<compile_context>
chip_gen: v5e
topology: v5e:2x2
jax: 0.10.0
libtpu: 0.0.40
codegen_flags: <defaults>
</compile_context>

<pallas_src>
import jax
import jax.numpy as jnp
from jax.experimental import pallas as pl
from jax.experimental.pallas import tpu as pltpu


def _round_up(x, m):
    return ((x + m - 1) // m) * m


# ---------------------------------------------------------------------------
# Tiled matmul + bias + activation (MXU)
# ---------------------------------------------------------------------------

def matmul_bias(a, b, bias, activation=None, out_dtype=jnp.float32):
    """C = act(A @ B + bias).  a:(M,K) b:(K,N) bias:(N,) -> (M,N) out_dtype.

    bf16 operands on the MXU, f32 accumulation in VMEM scratch, tiled grid,
    lane-dense (>=128) output tiles.
    """
    M, K = a.shape
    K2, N = b.shape
    assert K == K2

    # --- tile / padding selection ---
    if M >= 4096:
        tm = 512
    elif M >= 256:
        tm = 256
    else:
        tm = _round_up(M, 8)
    Mp = _round_up(M, tm)

    if K <= 512:
        Kp = _round_up(K, 8)
        tk = Kp                      # single K step, block == full dim
    else:
        Kp = _round_up(K, 128)
        if Kp % 512 == 0:
            tk = 512
        elif Kp % 256 == 0:
            tk = 256
        else:
            tk = 128

    Np = _round_up(N, 128)           # lane-dense output (no masked vst)
    if Np <= 256:
        tn = Np
    elif Np % 256 == 0:
        tn = 256
    else:
        tn = 128

    a_p = a.astype(jnp.bfloat16)
    b_p = b.astype(jnp.bfloat16)
    if (Mp, Kp) != (M, K):
        a_p = jnp.pad(a_p, ((0, Mp - M), (0, Kp - K)))
    if (Kp, Np) != (K, N):
        b_p = jnp.pad(b_p, ((0, Kp - K), (0, Np - N)))
    bias_p = bias.reshape(1, N).astype(jnp.float32)
    if Np != N:
        bias_p = jnp.pad(bias_p, ((0, 0), (0, Np - N)))

    nm, nn, nk = Mp // tm, Np // tn, Kp // tk
    out_bytes = 2 if out_dtype == jnp.bfloat16 else 4

    def kernel(a_ref, b_ref, bias_ref, o_ref, acc_ref):
        @pl.when(pl.program_id(2) == 0)
        def _():
            acc_ref[...] = jnp.zeros_like(acc_ref)

        acc_ref[...] += jnp.dot(a_ref[...], b_ref[...],
                                preferred_element_type=jnp.float32)

        @pl.when(pl.program_id(2) == nk - 1)
        def _():
            y = acc_ref[...] + bias_ref[...]
            if activation == "relu":
                y = jnp.maximum(y, 0.0)
            elif activation == "tanh":
                y = jnp.tanh(y)
            o_ref[...] = y.astype(o_ref.dtype)

    out = pl.pallas_call(
        kernel,
        out_shape=jax.ShapeDtypeStruct((Mp, Np), out_dtype),
        grid=(nm, nn, nk),
        in_specs=[
            pl.BlockSpec((tm, tk), lambda i, j, k: (i, k)),
            pl.BlockSpec((tk, tn), lambda i, j, k: (k, j)),
            pl.BlockSpec((1, tn), lambda i, j, k: (0, j)),
        ],
        out_specs=pl.BlockSpec((tm, tn), lambda i, j, k: (i, j)),
        scratch_shapes=[pltpu.VMEM((tm, tn), jnp.float32)],
        compiler_params=pltpu.CompilerParams(
            dimension_semantics=("parallel", "parallel", "arbitrary")),
        cost_estimate=pl.CostEstimate(
            flops=2 * Mp * Kp * Np,
            transcendentals=Mp * Np if activation == "tanh" else 0,
            bytes_accessed=2 * (nn * Mp * Kp + nm * Kp * Np)
            + out_bytes * Mp * Np),
    )(a_p, b_p, bias_p)

    if (Mp, Np) != (M, N):
        out = out[:M, :N]
    return out


# ---------------------------------------------------------------------------
# Fused 7x7 conv (+InstanceNorm+ReLU | +Tanh) kernel -- no 49x im2col
# ---------------------------------------------------------------------------

_CONV7_FUSE_LIMIT_BYTES = 8 * 1024 * 1024   # per-sample slab (bf16) + f32 acc


def conv7x7_fused(x, w, b, mode, gamma=None, beta=None, eps=1e-5,
                  out_dtype=jnp.bfloat16):
    """ReflectionPad(3) -> Conv2d(7x7, s=1) -> {IN+ReLU | Tanh}, fused.

    x: (N,H,W,Cin) -> (N,H,W,Cout).  Only a 7x "column slab" (W-shifted taps
    concatenated along channels, bf16) is materialized in HBM; the 7
    kernel-row matmuls and the epilogue run in-VMEM per sample.
    """
    N, H, W, Cin = x.shape
    Cout = w.shape[-1]
    HW = H * W
    K7 = 7 * Cin
    K7p = _round_up(K7, 16)
    HpW = (H + 6) * W
    slab_bytes = HpW * K7p * 2 + HW * Cout * 4
    fuse_in = (mode == "in_relu")

    if slab_bytes > _CONV7_FUSE_LIMIT_BYTES:
        # TODO(synk): halo-tile the H axis instead of falling back to im2col.
        xp = reflect_pad(x, 3)
        y = conv2d(xp, w, b,
                   activation="tanh" if mode == "tanh" else None,
                   out_dtype=jnp.bfloat16 if fuse_in else out_dtype)
        if fuse_in:
            y = instance_norm(y, gamma, beta, relu=True, out_dtype=out_dtype)
        return y

    xp = reflect_pad(x.astype(jnp.bfloat16), 3)            # (N, H+6, W+6, Cin)
    cols = jnp.concatenate([xp[:, :, j:j + W, :] for j in range(7)], axis=-1)
    cols = cols.reshape(N, HpW, K7)                         # bf16, 7x input
    wr = w.astype(jnp.bfloat16).reshape(7, K7, Cout)
    if K7p != K7:
        cols = jnp.pad(cols, ((0, 0), (0, 0), (0, K7p - K7)))
        wr = jnp.pad(wr, ((0, 0), (0, K7p - K7), (0, 0)))
    b2 = b.reshape(1, Cout).astype(jnp.float32)

    def kernel(*refs):
        if fuse_in:
            x_ref, w_ref, b_ref, g_ref, bt_ref, o_ref = refs
        else:
            x_ref, w_ref, b_ref, o_ref = refs
        v = x_ref[0]                                        # (HpW, K7p) bf16
        acc = jnp.zeros((HW, Cout), jnp.float32)
        for i in range(7):                                  # 7 kernel rows
            a_i = v[i * W:i * W + HW, :]                    # (HW, K7p)
            acc = acc + jnp.dot(a_i, w_ref[i],
                                preferred_element_type=jnp.float32)
        acc = acc + b_ref[...]
        if fuse_in:
            mean = jnp.mean(acc, axis=0, keepdims=True)
            cen = acc - mean
            var = jnp.mean(cen * cen, axis=0, keepdims=True)
            y = cen * jax.lax.rsqrt(var + eps) * g_ref[...] + bt_ref[...]
            y = jnp.maximum(y, 0.0)
        else:
            y = jnp.tanh(acc)
        o_ref[0] = y.astype(o_ref.dtype)

    in_specs = [
        pl.BlockSpec((1, HpW, K7p), lambda n: (n, 0, 0)),
        pl.BlockSpec((7, K7p, Cout), lambda n: (0, 0, 0)),
        pl.BlockSpec((1, Cout), lambda n: (0, 0)),
    ]
    args = [cols, wr, b2]
    if fuse_in:
        g2 = gamma.reshape(1, Cout).astype(jnp.float32)
        bt2 = beta.reshape(1, Cout).astype(jnp.float32)
        in_specs += [pl.BlockSpec((1, Cout), lambda n: (0, 0)),
                     pl.BlockSpec((1, Cout), lambda n: (0, 0))]
        args += [g2, bt2]

    out = pl.pallas_call(
        kernel,
        out_shape=jax.ShapeDtypeStruct((N, HW, Cout), out_dtype),
        grid=(N,),
        in_specs=in_specs,
        out_specs=pl.BlockSpec((1, HW, Cout), lambda n: (n, 0, 0)),
        compiler_params=pltpu.CompilerParams(dimension_semantics=("parallel",)),
    )(*args)
    return out.reshape(N, H, W, Cout)


# ---------------------------------------------------------------------------
# Fused depthwise-3x3 + InstanceNorm kernel (per sample, activations in VMEM)
# ---------------------------------------------------------------------------

def sepconv_dw_in(x, w, b, gamma, beta, eps=1e-5, out_dtype=jnp.bfloat16):
    """reflect-pad(1) -> depthwise 3x3 (stride 1) -> InstanceNorm, fused."""
    N, H, W, C = x.shape
    xp = jnp.pad(x.astype(jnp.bfloat16),
                 ((0, 0), (1, 1), (1, 1), (0, 0)), mode="reflect")
    b2 = b.reshape(1, C).astype(jnp.float32)
    g2 = gamma.reshape(1, C).astype(jnp.float32)
    bt2 = beta.reshape(1, C).astype(jnp.float32)

    def kernel(x_ref, w_ref, b_ref, g_ref, bt_ref, o_ref):
        v = x_ref[0].astype(jnp.float32)       # (H+2, W+2, C)
        wv = w_ref[...]                        # (3, 3, C)
        # Hoist the sublane (W) shifts out of the tap loop: 3 shifted views,
        # each reused by the 3 H-taps (H slices are free).
        vw = [v[:, j:j + W, :] for j in range(3)]
        acc = jnp.zeros((H, W, C), jnp.float32)
        for i in range(3):
            for j in range(3):
                acc = acc + vw[j][i:i + H] * wv[i, j, :]
        acc = acc + b_ref[...]
        mean = jnp.mean(jnp.mean(acc, axis=0, keepdims=True),
                        axis=1, keepdims=True)              # (1,1,C)
        cen = acc - mean
        var = jnp.mean(jnp.mean(cen * cen, axis=0, keepdims=True),
                       axis=1, keepdims=True)
        y = cen * jax.lax.rsqrt(var + eps) * g_ref[...] + bt_ref[...]
        o_ref[0] = y.astype(o_ref.dtype)

    return pl.pallas_call(
        kernel,
        out_shape=jax.ShapeDtypeStruct((N, H, W, C), out_dtype),
        grid=(N,),
        in_specs=[
            pl.BlockSpec((1, H + 2, W + 2, C), lambda n: (n, 0, 0, 0)),
            pl.BlockSpec((3, 3, C), lambda n: (0, 0, 0)),
            pl.BlockSpec((1, C), lambda n: (0, 0)),
            pl.BlockSpec((1, C), lambda n: (0, 0)),
            pl.BlockSpec((1, C), lambda n: (0, 0)),
        ],
        out_specs=pl.BlockSpec((1, H, W, C), lambda n: (n, 0, 0, 0)),
        compiler_params=pltpu.CompilerParams(dimension_semantics=("parallel",)),
    )(xp, w.astype(jnp.float32), b2, g2, bt2)


# ---------------------------------------------------------------------------
# Fused 1x1 conv + InstanceNorm (+ReLU) (+residual) kernel
# ---------------------------------------------------------------------------

def pointwise_in(x, w, b, gamma, beta, relu=False, residual=None, eps=1e-5,
                 out_dtype=jnp.bfloat16):
    """1x1 conv -> InstanceNorm (-> ReLU) (-> +residual), fused per sample."""
    N, H, W, Cin = x.shape
    Cout = w.shape[-1]
    HW = H * W
    xf = x.reshape(N, HW, Cin).astype(jnp.bfloat16)
    wm = w.reshape(Cin, Cout).astype(jnp.bfloat16)
    b2 = b.reshape(1, Cout).astype(jnp.float32)
    g2 = gamma.reshape(1, Cout).astype(jnp.float32)
    bt2 = beta.reshape(1, Cout).astype(jnp.float32)
    has_res = residual is not None
    rf = (None if residual is None
          else residual.reshape(N, HW, Cout).astype(jnp.bfloat16))

    def kernel(*refs):
        if has_res:
            x_ref, w_ref, b_ref, g_ref, bt_ref, r_ref, o_ref = refs
        else:
            x_ref, w_ref, b_ref, g_ref, bt_ref, o_ref = refs
        v = x_ref[0]                                            # (HW, Cin) bf16
        y = jnp.dot(v, w_ref[...],
                    preferred_element_type=jnp.float32) + b_ref[...]
        mean = jnp.mean(y, axis=0, keepdims=True)
        cen = y - mean
        var = jnp.mean(cen * cen, axis=0, keepdims=True)
        y = cen * jax.lax.rsqrt(var + eps) * g_ref[...] + bt_ref[...]
        if relu:
            y = jnp.maximum(y, 0.0)
        if has_res:
            y = y + r_ref[0].astype(jnp.float32)
        o_ref[0] = y.astype(o_ref.dtype)

    in_specs = [
        pl.BlockSpec((1, HW, Cin), lambda n: (n, 0, 0)),
        pl.BlockSpec((Cin, Cout), lambda n: (0, 0)),
        pl.BlockSpec((1, Cout), lambda n: (0, 0)),
        pl.BlockSpec((1, Cout), lambda n: (0, 0)),
        pl.BlockSpec((1, Cout), lambda n: (0, 0)),
    ]
    args = [xf, wm, b2, g2, bt2]
    if has_res:
        in_specs.append(pl.BlockSpec((1, HW, Cout), lambda n: (n, 0, 0)))
        args.append(rf)

    out = pl.pallas_call(
        kernel,
        out_shape=jax.ShapeDtypeStruct((N, HW, Cout), out_dtype),
        grid=(N,),
        in_specs=in_specs,
        out_specs=pl.BlockSpec((1, HW, Cout), lambda n: (n, 0, 0)),
        compiler_params=pltpu.CompilerParams(dimension_semantics=("parallel",)),
    )(*args)
    return out.reshape(N, H, W, Cout)


# ---------------------------------------------------------------------------
# Standalone InstanceNorm (downsample / upsample layers + fallback)
# ---------------------------------------------------------------------------

_IN_SINGLE_PASS_BYTES = 4 * 1024 * 1024   # per-sample bf16 activation slab
_IN_TILE_ROWS = 2048


def instance_norm(x, gamma, beta, relu=False, residual=None, eps=1e-5,
                  out_dtype=jnp.bfloat16):
    """InstanceNorm2d(affine=True) (+ReLU) (+residual), NHWC."""
    N, H, W, C = x.shape
    HW = H * W
    xf = x.reshape(N, HW, C).astype(jnp.bfloat16)
    g = gamma.reshape(1, C).astype(jnp.float32)
    bt = beta.reshape(1, C).astype(jnp.float32)
    has_res = residual is not None
    rf = (None if residual is None
          else residual.reshape(N, HW, C).astype(jnp.bfloat16))

    if HW * C * 2 <= _IN_SINGLE_PASS_BYTES:
        def kernel(*refs):
            if has_res:
                x_ref, g_ref, b_ref, r_ref, o_ref = refs
            else:
                x_ref, g_ref, b_ref, o_ref = refs
            v = x_ref[0].astype(jnp.float32)               # (HW, C)
            mean = jnp.mean(v, axis=0, keepdims=True)
            cen = v - mean
            var = jnp.mean(cen * cen, axis=0, keepdims=True)
            y = cen * jax.lax.rsqrt(var + eps) * g_ref[...] + b_ref[...]
            if relu:
                y = jnp.maximum(y, 0.0)
            if has_res:
                y = y + r_ref[0].astype(jnp.float32)
            o_ref[0] = y.astype(o_ref.dtype)

        in_specs = [pl.BlockSpec((1, HW, C), lambda n: (n, 0, 0)),
                    pl.BlockSpec((1, C), lambda n: (0, 0)),
                    pl.BlockSpec((1, C), lambda n: (0, 0))]
        args = [xf, g, bt]
        if has_res:
            in_specs.append(pl.BlockSpec((1, HW, C), lambda n: (n, 0, 0)))
            args.append(rf)
        out = pl.pallas_call(
            kernel,
            out_shape=jax.ShapeDtypeStruct((N, HW, C), out_dtype),
            grid=(N,),
            in_specs=in_specs,
            out_specs=pl.BlockSpec((1, HW, C), lambda n: (n, 0, 0)),
            compiler_params=pltpu.CompilerParams(
                dimension_semantics=("parallel",)),
        )(*args)
        return out.reshape(N, H, W, C)

    # ---- large H*W: two-pass, HW tiled on an "arbitrary" grid axis ----
    # NOTE: var = E[x^2] - E[x]^2 in f32 (clamped to >=0); acceptable here.
    thw = _IN_TILE_ROWS
    HWp = _round_up(HW, thw)
    xf_p = jnp.pad(xf, ((0, 0), (0, HWp - HW), (0, 0))) if HWp != HW else xf
    rf_p = None
    if has_res:
        rf_p = (jnp.pad(rf, ((0, 0), (0, HWp - HW), (0, 0)))
                if HWp != HW else rf)
    nt = HWp // thw
    inv_hw = 1.0 / float(HW)

    def stats_kernel(x_ref, s_ref):
        t = pl.program_id(1)

        @pl.when(t == 0)
        def _():
            s_ref[...] = jnp.zeros_like(s_ref)

        v = x_ref[0].astype(jnp.float32)
        s1 = jnp.sum(v, axis=0, keepdims=True)
        s2 = jnp.sum(v * v, axis=0, keepdims=True)
        s_ref[0] = s_ref[0] + jnp.concatenate([s1, s2], axis=0)

        @pl.when(t == nt - 1)
        def _():
            s = s_ref[0]
            mean = s[0:1] * inv_hw
            var = jnp.maximum(s[1:2] * inv_hw - mean * mean, 0.0)
            s_ref[0] = jnp.concatenate([mean, var], axis=0)

    stats = pl.pallas_call(
        stats_kernel,
        out_shape=jax.ShapeDtypeStruct((N, 2, C), jnp.float32),
        grid=(N, nt),
        in_specs=[pl.BlockSpec((1, thw, C), lambda n, t: (n, t, 0))],
        out_specs=pl.BlockSpec((1, 2, C), lambda n, t: (n, 0, 0)),
        compiler_params=pltpu.CompilerParams(
            dimension_semantics=("parallel", "arbitrary")),
    )(xf_p)

    def apply_kernel(*refs):
        if has_res:
            x_ref, s_ref, g_ref, b_ref, r_ref, o_ref = refs
        else:
            x_ref, s_ref, g_ref, b_ref, o_ref = refs
        v = x_ref[0].astype(jnp.float32)
        s = s_ref[0]
        y = (v - s[0:1]) * jax.lax.rsqrt(s[1:2] + eps) * g_ref[...] + b_ref[...]
        if relu:
            y = jnp.maximum(y, 0.0)
        if has_res:
            y = y + r_ref[0].astype(jnp.float32)
        o_ref[0] = y.astype(o_ref.dtype)

    in_specs = [pl.BlockSpec((1, thw, C), lambda n, t: (n, t, 0)),
                pl.BlockSpec((1, 2, C), lambda n, t: (n, 0, 0)),
                pl.BlockSpec((1, C), lambda n, t: (0, 0)),
                pl.BlockSpec((1, C), lambda n, t: (0, 0))]
    args = [xf_p, stats, g, bt]
    if has_res:
        in_specs.append(pl.BlockSpec((1, thw, C), lambda n, t: (n, t, 0)))
        args.append(rf_p)
    out = pl.pallas_call(
        apply_kernel,
        out_shape=jax.ShapeDtypeStruct((N, HWp, C), out_dtype),
        grid=(N, nt),
        in_specs=in_specs,
        out_specs=pl.BlockSpec((1, thw, C), lambda n, t: (n, t, 0)),
        compiler_params=pltpu.CompilerParams(
            dimension_semantics=("parallel", "parallel")),
    )(*args)
    if HWp != HW:
        out = out[:, :HW, :]
    return out.reshape(N, H, W, C)


# ---------------------------------------------------------------------------
# Standalone depthwise conv (only used by the large-spatial fallback path)
# ---------------------------------------------------------------------------

def depthwise_conv3x3(x_pad, w, b, out_dtype=jnp.bfloat16):
    """Depthwise 3x3, stride 1, on an already-padded NHWC input."""
    N, Hp, Wp, C = x_pad.shape
    H, W = Hp - 2, Wp - 2
    b2 = b.reshape(1, C).astype(jnp.float32)

    def kernel(x_ref, w_ref, b_ref, o_ref):
        v = x_ref[0].astype(jnp.float32)
        wv = w_ref[...]
        vw = [v[:, j:j + W, :] for j in range(3)]
        acc = jnp.zeros((H, W, C), jnp.float32)
        for i in range(3):
            for j in range(3):
                acc = acc + vw[j][i:i + H] * wv[i, j, :]
        o_ref[0] = (acc + b_ref[...]).astype(o_ref.dtype)

    return pl.pallas_call(
        kernel,
        out_shape=jax.ShapeDtypeStruct((N, H, W, C), out_dtype),
        grid=(N,),
        in_specs=[
            pl.BlockSpec((1, Hp, Wp, C), lambda n: (n, 0, 0, 0)),
            pl.BlockSpec((3, 3, C), lambda n: (0, 0, 0)),
            pl.BlockSpec((1, C), lambda n: (0, 0)),
        ],
        out_specs=pl.BlockSpec((1, H, W, C), lambda n: (n, 0, 0, 0)),
        compiler_params=pltpu.CompilerParams(dimension_semantics=("parallel",)),
    )(x_pad.astype(jnp.bfloat16), w.astype(jnp.float32), b2)


# ---------------------------------------------------------------------------
# Plain-JAX glue: padding, im2col, sub-pixel transposed conv
# ---------------------------------------------------------------------------

def reflect_pad(x, p):
    return jnp.pad(x, ((0, 0), (p, p), (p, p), (0, 0)), mode="reflect")


def _extract_patches(x, kh, kw, stride):
    N, H, W, C = x.shape
    oh = (H - kh) // stride + 1
    ow = (W - kw) // stride + 1
    cols = []
    for i in range(kh):
        for j in range(kw):
            cols.append(x[:, i:i + stride * oh:stride, j:j + stride * ow:stride, :])
    patches = jnp.stack(cols, axis=3)                  # (N, oh, ow, kh*kw, C)
    return patches.reshape(N, oh, ow, kh * kw * C), oh, ow


def conv2d(x, w, b, stride=1, padding=0, activation=None,
           out_dtype=jnp.float32):
    """Standard conv (zero pad), NHWC activations, (KH,KW,Cin,Cout) weights.

    im2col patches are materialized in bf16 (half the HBM traffic)."""
    kh, kw, cin, cout = w.shape
    xb = x.astype(jnp.bfloat16)
    if padding > 0:
        xb = jnp.pad(xb, ((0, 0), (padding, padding), (padding, padding), (0, 0)))
    patches, oh, ow = _extract_patches(xb, kh, kw, stride)
    N = xb.shape[0]
    a = patches.reshape(N * oh * ow, kh * kw * cin)
    wm = w.reshape(kh * kw * cin, cout)
    out = matmul_bias(a, wm, b, activation=activation, out_dtype=out_dtype)
    return out.reshape(N, oh, ow, cout)


def conv_transpose2d(x, w_t, b, out_dtype=jnp.bfloat16):
    """ConvTranspose2d(k=3, stride=2, padding=1, output_padding=1).

    Single merged sub-pixel matmul: A = [x00|x01|x10|x11] (K=4*Cin) against a
    block-structured (4*Cin, 4*Cout) weight (zeros for unused taps), so the
    MXU sees a lane-dense N and x is read from HBM once.

    w_t: (3,3,Cin,Cout) in ConvTranspose tap layout, i.e. for a torch
    checkpoint w_t[ky,kx,ci,co] = weight.permute(2,3,0,1)[ky,kx,ci,co].
    """
    N, H, W, C = x.shape
    cout = w_t.shape[-1]
    xb = x.astype(jnp.bfloat16)
    xp = jnp.pad(xb, ((0, 0), (0, 1), (0, 1), (0, 0)))   # zero row/col (bottom/right)
    x00 = xb                             # x[m,   p  ]
    x01 = xp[:, :H, 1:W + 1, :]          # x[m,   p+1]
    x10 = xp[:, 1:H + 1, :W, :]          # x[m+1, p  ]
    x11 = xp[:, 1:H + 1, 1:W + 1, :]     # x[m+1, p+1]
    a = jnp.concatenate([x00, x01, x10, x11], axis=-1).reshape(N * H * W, 4 * C)

    z = jnp.zeros((C, cout), w_t.dtype)
    w00, w01, w02 = w_t[0, 0], w_t[0, 1], w_t[0, 2]
    w10, w11, w12 = w_t[1, 0], w_t[1, 1], w_t[1, 2]
    w20, w21, w22 = w_t[2, 0], w_t[2, 1], w_t[2, 2]
    # rows: input slabs [x00, x01, x10, x11]; cols: output phases [ee, eo, oe, oo]
    wm = jnp.concatenate([
        jnp.concatenate([w11, w12, w21, w22], axis=1),
        jnp.concatenate([z,   w10, z,   w20], axis=1),
        jnp.concatenate([z,   z,   w01, w02], axis=1),
        jnp.concatenate([z,   z,   z,   w00], axis=1),
    ], axis=0)                                            # (4C, 4*cout)
    bm = jnp.tile(b, 4)                                   # (4*cout,)

    y = matmul_bias(a, wm, bm, out_dtype=out_dtype)       # (N*H*W, 4*cout)
    y = y.reshape(N, H, W, 2, 2, cout)
    y = jnp.transpose(y, (0, 1, 3, 2, 4, 5)).reshape(N, 2 * H, 2 * W, cout)
    return y


# ---------------------------------------------------------------------------
# MobileResnetBlock (fused path + large-spatial fallback)
# ---------------------------------------------------------------------------

_BLOCK_FUSE_LIMIT_BYTES = 4 * 1024 * 1024   # per-sample bf16 activation slab


def mobile_resnet_block(x, blk):
    N, H, W, ic = x.shape
    oc = blk["pw1_w"].shape[-1]
    if H * W * max(ic, oc) * 2 <= _BLOCK_FUSE_LIMIT_BYTES:
        h = sepconv_dw_in(x, blk["dw1_w"], blk["dw1_b"], *blk["norm_a"])
        h = pointwise_in(h, blk["pw1_w"], blk["pw1_b"], *blk["norm_b"], relu=True)
        # nn.Dropout(dropout_rate=0) is the identity in forward.
        h = sepconv_dw_in(h, blk["dw2_w"], blk["dw2_b"], *blk["norm_c"])
        return pointwise_in(h, blk["pw2_w"], blk["pw2_b"], *blk["norm_d"],
                            residual=x)

    # TODO(synk): halo-tiled depthwise kernel for very large spatial sizes.
    res = x
    h = reflect_pad(x.astype(jnp.bfloat16), 1)
    h = depthwise_conv3x3(h, blk["dw1_w"], blk["dw1_b"])
    h = instance_norm(h, *blk["norm_a"])
    h = conv2d(h, blk["pw1_w"], blk["pw1_b"], out_dtype=jnp.bfloat16)
    h = instance_norm(h, *blk["norm_b"], relu=True)
    h = reflect_pad(h, 1)
    h = depthwise_conv3x3(h, blk["dw2_w"], blk["dw2_b"])
    h = instance_norm(h, *blk["norm_c"])
    h = conv2d(h, blk["pw2_w"], blk["pw2_b"], out_dtype=jnp.bfloat16)
    return instance_norm(h, *blk["norm_d"], residual=res)


# ---------------------------------------------------------------------------
# Parameter init (deterministic, synthetic — no checkpoint loading)
# ---------------------------------------------------------------------------

DEFAULT_DIM_LST = [16, 32, 128] + [128, 64, 64, 64, 128, 128, 128, 128, 128] + [128, 32, 16]


def init_params(key, input_nc=3, output_nc=3, dim_lst=None, n_blocks=9):
    if dim_lst is None:
        dim_lst = DEFAULT_DIM_LST
    assert len(dim_lst) == 6 + n_blocks
    keys = iter(jax.random.split(key, 512))

    def conv_w(kh, kw, cin, cout):
        return 0.05 * jax.random.normal(next(keys), (kh, kw, cin, cout), jnp.float32)

    def dw_w(c):
        return 0.05 * jax.random.normal(next(keys), (3, 3, c), jnp.float32)

    def bias(c):
        return 0.01 * jax.random.normal(next(keys), (c,), jnp.float32)

    def norm(c):
        g = 1.0 + 0.1 * jax.random.normal(next(keys), (c,), jnp.float32)
        b = 0.1 * jax.random.normal(next(keys), (c,), jnp.float32)
        return (g, b)

    p = {}
    p["conv1_w"] = conv_w(7, 7, input_nc, dim_lst[0]); p["conv1_b"] = bias(dim_lst[0])
    p["in1"] = norm(dim_lst[0])
    p["conv2_w"] = conv_w(3, 3, dim_lst[0], dim_lst[1]); p["conv2_b"] = bias(dim_lst[1])
    p["in2"] = norm(dim_lst[1])
    p["conv3_w"] = conv_w(3, 3, dim_lst[1], dim_lst[2]); p["conv3_b"] = bias(dim_lst[2])
    p["in3"] = norm(dim_lst[2])

    ic = dim_lst[2]
    blocks = []
    for i in range(n_blocks):
        oc = dim_lst[i + 4]
        blocks.append(dict(
            dw1_w=dw_w(ic), dw1_b=bias(ic), norm_a=norm(ic),
            pw1_w=conv_w(1, 1, ic, oc), pw1_b=bias(oc), norm_b=norm(oc),
            dw2_w=dw_w(oc), dw2_b=bias(oc), norm_c=norm(oc),
            pw2_w=conv_w(1, 1, oc, ic), pw2_b=bias(ic), norm_d=norm(ic),
        ))
    p["blocks"] = blocks

    # ConvTranspose weights stored in tap layout (ky,kx,ci,co)
    # == torch ConvTranspose2d weight.permute(2,3,0,1).
    p["up1_w"] = conv_w(3, 3, dim_lst[3 + n_blocks], dim_lst[4 + n_blocks])
    p["up1_b"] = bias(dim_lst[4 + n_blocks]); p["in_up1"] = norm(dim_lst[4 + n_blocks])
    p["up2_w"] = conv_w(3, 3, dim_lst[4 + n_blocks], dim_lst[5 + n_blocks])
    p["up2_b"] = bias(dim_lst[5 + n_blocks]); p["in_up2"] = norm(dim_lst[5 + n_blocks])
    p["conv_out_w"] = conv_w(7, 7, dim_lst[5 + n_blocks], output_nc)
    p["conv_out_b"] = bias(output_nc)
    return p


# ---------------------------------------------------------------------------
# Forward pass (SubMobileResnetGenerator, padding_type='reflect',
# dropout_rate=0, n_residual_blocks=9, alpha=1)
# ---------------------------------------------------------------------------

def forward(params, x_nchw):
    x = jnp.transpose(x_nchw, (0, 2, 3, 1)).astype(jnp.float32)   # NCHW -> NHWC

    # stem: ReflectionPad(3) -> Conv7x7 -> IN -> ReLU  (one fused kernel)
    x = conv7x7_fused(x, params["conv1_w"], params["conv1_b"], mode="in_relu",
                      gamma=params["in1"][0], beta=params["in1"][1])
    # 2x downsampling convs (bf16 im2col, lane-dense matmul, bf16 out -> IN)
    x = conv2d(x, params["conv2_w"], params["conv2_b"], stride=2, padding=1,
               out_dtype=jnp.bfloat16)
    x = instance_norm(x, *params["in2"], relu=True)
    x = conv2d(x, params["conv3_w"], params["conv3_b"], stride=2, padding=1,
               out_dtype=jnp.bfloat16)
    x = instance_norm(x, *params["in3"], relu=True)

    # MobileResnetBlocks (4 fused Pallas kernels each)
    for blk in params["blocks"]:
        x = mobile_resnet_block(x, blk)

    # 2x upsampling transposed convs (merged sub-pixel matmul)
    x = conv_transpose2d(x, params["up1_w"], params["up1_b"])
    x = instance_norm(x, *params["in_up1"], relu=True)
    x = conv_transpose2d(x, params["up2_w"], params["up2_b"])
    x = instance_norm(x, *params["in_up2"], relu=True)

    # head: ReflectionPad(3) -> Conv7x7 -> Tanh  (one fused kernel, f32 out)
    x = conv7x7_fused(x, params["conv_out_w"], params["conv_out_b"],
                      mode="tanh", out_dtype=jnp.float32)
    return jnp.transpose(x, (0, 3, 1, 2))                         # NHWC -> NCHW


# ---------------------------------------------------------------------------
# Main
# ---------------------------------------------------------------------------

if __name__ == "__main__":
    key = jax.random.PRNGKey(0)
    k_param, k_in = jax.random.split(key)

    input_nc, output_nc = 3, 3
    batch, spatial = 2, 16

    params = init_params(k_param, input_nc=input_nc, output_nc=output_nc)
    x = jax.random.normal(k_in, (batch, input_nc, spatial, spatial), jnp.float32)

    fwd = jax.jit(forward)
    out = fwd(params, x)
    out = jax.block_until_ready(out)

    assert out.shape == (batch, output_nc, spatial, spatial), out.shape
    assert bool(jnp.all(jnp.isfinite(out)))
    assert bool(jnp.all(jnp.abs(out) <= 1.0 + 1e-6))   # tanh output range
    print("KERNEL_OK")
</pallas_src>

<mosaic_0001>
module attributes {stable_mosaic.version = 11 : i64} {
  func.func @kernel(%arg0: i32, %arg1: memref<1x352x32xbf16, #tpu.memory_space<vmem>>, %arg2: memref<7x32x16xbf16, #tpu.memory_space<vmem>>, %arg3: memref<1x16xf32, #tpu.memory_space<vmem>>, %arg4: memref<1x16xf32, #tpu.memory_space<vmem>>, %arg5: memref<1x16xf32, #tpu.memory_space<vmem>>, %arg6: memref<1x256x16xbf16, #tpu.memory_space<vmem>>) attributes {dimension_semantics = [#tpu.dimension_semantics<parallel>], iteration_bounds = array<i64: 2>, scalar_prefetch = 0 : i64, scratch_operands = 0 : i64, tpu.core_type = #tpu.core_type<tc>, window_params = [{transform_indices = @transform_0, window_bounds = array<i64: 1, 352, 32>}, {pipeline_mode = #tpu.pipeline_mode<synchronous>, transform_indices = @transform_1, window_bounds = array<i64: 7, 32, 16>}, {pipeline_mode = #tpu.pipeline_mode<synchronous>, transform_indices = @transform_2, window_bounds = array<i64: 1, 16>}, {pipeline_mode = #tpu.pipeline_mode<synchronous>, transform_indices = @transform_3, window_bounds = array<i64: 1, 16>}, {pipeline_mode = #tpu.pipeline_mode<synchronous>, transform_indices = @transform_4, window_bounds = array<i64: 1, 16>}, {transform_indices = @transform_5, window_bounds = array<i64: 1, 256, 16>}]} {
    %c0 = arith.constant 0 : index
    %c0_0 = arith.constant 0 : index
    %c0_1 = arith.constant 0 : index
    %0 = vector.load %arg1[%c0, %c0_0, %c0_1] : memref<1x352x32xbf16, #tpu.memory_space<vmem>>, vector<1x352x32xbf16>
    %1 = vector.shape_cast %0 : vector<1x352x32xbf16> to vector<352x32xbf16>
    %cst = arith.constant 0.000000e+00 : f32
    %2 = vector.broadcast %cst : f32 to vector<256x16xf32>
    %3 = vector.extract_strided_slice %1 {offsets = [0, 0], sizes = [256, 32], strides = [1, 1]} : vector<352x32xbf16> to vector<256x32xbf16>
    %c0_2 = arith.constant 0 : index
    %c0_3 = arith.constant 0 : index
    %c0_4 = arith.constant 0 : index
    %4 = vector.load %arg2[%c0_2, %c0_3, %c0_4] : memref<7x32x16xbf16, #tpu.memory_space<vmem>>, vector<1x32x16xbf16>
    %5 = vector.shape_cast %4 : vector<1x32x16xbf16> to vector<32x16xbf16>
    %cst_5 = arith.constant dense<0.000000e+00> : vector<256x16xf32>
    %6 = tpu.matmul %3, %5, %cst_5 {dimension_numbers = #tpu.dot_dimension_numbers<[1], [0], [0], [1], [0, 0, 1, 1], [], []>} : vector<256x32xbf16>, vector<32x16xbf16>, vector<256x16xf32> -> vector<256x16xf32>
    %7 = arith.addf %2, %6 : vector<256x16xf32>
    %8 = vector.extract_strided_slice %1 {offsets = [16, 0], sizes = [256, 32], strides = [1, 1]} : vector<352x32xbf16> to vector<256x32xbf16>
    %c1 = arith.constant 1 : index
    %c0_6 = arith.constant 0 : index
    %c0_7 = arith.constant 0 : index
    %9 = vector.load %arg2[%c1, %c0_6, %c0_7] : memref<7x32x16xbf16, #tpu.memory_space<vmem>>, vector<1x32x16xbf16>
    %10 = vector.shape_cast %9 : vector<1x32x16xbf16> to vector<32x16xbf16>
    %cst_8 = arith.constant dense<0.000000e+00> : vector<256x16xf32>
    %11 = tpu.matmul %8, %10, %cst_8 {dimension_numbers = #tpu.dot_dimension_numbers<[1], [0], [0], [1], [0, 0, 1, 1], [], []>} : vector<256x32xbf16>, vector<32x16xbf16>, vector<256x16xf32> -> vector<256x16xf32>
    %12 = arith.addf %7, %11 : vector<256x16xf32>
    %13 = vector.extract_strided_slice %1 {offsets = [32, 0], sizes = [256, 32], strides = [1, 1]} : vector<352x32xbf16> to vector<256x32xbf16>
    %c2 = arith.constant 2 : index
    %c0_9 = arith.constant 0 : index
    %c0_10 = arith.constant 0 : index
    %14 = vector.load %arg2[%c2, %c0_9, %c0_10] : memref<7x32x16xbf16, #tpu.memory_space<vmem>>, vector<1x32x16xbf16>
    %15 = vector.shape_cast %14 : vector<1x32x16xbf16> to vector<32x16xbf16>
    %cst_11 = arith.constant dense<0.000000e+00> : vector<256x16xf32>
    %16 = tpu.matmul %13, %15, %cst_11 {dimension_numbers = #tpu.dot_dimension_numbers<[1], [0], [0], [1], [0, 0, 1, 1], [], []>} : vector<256x32xbf16>, vector<32x16xbf16>, vector<256x16xf32> -> vector<256x16xf32>
    %17 = arith.addf %12, %16 : vector<256x16xf32>
    %18 = vector.extract_strided_slice %1 {offsets = [48, 0], sizes = [256, 32], strides = [1, 1]} : vector<352x32xbf16> to vector<256x32xbf16>
    %c3 = arith.constant 3 : index
    %c0_12 = arith.constant 0 : index
    %c0_13 = arith.constant 0 : index
    %19 = vector.load %arg2[%c3, %c0_12, %c0_13] : memref<7x32x16xbf16, #tpu.memory_space<vmem>>, vector<1x32x16xbf16>
    %20 = vector.shape_cast %19 : vector<1x32x16xbf16> to vector<32x16xbf16>
    %cst_14 = arith.constant dense<0.000000e+00> : vector<256x16xf32>
    %21 = tpu.matmul %18, %20, %cst_14 {dimension_numbers = #tpu.dot_dimension_numbers<[1], [0], [0], [1], [0, 0, 1, 1], [], []>} : vector<256x32xbf16>, vector<32x16xbf16>, vector<256x16xf32> -> vector<256x16xf32>
    %22 = arith.addf %17, %21 : vector<256x16xf32>
    %23 = vector.extract_strided_slice %1 {offsets = [64, 0], sizes = [256, 32], strides = [1, 1]} : vector<352x32xbf16> to vector<256x32xbf16>
    %c4 = arith.constant 4 : index
    %c0_15 = arith.constant 0 : index
    %c0_16 = arith.constant 0 : index
    %24 = vector.load %arg2[%c4, %c0_15, %c0_16] : memref<7x32x16xbf16, #tpu.memory_space<vmem>>, vector<1x32x16xbf16>
    %25 = vector.shape_cast %24 : vector<1x32x16xbf16> to vector<32x16xbf16>
    %cst_17 = arith.constant dense<0.000000e+00> : vector<256x16xf32>
    %26 = tpu.matmul %23, %25, %cst_17 {dimension_numbers = #tpu.dot_dimension_numbers<[1], [0], [0], [1], [0, 0, 1, 1], [], []>} : vector<256x32xbf16>, vector<32x16xbf16>, vector<256x16xf32> -> vector<256x16xf32>
    %27 = arith.addf %22, %26 : vector<256x16xf32>
    %28 = vector.extract_strided_slice %1 {offsets = [80, 0], sizes = [256, 32], strides = [1, 1]} : vector<352x32xbf16> to vector<256x32xbf16>
    %c5 = arith.constant 5 : index
    %c0_18 = arith.constant 0 : index
    %c0_19 = arith.constant 0 : index
    %29 = vector.load %arg2[%c5, %c0_18, %c0_19] : memref<7x32x16xbf16, #tpu.memory_space<vmem>>, vector<1x32x16xbf16>
    %30 = vector.shape_cast %29 : vector<1x32x16xbf16> to vector<32x16xbf16>
    %cst_20 = arith.constant dense<0.000000e+00> : vector<256x16xf32>
    %31 = tpu.matmul %28, %30, %cst_20 {dimension_numbers = #tpu.dot_dimension_numbers<[1], [0], [0], [1], [0, 0, 1, 1], [], []>} : vector<256x32xbf16>, vector<32x16xbf16>, vector<256x16xf32> -> vector<256x16xf32>
    %32 = arith.addf %27, %31 : vector<256x16xf32>
    %33 = vector.extract_strided_slice %1 {offsets = [96, 0], sizes = [256, 32], strides = [1, 1]} : vector<352x32xbf16> to vector<256x32xbf16>
    %c6 = arith.constant 6 : index
    %c0_21 = arith.constant 0 : index
    %c0_22 = arith.constant 0 : index
    %34 = vector.load %arg2[%c6, %c0_21, %c0_22] : memref<7x32x16xbf16, #tpu.memory_space<vmem>>, vector<1x32x16xbf16>
    %35 = vector.shape_cast %34 : vector<1x32x16xbf16> to vector<32x16xbf16>
    %cst_23 = arith.constant dense<0.000000e+00> : vector<256x16xf32>
    %36 = tpu.matmul %33, %35, %cst_23 {dimension_numbers = #tpu.dot_dimension_numbers<[1], [0], [0], [1], [0, 0, 1, 1], [], []>} : vector<256x32xbf16>, vector<32x16xbf16>, vector<256x16xf32> -> vector<256x16xf32>
    %37 = arith.addf %32, %36 : vector<256x16xf32>
    %c0_24 = arith.constant 0 : index
    %c0_25 = arith.constant 0 : index
    %38 = vector.load %arg3[%c0_24, %c0_25] : memref<1x16xf32, #tpu.memory_space<vmem>>, vector<1x16xf32>
    %39 = vector.broadcast %38 : vector<1x16xf32> to vector<256x16xf32>
    %40 = arith.addf %37, %39 : vector<256x16xf32>
    %cst_26 = arith.constant dense<0.000000e+00> : vector<16xf32>
    %41 = vector.multi_reduction <add>, %40, %cst_26 [0] : vector<256x16xf32> to vector<16xf32>
    %42 = vector.shape_cast %41 : vector<16xf32> to vector<1x16xf32>
    %cst_27 = arith.constant 2.560000e+02 : f32
    %43 = vector.broadcast %cst_27 : f32 to vector<1x16xf32>
    %44 = arith.divf %42, %43 : vector<1x16xf32>
    %45 = vector.broadcast %44 : vector<1x16xf32> to vector<256x16xf32>
    %46 = arith.subf %40, %45 : vector<256x16xf32>
    %47 = arith.mulf %46, %46 : vector<256x16xf32>
    %cst_28 = arith.constant dense<0.000000e+00> : vector<16xf32>
    %48 = vector.multi_reduction <add>, %47, %cst_28 [0] : vector<256x16xf32> to vector<16xf32>
    %49 = vector.shape_cast %48 : vector<16xf32> to vector<1x16xf32>
    %cst_29 = arith.constant 2.560000e+02 : f32
    %50 = vector.broadcast %cst_29 : f32 to vector<1x16xf32>
    %51 = arith.divf %49, %50 : vector<1x16xf32>
    %cst_30 = arith.constant 9.99999974E-6 : f32
    %52 = vector.broadcast %cst_30 : f32 to vector<1x16xf32>
    %53 = arith.addf %51, %52 : vector<1x16xf32>
    %54 = math.rsqrt %53 : vector<1x16xf32>
    %55 = vector.broadcast %54 : vector<1x16xf32> to vector<256x16xf32>
    %56 = arith.mulf %46, %55 : vector<256x16xf32>
    %c0_31 = arith.constant 0 : index
    %c0_32 = arith.constant 0 : index
    %57 = vector.load %arg4[%c0_31, %c0_32] : memref<1x16xf32, #tpu.memory_space<vmem>>, vector<1x16xf32>
    %58 = vector.broadcast %57 : vector<1x16xf32> to vector<256x16xf32>
    %59 = arith.mulf %56, %58 : vector<256x16xf32>
    %c0_33 = arith.constant 0 : index
    %c0_34 = arith.constant 0 : index
    %60 = vector.load %arg5[%c0_33, %c0_34] : memref<1x16xf32, #tpu.memory_space<vmem>>, vector<1x16xf32>
    %61 = vector.broadcast %60 : vector<1x16xf32> to vector<256x16xf32>
    %62 = arith.addf %59, %61 : vector<256x16xf32>
    %cst_35 = arith.constant 0.000000e+00 : f32
    %63 = vector.broadcast %cst_35 : f32 to vector<256x16xf32>
    %64 = arith.maximumf %62, %63 : vector<256x16xf32>
    %65 = arith.truncf %64 : vector<256x16xf32> to vector<256x16xbf16>
    %c0_36 = arith.constant 0 : index
    %c0_37 = arith.constant 0 : index
    %c0_38 = arith.constant 0 : index
    %66 = vector.load %arg6[%c0_36, %c0_37, %c0_38] : memref<1x256x16xbf16, #tpu.memory_space<vmem>>, vector<1x256x16xbf16>
    %67 = vector.shape_cast %66 : vector<1x256x16xbf16> to vector<256x16xbf16>
    %68 = vector.shape_cast %65 : vector<256x16xbf16> to vector<1x256x16xbf16>
    tpu.vector_store %arg6[%c0_36, %c0_37, %c0_38], %68 {strides = array<i32>} : memref<1x256x16xbf16, #tpu.memory_space<vmem>>, vector<1x256x16xbf16>,
    return
  }
  func.func @transform_0(%arg0: i32) -> (i32, i32, i32) {
    %c0_i32 = arith.constant 0 : i32
    %c0_i32_0 = arith.constant 0 : i32
    %c0_i32_1 = arith.constant 0 : i32
    return %arg0, %c0_i32, %c0_i32_0 : i32, i32, i32
  }
  func.func @transform_1(%arg0: i32) -> (i32, i32, i32) {
    %c0_i32 = arith.constant 0 : i32
    %c0_i32_0 = arith.constant 0 : i32
    %c0_i32_1 = arith.constant 0 : i32
    %c0_i32_2 = arith.constant 0 : i32
    return %c0_i32, %c0_i32_0, %c0_i32_1 : i32, i32, i32
  }
  func.func @transform_2(%arg0: i32) -> (i32, i32) {
    %c0_i32 = arith.constant 0 : i32
    %c0_i32_0 = arith.constant 0 : i32
    %c0_i32_1 = arith.constant 0 : i32
    return %c0_i32, %c0_i32_0 : i32, i32
  }
  func.func @transform_3(%arg0: i32) -> (i32, i32) {
    %c0_i32 = arith.constant 0 : i32
    %c0_i32_0 = arith.constant 0 : i32
    %c0_i32_1 = arith.constant 0 : i32
    return %c0_i32, %c0_i32_0 : i32, i32
  }
  func.func @transform_4(%arg0: i32) -> (i32, i32) {
    %c0_i32 = arith.constant 0 : i32
    %c0_i32_0 = arith.constant 0 : i32
    %c0_i32_1 = arith.constant 0 : i32
    return %c0_i32, %c0_i32_0 : i32, i32
  }
  func.func @transform_5(%arg0: i32) -> (i32, i32, i32) {
    %c0_i32 = arith.constant 0 : i32
    %c0_i32_0 = arith.constant 0 : i32
    %c0_i32_1 = arith.constant 0 : i32
    return %arg0, %c0_i32, %c0_i32_0 : i32, i32, i32
  }
}

module attributes {stable_mosaic.version = 11 : i64} {
  func.func @kernel(%arg0: i32, %arg1: i32, %arg2: i32, %arg3: memref<128x144xbf16, #tpu.memory_space<vmem>>, %arg4: memref<144x128xbf16, #tpu.memory_space<vmem>>, %arg5: memref<1x128xf32, #tpu.memory_space<vmem>>, %arg6: memref<128x128xbf16, #tpu.memory_space<vmem>>, %arg7: memref<128x128xf32, #tpu.memory_space<vmem>>) attributes {dimension_semantics = [#tpu.dimension_semantics<parallel>, #tpu.dimension_semantics<parallel>, #tpu.dimension_semantics<arbitrary>], iteration_bounds = array<i64: 1, 1, 1>, scalar_prefetch = 0 : i64, scratch_operands = 1 : i64, tpu.core_type = #tpu.core_type<tc>, window_params = [{transform_indices = @transform_0, window_bounds = array<i64: 128, 144>}, {transform_indices = @transform_1, window_bounds = array<i64: 144, 128>}, {transform_indices = @transform_2, window_bounds = array<i64: 1, 128>}, {transform_indices = @transform_3, window_bounds = array<i64: 128, 128>}]} {
    %c0_i32 = arith.constant 0 : i32
    %0 = arith.cmpi eq, %arg2, %c0_i32 : i32
    %1 = arith.extui %0 : i1 to i32
    %c0_i32_0 = arith.constant 0 : i32
    %2 = arith.cmpi ne, %1, %c0_i32_0 : i32
    scf.if %2 {
      %cst_10 = arith.constant 0.000000e+00 : f32
      %12 = vector.broadcast %cst_10 : f32 to vector<128x128xf32>
      %c0_11 = arith.constant 0 : index
      %c0_12 = arith.constant 0 : index
      %13 = vector.load %arg7[%c0_11, %c0_12] : memref<128x128xf32, #tpu.memory_space<vmem>>, vector<128x128xf32>
      tpu.vector_store %arg7[%c0_11, %c0_12], %12 {strides = array<i32>} : memref<128x128xf32, #tpu.memory_space<vmem>>, vector<128x128xf32>,
    } else {
    }
    %c0 = arith.constant 0 : index
    %c0_1 = arith.constant 0 : index
    %3 = vector.load %arg7[%c0, %c0_1] : memref<128x128xf32, #tpu.memory_space<vmem>>, vector<128x128xf32>
    %c0_2 = arith.constant 0 : index
    %c0_3 = arith.constant 0 : index
    %4 = vector.load %arg3[%c0_2, %c0_3] : memref<128x144xbf16, #tpu.memory_space<vmem>>, vector<128x144xbf16>
    %c0_4 = arith.constant 0 : index
    %c0_5 = arith.constant 0 : index
    %5 = vector.load %arg4[%c0_4, %c0_5] : memref<144x128xbf16, #tpu.memory_space<vmem>>, vector<144x128xbf16>
    %cst = arith.constant dense<0.000000e+00> : vector<128x128xf32>
    %6 = tpu.matmul %4, %5, %cst {dimension_numbers = #tpu.dot_dimension_numbers<[1], [0], [0], [1], [0, 0, 1, 1], [], []>} : vector<128x144xbf16>, vector<144x128xbf16>, vector<128x128xf32> -> vector<128x128xf32>
    %7 = arith.addf %3, %6 : vector<128x128xf32>
    %c0_6 = arith.constant 0 : index
    %c0_7 = arith.constant 0 : index
    %8 = vector.load %arg7[%c0_6, %c0_7] : memref<128x128xf32, #tpu.memory_space<vmem>>, vector<128x128xf32>
    tpu.vector_store %arg7[%c0_6, %c0_7], %7 {strides = array<i32>} : memref<128x128xf32, #tpu.memory_space<vmem>>, vector<128x128xf32>,
    %c0_i32_8 = arith.constant 0 : i32
    %9 = arith.cmpi eq, %arg2, %c0_i32_8 : i32
    %10 = arith.extui %9 : i1 to i32
    %c0_i32_9 = arith.constant 0 : i32
    %11 = arith.cmpi ne, %10, %c0_i32_9 : i32
    scf.if %11 {
      %c0_10 = arith.constant 0 : index
      %c0_11 = arith.constant 0 : index
      %12 = vector.load %arg7[%c0_10, %c0_11] : memref<128x128xf32, #tpu.memory_space<vmem>>, vector<128x128xf32>
      %c0_12 = arith.constant 0 : index
      %c0_13 = arith.constant 0 : index
      %13 = vector.load %arg5[%c0_12, %c0_13] : memref<1x128xf32, #tpu.memory_space<vmem>>, vector<1x128xf32>
      %14 = vector.broadcast %13 : vector<1x128xf32> to vector<128x128xf32>
      %15 = arith.addf %12, %14 : vector<128x128xf32>
      %16 = arith.truncf %15 : vector<128x128xf32> to vector<128x128xbf16>
      %c0_14 = arith.constant 0 : index
      %c0_15 = arith.constant 0 : index
      %17 = vector.load %arg6[%c0_14, %c0_15] : memref<128x128xbf16, #tpu.memory_space<vmem>>, vector<128x128xbf16>
      tpu.vector_store %arg6[%c0_14, %c0_15], %16 {strides = array<i32>} : memref<128x128xbf16, #tpu.memory_space<vmem>>, vector<128x128xbf16>,
    } else {
    }
    return
  }
  func.func @transform_0(%arg0: i32, %arg1: i32, %arg2: i32) -> (i32, i32) {
    %c0_i32 = arith.constant 0 : i32
    return %arg0, %arg2 : i32, i32
  }
  func.func @transform_1(%arg0: i32, %arg1: i32, %arg2: i32) -> (i32, i32) {
    %c0_i32 = arith.constant 0 : i32
    return %arg2, %arg1 : i32, i32
  }
  func.func @transform_2(%arg0: i32, %arg1: i32, %arg2: i32) -> (i32, i32) {
    %c0_i32 = arith.constant 0 : i32
    %c0_i32_0 = arith.constant 0 : i32
    return %c0_i32, %arg1 : i32, i32
  }
  func.func @transform_3(%arg0: i32, %arg1: i32, %arg2: i32) -> (i32, i32) {
    %c0_i32 = arith.constant 0 : i32
    return %arg0, %arg1 : i32, i32
  }
}

module attributes {stable_mosaic.version = 11 : i64} {
  func.func @kernel(%arg0: i32, %arg1: memref<1x64x32xbf16, #tpu.memory_space<vmem>>, %arg2: memref<1x32xf32, #tpu.memory_space<vmem>>, %arg3: memref<1x32xf32, #tpu.memory_space<vmem>>, %arg4: memref<1x64x32xbf16, #tpu.memory_space<vmem>>) attributes {dimension_semantics = [#tpu.dimension_semantics<parallel>], iteration_bounds = array<i64: 2>, scalar_prefetch = 0 : i64, scratch_operands = 0 : i64, tpu.core_type = #tpu.core_type<tc>, window_params = [{transform_indices = @transform_0, window_bounds = array<i64: 1, 64, 32>}, {pipeline_mode = #tpu.pipeline_mode<synchronous>, transform_indices = @transform_1, window_bounds = array<i64: 1, 32>}, {pipeline_mode = #tpu.pipeline_mode<synchronous>, transform_indices = @transform_2, window_bounds = array<i64: 1, 32>}, {transform_indices = @transform_3, window_bounds = array<i64: 1, 64, 32>}]} {
    %c0 = arith.constant 0 : index
    %c0_0 = arith.constant 0 : index
    %c0_1 = arith.constant 0 : index
    %0 = vector.load %arg1[%c0, %c0_0, %c0_1] : memref<1x64x32xbf16, #tpu.memory_space<vmem>>, vector<1x64x32xbf16>
    %1 = vector.shape_cast %0 : vector<1x64x32xbf16> to vector<64x32xbf16>
    %2 = arith.extf %1 : vector<64x32xbf16> to vector<64x32xf32>
    %cst = arith.constant dense<0.000000e+00> : vector<32xf32>
    %3 = vector.multi_reduction <add>, %2, %cst [0] : vector<64x32xf32> to vector<32xf32>
    %4 = vector.shape_cast %3 : vector<32xf32> to vector<1x32xf32>
    %cst_2 = arith.constant 6.400000e+01 : f32
    %5 = vector.broadcast %cst_2 : f32 to vector<1x32xf32>
    %6 = arith.divf %4, %5 : vector<1x32xf32>
    %7 = vector.broadcast %6 : vector<1x32xf32> to vector<64x32xf32>
    %8 = arith.subf %2, %7 : vector<64x32xf32>
    %9 = arith.mulf %8, %8 : vector<64x32xf32>
    %cst_3 = arith.constant dense<0.000000e+00> : vector<32xf32>
    %10 = vector.multi_reduction <add>, %9, %cst_3 [0] : vector<64x32xf32> to vector<32xf32>
    %11 = vector.shape_cast %10 : vector<32xf32> to vector<1x32xf32>
    %cst_4 = arith.constant 6.400000e+01 : f32
    %12 = vector.broadcast %cst_4 : f32 to vector<1x32xf32>
    %13 = arith.divf %11, %12 : vector<1x32xf32>
    %cst_5 = arith.constant 9.99999974E-6 : f32
    %14 = vector.broadcast %cst_5 : f32 to vector<1x32xf32>
    %15 = arith.addf %13, %14 : vector<1x32xf32>
    %16 = math.rsqrt %15 : vector<1x32xf32>
    %17 = vector.broadcast %16 : vector<1x32xf32> to vector<64x32xf32>
    %18 = arith.mulf %8, %17 : vector<64x32xf32>
    %c0_6 = arith.constant 0 : index
    %c0_7 = arith.constant 0 : index
    %19 = vector.load %arg2[%c0_6, %c0_7] : memref<1x32xf32, #tpu.memory_space<vmem>>, vector<1x32xf32>
    %20 = vector.broadcast %19 : vector<1x32xf32> to vector<64x32xf32>
    %21 = arith.mulf %18, %20 : vector<64x32xf32>
    %c0_8 = arith.constant 0 : index
    %c0_9 = arith.constant 0 : index
    %22 = vector.load %arg3[%c0_8, %c0_9] : memref<1x32xf32, #tpu.memory_space<vmem>>, vector<1x32xf32>
    %23 = vector.broadcast %22 : vector<1x32xf32> to vector<64x32xf32>
    %24 = arith.addf %21, %23 : vector<64x32xf32>
    %cst_10 = arith.constant 0.000000e+00 : f32
    %25 = vector.broadcast %cst_10 : f32 to vector<64x32xf32>
    %26 = arith.maximumf %24, %25 : vector<64x32xf32>
    %27 = arith.truncf %26 : vector<64x32xf32> to vector<64x32xbf16>
    %c0_11 = arith.constant 0 : index
    %c0_12 = arith.constant 0 : index
    %c0_13 = arith.constant 0 : index
    %28 = vector.load %arg4[%c0_11, %c0_12, %c0_13] : memref<1x64x32xbf16, #tpu.memory_space<vmem>>, vector<1x64x32xbf16>
    %29 = vector.shape_cast %28 : vector<1x64x32xbf16> to vector<64x32xbf16>
    %30 = vector.shape_cast %27 : vector<64x32xbf16> to vector<1x64x32xbf16>
    tpu.vector_store %arg4[%c0_11, %c0_12, %c0_13], %30 {strides = array<i32>} : memref<1x64x32xbf16, #tpu.memory_space<vmem>>, vector<1x64x32xbf16>,
    return
  }
  func.func @transform_0(%arg0: i32) -> (i32, i32, i32) {
    %c0_i32 = arith.constant 0 : i32
    %c0_i32_0 = arith.constant 0 : i32
    %c0_i32_1 = arith.constant 0 : i32
    return %arg0, %c0_i32, %c0_i32_0 : i32, i32, i32
  }
  func.func @transform_1(%arg0: i32) -> (i32, i32) {
    %c0_i32 = arith.constant 0 : i32
    %c0_i32_0 = arith.constant 0 : i32
    %c0_i32_1 = arith.constant 0 : i32
    return %c0_i32, %c0_i32_0 : i32, i32
  }
  func.func @transform_2(%arg0: i32) -> (i32, i32) {
    %c0_i32 = arith.constant 0 : i32
    %c0_i32_0 = arith.constant 0 : i32
    %c0_i32_1 = arith.constant 0 : i32
    return %c0_i32, %c0_i32_0 : i32, i32
  }
  func.func @transform_3(%arg0: i32) -> (i32, i32, i32) {
    %c0_i32 = arith.constant 0 : i32
    %c0_i32_0 = arith.constant 0 : i32
    %c0_i32_1 = arith.constant 0 : i32
    return %arg0, %c0_i32, %c0_i32_0 : i32, i32, i32
  }
}

module attributes {stable_mosaic.version = 11 : i64} {
  func.func @kernel(%arg0: i32, %arg1: memref<1x16x128xbf16, #tpu.memory_space<vmem>>, %arg2: memref<1x128xf32, #tpu.memory_space<vmem>>, %arg3: memref<1x128xf32, #tpu.memory_space<vmem>>, %arg4: memref<1x16x128xbf16, #tpu.memory_space<vmem>>) attributes {dimension_semantics = [#tpu.dimension_semantics<parallel>], iteration_bounds = array<i64: 2>, scalar_prefetch = 0 : i64, scratch_operands = 0 : i64, tpu.core_type = #tpu.core_type<tc>, window_params = [{transform_indices = @transform_0, window_bounds = array<i64: 1, 16, 128>}, {pipeline_mode = #tpu.pipeline_mode<synchronous>, transform_indices = @transform_1, window_bounds = array<i64: 1, 128>}, {pipeline_mode = #tpu.pipeline_mode<synchronous>, transform_indices = @transform_2, window_bounds = array<i64: 1, 128>}, {transform_indices = @transform_3, window_bounds = array<i64: 1, 16, 128>}]} {
    %c0 = arith.constant 0 : index
    %c0_0 = arith.constant 0 : index
    %c0_1 = arith.constant 0 : index
    %0 = vector.load %arg1[%c0, %c0_0, %c0_1] : memref<1x16x128xbf16, #tpu.memory_space<vmem>>, vector<1x16x128xbf16>
    %1 = vector.shape_cast %0 : vector<1x16x128xbf16> to vector<16x128xbf16>
    %2 = arith.extf %1 : vector<16x128xbf16> to vector<16x128xf32>
    %cst = arith.constant dense<0.000000e+00> : vector<128xf32>
    %3 = vector.multi_reduction <add>, %2, %cst [0] : vector<16x128xf32> to vector<128xf32>
    %4 = vector.shape_cast %3 : vector<128xf32> to vector<1x128xf32>
    %cst_2 = arith.constant 1.600000e+01 : f32
    %5 = vector.broadcast %cst_2 : f32 to vector<1x128xf32>
    %6 = arith.divf %4, %5 : vector<1x128xf32>
    %7 = vector.broadcast %6 : vector<1x128xf32> to vector<16x128xf32>
    %8 = arith.subf %2, %7 : vector<16x128xf32>
    %9 = arith.mulf %8, %8 : vector<16x128xf32>
    %cst_3 = arith.constant dense<0.000000e+00> : vector<128xf32>
    %10 = vector.multi_reduction <add>, %9, %cst_3 [0] : vector<16x128xf32> to vector<128xf32>
    %11 = vector.shape_cast %10 : vector<128xf32> to vector<1x128xf32>
    %cst_4 = arith.constant 1.600000e+01 : f32
    %12 = vector.broadcast %cst_4 : f32 to vector<1x128xf32>
    %13 = arith.divf %11, %12 : vector<1x128xf32>
    %cst_5 = arith.constant 9.99999974E-6 : f32
    %14 = vector.broadcast %cst_5 : f32 to vector<1x128xf32>
    %15 = arith.addf %13, %14 : vector<1x128xf32>
    %16 = math.rsqrt %15 : vector<1x128xf32>
    %17 = vector.broadcast %16 : vector<1x128xf32> to vector<16x128xf32>
    %18 = arith.mulf %8, %17 : vector<16x128xf32>
    %c0_6 = arith.constant 0 : index
    %c0_7 = arith.constant 0 : index
    %19 = vector.load %arg2[%c0_6, %c0_7] : memref<1x128xf32, #tpu.memory_space<vmem>>, vector<1x128xf32>
    %20 = vector.broadcast %19 : vector<1x128xf32> to vector<16x128xf32>
    %21 = arith.mulf %18, %20 : vector<16x128xf32>
    %c0_8 = arith.constant 0 : index
    %c0_9 = arith.constant 0 : index
    %22 = vector.load %arg3[%c0_8, %c0_9] : memref<1x128xf32, #tpu.memory_space<vmem>>, vector<1x128xf32>
    %23 = vector.broadcast %22 : vector<1x128xf32> to vector<16x128xf32>
    %24 = arith.addf %21, %23 : vector<16x128xf32>
    %cst_10 = arith.constant 0.000000e+00 : f32
    %25 = vector.broadcast %cst_10 : f32 to vector<16x128xf32>
    %26 = arith.maximumf %24, %25 : vector<16x128xf32>
    %27 = arith.truncf %26 : vector<16x128xf32> to vector<16x128xbf16>
    %c0_11 = arith.constant 0 : index
    %c0_12 = arith.constant 0 : index
    %c0_13 = arith.constant 0 : index
    %28 = vector.load %arg4[%c0_11, %c0_12, %c0_13] : memref<1x16x128xbf16, #tpu.memory_space<vmem>>, vector<1x16x128xbf16>
    %29 = vector.shape_cast %28 : vector<1x16x128xbf16> to vector<16x128xbf16>
    %30 = vector.shape_cast %27 : vector<16x128xbf16> to vector<1x16x128xbf16>
    tpu.vector_store %arg4[%c0_11, %c0_12, %c0_13], %30 {strides = array<i32>} : memref<1x16x128xbf16, #tpu.memory_space<vmem>>, vector<1x16x128xbf16>,
    return
  }
  func.func @transform_0(%arg0: i32) -> (i32, i32, i32) {
    %c0_i32 = arith.constant 0 : i32
    %c0_i32_0 = arith.constant 0 : i32
    %c0_i32_1 = arith.constant 0 : i32
    return %arg0, %c0_i32, %c0_i32_0 : i32, i32, i32
  }
  func.func @transform_1(%arg0: i32) -> (i32, i32) {
    %c0_i32 = arith.constant 0 : i32
    %c0_i32_0 = arith.constant 0 : i32
    %c0_i32_1 = arith.constant 0 : i32
    return %c0_i32, %c0_i32_0 : i32, i32
  }
  func.func @transform_2(%arg0: i32) -> (i32, i32) {
    %c0_i32 = arith.constant 0 : i32
    %c0_i32_0 = arith.constant 0 : i32
    %c0_i32_1 = arith.constant 0 : i32
    return %c0_i32, %c0_i32_0 : i32, i32
  }
  func.func @transform_3(%arg0: i32) -> (i32, i32, i32) {
    %c0_i32 = arith.constant 0 : i32
    %c0_i32_0 = arith.constant 0 : i32
    %c0_i32_1 = arith.constant 0 : i32
    return %arg0, %c0_i32, %c0_i32_0 : i32, i32, i32
  }
}

module attributes {stable_mosaic.version = 11 : i64} {
  func.func @kernel(%arg0: i32, %arg1: i32, %arg2: i32, %arg3: memref<32x288xbf16, #tpu.memory_space<vmem>>, %arg4: memref<288x128xbf16, #tpu.memory_space<vmem>>, %arg5: memref<1x128xf32, #tpu.memory_space<vmem>>, %arg6: memref<32x128xbf16, #tpu.memory_space<vmem>>, %arg7: memref<32x128xf32, #tpu.memory_space<vmem>>) attributes {dimension_semantics = [#tpu.dimension_semantics<parallel>, #tpu.dimension_semantics<parallel>, #tpu.dimension_semantics<arbitrary>], iteration_bounds = array<i64: 1, 1, 1>, scalar_prefetch = 0 : i64, scratch_operands = 1 : i64, tpu.core_type = #tpu.core_type<tc>, window_params = [{transform_indices = @transform_0, window_bounds = array<i64: 32, 288>}, {transform_indices = @transform_1, window_bounds = array<i64: 288, 128>}, {transform_indices = @transform_2, window_bounds = array<i64: 1, 128>}, {transform_indices = @transform_3, window_bounds = array<i64: 32, 128>}]} {
    %c0_i32 = arith.constant 0 : i32
    %0 = arith.cmpi eq, %arg2, %c0_i32 : i32
    %1 = arith.extui %0 : i1 to i32
    %c0_i32_0 = arith.constant 0 : i32
    %2 = arith.cmpi ne, %1, %c0_i32_0 : i32
    scf.if %2 {
      %cst_10 = arith.constant 0.000000e+00 : f32
      %12 = vector.broadcast %cst_10 : f32 to vector<32x128xf32>
      %c0_11 = arith.constant 0 : index
      %c0_12 = arith.constant 0 : index
      %13 = vector.load %arg7[%c0_11, %c0_12] : memref<32x128xf32, #tpu.memory_space<vmem>>, vector<32x128xf32>
      tpu.vector_store %arg7[%c0_11, %c0_12], %12 {strides = array<i32>} : memref<32x128xf32, #tpu.memory_space<vmem>>, vector<32x128xf32>,
    } else {
    }
    %c0 = arith.constant 0 : index
    %c0_1 = arith.constant 0 : index
    %3 = vector.load %arg7[%c0, %c0_1] : memref<32x128xf32, #tpu.memory_space<vmem>>, vector<32x128xf32>
    %c0_2 = arith.constant 0 : index
    %c0_3 = arith.constant 0 : index
    %4 = vector.load %arg3[%c0_2, %c0_3] : memref<32x288xbf16, #tpu.memory_space<vmem>>, vector<32x288xbf16>
    %c0_4 = arith.constant 0 : index
    %c0_5 = arith.constant 0 : index
    %5 = vector.load %arg4[%c0_4, %c0_5] : memref<288x128xbf16, #tpu.memory_space<vmem>>, vector<288x128xbf16>
    %cst = arith.constant dense<0.000000e+00> : vector<32x128xf32>
    %6 = tpu.matmul %4, %5, %cst {dimension_numbers = #tpu.dot_dimension_numbers<[1], [0], [0], [1], [0, 0, 1, 1], [], []>} : vector<32x288xbf16>, vector<288x128xbf16>, vector<32x128xf32> -> vector<32x128xf32>
    %7 = arith.addf %3, %6 : vector<32x128xf32>
    %c0_6 = arith.constant 0 : index
    %c0_7 = arith.constant 0 : index
    %8 = vector.load %arg7[%c0_6, %c0_7] : memref<32x128xf32, #tpu.memory_space<vmem>>, vector<32x128xf32>
    tpu.vector_store %arg7[%c0_6, %c0_7], %7 {strides = array<i32>} : memref<32x128xf32, #tpu.memory_space<vmem>>, vector<32x128xf32>,
    %c0_i32_8 = arith.constant 0 : i32
    %9 = arith.cmpi eq, %arg2, %c0_i32_8 : i32
    %10 = arith.extui %9 : i1 to i32
    %c0_i32_9 = arith.constant 0 : i32
    %11 = arith.cmpi ne, %10, %c0_i32_9 : i32
    scf.if %11 {
      %c0_10 = arith.constant 0 : index
      %c0_11 = arith.constant 0 : index
      %12 = vector.load %arg7[%c0_10, %c0_11] : memref<32x128xf32, #tpu.memory_space<vmem>>, vector<32x128xf32>
      %c0_12 = arith.constant 0 : index
      %c0_13 = arith.constant 0 : index
      %13 = vector.load %arg5[%c0_12, %c0_13] : memref<1x128xf32, #tpu.memory_space<vmem>>, vector<1x128xf32>
      %14 = vector.broadcast %13 : vector<1x128xf32> to vector<32x128xf32>
      %15 = arith.addf %12, %14 : vector<32x128xf32>
      %16 = arith.truncf %15 : vector<32x128xf32> to vector<32x128xbf16>
      %c0_14 = arith.constant 0 : index
      %c0_15 = arith.constant 0 : index
      %17 = vector.load %arg6[%c0_14, %c0_15] : memref<32x128xbf16, #tpu.memory_space<vmem>>, vector<32x128xbf16>
      tpu.vector_store %arg6[%c0_14, %c0_15], %16 {strides = array<i32>} : memref<32x128xbf16, #tpu.memory_space<vmem>>, vector<32x128xbf16>,
    } else {
    }
    return
  }
  func.func @transform_0(%arg0: i32, %arg1: i32, %arg2: i32) -> (i32, i32) {
    %c0_i32 = arith.constant 0 : i32
    return %arg0, %arg2 : i32, i32
  }
  func.func @transform_1(%arg0: i32, %arg1: i32, %arg2: i32) -> (i32, i32) {
    %c0_i32 = arith.constant 0 : i32
    return %arg2, %arg1 : i32, i32
  }
  func.func @transform_2(%arg0: i32, %arg1: i32, %arg2: i32) -> (i32, i32) {
    %c0_i32 = arith.constant 0 : i32
    %c0_i32_0 = arith.constant 0 : i32
    return %c0_i32, %arg1 : i32, i32
  }
  func.func @transform_3(%arg0: i32, %arg1: i32, %arg2: i32) -> (i32, i32) {
    %c0_i32 = arith.constant 0 : i32
    return %arg0, %arg1 : i32, i32
  }
}

module attributes {stable_mosaic.version = 11 : i64} {
  func.func @kernel(%arg0: i32, %arg1: memref<1x6x6x128xbf16, #tpu.memory_space<vmem>>, %arg2: memref<3x3x128xf32, #tpu.memory_space<vmem>>, %arg3: memref<1x128xf32, #tpu.memory_space<vmem>>, %arg4: memref<1x128xf32, #tpu.memory_space<vmem>>, %arg5: memref<1x128xf32, #tpu.memory_space<vmem>>, %arg6: memref<1x4x4x128xbf16, #tpu.memory_space<vmem>>) attributes {dimension_semantics = [#tpu.dimension_semantics<parallel>], iteration_bounds = array<i64: 2>, scalar_prefetch = 0 : i64, scratch_operands = 0 : i64, tpu.core_type = #tpu.core_type<tc>, window_params = [{transform_indices = @transform_0, window_bounds = array<i64: 1, 6, 6, 128>}, {pipeline_mode = #tpu.pipeline_mode<synchronous>, transform_indices = @transform_1, window_bounds = array<i64: 3, 3, 128>}, {pipeline_mode = #tpu.pipeline_mode<synchronous>, transform_indices = @transform_2, window_bounds = array<i64: 1, 128>}, {pipeline_mode = #tpu.pipeline_mode<synchronous>, transform_indices = @transform_3, window_bounds = array<i64: 1, 128>}, {pipeline_mode = #tpu.pipeline_mode<synchronous>, transform_indices = @transform_4, window_bounds = array<i64: 1, 128>}, {transform_indices = @transform_5, window_bounds = array<i64: 1, 4, 4, 128>}]} {
    %c0 = arith.constant 0 : index
    %c0_0 = arith.constant 0 : index
    %c0_1 = arith.constant 0 : index
    %c0_2 = arith.constant 0 : index
    %0 = vector.load %arg1[%c0, %c0_0, %c0_1, %c0_2] : memref<1x6x6x128xbf16, #tpu.memory_space<vmem>>, vector<1x6x6x128xbf16>
    %1 = vector.shape_cast %0 : vector<1x6x6x128xbf16> to vector<6x6x128xbf16>
    %2 = arith.extf %1 : vector<6x6x128xbf16> to vector<6x6x128xf32>
    %c0_3 = arith.constant 0 : index
    %c0_4 = arith.constant 0 : index
    %c0_5 = arith.constant 0 : index
    %3 = vector.load %arg2[%c0_3, %c0_4, %c0_5] : memref<3x3x128xf32, #tpu.memory_space<vmem>>, vector<3x3x128xf32>
    %4 = vector.extract_strided_slice %2 {offsets = [0, 0, 0], sizes = [6, 4, 128], strides = [1, 1, 1]} : vector<6x6x128xf32> to vector<6x4x128xf32>
    %5 = vector.extract_strided_slice %2 {offsets = [0, 1, 0], sizes = [6, 4, 128], strides = [1, 1, 1]} : vector<6x6x128xf32> to vector<6x4x128xf32>
    %6 = vector.extract_strided_slice %2 {offsets = [0, 2, 0], sizes = [6, 4, 128], strides = [1, 1, 1]} : vector<6x6x128xf32> to vector<6x4x128xf32>
    %cst = arith.constant 0.000000e+00 : f32
    %7 = vector.broadcast %cst : f32 to vector<4x4x128xf32>
    %8 = vector.extract_strided_slice %4 {offsets = [0, 0, 0], sizes = [4, 4, 128], strides = [1, 1, 1]} : vector<6x4x128xf32> to vector<4x4x128xf32>
    %9 = vector.extract_strided_slice %3 {offsets = [0, 0, 0], sizes = [1, 1, 128], strides = [1, 1, 1]} : vector<3x3x128xf32> to vector<1x1x128xf32>
    %10 = vector.shape_cast %9 : vector<1x1x128xf32> to vector<128xf32>
    %11 = vector.shape_cast %10 : vector<128xf32> to vector<1x1x128xf32>
    %12 = vector.broadcast %11 : vector<1x1x128xf32> to vector<4x4x128xf32>
    %13 = arith.mulf %8, %12 : vector<4x4x128xf32>
    %14 = arith.addf %7, %13 : vector<4x4x128xf32>
    %15 = vector.extract_strided_slice %5 {offsets = [0, 0, 0], sizes = [4, 4, 128], strides = [1, 1, 1]} : vector<6x4x128xf32> to vector<4x4x128xf32>
    %16 = vector.extract_strided_slice %3 {offsets = [0, 1, 0], sizes = [1, 1, 128], strides = [1, 1, 1]} : vector<3x3x128xf32> to vector<1x1x128xf32>
    %17 = vector.shape_cast %16 : vector<1x1x128xf32> to vector<128xf32>
    %18 = vector.shape_cast %17 : vector<128xf32> to vector<1x1x128xf32>
    %19 = vector.broadcast %18 : vector<1x1x128xf32> to vector<4x4x128xf32>
    %20 = arith.mulf %15, %19 : vector<4x4x128xf32>
    %21 = arith.addf %14, %20 : vector<4x4x128xf32>
    %22 = vector.extract_strided_slice %6 {offsets = [0, 0, 0], sizes = [4, 4, 128], strides = [1, 1, 1]} : vector<6x4x128xf32> to vector<4x4x128xf32>
    %23 = vector.extract_strided_slice %3 {offsets = [0, 2, 0], sizes = [1, 1, 128], strides = [1, 1, 1]} : vector<3x3x128xf32> to vector<1x1x128xf32>
    %24 = vector.shape_cast %23 : vector<1x1x128xf32> to vector<128xf32>
    %25 = vector.shape_cast %24 : vector<128xf32> to vector<1x1x128xf32>
    %26 = vector.broadcast %25 : vector<1x1x128xf32> to vector<4x4x128xf32>
    %27 = arith.mulf %22, %26 : vector<4x4x128xf32>
    %28 = arith.addf %21, %27 : vector<4x4x128xf32>
    %29 = vector.extract_strided_slice %4 {offsets = [1, 0, 0], sizes = [4, 4, 128], strides = [1, 1, 1]} : vector<6x4x128xf32> to vector<4x4x128xf32>
    %30 = vector.extract_strided_slice %3 {offsets = [1, 0, 0], sizes = [1, 1, 128], strides = [1, 1, 1]} : vector<3x3x128xf32> to vector<1x1x128xf32>
    %31 = vector.shape_cast %30 : vector<1x1x128xf32> to vector<128xf32>
    %32 = vector.shape_cast %31 : vector<128xf32> to vector<1x1x128xf32>
    %33 = vector.broadcast %32 : vector<1x1x128xf32> to vector<4x4x128xf32>
    %34 = arith.mulf %29, %33 : vector<4x4x128xf32>
    %35 = arith.addf %28, %34 : vector<4x4x128xf32>
    %36 = vector.extract_strided_slice %5 {offsets = [1, 0, 0], sizes = [4, 4, 128], strides = [1, 1, 1]} : vector<6x4x128xf32> to vector<4x4x128xf32>
    %37 = vector.extract_strided_slice %3 {offsets = [1, 1, 0], sizes = [1, 1, 128], strides = [1, 1, 1]} : vector<3x3x128xf32> to vector<1x1x128xf32>
    %38 = vector.shape_cast %37 : vector<1x1x128xf32> to vector<128xf32>
    %39 = vector.shape_cast %38 : vector<128xf32> to vector<1x1x128xf32>
    %40 = vector.broadcast %39 : vector<1x1x128xf32> to vector<4x4x128xf32>
    %41 = arith.mulf %36, %40 : vector<4x4x128xf32>
    %42 = arith.addf %35, %41 : vector<4x4x128xf32>
    %43 = vector.extract_strided_slice %6 {offsets = [1, 0, 0], sizes = [4, 4, 128], strides = [1, 1, 1]} : vector<6x4x128xf32> to vector<4x4x128xf32>
    %44 = vector.extract_strided_slice %3 {offsets = [1, 2, 0], sizes = [1, 1, 128], strides = [1, 1, 1]} : vector<3x3x128xf32> to vector<1x1x128xf32>
    %45 = vector.shape_cast %44 : vector<1x1x128xf32> to vector<128xf32>
    %46 = vector.shape_cast %45 : vector<128xf32> to vector<1x1x128xf32>
    %47 = vector.broadcast %46 : vector<1x1x128xf32> to vector<4x4x128xf32>
    %48 = arith.mulf %43, %47 : vector<4x4x128xf32>
    %49 = arith.addf %42, %48 : vector<4x4x128xf32>
    %50 = vector.extract_strided_slice %4 {offsets = [2, 0, 0], sizes = [4, 4, 128], strides = [1, 1, 1]} : vector<6x4x128xf32> to vector<4x4x128xf32>
    %51 = vector.extract_strided_slice %3 {offsets = [2, 0, 0], sizes = [1, 1, 128], strides = [1, 1, 1]} : vector<3x3x128xf32> to vector<1x1x128xf32>
    %52 = vector.shape_cast %51 : vector<1x1x128xf32> to vector<128xf32>
    %53 = vector.shape_cast %52 : vector<128xf32> to vector<1x1x128xf32>
    %54 = vector.broadcast %53 : vector<1x1x128xf32> to vector<4x4x128xf32>
    %55 = arith.mulf %50, %54 : vector<4x4x128xf32>
    %56 = arith.addf %49, %55 : vector<4x4x128xf32>
    %57 = vector.extract_strided_slice %5 {offsets = [2, 0, 0], sizes = [4, 4, 128], strides = [1, 1, 1]} : vector<6x4x128xf32> to vector<4x4x128xf32>
    %58 = vector.extract_strided_slice %3 {offsets = [2, 1, 0], sizes = [1, 1, 128], strides = [1, 1, 1]} : vector<3x3x128xf32> to vector<1x1x128xf32>
    %59 = vector.shape_cast %58 : vector<1x1x128xf32> to vector<128xf32>
    %60 = vector.shape_cast %59 : vector<128xf32> to vector<1x1x128xf32>
    %61 = vector.broadcast %60 : vector<1x1x128xf32> to vector<4x4x128xf32>
    %62 = arith.mulf %57, %61 : vector<4x4x128xf32>
    %63 = arith.addf %56, %62 : vector<4x4x128xf32>
    %64 = vector.extract_strided_slice %6 {offsets = [2, 0, 0], sizes = [4, 4, 128], strides = [1, 1, 1]} : vector<6x4x128xf32> to vector<4x4x128xf32>
    %65 = vector.extract_strided_slice %3 {offsets = [2, 2, 0], sizes = [1, 1, 128], strides = [1, 1, 1]} : vector<3x3x128xf32> to vector<1x1x128xf32>
    %66 = vector.shape_cast %65 : vector<1x1x128xf32> to vector<128xf32>
    %67 = vector.shape_cast %66 : vector<128xf32> to vector<1x1x128xf32>
    %68 = vector.broadcast %67 : vector<1x1x128xf32> to vector<4x4x128xf32>
    %69 = arith.mulf %64, %68 : vector<4x4x128xf32>
    %70 = arith.addf %63, %69 : vector<4x4x128xf32>
    %c0_6 = arith.constant 0 : index
    %c0_7 = arith.constant 0 : index
    %71 = vector.load %arg3[%c0_6, %c0_7] : memref<1x128xf32, #tpu.memory_space<vmem>>, vector<1x128xf32>
    %72 = vector.shape_cast %71 : vector<1x128xf32> to vector<1x1x128xf32>
    %73 = vector.broadcast %72 : vector<1x1x128xf32> to vector<4x4x128xf32>
    %74 = arith.addf %70, %73 : vector<4x4x128xf32>
    %cst_8 = arith.constant dense<0.000000e+00> : vector<4x128xf32>
    %75 = vector.multi_reduction <add>, %74, %cst_8 [0] : vector<4x4x128xf32> to vector<4x128xf32>
    %76 = vector.shape_cast %75 : vector<4x128xf32> to vector<1x4x128xf32>
    %cst_9 = arith.constant 4.000000e+00 : f32
    %77 = vector.broadcast %cst_9 : f32 to vector<1x4x128xf32>
    %78 = arith.divf %76, %77 : vector<1x4x128xf32>
    %cst_10 = arith.constant dense<0.000000e+00> : vector<1x128xf32>
    %79 = vector.multi_reduction <add>, %78, %cst_10 [1] : vector<1x4x128xf32> to vector<1x128xf32>
    %80 = vector.shape_cast %79 : vector<1x128xf32> to vector<1x1x128xf32>
    %cst_11 = arith.constant 4.000000e+00 : f32
    %81 = vector.broadcast %cst_11 : f32 to vector<1x1x128xf32>
    %82 = arith.divf %80, %81 : vector<1x1x128xf32>
    %83 = vector.broadcast %82 : vector<1x1x128xf32> to vector<4x4x128xf32>
    %84 = arith.subf %74, %83 : vector<4x4x128xf32>
    %85 = arith.mulf %84, %84 : vector<4x4x128xf32>
    %cst_12 = arith.constant dense<0.000000e+00> : vector<4x128xf32>
    %86 = vector.multi_reduction <add>, %85, %cst_12 [0] : vector<4x4x128xf32> to vector<4x128xf32>
    %87 = vector.shape_cast %86 : vector<4x128xf32> to vector<1x4x128xf32>
    %cst_13 = arith.constant 4.000000e+00 : f32
    %88 = vector.broadcast %cst_13 : f32 to vector<1x4x128xf32>
    %89 = arith.divf %87, %88 : vector<1x4x128xf32>
    %cst_14 = arith.constant dense<0.000000e+00> : vector<1x128xf32>
    %90 = vector.multi_reduction <add>, %89, %cst_14 [1] : vector<1x4x128xf32> to vector<1x128xf32>
    %91 = vector.shape_cast %90 : vector<1x128xf32> to vector<1x1x128xf32>
    %cst_15 = arith.constant 4.000000e+00 : f32
    %92 = vector.broadcast %cst_15 : f32 to vector<1x1x128xf32>
    %93 = arith.divf %91, %92 : vector<1x1x128xf32>
    %cst_16 = arith.constant 9.99999974E-6 : f32
    %94 = vector.broadcast %cst_16 : f32 to vector<1x1x128xf32>
    %95 = arith.addf %93, %94 : vector<1x1x128xf32>
    %96 = math.rsqrt %95 : vector<1x1x128xf32>
    %97 = vector.broadcast %96 : vector<1x1x128xf32> to vector<4x4x128xf32>
    %98 = arith.mulf %84, %97 : vector<4x4x128xf32>
    %c0_17 = arith.constant 0 : index
    %c0_18 = arith.constant 0 : index
    %99 = vector.load %arg4[%c0_17, %c0_18] : memref<1x128xf32, #tpu.memory_space<vmem>>, vector<1x128xf32>
    %100 = vector.shape_cast %99 : vector<1x128xf32> to vector<1x1x128xf32>
    %101 = vector.broadcast %100 : vector<1x1x128xf32> to vector<4x4x128xf32>
    %102 = arith.mulf %98, %101 : vector<4x4x128xf32>
    %c0_19 = arith.constant 0 : index
    %c0_20 = arith.constant 0 : index
    %103 = vector.load %arg5[%c0_19, %c0_20] : memref<1x128xf32, #tpu.memory_space<vmem>>, vector<1x128xf32>
    %104 = vector.shape_cast %103 : vector<1x128xf32> to vector<1x1x128xf32>
    %105 = vector.broadcast %104 : vector<1x1x128xf32> to vector<4x4x128xf32>
    %106 = arith.addf %102, %105 : vector<4x4x128xf32>
    %107 = arith.truncf %106 : vector<4x4x128xf32> to vector<4x4x128xbf16>
    %c0_21 = arith.constant 0 : index
    %c0_22 = arith.constant 0 : index
    %c0_23 = arith.constant 0 : index
    %c0_24 = arith.constant 0 : index
    %108 = vector.load %arg6[%c0_21, %c0_22, %c0_23, %c0_24] : memref<1x4x4x128xbf16, #tpu.memory_space<vmem>>, vector<1x4x4x128xbf16>
    %109 = vector.shape_cast %108 : vector<1x4x4x128xbf16> to vector<4x4x128xbf16>
    %110 = vector.shape_cast %107 : vector<4x4x128xbf16> to vector<1x4x4x128xbf16>
    tpu.vector_store %arg6[%c0_21, %c0_22, %c0_23, %c0_24], %110 {strides = array<i32>} : memref<1x4x4x128xbf16, #tpu.memory_space<vmem>>, vector<1x4x4x128xbf16>,
    return
  }
  func.func @transform_0(%arg0: i32) -> (i32, i32, i32, i32) {
    %c0_i32 = arith.constant 0 : i32
    %c0_i32_0 = arith.constant 0 : i32
    %c0_i32_1 = arith.constant 0 : i32
    %c0_i32_2 = arith.constant 0 : i32
    return %arg0, %c0_i32, %c0_i32_0, %c0_i32_1 : i32, i32, i32, i32
  }
  func.func @transform_1(%arg0: i32) -> (i32, i32, i32) {
    %c0_i32 = arith.constant 0 : i32
    %c0_i32_0 = arith.constant 0 : i32
    %c0_i32_1 = arith.constant 0 : i32
    %c0_i32_2 = arith.constant 0 : i32
    return %c0_i32, %c0_i32_0, %c0_i32_1 : i32, i32, i32
  }
  func.func @transform_2(%arg0: i32) -> (i32, i32) {
    %c0_i32 = arith.constant 0 : i32
    %c0_i32_0 = arith.constant 0 : i32
    %c0_i32_1 = arith.constant 0 : i32
    return %c0_i32, %c0_i32_0 : i32, i32
  }
  func.func @transform_3(%arg0: i32) -> (i32, i32) {
    %c0_i32 = arith.constant 0 : i32
    %c0_i32_0 = arith.constant 0 : i32
    %c0_i32_1 = arith.constant 0 : i32
    return %c0_i32, %c0_i32_0 : i32, i32
  }
  func.func @transform_4(%arg0: i32) -> (i32, i32) {
    %c0_i32 = arith.constant 0 : i32
    %c0_i32_0 = arith.constant 0 : i32
    %c0_i32_1 = arith.constant 0 : i32
    return %c0_i32, %c0_i32_0 : i32, i32
  }
  func.func @transform_5(%arg0: i32) -> (i32, i32, i32, i32) {
    %c0_i32 = arith.constant 0 : i32
    %c0_i32_0 = arith.constant 0 : i32
    %c0_i32_1 = arith.constant 0 : i32
    %c0_i32_2 = arith.constant 0 : i32
    return %arg0, %c0_i32, %c0_i32_0, %c0_i32_1 : i32, i32, i32, i32
  }
}

module attributes {stable_mosaic.version = 11 : i64} {
  func.func @kernel(%arg0: i32, %arg1: memref<1x16x128xbf16, #tpu.memory_space<vmem>>, %arg2: memref<128x64xbf16, #tpu.memory_space<vmem>>, %arg3: memref<1x64xf32, #tpu.memory_space<vmem>>, %arg4: memref<1x64xf32, #tpu.memory_space<vmem>>, %arg5: memref<1x64xf32, #tpu.memory_space<vmem>>, %arg6: memref<1x16x64xbf16, #tpu.memory_space<vmem>>) attributes {dimension_semantics = [#tpu.dimension_semantics<parallel>], iteration_bounds = array<i64: 2>, scalar_prefetch = 0 : i64, scratch_operands = 0 : i64, tpu.core_type = #tpu.core_type<tc>, window_params = [{transform_indices = @transform_0, window_bounds = array<i64: 1, 16, 128>}, {pipeline_mode = #tpu.pipeline_mode<synchronous>, transform_indices = @transform_1, window_bounds = array<i64: 128, 64>}, {pipeline_mode = #tpu.pipeline_mode<synchronous>, transform_indices = @transform_2, window_bounds = array<i64: 1, 64>}, {pipeline_mode = #tpu.pipeline_mode<synchronous>, transform_indices = @transform_3, window_bounds = array<i64: 1, 64>}, {pipeline_mode = #tpu.pipeline_mode<synchronous>, transform_indices = @transform_4, window_bounds = array<i64: 1, 64>}, {transform_indices = @transform_5, window_bounds = array<i64: 1, 16, 64>}]} {
    %c0 = arith.constant 0 : index
    %c0_0 = arith.constant 0 : index
    %c0_1 = arith.constant 0 : index
    %0 = vector.load %arg1[%c0, %c0_0, %c0_1] : memref<1x16x128xbf16, #tpu.memory_space<vmem>>, vector<1x16x128xbf16>
    %1 = vector.shape_cast %0 : vector<1x16x128xbf16> to vector<16x128xbf16>
    %c0_2 = arith.constant 0 : index
    %c0_3 = arith.constant 0 : index
    %2 = vector.load %arg2[%c0_2, %c0_3] : memref<128x64xbf16, #tpu.memory_space<vmem>>, vector<128x64xbf16>
    %cst = arith.constant dense<0.000000e+00> : vector<16x64xf32>
    %3 = tpu.matmul %1, %2, %cst {dimension_numbers = #tpu.dot_dimension_numbers<[1], [0], [0], [1], [0, 0, 1, 1], [], []>} : vector<16x128xbf16>, vector<128x64xbf16>, vector<16x64xf32> -> vector<16x64xf32>
    %c0_4 = arith.constant 0 : index
    %c0_5 = arith.constant 0 : index
    %4 = vector.load %arg3[%c0_4, %c0_5] : memref<1x64xf32, #tpu.memory_space<vmem>>, vector<1x64xf32>
    %5 = vector.broadcast %4 : vector<1x64xf32> to vector<16x64xf32>
    %6 = arith.addf %3, %5 : vector<16x64xf32>
    %cst_6 = arith.constant dense<0.000000e+00> : vector<64xf32>
    %7 = vector.multi_reduction <add>, %6, %cst_6 [0] : vector<16x64xf32> to vector<64xf32>
    %8 = vector.shape_cast %7 : vector<64xf32> to vector<1x64xf32>
    %cst_7 = arith.constant 1.600000e+01 : f32
    %9 = vector.broadcast %cst_7 : f32 to vector<1x64xf32>
    %10 = arith.divf %8, %9 : vector<1x64xf32>
    %11 = vector.broadcast %10 : vector<1x64xf32> to vector<16x64xf32>
    %12 = arith.subf %6, %11 : vector<16x64xf32>
    %13 = arith.mulf %12, %12 : vector<16x64xf32>
    %cst_8 = arith.constant dense<0.000000e+00> : vector<64xf32>
    %14 = vector.multi_reduction <add>, %13, %cst_8 [0] : vector<16x64xf32> to vector<64xf32>
    %15 = vector.shape_cast %14 : vector<64xf32> to vector<1x64xf32>
    %cst_9 = arith.constant 1.600000e+01 : f32
    %16 = vector.broadcast %cst_9 : f32 to vector<1x64xf32>
    %17 = arith.divf %15, %16 : vector<1x64xf32>
    %cst_10 = arith.constant 9.99999974E-6 : f32
    %18 = vector.broadcast %cst_10 : f32 to vector<1x64xf32>
    %19 = arith.addf %17, %18 : vector<1x64xf32>
    %20 = math.rsqrt %19 : vector<1x64xf32>
    %21 = vector.broadcast %20 : vector<1x64xf32> to vector<16x64xf32>
    %22 = arith.mulf %12, %21 : vector<16x64xf32>
    %c0_11 = arith.constant 0 : index
    %c0_12 = arith.constant 0 : index
    %23 = vector.load %arg4[%c0_11, %c0_12] : memref<1x64xf32, #tpu.memory_space<vmem>>, vector<1x64xf32>
    %24 = vector.broadcast %23 : vector<1x64xf32> to vector<16x64xf32>
    %25 = arith.mulf %22, %24 : vector<16x64xf32>
    %c0_13 = arith.constant 0 : index
    %c0_14 = arith.constant 0 : index
    %26 = vector.load %arg5[%c0_13, %c0_14] : memref<1x64xf32, #tpu.memory_space<vmem>>, vector<1x64xf32>
    %27 = vector.broadcast %26 : vector<1x64xf32> to vector<16x64xf32>
    %28 = arith.addf %25, %27 : vector<16x64xf32>
    %cst_15 = arith.constant 0.000000e+00 : f32
    %29 = vector.broadcast %cst_15 : f32 to vector<16x64xf32>
    %30 = arith.maximumf %28, %29 : vector<16x64xf32>
    %31 = arith.truncf %30 : vector<16x64xf32> to vector<16x64xbf16>
    %c0_16 = arith.constant 0 : index
    %c0_17 = arith.constant 0 : index
    %c0_18 = arith.constant 0 : index
    %32 = vector.load %arg6[%c0_16, %c0_17, %c0_18] : memref<1x16x64xbf16, #tpu.memory_space<vmem>>, vector<1x16x64xbf16>
    %33 = vector.shape_cast %32 : vector<1x16x64xbf16> to vector<16x64xbf16>
    %34 = vector.shape_cast %31 : vector<16x64xbf16> to vector<1x16x64xbf16>
    tpu.vector_store %arg6[%c0_16, %c0_17, %c0_18], %34 {strides = array<i32>} : memref<1x16x64xbf16, #tpu.memory_space<vmem>>, vector<1x16x64xbf16>,
    return
  }
  func.func @transform_0(%arg0: i32) -> (i32, i32, i32) {
    %c0_i32 = arith.constant 0 : i32
    %c0_i32_0 = arith.constant 0 : i32
    %c0_i32_1 = arith.constant 0 : i32
    return %arg0, %c0_i32, %c0_i32_0 : i32, i32, i32
  }
  func.func @transform_1(%arg0: i32) -> (i32, i32) {
    %c0_i32 = arith.constant 0 : i32
    %c0_i32_0 = arith.constant 0 : i32
    %c0_i32_1 = arith.constant 0 : i32
    return %c0_i32, %c0_i32_0 : i32, i32
  }
  func.func @transform_2(%arg0: i32) -> (i32, i32) {
    %c0_i32 = arith.constant 0 : i32
    %c0_i32_0 = arith.constant 0 : i32
    %c0_i32_1 = arith.constant 0 : i32
    return %c0_i32, %c0_i32_0 : i32, i32
  }
  func.func @transform_3(%arg0: i32) -> (i32, i32) {
    %c0_i32 = arith.constant 0 : i32
    %c0_i32_0 = arith.constant 0 : i32
    %c0_i32_1 = arith.constant 0 : i32
    return %c0_i32, %c0_i32_0 : i32, i32
  }
  func.func @transform_4(%arg0: i32) -> (i32, i32) {
    %c0_i32 = arith.constant 0 : i32
    %c0_i32_0 = arith.constant 0 : i32
    %c0_i32_1 = arith.constant 0 : i32
    return %c0_i32, %c0_i32_0 : i32, i32
  }
  func.func @transform_5(%arg0: i32) -> (i32, i32, i32) {
    %c0_i32 = arith.constant 0 : i32
    %c0_i32_0 = arith.constant 0 : i32
    %c0_i32_1 = arith.constant 0 : i32
    return %arg0, %c0_i32, %c0_i32_0 : i32, i32, i32
  }
}

module attributes {stable_mosaic.version = 11 : i64} {
  func.func @kernel(%arg0: i32, %arg1: memref<1x16x64xbf16, #tpu.memory_space<vmem>>, %arg2: memref<64x128xbf16, #tpu.memory_space<vmem>>, %arg3: memref<1x128xf32, #tpu.memory_space<vmem>>, %arg4: memref<1x128xf32, #tpu.memory_space<vmem>>, %arg5: memref<1x128xf32, #tpu.memory_space<vmem>>, %arg6: memref<1x16x128xbf16, #tpu.memory_space<vmem>>, %arg7: memref<1x16x128xbf16, #tpu.memory_space<vmem>>) attributes {dimension_semantics = [#tpu.dimension_semantics<parallel>], iteration_bounds = array<i64: 2>, scalar_prefetch = 0 : i64, scratch_operands = 0 : i64, tpu.core_type = #tpu.core_type<tc>, window_params = [{transform_indices = @transform_0, window_bounds = array<i64: 1, 16, 64>}, {pipeline_mode = #tpu.pipeline_mode<synchronous>, transform_indices = @transform_1, window_bounds = array<i64: 64, 128>}, {pipeline_mode = #tpu.pipeline_mode<synchronous>, transform_indices = @transform_2, window_bounds = array<i64: 1, 128>}, {pipeline_mode = #tpu.pipeline_mode<synchronous>, transform_indices = @transform_3, window_bounds = array<i64: 1, 128>}, {pipeline_mode = #tpu.pipeline_mode<synchronous>, transform_indices = @transform_4, window_bounds = array<i64: 1, 128>}, {transform_indices = @transform_5, window_bounds = array<i64: 1, 16, 128>}, {transform_indices = @transform_6, window_bounds = array<i64: 1, 16, 128>}]} {
    %c0 = arith.constant 0 : index
    %c0_0 = arith.constant 0 : index
    %c0_1 = arith.constant 0 : index
    %0 = vector.load %arg1[%c0, %c0_0, %c0_1] : memref<1x16x64xbf16, #tpu.memory_space<vmem>>, vector<1x16x64xbf16>
    %1 = vector.shape_cast %0 : vector<1x16x64xbf16> to vector<16x64xbf16>
    %c0_2 = arith.constant 0 : index
    %c0_3 = arith.constant 0 : index
    %2 = vector.load %arg2[%c0_2, %c0_3] : memref<64x128xbf16, #tpu.memory_space<vmem>>, vector<64x128xbf16>
    %cst = arith.constant dense<0.000000e+00> : vector<16x128xf32>
    %3 = tpu.matmul %1, %2, %cst {dimension_numbers = #tpu.dot_dimension_numbers<[1], [0], [0], [1], [0, 0, 1, 1], [], []>} : vector<16x64xbf16>, vector<64x128xbf16>, vector<16x128xf32> -> vector<16x128xf32>
    %c0_4 = arith.constant 0 : index
    %c0_5 = arith.constant 0 : index
    %4 = vector.load %arg3[%c0_4, %c0_5] : memref<1x128xf32, #tpu.memory_space<vmem>>, vector<1x128xf32>
    %5 = vector.broadcast %4 : vector<1x128xf32> to vector<16x128xf32>
    %6 = arith.addf %3, %5 : vector<16x128xf32>
    %cst_6 = arith.constant dense<0.000000e+00> : vector<128xf32>
    %7 = vector.multi_reduction <add>, %6, %cst_6 [0] : vector<16x128xf32> to vector<128xf32>
    %8 = vector.shape_cast %7 : vector<128xf32> to vector<1x128xf32>
    %cst_7 = arith.constant 1.600000e+01 : f32
    %9 = vector.broadcast %cst_7 : f32 to vector<1x128xf32>
    %10 = arith.divf %8, %9 : vector<1x128xf32>
    %11 = vector.broadcast %10 : vector<1x128xf32> to vector<16x128xf32>
    %12 = arith.subf %6, %11 : vector<16x128xf32>
    %13 = arith.mulf %12, %12 : vector<16x128xf32>
    %cst_8 = arith.constant dense<0.000000e+00> : vector<128xf32>
    %14 = vector.multi_reduction <add>, %13, %cst_8 [0] : vector<16x128xf32> to vector<128xf32>
    %15 = vector.shape_cast %14 : vector<128xf32> to vector<1x128xf32>
    %cst_9 = arith.constant 1.600000e+01 : f32
    %16 = vector.broadcast %cst_9 : f32 to vector<1x128xf32>
    %17 = arith.divf %15, %16 : vector<1x128xf32>
    %cst_10 = arith.constant 9.99999974E-6 : f32
    %18 = vector.broadcast %cst_10 : f32 to vector<1x128xf32>
    %19 = arith.addf %17, %18 : vector<1x128xf32>
    %20 = math.rsqrt %19 : vector<1x128xf32>
    %21 = vector.broadcast %20 : vector<1x128xf32> to vector<16x128xf32>
    %22 = arith.mulf %12, %21 : vector<16x128xf32>
    %c0_11 = arith.constant 0 : index
    %c0_12 = arith.constant 0 : index
    %23 = vector.load %arg4[%c0_11, %c0_12] : memref<1x128xf32, #tpu.memory_space<vmem>>, vector<1x128xf32>
    %24 = vector.broadcast %23 : vector<1x128xf32> to vector<16x128xf32>
    %25 = arith.mulf %22, %24 : vector<16x128xf32>
    %c0_13 = arith.constant 0 : index
    %c0_14 = arith.constant 0 : index
    %26 = vector.load %arg5[%c0_13, %c0_14] : memref<1x128xf32, #tpu.memory_space<vmem>>, vector<1x128xf32>
    %27 = vector.broadcast %26 : vector<1x128xf32> to vector<16x128xf32>
    %28 = arith.addf %25, %27 : vector<16x128xf32>
    %c0_15 = arith.constant 0 : index
    %c0_16 = arith.constant 0 : index
    %c0_17 = arith.constant 0 : index
    %29 = vector.load %arg6[%c0_15, %c0_16, %c0_17] : memref<1x16x128xbf16, #tpu.memory_space<vmem>>, vector<1x16x128xbf16>
    %30 = vector.shape_cast %29 : vector<1x16x128xbf16> to vector<16x128xbf16>
    %31 = arith.extf %30 : vector<16x128xbf16> to vector<16x128xf32>
    %32 = arith.addf %28, %31 : vector<16x128xf32>
    %33 = arith.truncf %32 : vector<16x128xf32> to vector<16x128xbf16>
    %c0_18 = arith.constant 0 : index
    %c0_19 = arith.constant 0 : index
    %c0_20 = arith.constant 0 : index
    %34 = vector.load %arg7[%c0_18, %c0_19, %c0_20] : memref<1x16x128xbf16, #tpu.memory_space<vmem>>, vector<1x16x128xbf16>
    %35 = vector.shape_cast %34 : vector<1x16x128xbf16> to vector<16x128xbf16>
    %36 = vector.shape_cast %33 : vector<16x128xbf16> to vector<1x16x128xbf16>
    tpu.vector_store %arg7[%c0_18, %c0_19, %c0_20], %36 {strides = array<i32>} : memref<1x16x128xbf16, #tpu.memory_space<vmem>>, vector<1x16x128xbf16>,
    return
  }
  func.func @transform_0(%arg0: i32) -> (i32, i32, i32) {
    %c0_i32 = arith.constant 0 : i32
    %c0_i32_0 = arith.constant 0 : i32
    %c0_i32_1 = arith.constant 0 : i32
    return %arg0, %c0_i32, %c0_i32_0 : i32, i32, i32
  }
  func.func @transform_1(%arg0: i32) -> (i32, i32) {
    %c0_i32 = arith.constant 0 : i32
    %c0_i32_0 = arith.constant 0 : i32
    %c0_i32_1 = arith.constant 0 : i32
    return %c0_i32, %c0_i32_0 : i32, i32
  }
  func.func @transform_2(%arg0: i32) -> (i32, i32) {
    %c0_i32 = arith.constant 0 : i32
    %c0_i32_0 = arith.constant 0 : i32
    %c0_i32_1 = arith.constant 0 : i32
    return %c0_i32, %c0_i32_0 : i32, i32
  }
  func.func @transform_3(%arg0: i32) -> (i32, i32) {
    %c0_i32 = arith.constant 0 : i32
    %c0_i32_0 = arith.constant 0 : i32
    %c0_i32_1 = arith.constant 0 : i32
    return %c0_i32, %c0_i32_0 : i32, i32
  }
  func.func @transform_4(%arg0: i32) -> (i32, i32) {
    %c0_i32 = arith.constant 0 : i32
    %c0_i32_0 = arith.constant 0 : i32
    %c0_i32_1 = arith.constant 0 : i32
    return %c0_i32, %c0_i32_0 : i32, i32
  }
  func.func @transform_5(%arg0: i32) -> (i32, i32, i32) {
    %c0_i32 = arith.constant 0 : i32
    %c0_i32_0 = arith.constant 0 : i32
    %c0_i32_1 = arith.constant 0 : i32
    return %arg0, %c0_i32, %c0_i32_0 : i32, i32, i32
  }
  func.func @transform_6(%arg0: i32) -> (i32, i32, i32) {
    %c0_i32 = arith.constant 0 : i32
    %c0_i32_0 = arith.constant 0 : i32
    %c0_i32_1 = arith.constant 0 : i32
    return %arg0, %c0_i32, %c0_i32_0 : i32, i32, i32
  }
}

module attributes {stable_mosaic.version = 11 : i64} {
  func.func @kernel(%arg0: i32, %arg1: memref<1x16x128xbf16, #tpu.memory_space<vmem>>, %arg2: memref<128x128xbf16, #tpu.memory_space<vmem>>, %arg3: memref<1x128xf32, #tpu.memory_space<vmem>>, %arg4: memref<1x128xf32, #tpu.memory_space<vmem>>, %arg5: memref<1x128xf32, #tpu.memory_space<vmem>>, %arg6: memref<1x16x128xbf16, #tpu.memory_space<vmem>>, %arg7: memref<1x16x128xbf16, #tpu.memory_space<vmem>>) attributes {dimension_semantics = [#tpu.dimension_semantics<parallel>], iteration_bounds = array<i64: 2>, scalar_prefetch = 0 : i64, scratch_operands = 0 : i64, tpu.core_type = #tpu.core_type<tc>, window_params = [{transform_indices = @transform_0, window_bounds = array<i64: 1, 16, 128>}, {pipeline_mode = #tpu.pipeline_mode<synchronous>, transform_indices = @transform_1, window_bounds = array<i64: 128, 128>}, {pipeline_mode = #tpu.pipeline_mode<synchronous>, transform_indices = @transform_2, window_bounds = array<i64: 1, 128>}, {pipeline_mode = #tpu.pipeline_mode<synchronous>, transform_indices = @transform_3, window_bounds = array<i64: 1, 128>}, {pipeline_mode = #tpu.pipeline_mode<synchronous>, transform_indices = @transform_4, window_bounds = array<i64: 1, 128>}, {transform_indices = @transform_5, window_bounds = array<i64: 1, 16, 128>}, {transform_indices = @transform_6, window_bounds = array<i64: 1, 16, 128>}]} {
    %c0 = arith.constant 0 : index
    %c0_0 = arith.constant 0 : index
    %c0_1 = arith.constant 0 : index
    %0 = vector.load %arg1[%c0, %c0_0, %c0_1] : memref<1x16x128xbf16, #tpu.memory_space<vmem>>, vector<1x16x128xbf16>
    %1 = vector.shape_cast %0 : vector<1x16x128xbf16> to vector<16x128xbf16>
    %c0_2 = arith.constant 0 : index
    %c0_3 = arith.constant 0 : index
    %2 = vector.load %arg2[%c0_2, %c0_3] : memref<128x128xbf16, #tpu.memory_space<vmem>>, vector<128x128xbf16>
    %cst = arith.constant dense<0.000000e+00> : vector<16x128xf32>
    %3 = tpu.matmul %1, %2, %cst {dimension_numbers = #tpu.dot_dimension_numbers<[1], [0], [0], [1], [0, 0, 1, 1], [], []>} : vector<16x128xbf16>, vector<128x128xbf16>, vector<16x128xf32> -> vector<16x128xf32>
    %c0_4 = arith.constant 0 : index
    %c0_5 = arith.constant 0 : index
    %4 = vector.load %arg3[%c0_4, %c0_5] : memref<1x128xf32, #tpu.memory_space<vmem>>, vector<1x128xf32>
    %5 = vector.broadcast %4 : vector<1x128xf32> to vector<16x128xf32>
    %6 = arith.addf %3, %5 : vector<16x128xf32>
    %cst_6 = arith.constant dense<0.000000e+00> : vector<128xf32>
    %7 = vector.multi_reduction <add>, %6, %cst_6 [0] : vector<16x128xf32> to vector<128xf32>
    %8 = vector.shape_cast %7 : vector<128xf32> to vector<1x128xf32>
    %cst_7 = arith.constant 1.600000e+01 : f32
    %9 = vector.broadcast %cst_7 : f32 to vector<1x128xf32>
    %10 = arith.divf %8, %9 : vector<1x128xf32>
    %11 = vector.broadcast %10 : vector<1x128xf32> to vector<16x128xf32>
    %12 = arith.subf %6, %11 : vector<16x128xf32>
    %13 = arith.mulf %12, %12 : vector<16x128xf32>
    %cst_8 = arith.constant dense<0.000000e+00> : vector<128xf32>
    %14 = vector.multi_reduction <add>, %13, %cst_8 [0] : vector<16x128xf32> to vector<128xf32>
    %15 = vector.shape_cast %14 : vector<128xf32> to vector<1x128xf32>
    %cst_9 = arith.constant 1.600000e+01 : f32
    %16 = vector.broadcast %cst_9 : f32 to vector<1x128xf32>
    %17 = arith.divf %15, %16 : vector<1x128xf32>
    %cst_10 = arith.constant 9.99999974E-6 : f32
    %18 = vector.broadcast %cst_10 : f32 to vector<1x128xf32>
    %19 = arith.addf %17, %18 : vector<1x128xf32>
    %20 = math.rsqrt %19 : vector<1x128xf32>
    %21 = vector.broadcast %20 : vector<1x128xf32> to vector<16x128xf32>
    %22 = arith.mulf %12, %21 : vector<16x128xf32>
    %c0_11 = arith.constant 0 : index
    %c0_12 = arith.constant 0 : index
    %23 = vector.load %arg4[%c0_11, %c0_12] : memref<1x128xf32, #tpu.memory_space<vmem>>, vector<1x128xf32>
    %24 = vector.broadcast %23 : vector<1x128xf32> to vector<16x128xf32>
    %25 = arith.mulf %22, %24 : vector<16x128xf32>
    %c0_13 = arith.constant 0 : index
    %c0_14 = arith.constant 0 : index
    %26 = vector.load %arg5[%c0_13, %c0_14] : memref<1x128xf32, #tpu.memory_space<vmem>>, vector<1x128xf32>
    %27 = vector.broadcast %26 : vector<1x128xf32> to vector<16x128xf32>
    %28 = arith.addf %25, %27 : vector<16x128xf32>
    %c0_15 = arith.constant 0 : index
    %c0_16 = arith.constant 0 : index
    %c0_17 = arith.constant 0 : index
    %29 = vector.load %arg6[%c0_15, %c0_16, %c0_17] : memref<1x16x128xbf16, #tpu.memory_space<vmem>>, vector<1x16x128xbf16>
    %30 = vector.shape_cast %29 : vector<1x16x128xbf16> to vector<16x128xbf16>
    %31 = arith.extf %30 : vector<16x128xbf16> to vector<16x128xf32>
    %32 = arith.addf %28, %31 : vector<16x128xf32>
    %33 = arith.truncf %32 : vector<16x128xf32> to vector<16x128xbf16>
    %c0_18 = arith.constant 0 : index
    %c0_19 = arith.constant 0 : index
    %c0_20 = arith.constant 0 : index
    %34 = vector.load %arg7[%c0_18, %c0_19, %c0_20] : memref<1x16x128xbf16, #tpu.memory_space<vmem>>, vector<1x16x128xbf16>
    %35 = vector.shape_cast %34 : vector<1x16x128xbf16> to vector<16x128xbf16>
    %36 = vector.shape_cast %33 : vector<16x128xbf16> to vector<1x16x128xbf16>
    tpu.vector_store %arg7[%c0_18, %c0_19, %c0_20], %36 {strides = array<i32>} : memref<1x16x128xbf16, #tpu.memory_space<vmem>>, vector<1x16x128xbf16>,
    return
  }
  func.func @transform_0(%arg0: i32) -> (i32, i32, i32) {
    %c0_i32 = arith.constant 0 : i32
    %c0_i32_0 = arith.constant 0 : i32
    %c0_i32_1 = arith.constant 0 : i32
    return %arg0, %c0_i32, %c0_i32_0 : i32, i32, i32
  }
  func.func @transform_1(%arg0: i32) -> (i32, i32) {
    %c0_i32 = arith.constant 0 : i32
    %c0_i32_0 = arith.constant 0 : i32
    %c0_i32_1 = arith.constant 0 : i32
    return %c0_i32, %c0_i32_0 : i32, i32
  }
  func.func @transform_2(%arg0: i32) -> (i32, i32) {
    %c0_i32 = arith.constant 0 : i32
    %c0_i32_0 = arith.constant 0 : i32
    %c0_i32_1 = arith.constant 0 : i32
    return %c0_i32, %c0_i32_0 : i32, i32
  }
  func.func @transform_3(%arg0: i32) -> (i32, i32) {
    %c0_i32 = arith.constant 0 : i32
    %c0_i32_0 = arith.constant 0 : i32
    %c0_i32_1 = arith.constant 0 : i32
    return %c0_i32, %c0_i32_0 : i32, i32
  }
  func.func @transform_4(%arg0: i32) -> (i32, i32) {
    %c0_i32 = arith.constant 0 : i32
    %c0_i32_0 = arith.constant 0 : i32
    %c0_i32_1 = arith.constant 0 : i32
    return %c0_i32, %c0_i32_0 : i32, i32
  }
  func.func @transform_5(%arg0: i32) -> (i32, i32, i32) {
    %c0_i32 = arith.constant 0 : i32
    %c0_i32_0 = arith.constant 0 : i32
    %c0_i32_1 = arith.constant 0 : i32
    return %arg0, %c0_i32, %c0_i32_0 : i32, i32, i32
  }
  func.func @transform_6(%arg0: i32) -> (i32, i32, i32) {
    %c0_i32 = arith.constant 0 : i32
    %c0_i32_0 = arith.constant 0 : i32
    %c0_i32_1 = arith.constant 0 : i32
    return %arg0, %c0_i32, %c0_i32_0 : i32, i32, i32
  }
}

module attributes {stable_mosaic.version = 11 : i64} {
  func.func @kernel(%arg0: i32, %arg1: memref<1x6x6x64xbf16, #tpu.memory_space<vmem>>, %arg2: memref<3x3x64xf32, #tpu.memory_space<vmem>>, %arg3: memref<1x64xf32, #tpu.memory_space<vmem>>, %arg4: memref<1x64xf32, #tpu.memory_space<vmem>>, %arg5: memref<1x64xf32, #tpu.memory_space<vmem>>, %arg6: memref<1x4x4x64xbf16, #tpu.memory_space<vmem>>) attributes {dimension_semantics = [#tpu.dimension_semantics<parallel>], iteration_bounds = array<i64: 2>, scalar_prefetch = 0 : i64, scratch_operands = 0 : i64, tpu.core_type = #tpu.core_type<tc>, window_params = [{transform_indices = @transform_0, window_bounds = array<i64: 1, 6, 6, 64>}, {pipeline_mode = #tpu.pipeline_mode<synchronous>, transform_indices = @transform_1, window_bounds = array<i64: 3, 3, 64>}, {pipeline_mode = #tpu.pipeline_mode<synchronous>, transform_indices = @transform_2, window_bounds = array<i64: 1, 64>}, {pipeline_mode = #tpu.pipeline_mode<synchronous>, transform_indices = @transform_3, window_bounds = array<i64: 1, 64>}, {pipeline_mode = #tpu.pipeline_mode<synchronous>, transform_indices = @transform_4, window_bounds = array<i64: 1, 64>}, {transform_indices = @transform_5, window_bounds = array<i64: 1, 4, 4, 64>}]} {
    %c0 = arith.constant 0 : index
    %c0_0 = arith.constant 0 : index
    %c0_1 = arith.constant 0 : index
    %c0_2 = arith.constant 0 : index
    %0 = vector.load %arg1[%c0, %c0_0, %c0_1, %c0_2] : memref<1x6x6x64xbf16, #tpu.memory_space<vmem>>, vector<1x6x6x64xbf16>
    %1 = vector.shape_cast %0 : vector<1x6x6x64xbf16> to vector<6x6x64xbf16>
    %2 = arith.extf %1 : vector<6x6x64xbf16> to vector<6x6x64xf32>
    %c0_3 = arith.constant 0 : index
    %c0_4 = arith.constant 0 : index
    %c0_5 = arith.constant 0 : index
    %3 = vector.load %arg2[%c0_3, %c0_4, %c0_5] : memref<3x3x64xf32, #tpu.memory_space<vmem>>, vector<3x3x64xf32>
    %4 = vector.extract_strided_slice %2 {offsets = [0, 0, 0], sizes = [6, 4, 64], strides = [1, 1, 1]} : vector<6x6x64xf32> to vector<6x4x64xf32>
    %5 = vector.extract_strided_slice %2 {offsets = [0, 1, 0], sizes = [6, 4, 64], strides = [1, 1, 1]} : vector<6x6x64xf32> to vector<6x4x64xf32>
    %6 = vector.extract_strided_slice %2 {offsets = [0, 2, 0], sizes = [6, 4, 64], strides = [1, 1, 1]} : vector<6x6x64xf32> to vector<6x4x64xf32>
    %cst = arith.constant 0.000000e+00 : f32
    %7 = vector.broadcast %cst : f32 to vector<4x4x64xf32>
    %8 = vector.extract_strided_slice %4 {offsets = [0, 0, 0], sizes = [4, 4, 64], strides = [1, 1, 1]} : vector<6x4x64xf32> to vector<4x4x64xf32>
    %9 = vector.extract_strided_slice %3 {offsets = [0, 0, 0], sizes = [1, 1, 64], strides = [1, 1, 1]} : vector<3x3x64xf32> to vector<1x1x64xf32>
    %10 = vector.shape_cast %9 : vector<1x1x64xf32> to vector<64xf32>
    %11 = vector.shape_cast %10 : vector<64xf32> to vector<1x1x64xf32>
    %12 = vector.broadcast %11 : vector<1x1x64xf32> to vector<4x4x64xf32>
    %13 = arith.mulf %8, %12 : vector<4x4x64xf32>
    %14 = arith.addf %7, %13 : vector<4x4x64xf32>
    %15 = vector.extract_strided_slice %5 {offsets = [0, 0, 0], sizes = [4, 4, 64], strides = [1, 1, 1]} : vector<6x4x64xf32> to vector<4x4x64xf32>
    %16 = vector.extract_strided_slice %3 {offsets = [0, 1, 0], sizes = [1, 1, 64], strides = [1, 1, 1]} : vector<3x3x64xf32> to vector<1x1x64xf32>
    %17 = vector.shape_cast %16 : vector<1x1x64xf32> to vector<64xf32>
    %18 = vector.shape_cast %17 : vector<64xf32> to vector<1x1x64xf32>
    %19 = vector.broadcast %18 : vector<1x1x64xf32> to vector<4x4x64xf32>
    %20 = arith.mulf %15, %19 : vector<4x4x64xf32>
    %21 = arith.addf %14, %20 : vector<4x4x64xf32>
    %22 = vector.extract_strided_slice %6 {offsets = [0, 0, 0], sizes = [4, 4, 64], strides = [1, 1, 1]} : vector<6x4x64xf32> to vector<4x4x64xf32>
    %23 = vector.extract_strided_slice %3 {offsets = [0, 2, 0], sizes = [1, 1, 64], strides = [1, 1, 1]} : vector<3x3x64xf32> to vector<1x1x64xf32>
    %24 = vector.shape_cast %23 : vector<1x1x64xf32> to vector<64xf32>
    %25 = vector.shape_cast %24 : vector<64xf32> to vector<1x1x64xf32>
    %26 = vector.broadcast %25 : vector<1x1x64xf32> to vector<4x4x64xf32>
    %27 = arith.mulf %22, %26 : vector<4x4x64xf32>
    %28 = arith.addf %21, %27 : vector<4x4x64xf32>
    %29 = vector.extract_strided_slice %4 {offsets = [1, 0, 0], sizes = [4, 4, 64], strides = [1, 1, 1]} : vector<6x4x64xf32> to vector<4x4x64xf32>
    %30 = vector.extract_strided_slice %3 {offsets = [1, 0, 0], sizes = [1, 1, 64], strides = [1, 1, 1]} : vector<3x3x64xf32> to vector<1x1x64xf32>
    %31 = vector.shape_cast %30 : vector<1x1x64xf32> to vector<64xf32>
    %32 = vector.shape_cast %31 : vector<64xf32> to vector<1x1x64xf32>
    %33 = vector.broadcast %32 : vector<1x1x64xf32> to vector<4x4x64xf32>
    %34 = arith.mulf %29, %33 : vector<4x4x64xf32>
    %35 = arith.addf %28, %34 : vector<4x4x64xf32>
    %36 = vector.extract_strided_slice %5 {offsets = [1, 0, 0], sizes = [4, 4, 64], strides = [1, 1, 1]} : vector<6x4x64xf32> to vector<4x4x64xf32>
    %37 = vector.extract_strided_slice %3 {offsets = [1, 1, 0], sizes = [1, 1, 64], strides = [1, 1, 1]} : vector<3x3x64xf32> to vector<1x1x64xf32>
    %38 = vector.shape_cast %37 : vector<1x1x64xf32> to vector<64xf32>
    %39 = vector.shape_cast %38 : vector<64xf32> to vector<1x1x64xf32>
    %40 = vector.broadcast %39 : vector<1x1x64xf32> to vector<4x4x64xf32>
    %41 = arith.mulf %36, %40 : vector<4x4x64xf32>
    %42 = arith.addf %35, %41 : vector<4x4x64xf32>
    %43 = vector.extract_strided_slice %6 {offsets = [1, 0, 0], sizes = [4, 4, 64], strides = [1, 1, 1]} : vector<6x4x64xf32> to vector<4x4x64xf32>
    %44 = vector.extract_strided_slice %3 {offsets = [1, 2, 0], sizes = [1, 1, 64], strides = [1, 1, 1]} : vector<3x3x64xf32> to vector<1x1x64xf32>
    %45 = vector.shape_cast %44 : vector<1x1x64xf32> to vector<64xf32>
    %46 = vector.shape_cast %45 : vector<64xf32> to vector<1x1x64xf32>
    %47 = vector.broadcast %46 : vector<1x1x64xf32> to vector<4x4x64xf32>
    %48 = arith.mulf %43, %47 : vector<4x4x64xf32>
    %49 = arith.addf %42, %48 : vector<4x4x64xf32>
    %50 = vector.extract_strided_slice %4 {offsets = [2, 0, 0], sizes = [4, 4, 64], strides = [1, 1, 1]} : vector<6x4x64xf32> to vector<4x4x64xf32>
    %51 = vector.extract_strided_slice %3 {offsets = [2, 0, 0], sizes = [1, 1, 64], strides = [1, 1, 1]} : vector<3x3x64xf32> to vector<1x1x64xf32>
    %52 = vector.shape_cast %51 : vector<1x1x64xf32> to vector<64xf32>
    %53 = vector.shape_cast %52 : vector<64xf32> to vector<1x1x64xf32>
    %54 = vector.broadcast %53 : vector<1x1x64xf32> to vector<4x4x64xf32>
    %55 = arith.mulf %50, %54 : vector<4x4x64xf32>
    %56 = arith.addf %49, %55 : vector<4x4x64xf32>
    %57 = vector.extract_strided_slice %5 {offsets = [2, 0, 0], sizes = [4, 4, 64], strides = [1, 1, 1]} : vector<6x4x64xf32> to vector<4x4x64xf32>
    %58 = vector.extract_strided_slice %3 {offsets = [2, 1, 0], sizes = [1, 1, 64], strides = [1, 1, 1]} : vector<3x3x64xf32> to vector<1x1x64xf32>
    %59 = vector.shape_cast %58 : vector<1x1x64xf32> to vector<64xf32>
    %60 = vector.shape_cast %59 : vector<64xf32> to vector<1x1x64xf32>
    %61 = vector.broadcast %60 : vector<1x1x64xf32> to vector<4x4x64xf32>
    %62 = arith.mulf %57, %61 : vector<4x4x64xf32>
    %63 = arith.addf %56, %62 : vector<4x4x64xf32>
    %64 = vector.extract_strided_slice %6 {offsets = [2, 0, 0], sizes = [4, 4, 64], strides = [1, 1, 1]} : vector<6x4x64xf32> to vector<4x4x64xf32>
    %65 = vector.extract_strided_slice %3 {offsets = [2, 2, 0], sizes = [1, 1, 64], strides = [1, 1, 1]} : vector<3x3x64xf32> to vector<1x1x64xf32>
    %66 = vector.shape_cast %65 : vector<1x1x64xf32> to vector<64xf32>
    %67 = vector.shape_cast %66 : vector<64xf32> to vector<1x1x64xf32>
    %68 = vector.broadcast %67 : vector<1x1x64xf32> to vector<4x4x64xf32>
    %69 = arith.mulf %64, %68 : vector<4x4x64xf32>
    %70 = arith.addf %63, %69 : vector<4x4x64xf32>
    %c0_6 = arith.constant 0 : index
    %c0_7 = arith.constant 0 : index
    %71 = vector.load %arg3[%c0_6, %c0_7] : memref<1x64xf32, #tpu.memory_space<vmem>>, vector<1x64xf32>
    %72 = vector.shape_cast %71 : vector<1x64xf32> to vector<1x1x64xf32>
    %73 = vector.broadcast %72 : vector<1x1x64xf32> to vector<4x4x64xf32>
    %74 = arith.addf %70, %73 : vector<4x4x64xf32>
    %cst_8 = arith.constant dense<0.000000e+00> : vector<4x64xf32>
    %75 = vector.multi_reduction <add>, %74, %cst_8 [0] : vector<4x4x64xf32> to vector<4x64xf32>
    %76 = vector.shape_cast %75 : vector<4x64xf32> to vector<1x4x64xf32>
    %cst_9 = arith.constant 4.000000e+00 : f32
    %77 = vector.broadcast %cst_9 : f32 to vector<1x4x64xf32>
    %78 = arith.divf %76, %77 : vector<1x4x64xf32>
    %cst_10 = arith.constant dense<0.000000e+00> : vector<1x64xf32>
    %79 = vector.multi_reduction <add>, %78, %cst_10 [1] : vector<1x4x64xf32> to vector<1x64xf32>
    %80 = vector.shape_cast %79 : vector<1x64xf32> to vector<1x1x64xf32>
    %cst_11 = arith.constant 4.000000e+00 : f32
    %81 = vector.broadcast %cst_11 : f32 to vector<1x1x64xf32>
    %82 = arith.divf %80, %81 : vector<1x1x64xf32>
    %83 = vector.broadcast %82 : vector<1x1x64xf32> to vector<4x4x64xf32>
    %84 = arith.subf %74, %83 : vector<4x4x64xf32>
    %85 = arith.mulf %84, %84 : vector<4x4x64xf32>
    %cst_12 = arith.constant dense<0.000000e+00> : vector<4x64xf32>
    %86 = vector.multi_reduction <add>, %85, %cst_12 [0] : vector<4x4x64xf32> to vector<4x64xf32>
    %87 = vector.shape_cast %86 : vector<4x64xf32> to vector<1x4x64xf32>
    %cst_13 = arith.constant 4.000000e+00 : f32
    %88 = vector.broadcast %cst_13 : f32 to vector<1x4x64xf32>
    %89 = arith.divf %87, %88 : vector<1x4x64xf32>
    %cst_14 = arith.constant dense<0.000000e+00> : vector<1x64xf32>
    %90 = vector.multi_reduction <add>, %89, %cst_14 [1] : vector<1x4x64xf32> to vector<1x64xf32>
    %91 = vector.shape_cast %90 : vector<1x64xf32> to vector<1x1x64xf32>
    %cst_15 = arith.constant 4.000000e+00 : f32
    %92 = vector.broadcast %cst_15 : f32 to vector<1x1x64xf32>
    %93 = arith.divf %91, %92 : vector<1x1x64xf32>
    %cst_16 = arith.constant 9.99999974E-6 : f32
    %94 = vector.broadcast %cst_16 : f32 to vector<1x1x64xf32>
    %95 = arith.addf %93, %94 : vector<1x1x64xf32>
    %96 = math.rsqrt %95 : vector<1x1x64xf32>
    %97 = vector.broadcast %96 : vector<1x1x64xf32> to vector<4x4x64xf32>
    %98 = arith.mulf %84, %97 : vector<4x4x64xf32>
    %c0_17 = arith.constant 0 : index
    %c0_18 = arith.constant 0 : index
    %99 = vector.load %arg4[%c0_17, %c0_18] : memref<1x64xf32, #tpu.memory_space<vmem>>, vector<1x64xf32>
    %100 = vector.shape_cast %99 : vector<1x64xf32> to vector<1x1x64xf32>
    %101 = vector.broadcast %100 : vector<1x1x64xf32> to vector<4x4x64xf32>
    %102 = arith.mulf %98, %101 : vector<4x4x64xf32>
    %c0_19 = arith.constant 0 : index
    %c0_20 = arith.constant 0 : index
    %103 = vector.load %arg5[%c0_19, %c0_20] : memref<1x64xf32, #tpu.memory_space<vmem>>, vector<1x64xf32>
    %104 = vector.shape_cast %103 : vector<1x64xf32> to vector<1x1x64xf32>
    %105 = vector.broadcast %104 : vector<1x1x64xf32> to vector<4x4x64xf32>
    %106 = arith.addf %102, %105 : vector<4x4x64xf32>
    %107 = arith.truncf %106 : vector<4x4x64xf32> to vector<4x4x64xbf16>
    %c0_21 = arith.constant 0 : index
    %c0_22 = arith.constant 0 : index
    %c0_23 = arith.constant 0 : index
    %c0_24 = arith.constant 0 : index
    %108 = vector.load %arg6[%c0_21, %c0_22, %c0_23, %c0_24] : memref<1x4x4x64xbf16, #tpu.memory_space<vmem>>, vector<1x4x4x64xbf16>
    %109 = vector.shape_cast %108 : vector<1x4x4x64xbf16> to vector<4x4x64xbf16>
    %110 = vector.shape_cast %107 : vector<4x4x64xbf16> to vector<1x4x4x64xbf16>
    tpu.vector_store %arg6[%c0_21, %c0_22, %c0_23, %c0_24], %110 {strides = array<i32>} : memref<1x4x4x64xbf16, #tpu.memory_space<vmem>>, vector<1x4x4x64xbf16>,
    return
  }
  func.func @transform_0(%arg0: i32) -> (i32, i32, i32, i32) {
    %c0_i32 = arith.constant 0 : i32
    %c0_i32_0 = arith.constant 0 : i32
    %c0_i32_1 = arith.constant 0 : i32
    %c0_i32_2 = arith.constant 0 : i32
    return %arg0, %c0_i32, %c0_i32_0, %c0_i32_1 : i32, i32, i32, i32
  }
  func.func @transform_1(%arg0: i32) -> (i32, i32, i32) {
    %c0_i32 = arith.constant 0 : i32
    %c0_i32_0 = arith.constant 0 : i32
    %c0_i32_1 = arith.constant 0 : i32
    %c0_i32_2 = arith.constant 0 : i32
    return %c0_i32, %c0_i32_0, %c0_i32_1 : i32, i32, i32
  }
  func.func @transform_2(%arg0: i32) -> (i32, i32) {
    %c0_i32 = arith.constant 0 : i32
    %c0_i32_0 = arith.constant 0 : i32
    %c0_i32_1 = arith.constant 0 : i32
    return %c0_i32, %c0_i32_0 : i32, i32
  }
  func.func @transform_3(%arg0: i32) -> (i32, i32) {
    %c0_i32 = arith.constant 0 : i32
    %c0_i32_0 = arith.constant 0 : i32
    %c0_i32_1 = arith.constant 0 : i32
    return %c0_i32, %c0_i32_0 : i32, i32
  }
  func.func @transform_4(%arg0: i32) -> (i32, i32) {
    %c0_i32 = arith.constant 0 : i32
    %c0_i32_0 = arith.constant 0 : i32
    %c0_i32_1 = arith.constant 0 : i32
    return %c0_i32, %c0_i32_0 : i32, i32
  }
  func.func @transform_5(%arg0: i32) -> (i32, i32, i32, i32) {
    %c0_i32 = arith.constant 0 : i32
    %c0_i32_0 = arith.constant 0 : i32
    %c0_i32_1 = arith.constant 0 : i32
    %c0_i32_2 = arith.constant 0 : i32
    return %arg0, %c0_i32, %c0_i32_0, %c0_i32_1 : i32, i32, i32, i32
  }
}

module attributes {stable_mosaic.version = 11 : i64} {
  func.func @kernel(%arg0: i32, %arg1: memref<1x16x128xbf16, #tpu.memory_space<vmem>>, %arg2: memref<128x128xbf16, #tpu.memory_space<vmem>>, %arg3: memref<1x128xf32, #tpu.memory_space<vmem>>, %arg4: memref<1x128xf32, #tpu.memory_space<vmem>>, %arg5: memref<1x128xf32, #tpu.memory_space<vmem>>, %arg6: memref<1x16x128xbf16, #tpu.memory_space<vmem>>) attributes {dimension_semantics = [#tpu.dimension_semantics<parallel>], iteration_bounds = array<i64: 2>, scalar_prefetch = 0 : i64, scratch_operands = 0 : i64, tpu.core_type = #tpu.core_type<tc>, window_params = [{transform_indices = @transform_0, window_bounds = array<i64: 1, 16, 128>}, {pipeline_mode = #tpu.pipeline_mode<synchronous>, transform_indices = @transform_1, window_bounds = array<i64: 128, 128>}, {pipeline_mode = #tpu.pipeline_mode<synchronous>, transform_indices = @transform_2, window_bounds = array<i64: 1, 128>}, {pipeline_mode = #tpu.pipeline_mode<synchronous>, transform_indices = @transform_3, window_bounds = array<i64: 1, 128>}, {pipeline_mode = #tpu.pipeline_mode<synchronous>, transform_indices = @transform_4, window_bounds = array<i64: 1, 128>}, {transform_indices = @transform_5, window_bounds = array<i64: 1, 16, 128>}]} {
    %c0 = arith.constant 0 : index
    %c0_0 = arith.constant 0 : index
    %c0_1 = arith.constant 0 : index
    %0 = vector.load %arg1[%c0, %c0_0, %c0_1] : memref<1x16x128xbf16, #tpu.memory_space<vmem>>, vector<1x16x128xbf16>
    %1 = vector.shape_cast %0 : vector<1x16x128xbf16> to vector<16x128xbf16>
    %c0_2 = arith.constant 0 : index
    %c0_3 = arith.constant 0 : index
    %2 = vector.load %arg2[%c0_2, %c0_3] : memref<128x128xbf16, #tpu.memory_space<vmem>>, vector<128x128xbf16>
    %cst = arith.constant dense<0.000000e+00> : vector<16x128xf32>
    %3 = tpu.matmul %1, %2, %cst {dimension_numbers = #tpu.dot_dimension_numbers<[1], [0], [0], [1], [0, 0, 1, 1], [], []>} : vector<16x128xbf16>, vector<128x128xbf16>, vector<16x128xf32> -> vector<16x128xf32>
    %c0_4 = arith.constant 0 : index
    %c0_5 = arith.constant 0 : index
    %4 = vector.load %arg3[%c0_4, %c0_5] : memref<1x128xf32, #tpu.memory_space<vmem>>, vector<1x128xf32>
    %5 = vector.broadcast %4 : vector<1x128xf32> to vector<16x128xf32>
    %6 = arith.addf %3, %5 : vector<16x128xf32>
    %cst_6 = arith.constant dense<0.000000e+00> : vector<128xf32>
    %7 = vector.multi_reduction <add>, %6, %cst_6 [0] : vector<16x128xf32> to vector<128xf32>
    %8 = vector.shape_cast %7 : vector<128xf32> to vector<1x128xf32>
    %cst_7 = arith.constant 1.600000e+01 : f32
    %9 = vector.broadcast %cst_7 : f32 to vector<1x128xf32>
    %10 = arith.divf %8, %9 : vector<1x128xf32>
    %11 = vector.broadcast %10 : vector<1x128xf32> to vector<16x128xf32>
    %12 = arith.subf %6, %11 : vector<16x128xf32>
    %13 = arith.mulf %12, %12 : vector<16x128xf32>
    %cst_8 = arith.constant dense<0.000000e+00> : vector<128xf32>
    %14 = vector.multi_reduction <add>, %13, %cst_8 [0] : vector<16x128xf32> to vector<128xf32>
    %15 = vector.shape_cast %14 : vector<128xf32> to vector<1x128xf32>
    %cst_9 = arith.constant 1.600000e+01 : f32
    %16 = vector.broadcast %cst_9 : f32 to vector<1x128xf32>
    %17 = arith.divf %15, %16 : vector<1x128xf32>
    %cst_10 = arith.constant 9.99999974E-6 : f32
    %18 = vector.broadcast %cst_10 : f32 to vector<1x128xf32>
    %19 = arith.addf %17, %18 : vector<1x128xf32>
    %20 = math.rsqrt %19 : vector<1x128xf32>
    %21 = vector.broadcast %20 : vector<1x128xf32> to vector<16x128xf32>
    %22 = arith.mulf %12, %21 : vector<16x128xf32>
    %c0_11 = arith.constant 0 : index
    %c0_12 = arith.constant 0 : index
    %23 = vector.load %arg4[%c0_11, %c0_12] : memref<1x128xf32, #tpu.memory_space<vmem>>, vector<1x128xf32>
    %24 = vector.broadcast %23 : vector<1x128xf32> to vector<16x128xf32>
    %25 = arith.mulf %22, %24 : vector<16x128xf32>
    %c0_13 = arith.constant 0 : index
    %c0_14 = arith.constant 0 : index
    %26 = vector.load %arg5[%c0_13, %c0_14] : memref<1x128xf32, #tpu.memory_space<vmem>>, vector<1x128xf32>
    %27 = vector.broadcast %26 : vector<1x128xf32> to vector<16x128xf32>
    %28 = arith.addf %25, %27 : vector<16x128xf32>
    %cst_15 = arith.constant 0.000000e+00 : f32
    %29 = vector.broadcast %cst_15 : f32 to vector<16x128xf32>
    %30 = arith.maximumf %28, %29 : vector<16x128xf32>
    %31 = arith.truncf %30 : vector<16x128xf32> to vector<16x128xbf16>
    %c0_16 = arith.constant 0 : index
    %c0_17 = arith.constant 0 : index
    %c0_18 = arith.constant 0 : index
    %32 = vector.load %arg6[%c0_16, %c0_17, %c0_18] : memref<1x16x128xbf16, #tpu.memory_space<vmem>>, vector<1x16x128xbf16>
    %33 = vector.shape_cast %32 : vector<1x16x128xbf16> to vector<16x128xbf16>
    %34 = vector.shape_cast %31 : vector<16x128xbf16> to vector<1x16x128xbf16>
    tpu.vector_store %arg6[%c0_16, %c0_17, %c0_18], %34 {strides = array<i32>} : memref<1x16x128xbf16, #tpu.memory_space<vmem>>, vector<1x16x128xbf16>,
    return
  }
  func.func @transform_0(%arg0: i32) -> (i32, i32, i32) {
    %c0_i32 = arith.constant 0 : i32
    %c0_i32_0 = arith.constant 0 : i32
    %c0_i32_1 = arith.constant 0 : i32
    return %arg0, %c0_i32, %c0_i32_0 : i32, i32, i32
  }
  func.func @transform_1(%arg0: i32) -> (i32, i32) {
    %c0_i32 = arith.constant 0 : i32
    %c0_i32_0 = arith.constant 0 : i32
    %c0_i32_1 = arith.constant 0 : i32
    return %c0_i32, %c0_i32_0 : i32, i32
  }
  func.func @transform_2(%arg0: i32) -> (i32, i32) {
    %c0_i32 = arith.constant 0 : i32
    %c0_i32_0 = arith.constant 0 : i32
    %c0_i32_1 = arith.constant 0 : i32
    return %c0_i32, %c0_i32_0 : i32, i32
  }
  func.func @transform_3(%arg0: i32) -> (i32, i32) {
    %c0_i32 = arith.constant 0 : i32
    %c0_i32_0 = arith.constant 0 : i32
    %c0_i32_1 = arith.constant 0 : i32
    return %c0_i32, %c0_i32_0 : i32, i32
  }
  func.func @transform_4(%arg0: i32) -> (i32, i32) {
    %c0_i32 = arith.constant 0 : i32
    %c0_i32_0 = arith.constant 0 : i32
    %c0_i32_1 = arith.constant 0 : i32
    return %c0_i32, %c0_i32_0 : i32, i32
  }
  func.func @transform_5(%arg0: i32) -> (i32, i32, i32) {
    %c0_i32 = arith.constant 0 : i32
    %c0_i32_0 = arith.constant 0 : i32
    %c0_i32_1 = arith.constant 0 : i32
    return %arg0, %c0_i32, %c0_i32_0 : i32, i32, i32
  }
}

module attributes {stable_mosaic.version = 11 : i64} {
  func.func @kernel(%arg0: i32, %arg1: i32, %arg2: i32, %arg3: memref<32x512xbf16, #tpu.memory_space<vmem>>, %arg4: memref<512x128xbf16, #tpu.memory_space<vmem>>, %arg5: memref<1x128xf32, #tpu.memory_space<vmem>>, %arg6: memref<32x128xbf16, #tpu.memory_space<vmem>>, %arg7: memref<32x128xf32, #tpu.memory_space<vmem>>) attributes {dimension_semantics = [#tpu.dimension_semantics<parallel>, #tpu.dimension_semantics<parallel>, #tpu.dimension_semantics<arbitrary>], iteration_bounds = array<i64: 1, 1, 1>, scalar_prefetch = 0 : i64, scratch_operands = 1 : i64, tpu.core_type = #tpu.core_type<tc>, window_params = [{transform_indices = @transform_0, window_bounds = array<i64: 32, 512>}, {transform_indices = @transform_1, window_bounds = array<i64: 512, 128>}, {transform_indices = @transform_2, window_bounds = array<i64: 1, 128>}, {transform_indices = @transform_3, window_bounds = array<i64: 32, 128>}]} {
    %c0_i32 = arith.constant 0 : i32
    %0 = arith.cmpi eq, %arg2, %c0_i32 : i32
    %1 = arith.extui %0 : i1 to i32
    %c0_i32_0 = arith.constant 0 : i32
    %2 = arith.cmpi ne, %1, %c0_i32_0 : i32
    scf.if %2 {
      %cst_10 = arith.constant 0.000000e+00 : f32
      %12 = vector.broadcast %cst_10 : f32 to vector<32x128xf32>
      %c0_11 = arith.constant 0 : index
      %c0_12 = arith.constant 0 : index
      %13 = vector.load %arg7[%c0_11, %c0_12] : memref<32x128xf32, #tpu.memory_space<vmem>>, vector<32x128xf32>
      tpu.vector_store %arg7[%c0_11, %c0_12], %12 {strides = array<i32>} : memref<32x128xf32, #tpu.memory_space<vmem>>, vector<32x128xf32>,
    } else {
    }
    %c0 = arith.constant 0 : index
    %c0_1 = arith.constant 0 : index
    %3 = vector.load %arg7[%c0, %c0_1] : memref<32x128xf32, #tpu.memory_space<vmem>>, vector<32x128xf32>
    %c0_2 = arith.constant 0 : index
    %c0_3 = arith.constant 0 : index
    %4 = vector.load %arg3[%c0_2, %c0_3] : memref<32x512xbf16, #tpu.memory_space<vmem>>, vector<32x512xbf16>
    %c0_4 = arith.constant 0 : index
    %c0_5 = arith.constant 0 : index
    %5 = vector.load %arg4[%c0_4, %c0_5] : memref<512x128xbf16, #tpu.memory_space<vmem>>, vector<512x128xbf16>
    %cst = arith.constant dense<0.000000e+00> : vector<32x128xf32>
    %6 = tpu.matmul %4, %5, %cst {dimension_numbers = #tpu.dot_dimension_numbers<[1], [0], [0], [1], [0, 0, 1, 1], [], []>} : vector<32x512xbf16>, vector<512x128xbf16>, vector<32x128xf32> -> vector<32x128xf32>
    %7 = arith.addf %3, %6 : vector<32x128xf32>
    %c0_6 = arith.constant 0 : index
    %c0_7 = arith.constant 0 : index
    %8 = vector.load %arg7[%c0_6, %c0_7] : memref<32x128xf32, #tpu.memory_space<vmem>>, vector<32x128xf32>
    tpu.vector_store %arg7[%c0_6, %c0_7], %7 {strides = array<i32>} : memref<32x128xf32, #tpu.memory_space<vmem>>, vector<32x128xf32>,
    %c0_i32_8 = arith.constant 0 : i32
    %9 = arith.cmpi eq, %arg2, %c0_i32_8 : i32
    %10 = arith.extui %9 : i1 to i32
    %c0_i32_9 = arith.constant 0 : i32
    %11 = arith.cmpi ne, %10, %c0_i32_9 : i32
    scf.if %11 {
      %c0_10 = arith.constant 0 : index
      %c0_11 = arith.constant 0 : index
      %12 = vector.load %arg7[%c0_10, %c0_11] : memref<32x128xf32, #tpu.memory_space<vmem>>, vector<32x128xf32>
      %c0_12 = arith.constant 0 : index
      %c0_13 = arith.constant 0 : index
      %13 = vector.load %arg5[%c0_12, %c0_13] : memref<1x128xf32, #tpu.memory_space<vmem>>, vector<1x128xf32>
      %14 = vector.broadcast %13 : vector<1x128xf32> to vector<32x128xf32>
      %15 = arith.addf %12, %14 : vector<32x128xf32>
      %16 = arith.truncf %15 : vector<32x128xf32> to vector<32x128xbf16>
      %c0_14 = arith.constant 0 : index
      %c0_15 = arith.constant 0 : index
      %17 = vector.load %arg6[%c0_14, %c0_15] : memref<32x128xbf16, #tpu.memory_space<vmem>>, vector<32x128xbf16>
      tpu.vector_store %arg6[%c0_14, %c0_15], %16 {strides = array<i32>} : memref<32x128xbf16, #tpu.memory_space<vmem>>, vector<32x128xbf16>,
    } else {
    }
    return
  }
  func.func @transform_0(%arg0: i32, %arg1: i32, %arg2: i32) -> (i32, i32) {
    %c0_i32 = arith.constant 0 : i32
    return %arg0, %arg2 : i32, i32
  }
  func.func @transform_1(%arg0: i32, %arg1: i32, %arg2: i32) -> (i32, i32) {
    %c0_i32 = arith.constant 0 : i32
    return %arg2, %arg1 : i32, i32
  }
  func.func @transform_2(%arg0: i32, %arg1: i32, %arg2: i32) -> (i32, i32) {
    %c0_i32 = arith.constant 0 : i32
    %c0_i32_0 = arith.constant 0 : i32
    return %c0_i32, %arg1 : i32, i32
  }
  func.func @transform_3(%arg0: i32, %arg1: i32, %arg2: i32) -> (i32, i32) {
    %c0_i32 = arith.constant 0 : i32
    return %arg0, %arg1 : i32, i32
  }
}

module attributes {stable_mosaic.version = 11 : i64} {
  func.func @kernel(%arg0: i32, %arg1: i32, %arg2: i32, %arg3: memref<128x128xbf16, #tpu.memory_space<vmem>>, %arg4: memref<128x128xbf16, #tpu.memory_space<vmem>>, %arg5: memref<1x128xf32, #tpu.memory_space<vmem>>, %arg6: memref<128x128xbf16, #tpu.memory_space<vmem>>, %arg7: memref<128x128xf32, #tpu.memory_space<vmem>>) attributes {dimension_semantics = [#tpu.dimension_semantics<parallel>, #tpu.dimension_semantics<parallel>, #tpu.dimension_semantics<arbitrary>], iteration_bounds = array<i64: 1, 1, 1>, scalar_prefetch = 0 : i64, scratch_operands = 1 : i64, tpu.core_type = #tpu.core_type<tc>, window_params = [{transform_indices = @transform_0, window_bounds = array<i64: 128, 128>}, {transform_indices = @transform_1, window_bounds = array<i64: 128, 128>}, {transform_indices = @transform_2, window_bounds = array<i64: 1, 128>}, {transform_indices = @transform_3, window_bounds = array<i64: 128, 128>}]} {
    %c0_i32 = arith.constant 0 : i32
    %0 = arith.cmpi eq, %arg2, %c0_i32 : i32
    %1 = arith.extui %0 : i1 to i32
    %c0_i32_0 = arith.constant 0 : i32
    %2 = arith.cmpi ne, %1, %c0_i32_0 : i32
    scf.if %2 {
      %cst_10 = arith.constant 0.000000e+00 : f32
      %12 = vector.broadcast %cst_10 : f32 to vector<128x128xf32>
      %c0_11 = arith.constant 0 : index
      %c0_12 = arith.constant 0 : index
      %13 = vector.load %arg7[%c0_11, %c0_12] : memref<128x128xf32, #tpu.memory_space<vmem>>, vector<128x128xf32>
      tpu.vector_store %arg7[%c0_11, %c0_12], %12 {strides = array<i32>} : memref<128x128xf32, #tpu.memory_space<vmem>>, vector<128x128xf32>,
    } else {
    }
    %c0 = arith.constant 0 : index
    %c0_1 = arith.constant 0 : index
    %3 = vector.load %arg7[%c0, %c0_1] : memref<128x128xf32, #tpu.memory_space<vmem>>, vector<128x128xf32>
    %c0_2 = arith.constant 0 : index
    %c0_3 = arith.constant 0 : index
    %4 = vector.load %arg3[%c0_2, %c0_3] : memref<128x128xbf16, #tpu.memory_space<vmem>>, vector<128x128xbf16>
    %c0_4 = arith.constant 0 : index
    %c0_5 = arith.constant 0 : index
    %5 = vector.load %arg4[%c0_4, %c0_5] : memref<128x128xbf16, #tpu.memory_space<vmem>>, vector<128x128xbf16>
    %cst = arith.constant dense<0.000000e+00> : vector<128x128xf32>
    %6 = tpu.matmul %4, %5, %cst {dimension_numbers = #tpu.dot_dimension_numbers<[1], [0], [0], [1], [0, 0, 1, 1], [], []>} : vector<128x128xbf16>, vector<128x128xbf16>, vector<128x128xf32> -> vector<128x128xf32>
    %7 = arith.addf %3, %6 : vector<128x128xf32>
    %c0_6 = arith.constant 0 : index
    %c0_7 = arith.constant 0 : index
    %8 = vector.load %arg7[%c0_6, %c0_7] : memref<128x128xf32, #tpu.memory_space<vmem>>, vector<128x128xf32>
    tpu.vector_store %arg7[%c0_6, %c0_7], %7 {strides = array<i32>} : memref<128x128xf32, #tpu.memory_space<vmem>>, vector<128x128xf32>,
    %c0_i32_8 = arith.constant 0 : i32
    %9 = arith.cmpi eq, %arg2, %c0_i32_8 : i32
    %10 = arith.extui %9 : i1 to i32
    %c0_i32_9 = arith.constant 0 : i32
    %11 = arith.cmpi ne, %10, %c0_i32_9 : i32
    scf.if %11 {
      %c0_10 = arith.constant 0 : index
      %c0_11 = arith.constant 0 : index
      %12 = vector.load %arg7[%c0_10, %c0_11] : memref<128x128xf32, #tpu.memory_space<vmem>>, vector<128x128xf32>
      %c0_12 = arith.constant 0 : index
      %c0_13 = arith.constant 0 : index
      %13 = vector.load %arg5[%c0_12, %c0_13] : memref<1x128xf32, #tpu.memory_space<vmem>>, vector<1x128xf32>
      %14 = vector.broadcast %13 : vector<1x128xf32> to vector<128x128xf32>
      %15 = arith.addf %12, %14 : vector<128x128xf32>
      %16 = arith.truncf %15 : vector<128x128xf32> to vector<128x128xbf16>
      %c0_14 = arith.constant 0 : index
      %c0_15 = arith.constant 0 : index
      %17 = vector.load %arg6[%c0_14, %c0_15] : memref<128x128xbf16, #tpu.memory_space<vmem>>, vector<128x128xbf16>
      tpu.vector_store %arg6[%c0_14, %c0_15], %16 {strides = array<i32>} : memref<128x128xbf16, #tpu.memory_space<vmem>>, vector<128x128xbf16>,
    } else {
    }
    return
  }
  func.func @transform_0(%arg0: i32, %arg1: i32, %arg2: i32) -> (i32, i32) {
    %c0_i32 = arith.constant 0 : i32
    return %arg0, %arg2 : i32, i32
  }
  func.func @transform_1(%arg0: i32, %arg1: i32, %arg2: i32) -> (i32, i32) {
    %c0_i32 = arith.constant 0 : i32
    return %arg2, %arg1 : i32, i32
  }
  func.func @transform_2(%arg0: i32, %arg1: i32, %arg2: i32) -> (i32, i32) {
    %c0_i32 = arith.constant 0 : i32
    %c0_i32_0 = arith.constant 0 : i32
    return %c0_i32, %arg1 : i32, i32
  }
  func.func @transform_3(%arg0: i32, %arg1: i32, %arg2: i32) -> (i32, i32) {
    %c0_i32 = arith.constant 0 : i32
    return %arg0, %arg1 : i32, i32
  }
}

module attributes {stable_mosaic.version = 11 : i64} {
  func.func @kernel(%arg0: i32, %arg1: memref<1x256x16xbf16, #tpu.memory_space<vmem>>, %arg2: memref<1x16xf32, #tpu.memory_space<vmem>>, %arg3: memref<1x16xf32, #tpu.memory_space<vmem>>, %arg4: memref<1x256x16xbf16, #tpu.memory_space<vmem>>) attributes {dimension_semantics = [#tpu.dimension_semantics<parallel>], iteration_bounds = array<i64: 2>, scalar_prefetch = 0 : i64, scratch_operands = 0 : i64, tpu.core_type = #tpu.core_type<tc>, window_params = [{transform_indices = @transform_0, window_bounds = array<i64: 1, 256, 16>}, {pipeline_mode = #tpu.pipeline_mode<synchronous>, transform_indices = @transform_1, window_bounds = array<i64: 1, 16>}, {pipeline_mode = #tpu.pipeline_mode<synchronous>, transform_indices = @transform_2, window_bounds = array<i64: 1, 16>}, {transform_indices = @transform_3, window_bounds = array<i64: 1, 256, 16>}]} {
    %c0 = arith.constant 0 : index
    %c0_0 = arith.constant 0 : index
    %c0_1 = arith.constant 0 : index
    %0 = vector.load %arg1[%c0, %c0_0, %c0_1] : memref<1x256x16xbf16, #tpu.memory_space<vmem>>, vector<1x256x16xbf16>
    %1 = vector.shape_cast %0 : vector<1x256x16xbf16> to vector<256x16xbf16>
    %2 = arith.extf %1 : vector<256x16xbf16> to vector<256x16xf32>
    %cst = arith.constant dense<0.000000e+00> : vector<16xf32>
    %3 = vector.multi_reduction <add>, %2, %cst [0] : vector<256x16xf32> to vector<16xf32>
    %4 = vector.shape_cast %3 : vector<16xf32> to vector<1x16xf32>
    %cst_2 = arith.constant 2.560000e+02 : f32
    %5 = vector.broadcast %cst_2 : f32 to vector<1x16xf32>
    %6 = arith.divf %4, %5 : vector<1x16xf32>
    %7 = vector.broadcast %6 : vector<1x16xf32> to vector<256x16xf32>
    %8 = arith.subf %2, %7 : vector<256x16xf32>
    %9 = arith.mulf %8, %8 : vector<256x16xf32>
    %cst_3 = arith.constant dense<0.000000e+00> : vector<16xf32>
    %10 = vector.multi_reduction <add>, %9, %cst_3 [0] : vector<256x16xf32> to vector<16xf32>
    %11 = vector.shape_cast %10 : vector<16xf32> to vector<1x16xf32>
    %cst_4 = arith.constant 2.560000e+02 : f32
    %12 = vector.broadcast %cst_4 : f32 to vector<1x16xf32>
    %13 = arith.divf %11, %12 : vector<1x16xf32>
    %cst_5 = arith.constant 9.99999974E-6 : f32
    %14 = vector.broadcast %cst_5 : f32 to vector<1x16xf32>
    %15 = arith.addf %13, %14 : vector<1x16xf32>
    %16 = math.rsqrt %15 : vector<1x16xf32>
    %17 = vector.broadcast %16 : vector<1x16xf32> to vector<256x16xf32>
    %18 = arith.mulf %8, %17 : vector<256x16xf32>
    %c0_6 = arith.constant 0 : index
    %c0_7 = arith.constant 0 : index
    %19 = vector.load %arg2[%c0_6, %c0_7] : memref<1x16xf32, #tpu.memory_space<vmem>>, vector<1x16xf32>
    %20 = vector.broadcast %19 : vector<1x16xf32> to vector<256x16xf32>
    %21 = arith.mulf %18, %20 : vector<256x16xf32>
    %c0_8 = arith.constant 0 : index
    %c0_9 = arith.constant 0 : index
    %22 = vector.load %arg3[%c0_8, %c0_9] : memref<1x16xf32, #tpu.memory_space<vmem>>, vector<1x16xf32>
    %23 = vector.broadcast %22 : vector<1x16xf32> to vector<256x16xf32>
    %24 = arith.addf %21, %23 : vector<256x16xf32>
    %cst_10 = arith.constant 0.000000e+00 : f32
    %25 = vector.broadcast %cst_10 : f32 to vector<256x16xf32>
    %26 = arith.maximumf %24, %25 : vector<256x16xf32>
    %27 = arith.truncf %26 : vector<256x16xf32> to vector<256x16xbf16>
    %c0_11 = arith.constant 0 : index
    %c0_12 = arith.constant 0 : index
    %c0_13 = arith.constant 0 : index
    %28 = vector.load %arg4[%c0_11, %c0_12, %c0_13] : memref<1x256x16xbf16, #tpu.memory_space<vmem>>, vector<1x256x16xbf16>
    %29 = vector.shape_cast %28 : vector<1x256x16xbf16> to vector<256x16xbf16>
    %30 = vector.shape_cast %27 : vector<256x16xbf16> to vector<1x256x16xbf16>
    tpu.vector_store %arg4[%c0_11, %c0_12, %c0_13], %30 {strides = array<i32>} : memref<1x256x16xbf16, #tpu.memory_space<vmem>>, vector<1x256x16xbf16>,
    return
  }
  func.func @transform_0(%arg0: i32) -> (i32, i32, i32) {
    %c0_i32 = arith.constant 0 : i32
    %c0_i32_0 = arith.constant 0 : i32
    %c0_i32_1 = arith.constant 0 : i32
    return %arg0, %c0_i32, %c0_i32_0 : i32, i32, i32
  }
  func.func @transform_1(%arg0: i32) -> (i32, i32) {
    %c0_i32 = arith.constant 0 : i32
    %c0_i32_0 = arith.constant 0 : i32
    %c0_i32_1 = arith.constant 0 : i32
    return %c0_i32, %c0_i32_0 : i32, i32
  }
  func.func @transform_2(%arg0: i32) -> (i32, i32) {
    %c0_i32 = arith.constant 0 : i32
    %c0_i32_0 = arith.constant 0 : i32
    %c0_i32_1 = arith.constant 0 : i32
    return %c0_i32, %c0_i32_0 : i32, i32
  }
  func.func @transform_3(%arg0: i32) -> (i32, i32, i32) {
    %c0_i32 = arith.constant 0 : i32
    %c0_i32_0 = arith.constant 0 : i32
    %c0_i32_1 = arith.constant 0 : i32
    return %arg0, %c0_i32, %c0_i32_0 : i32, i32, i32
  }
}

module attributes {stable_mosaic.version = 11 : i64} {
  func.func @kernel(%arg0: i32, %arg1: memref<1x352x112xbf16, #tpu.memory_space<vmem>>, %arg2: memref<7x112x3xbf16, #tpu.memory_space<vmem>>, %arg3: memref<1x3xf32, #tpu.memory_space<vmem>>, %arg4: memref<1x256x3xf32, #tpu.memory_space<vmem>>) attributes {dimension_semantics = [#tpu.dimension_semantics<parallel>], iteration_bounds = array<i64: 2>, scalar_prefetch = 0 : i64, scratch_operands = 0 : i64, tpu.core_type = #tpu.core_type<tc>, window_params = [{transform_indices = @transform_0, window_bounds = array<i64: 1, 352, 112>}, {pipeline_mode = #tpu.pipeline_mode<synchronous>, transform_indices = @transform_1, window_bounds = array<i64: 7, 112, 3>}, {pipeline_mode = #tpu.pipeline_mode<synchronous>, transform_indices = @transform_2, window_bounds = array<i64: 1, 3>}, {transform_indices = @transform_3, window_bounds = array<i64: 1, 256, 3>}]} {
    %c0 = arith.constant 0 : index
    %c0_0 = arith.constant 0 : index
    %c0_1 = arith.constant 0 : index
    %0 = vector.load %arg1[%c0, %c0_0, %c0_1] : memref<1x352x112xbf16, #tpu.memory_space<vmem>>, vector<1x352x112xbf16>
    %1 = vector.shape_cast %0 : vector<1x352x112xbf16> to vector<352x112xbf16>
    %cst = arith.constant 0.000000e+00 : f32
    %2 = vector.broadcast %cst : f32 to vector<256x3xf32>
    %3 = vector.extract_strided_slice %1 {offsets = [0, 0], sizes = [256, 112], strides = [1, 1]} : vector<352x112xbf16> to vector<256x112xbf16>
    %c0_2 = arith.constant 0 : index
    %c0_3 = arith.constant 0 : index
    %c0_4 = arith.constant 0 : index
    %4 = vector.load %arg2[%c0_2, %c0_3, %c0_4] : memref<7x112x3xbf16, #tpu.memory_space<vmem>>, vector<1x112x3xbf16>
    %5 = vector.shape_cast %4 : vector<1x112x3xbf16> to vector<112x3xbf16>
    %cst_5 = arith.constant dense<0.000000e+00> : vector<256x3xf32>
    %6 = tpu.matmul %3, %5, %cst_5 {dimension_numbers = #tpu.dot_dimension_numbers<[1], [0], [0], [1], [0, 0, 1, 1], [], []>} : vector<256x112xbf16>, vector<112x3xbf16>, vector<256x3xf32> -> vector<256x3xf32>
    %7 = arith.addf %2, %6 : vector<256x3xf32>
    %8 = vector.extract_strided_slice %1 {offsets = [16, 0], sizes = [256, 112], strides = [1, 1]} : vector<352x112xbf16> to vector<256x112xbf16>
    %c1 = arith.constant 1 : index
    %c0_6 = arith.constant 0 : index
    %c0_7 = arith.constant 0 : index
    %9 = vector.load %arg2[%c1, %c0_6, %c0_7] : memref<7x112x3xbf16, #tpu.memory_space<vmem>>, vector<1x112x3xbf16>
    %10 = vector.shape_cast %9 : vector<1x112x3xbf16> to vector<112x3xbf16>
    %cst_8 = arith.constant dense<0.000000e+00> : vector<256x3xf32>
    %11 = tpu.matmul %8, %10, %cst_8 {dimension_numbers = #tpu.dot_dimension_numbers<[1], [0], [0], [1], [0, 0, 1, 1], [], []>} : vector<256x112xbf16>, vector<112x3xbf16>, vector<256x3xf32> -> vector<256x3xf32>
    %12 = arith.addf %7, %11 : vector<256x3xf32>
    %13 = vector.extract_strided_slice %1 {offsets = [32, 0], sizes = [256, 112], strides = [1, 1]} : vector<352x112xbf16> to vector<256x112xbf16>
    %c2 = arith.constant 2 : index
    %c0_9 = arith.constant 0 : index
    %c0_10 = arith.constant 0 : index
    %14 = vector.load %arg2[%c2, %c0_9, %c0_10] : memref<7x112x3xbf16, #tpu.memory_space<vmem>>, vector<1x112x3xbf16>
    %15 = vector.shape_cast %14 : vector<1x112x3xbf16> to vector<112x3xbf16>
    %cst_11 = arith.constant dense<0.000000e+00> : vector<256x3xf32>
    %16 = tpu.matmul %13, %15, %cst_11 {dimension_numbers = #tpu.dot_dimension_numbers<[1], [0], [0], [1], [0, 0, 1, 1], [], []>} : vector<256x112xbf16>, vector<112x3xbf16>, vector<256x3xf32> -> vector<256x3xf32>
    %17 = arith.addf %12, %16 : vector<256x3xf32>
    %18 = vector.extract_strided_slice %1 {offsets = [48, 0], sizes = [256, 112], strides = [1, 1]} : vector<352x112xbf16> to vector<256x112xbf16>
    %c3 = arith.constant 3 : index
    %c0_12 = arith.constant 0 : index
    %c0_13 = arith.constant 0 : index
    %19 = vector.load %arg2[%c3, %c0_12, %c0_13] : memref<7x112x3xbf16, #tpu.memory_space<vmem>>, vector<1x112x3xbf16>
    %20 = vector.shape_cast %19 : vector<1x112x3xbf16> to vector<112x3xbf16>
    %cst_14 = arith.constant dense<0.000000e+00> : vector<256x3xf32>
    %21 = tpu.matmul %18, %20, %cst_14 {dimension_numbers = #tpu.dot_dimension_numbers<[1], [0], [0], [1], [0, 0, 1, 1], [], []>} : vector<256x112xbf16>, vector<112x3xbf16>, vector<256x3xf32> -> vector<256x3xf32>
    %22 = arith.addf %17, %21 : vector<256x3xf32>
    %23 = vector.extract_strided_slice %1 {offsets = [64, 0], sizes = [256, 112], strides = [1, 1]} : vector<352x112xbf16> to vector<256x112xbf16>
    %c4 = arith.constant 4 : index
    %c0_15 = arith.constant 0 : index
    %c0_16 = arith.constant 0 : index
    %24 = vector.load %arg2[%c4, %c0_15, %c0_16] : memref<7x112x3xbf16, #tpu.memory_space<vmem>>, vector<1x112x3xbf16>
    %25 = vector.shape_cast %24 : vector<1x112x3xbf16> to vector<112x3xbf16>
    %cst_17 = arith.constant dense<0.000000e+00> : vector<256x3xf32>
    %26 = tpu.matmul %23, %25, %cst_17 {dimension_numbers = #tpu.dot_dimension_numbers<[1], [0], [0], [1], [0, 0, 1, 1], [], []>} : vector<256x112xbf16>, vector<112x3xbf16>, vector<256x3xf32> -> vector<256x3xf32>
    %27 = arith.addf %22, %26 : vector<256x3xf32>
    %28 = vector.extract_strided_slice %1 {offsets = [80, 0], sizes = [256, 112], strides = [1, 1]} : vector<352x112xbf16> to vector<256x112xbf16>
    %c5 = arith.constant 5 : index
    %c0_18 = arith.constant 0 : index
    %c0_19 = arith.constant 0 : index
    %29 = vector.load %arg2[%c5, %c0_18, %c0_19] : memref<7x112x3xbf16, #tpu.memory_space<vmem>>, vector<1x112x3xbf16>
    %30 = vector.shape_cast %29 : vector<1x112x3xbf16> to vector<112x3xbf16>
    %cst_20 = arith.constant dense<0.000000e+00> : vector<256x3xf32>
    %31 = tpu.matmul %28, %30, %cst_20 {dimension_numbers = #tpu.dot_dimension_numbers<[1], [0], [0], [1], [0, 0, 1, 1], [], []>} : vector<256x112xbf16>, vector<112x3xbf16>, vector<256x3xf32> -> vector<256x3xf32>
    %32 = arith.addf %27, %31 : vector<256x3xf32>
    %33 = vector.extract_strided_slice %1 {offsets = [96, 0], sizes = [256, 112], strides = [1, 1]} : vector<352x112xbf16> to vector<256x112xbf16>
    %c6 = arith.constant 6 : index
    %c0_21 = arith.constant 0 : index
    %c0_22 = arith.constant 0 : index
    %34 = vector.load %arg2[%c6, %c0_21, %c0_22] : memref<7x112x3xbf16, #tpu.memory_space<vmem>>, vector<1x112x3xbf16>
    %35 = vector.shape_cast %34 : vector<1x112x3xbf16> to vector<112x3xbf16>
    %cst_23 = arith.constant dense<0.000000e+00> : vector<256x3xf32>
    %36 = tpu.matmul %33, %35, %cst_23 {dimension_numbers = #tpu.dot_dimension_numbers<[1], [0], [0], [1], [0, 0, 1, 1], [], []>} : vector<256x112xbf16>, vector<112x3xbf16>, vector<256x3xf32> -> vector<256x3xf32>
    %37 = arith.addf %32, %36 : vector<256x3xf32>
    %c0_24 = arith.constant 0 : index
    %c0_25 = arith.constant 0 : index
    %38 = vector.load %arg3[%c0_24, %c0_25] : memref<1x3xf32, #tpu.memory_space<vmem>>, vector<1x3xf32>
    %39 = vector.broadcast %38 : vector<1x3xf32> to vector<256x3xf32>
    %40 = arith.addf %37, %39 : vector<256x3xf32>
    %41 = math.tanh %40 : vector<256x3xf32>
    %c0_26 = arith.constant 0 : index
    %c0_27 = arith.constant 0 : index
    %c0_28 = arith.constant 0 : index
    %42 = vector.load %arg4[%c0_26, %c0_27, %c0_28] : memref<1x256x3xf32, #tpu.memory_space<vmem>>, vector<1x256x3xf32>
    %43 = vector.shape_cast %42 : vector<1x256x3xf32> to vector<256x3xf32>
    %44 = vector.shape_cast %41 : vector<256x3xf32> to vector<1x256x3xf32>
    tpu.vector_store %arg4[%c0_26, %c0_27, %c0_28], %44 {strides = array<i32>} : memref<1x256x3xf32, #tpu.memory_space<vmem>>, vector<1x256x3xf32>,
    return
  }
  func.func @transform_0(%arg0: i32) -> (i32, i32, i32) {
    %c0_i32 = arith.constant 0 : i32
    %c0_i32_0 = arith.constant 0 : i32
    %c0_i32_1 = arith.constant 0 : i32
    return %arg0, %c0_i32, %c0_i32_0 : i32, i32, i32
  }
  func.func @transform_1(%arg0: i32) -> (i32, i32, i32) {
    %c0_i32 = arith.constant 0 : i32
    %c0_i32_0 = arith.constant 0 : i32
    %c0_i32_1 = arith.constant 0 : i32
    %c0_i32_2 = arith.constant 0 : i32
    return %c0_i32, %c0_i32_0, %c0_i32_1 : i32, i32, i32
  }
  func.func @transform_2(%arg0: i32) -> (i32, i32) {
    %c0_i32 = arith.constant 0 : i32
    %c0_i32_0 = arith.constant 0 : i32
    %c0_i32_1 = arith.constant 0 : i32
    return %c0_i32, %c0_i32_0 : i32, i32
  }
  func.func @transform_3(%arg0: i32) -> (i32, i32, i32) {
    %c0_i32 = arith.constant 0 : i32
    %c0_i32_0 = arith.constant 0 : i32
    %c0_i32_1 = arith.constant 0 : i32
    return %arg0, %c0_i32, %c0_i32_0 : i32, i32, i32
  }
}

</mosaic_0001>

<llo_original>
// kernel: forward.46
$region0: #{forward.46}
  #allocation0 [shape = 'u32[]', space=smem, size = 0x4, offset = 0x4, fixed_abs, tag = 'smem constant byte address 0x4 - core index']
  #allocation1 [shape = 'u32[72,128]{1,0:T(1,128)}', space=vmem, size = 0x9000, scoped, tag = 'internal scratch']
  %s0 = inlined_call_operand.vmem [shape: bf16[2,352,32], index: 0, kind: input, shape index: {}]
  %s1 = inlined_call_operand.vmem [shape: bf16[7,32,16], index: 1, kind: input, shape index: {}]
  %s2 = inlined_call_operand.vmem [shape: f32[1,16], index: 2, kind: input, shape index: {}]
  %s3 = inlined_call_operand.vmem [shape: f32[1,16], index: 3, kind: input, shape index: {}]
  %s4 = inlined_call_operand.vmem [shape: f32[1,16], index: 4, kind: input, shape index: {}]
  %s5 = inlined_call_operand.vmem [shape: bf16[2,256,16], index: 5, kind: output, shape index: {}]
  %s6 = sld [smem:[#allocation0]]
  $region53: #{forward.46} parent=0
    _
  %s8 = ssub.s32 1, %s6
  %s9 = scalar_select 0, %s8, %s6
  loop: start=0, step=1, limit=4
  $region2: #{forward.46} parent=0 // loop_pre_header
    _
  $region3: #{forward.46} parent=0 // loop_header
    %s11 = sphi 0, %s15
    %p12 = scmp.ge.s32.totalorder %s11, 4
    %s21 = sphi 0, %s23
    %s24 = sphi 0, %s21
    %s25 = sphi 0, %s24
    %s41 = sphi 0, %s25
    %s45 = sphi 0, %s45
    %s47 = sphi 0, %s45
    %s48 = sphi 0, %s47
    %s62 = sphi 0, %s48
    %s66 = sphi 0, %s66
    %s68 = sphi 0, %s66
    %s69 = sphi 0, %s68
    %s83 = sphi 0, %s69
    %s87 = sphi 0, %s87
    %s89 = sphi 0, %s87
    %s90 = sphi 0, %s89
    %s104 = sphi 0, %s90
    %s108 = sphi 0, %s108
    %s110 = sphi 0, %s108
    %s111 = sphi 0, %s110
    %s125 = sphi 0, %s111
    %s131 = sphi 0, %s133
    %s134 = sphi 0, %s131
    %s135 = sphi 0, %s134
    %s151 = sphi 0, %s135
  $region4: #{forward.46} parent=0 // loop_header_branch
    %14 = sbr.rel (%p12) target = $region8
  $region5: #{forward.46} parent=0 // loop_body
    %s16 = ssub.s32 %s11, 1
    %s17 = ssub.s32 %s11, 2
    %s18 = sadd.s32 %s11, 1
    %s19 = ssub.s32 %s11, %s18
    %p20 = scmp.eq.s32.totalorder %s19, 0
    %s22 = sadd.s32 %s21, 1
    %s23 = scalar_select %p20, %s21, %s22
    %p26 = pneg %p20
    %p27 = scmp.eq.s32.totalorder %s11, 1
    %p28 = por %p26, %p27
    %p29 = scmp.ne.s32.totalorder %s21, %s24
    %p30 = scmp.eq.s32.totalorder %s11, 0
    %p31 = por %p29, %p30
    %p32 = scmp.ne.s32.totalorder %s21, %s24
    %p33 = scmp.eq.s32.totalorder %s16, 1
    %p34 = por %p32, %p33
    %p35 = scmp.ne.s32.totalorder %s24, %s25
    %p36 = scmp.eq.s32.totalorder %s16, 0
    %p37 = por %p35, %p36
    %p38 = scmp.ne.s32.totalorder %s24, %s25
    %p39 = scmp.eq.s32.totalorder %s17, 1
    %p40 = por %p38, %p39
    %p42 = scmp.ne.s32.totalorder %s25, %s41
    %p43 = scmp.eq.s32.totalorder %s17, 0
    %p44 = por %p42, %p43
    %s46 = sadd.s32 %s45, 1
    %p49 = scmp.eq.s32.totalorder %s11, 1
    %p50 = scmp.ne.s32.totalorder %s45, %s47
    %p51 = scmp.eq.s32.totalorder %s11, 0
    %p52 = por %p50, %p51
    %p53 = scmp.ne.s32.totalorder %s45, %s47
    %p54 = scmp.eq.s32.totalorder %s16, 1
    %p55 = por %p53, %p54
    %p56 = scmp.ne.s32.totalorder %s47, %s48
    %p57 = scmp.eq.s32.totalorder %s16, 0
    %p58 = por %p56, %p57
    %p59 = scmp.ne.s32.totalorder %s47, %s48
    %p60 = scmp.eq.s32.totalorder %s17, 1
    %p61 = por %p59, %p60
    %p63 = scmp.ne.s32.totalorder %s48, %s62
    %p64 = scmp.eq.s32.totalorder %s17, 0
    %p65 = por %p63, %p64
    %s67 = sadd.s32 %s66, 1
    %p70 = scmp.eq.s32.totalorder %s11, 1
    %p71 = scmp.ne.s32.totalorder %s66, %s68
    %p72 = scmp.eq.s32.totalorder %s11, 0
    %p73 = por %p71, %p72
    %p74 = scmp.ne.s32.totalorder %s66, %s68
    %p75 = scmp.eq.s32.totalorder %s16, 1
    %p76 = por %p74, %p75
    %p77 = scmp.ne.s32.totalorder %s68, %s69
    %p78 = scmp.eq.s32.totalorder %s16, 0
    %p79 = por %p77, %p78
    %p80 = scmp.ne.s32.totalorder %s68, %s69
    %p81 = scmp.eq.s32.totalorder %s17, 1
    %p82 = por %p80, %p81
    %p84 = scmp.ne.s32.totalorder %s69, %s83
    %p85 = scmp.eq.s32.totalorder %s17, 0
    %p86 = por %p84, %p85
    %s88 = sadd.s32 %s87, 1
    %p91 = scmp.eq.s32.totalorder %s11, 1
    %p92 = scmp.ne.s32.totalorder %s87, %s89
    %p93 = scmp.eq.s32.totalorder %s11, 0
    %p94 = por %p92, %p93
    %p95 = scmp.ne.s32.totalorder %s87, %s89
    %p96 = scmp.eq.s32.totalorder %s16, 1
    %p97 = por %p95, %p96
    %p98 = scmp.ne.s32.totalorder %s89, %s90
    %p99 = scmp.eq.s32.totalorder %s16, 0
    %p100 = por %p98, %p99
    %p101 = scmp.ne.s32.totalorder %s89, %s90
    %p102 = scmp.eq.s32.totalorder %s17, 1
    %p103 = por %p101, %p102
    %p105 = scmp.ne.s32.totalorder %s90, %s104
    %p106 = scmp.eq.s32.totalorder %s17, 0
    %p107 = por %p105, %p106
    %s109 = sadd.s32 %s108, 1
    %p112 = scmp.eq.s32.totalorder %s11, 1
    %p113 = scmp.ne.s32.totalorder %s108, %s110
    %p114 = scmp.eq.s32.totalorder %s11, 0
    %p115 = por %p113, %p114
    %p116 = scmp.ne.s32.totalorder %s108, %s110
    %p117 = scmp.eq.s32.totalorder %s16, 1
    %p118 = por %p116, %p117
    %p119 = scmp.ne.s32.totalorder %s110, %s111
    %p120 = scmp.eq.s32.totalorder %s16, 0
    %p121 = por %p119, %p120
    %p122 = scmp.ne.s32.totalorder %s110, %s111
    %p123 = scmp.eq.s32.totalorder %s17, 1
    %p124 = por %p122, %p123
    %p126 = scmp.ne.s32.totalorder %s111, %s125
    %p127 = scmp.eq.s32.totalorder %s17, 0
    %p128 = por %p126, %p127
    %s129 = ssub.s32 %s11, %s18
    %p130 = scmp.eq.s32.totalorder %s129, 0
    %s132 = sadd.s32 %s131, 1
    %s133 = scalar_select %p130, %s131, %s132
    %p136 = pneg %p130
    %p137 = scmp.eq.s32.totalorder %s11, 1
    %p138 = por %p136, %p137
    %p139 = scmp.ne.s32.totalorder %s131, %s134
    %p140 = scmp.eq.s32.totalorder %s11, 0
    %p141 = por %p139, %p140
    %p142 = scmp.ne.s32.totalorder %s131, %s134
    %p143 = scmp.eq.s32.totalorder %s16, 1
    %p144 = por %p142, %p143
    %p145 = scmp.ne.s32.totalorder %s134, %s135
    %p146 = scmp.eq.s32.totalorder %s16, 0
    %p147 = por %p145, %p146
    %p148 = scmp.ne.s32.totalorder %s134, %s135
    %p149 = scmp.eq.s32.totalorder %s17, 1
    %p150 = por %p148, %p149
    %p152 = scmp.ne.s32.totalorder %s135, %s151
    %p153 = scmp.eq.s32.totalorder %s17, 0
    %p154 = por %p152, %p153
    %p155 = scmp.le.s32.totalorder 1, %s11
    %p156 = scmp.lt.s32.totalorder %s11, 3
    %p157 = pnand %p155, %p156
    %p158 = pneg %p157
    // Predicated region
    $region9: #{forward.46} parent=5 // pred_check
      _
    $region10: #{forward.46} parent=5 // pred_check_branch
      %160 = sbr.rel (%p157) target = $region12
    $region11: #{forward.46} parent=5 // pred_region
      %s161 = ssub.s32 %s11, 1
      // Predicated region
      $region13: #{forward.46} parent=11 // pred_check
        %p162 = pneg %p58
      $region14: #{forward.46} parent=11 // pred_check_branch
        %164 = sbr.rel (%p162) target = $region16
      $region15: #{forward.46} parent=11 // pred_region
        _
      $region16: #{forward.46} parent=11 // pred_fallthru
        _
      // Predicated region
      $region17: #{forward.46} parent=11 // pred_check
        %p165 = pneg %p79
      $region18: #{forward.46} parent=11 // pred_check_branch
        %167 = sbr.rel (%p165) target = $region20
      $region19: #{forward.46} parent=11 // pred_region
        _
      $region20: #{forward.46} parent=11 // pred_fallthru
        _
      // Predicated region
      $region21: #{forward.46} parent=11 // pred_check
        %p168 = pneg %p100
      $region22: #{forward.46} parent=11 // pred_check_branch
        %170 = sbr.rel (%p168) target = $region24
      $region23: #{forward.46} parent=11 // pred_region
        _
      $region24: #{forward.46} parent=11 // pred_fallthru
        _
      // Predicated region
      $region25: #{forward.46} parent=11 // pred_check
        %p171 = pneg %p121
      $region26: #{forward.46} parent=11 // pred_check_branch
        %173 = sbr.rel (%p171) target = $region28
      $region27: #{forward.46} parent=11 // pred_region
        _
      $region28: #{forward.46} parent=11 // pred_fallthru
        _
    $region12: #{forward.46} parent=5 // pred_fallthru
      _
    %p174 = scmp.lt.s32.totalorder %s11, 2
    // Predicated region
    $region29: #{forward.46} parent=5 // pred_check
      %p175 = pneg %p174
    $region30: #{forward.46} parent=5 // pred_check_branch
      %177 = sbr.rel (%p175) target = $region32
    $region31: #{forward.46} parent=5 // pred_region
      // Predicated region
      $region33: #{forward.46} parent=31 // pred_check
        %p178 = pneg %p31
      $region34: #{forward.46} parent=31 // pred_check_branch
        %180 = sbr.rel (%p178) target = $region36
      $region35: #{forward.46} parent=31 // pred_region
        %p181 = scmp.lt.s32.totalorder %s11, 1
        %s182 = scalar_select %p181, %s11, 1
        %s183 = smul.addr %s182, 44
        %s184 = smul.addr %s183, 4
        %s185 = scalar_lea.vmem %s0, %s184
      $region36: #{forward.46} parent=31 // pred_fallthru
        _
    $region32: #{forward.46} parent=5 // pred_fallthru
      _
    %p186 = scmp.le.s32.totalorder 1, %s11
    %p187 = scmp.lt.s32.totalorder %s11, 3
    %p188 = pnand %p186, %p187
    %p189 = pneg %p188
    // Predicated region
    $region37: #{forward.46} parent=5 // pred_check
      _
    $region38: #{forward.46} parent=5 // pred_check_branch
      %191 = sbr.rel (%p188) target = $region40
    $region39: #{forward.46} parent=5 // pred_region
      %s192 = ssub.s32 %s11, 1
      %p193 = scmp.lt.s32.totalorder %s16, 1
      %s194 = scalar_select %p193, %s16, 1
      %s195 = smul.addr %s194, 44
      %s196 = smul.addr %s195, 4
      %s197 = scalar_lea.vmem %s0, %s196
      %p198 = pneg %p37
      %p199 = pneg %p34
      %p200 = pneg %p58
      %p201 = pneg %p55
      %p202 = pneg %p79
      %p203 = pneg %p76
      %p204 = pneg %p100
      %p205 = pneg %p97
      %p206 = pneg %p121
      %p207 = pneg %p118
      %p208 = pneg %p147
      %p209 = pneg %p144
      %p210 = scmp.lt.s32.totalorder %s16, 1
      %s211 = scalar_select %p210, %s16, 1
      %s212 = smul.addr %s211, 32
      %s213 = smul.addr %s212, 4
      %s214 = scalar_lea.vmem %s5, %s213
      %p215 = scmp.lt.s32.totalorder %s16, 1
      %s216 = scalar_select %p215, %s16, 1
      %s217 = smul.addr %s216, 44
      %s218 = smul.addr %s217, 4
      %s219 = scalar_lea.vmem %s0, %s218
      %p220 = scmp.lt.s32.totalorder %s16, 1
      %s221 = scalar_select %p220, %s16, 1
      %s222 = smul.addr %s221, 32
      %s223 = smul.addr %s222, 4
      %s224 = scalar_lea.vmem %s5, %s223
      %v226 = vld [vmem:[%s219] sm:$0xf]
      %v227 = vld [vmem:[%s219 + $0x4] sm:$0xf]
      %v228 = vld [vmem:[%s219 + $0x8] sm:$0xf]
      %v229 = vld [vmem:[%s219 + $0xc] sm:$0xf]
      %v230 = vld [vmem:[%s219 + $0x10] sm:$0xf]
      %v231 = vld [vmem:[%s219 + $0x14] sm:$0xf]
      %v232 = vld [vmem:[%s219 + $0x18] sm:$0xf]
      %v233 = vld [vmem:[%s219 + $0x1c] sm:$0xf]
      %v234 = vld [vmem:[%s219 + $0x20] sm:$0xf]
      %v235 = vld [vmem:[%s219 + $0x24] sm:$0xf]
      %v236 = vld [vmem:[%s219 + $0x28] sm:$0xf]
      %v237 = vld [vmem:[%s219 + $0x2c] sm:$0xf]
      %v238 = vld [vmem:[%s219 + $0x30] sm:$0xf]
      %v239 = vld [vmem:[%s219 + $0x34] sm:$0xf]
      %v240 = vld [vmem:[%s219 + $0x38] sm:$0xf]
      %v241 = vld [vmem:[%s219 + $0x3c] sm:$0xf]
      %v242 = vld [vmem:[%s219 + $0x40] sm:$0xf]
      %v243 = vld [vmem:[%s219 + $0x44] sm:$0xf]
      %v244 = vld [vmem:[%s219 + $0x48] sm:$0xf]
      %v245 = vld [vmem:[%s219 + $0x4c] sm:$0xf]
      %v246 = vld [vmem:[%s219 + $0x50] sm:$0xf]
      %v247 = vld [vmem:[%s219 + $0x54] sm:$0xf]
      %v248 = vld [vmem:[%s219 + $0x58] sm:$0xf]
      %v249 = vld [vmem:[%s219 + $0x5c] sm:$0xf]
      %v250 = vld [vmem:[%s219 + $0x60] sm:$0xf]
      %v251 = vld [vmem:[%s219 + $0x64] sm:$0xf]
      %v252 = vld [vmem:[%s219 + $0x68] sm:$0xf]
      %v253 = vld [vmem:[%s219 + $0x6c] sm:$0xf]
      %v254 = vld [vmem:[%s219 + $0x70] sm:$0xf]
      %v255 = vld [vmem:[%s219 + $0x74] sm:$0xf]
      %v256 = vld [vmem:[%s219 + $0x78] sm:$0xf]
      %v257 = vld [vmem:[%s219 + $0x7c] sm:$0xf]
      %v258 = vld [vmem:[%s219 + $0x80] sm:$0xf]
      %v259 = vld [vmem:[%s219 + $0x84] sm:$0xf]
      %v260 = vld [vmem:[%s219 + $0x88] sm:$0xf]
      %v261 = vld [vmem:[%s219 + $0x8c] sm:$0xf]
      %v262 = vld [vmem:[%s219 + $0x90] sm:$0xf]
      %v263 = vld [vmem:[%s219 + $0x94] sm:$0xf]
      %v264 = vld [vmem:[%s219 + $0x98] sm:$0xf]
      %v265 = vld [vmem:[%s219 + $0x9c] sm:$0xf]
      %v266 = vld [vmem:[%s219 + $0xa0] sm:$0xf]
      %v267 = vld [vmem:[%s219 + $0xa4] sm:$0xf]
      %v268 = vld [vmem:[%s219 + $0xa8] sm:$0xf]
      %v269 = vld [vmem:[%s219 + $0xac] sm:$0xf]
      %v270 = vld [vmem:[%s1] sm:$0xf]
      %v271 = vld [vmem:[%s1 + $0x4] sm:$0xf]
      %v272 = vld [vmem:[%s1 + $0x8] sm:$0xf]
      %v273 = vld [vmem:[%s1 + $0xc] sm:$0xf]
      %s274 = scalar_lea.vmem %s1, 16
      %v275 = vld [vmem:[%s274] sm:$0xf]
      %v276 = vld [vmem:[%s274 + $0x4] sm:$0xf]
      %v277 = vld [vmem:[%s274 + $0x8] sm:$0xf]
      %v278 = vld [vmem:[%s274 + $0xc] sm:$0xf]
      %v311 = vunpack.c.l.b16 %v228
      %v312 = vunpack.c.l.b16 %v229
      %v313 = vunpack.c.l.b16 %v230
      %v314 = vunpack.c.l.b16 %v231
      %v315 = vunpack.c.l.b16 %v232
      %v316 = vunpack.c.l.b16 %v233
      %v317 = vunpack.c.l.b16 %v234
      %v318 = vunpack.c.l.b16 %v235
      %v319 = vunpack.c.l.b16 %v236
      %v320 = vunpack.c.l.b16 %v237
      %v321 = vunpack.c.l.b16 %v238
      %v322 = vunpack.c.l.b16 %v239
      %v323 = vunpack.c.l.b16 %v240
      %v324 = vunpack.c.l.b16 %v241
      %v325 = vunpack.c.l.b16 %v242
      %v326 = vunpack.c.l.b16 %v243
      %v327 = vunpack.c.l.b16 %v244
      %v328 = vunpack.c.l.b16 %v245
      %v329 = vunpack.c.l.b16 %v246
      %v330 = vunpack.c.l.b16 %v247
      %v331 = vunpack.c.l.b16 %v248
      %v332 = vunpack.c.l.b16 %v249
      %v333 = vunpack.c.l.b16 %v250
      %v334 = vunpack.c.l.b16 %v251
      %v335 = vunpack.c.l.b16 %v252
      %v336 = vunpack.c.l.b16 %v253
      %v337 = vunpack.c.l.b16 %v254
      %v338 = vunpack.c.l.b16 %v255
      %v339 = vunpack.c.l.b16 %v256
      %v340 = vunpack.c.l.b16 %v257
      %v341 = vunpack.c.l.b16 %v258
      %v342 = vunpack.c.l.b16 %v259
      %v343 = vpack.c.b16 %v312, %v311
      %v344 = vpack.c.b16 %v314, %v313
      %v345 = vpack.c.b16 %v316, %v315
      %v346 = vpack.c.b16 %v318, %v317
      %v347 = vpack.c.b16 %v320, %v319
      %v348 = vpack.c.b16 %v322, %v321
      %v349 = vpack.c.b16 %v324, %v323
      %v350 = vpack.c.b16 %v326, %v325
      %v351 = vpack.c.b16 %v328, %v327
      %v352 = vpack.c.b16 %v330, %v329
      %v353 = vpack.c.b16 %v332, %v331
      %v354 = vpack.c.b16 %v334, %v333
      %v355 = vpack.c.b16 %v336, %v335
      %v356 = vpack.c.b16 %v338, %v337
      %v357 = vpack.c.b16 %v340, %v339
      %v358 = vpack.c.b16 %v342, %v341
      %v363 = vunpack.c.l.b16 %v275
      %v364 = vunpack.c.l.b16 %v276
      %v365 = vunpack.c.l.b16 %v277
      %v366 = vunpack.c.l.b16 %v278
      %v367 = vpack.c.b16 %v364, %v363
      %v368 = vpack.c.b16 %v366, %v365
      %vm371 = vcmask 261120
      %v373 = vsel %vm371, %v343, 0
      %v376 = vsel %vm371, %v344, 0
      %v379 = vsel %vm371, %v345, 0
      %v382 = vsel %vm371, %v346, 0
      %v385 = vsel %vm371, %v347, 0
      %v388 = vsel %vm371, %v348, 0
      %v391 = vsel %vm371, %v349, 0
      %v394 = vsel %vm371, %v350, 0
      %v397 = vsel %vm371, %v351, 0
      %v400 = vsel %vm371, %v352, 0
      %v403 = vsel %vm371, %v353, 0
      %v406 = vsel %vm371, %v354, 0
      %v409 = vsel %vm371, %v355, 0
      %v412 = vsel %vm371, %v356, 0
      %v415 = vsel %vm371, %v357, 0
      %v418 = vsel %vm371, %v358, 0
      %420 = vmatpush.bf16.msra.mxu0 0
      %421 = vmatpush.bf16.msra.mxu0 0
      %422 = vmatpush.bf16.msra.mxu0 0
      %423 = vmatpush.bf16.msra.mxu0 0
      %424 = vmatpush.bf16.msra.mxu0 0
      %425 = vmatpush.bf16.msra.mxu0 0
      %426 = vmatpush.bf16.msra.mxu0 %v368
      %427 = vmatpush.bf16.msra.mxu0 %v367
      %428 = vmatmul.bf16.gmra.mxu0 %v373
      %v429 = vpop.f32.mrf.mxu0
      %v430 = vadd.f32 0.0, %v429
      %v431 = vpop.f32.mrf.mxu0
      %v432 = vadd.f32 0.0, %v431
      %433 = vmatmul.bf16.gmra.mxu0 %v376
      %v434 = vpop.f32.mrf.mxu0
      %v435 = vadd.f32 0.0, %v434
      %v436 = vpop.f32.mrf.mxu0
      %v437 = vadd.f32 0.0, %v436
      %438 = vmatmul.bf16.gmra.mxu0 %v379
      %v439 = vpop.f32.mrf.mxu0
      %v440 = vadd.f32 0.0, %v439
      %v441 = vpop.f32.mrf.mxu0
      %v442 = vadd.f32 0.0, %v441
      %443 = vmatmul.bf16.gmra.mxu0 %v382
      %v444 = vpop.f32.mrf.mxu0
      %v445 = vadd.f32 0.0, %v444
      %v446 = vpop.f32.mrf.mxu0
      %v447 = vadd.f32 0.0, %v446
      %448 = vmatmul.bf16.gmra.mxu0 %v385
      %v449 = vpop.f32.mrf.mxu0
      %v450 = vadd.f32 0.0, %v449
      %v451 = vpop.f32.mrf.mxu0
      %v452 = vadd.f32 0.0, %v451
      %453 = vmatmul.bf16.gmra.mxu0 %v388
      %v454 = vpop.f32.mrf.mxu0
      %v455 = vadd.f32 0.0, %v454
      %v456 = vpop.f32.mrf.mxu0
      %v457 = vadd.f32 0.0, %v456
      %458 = vmatmul.bf16.gmra.mxu0 %v391
      %v459 = vpop.f32.mrf.mxu0
      %v460 = vadd.f32 0.0, %v459
      %v461 = vpop.f32.mrf.mxu0
      %v462 = vadd.f32 0.0, %v461
      %463 = vmatmul.bf16.gmra.mxu0 %v394
      %v464 = vpop.f32.mrf.mxu0
      %v465 = vadd.f32 0.0, %v464
      %v466 = vpop.f32.mrf.mxu0
      %v467 = vadd.f32 0.0, %v466
      %468 = vmatmul.bf16.gmra.mxu0 %v397
      %v469 = vpop.f32.mrf.mxu0
      %v470 = vadd.f32 0.0, %v469
      %v471 = vpop.f32.mrf.mxu0
      %v472 = vadd.f32 0.0, %v471
      %473 = vmatmul.bf16.gmra.mxu0 %v400
      %v474 = vpop.f32.mrf.mxu0
      %v475 = vadd.f32 0.0, %v474
      %v476 = vpop.f32.mrf.mxu0
      %v477 = vadd.f32 0.0, %v476
      %478 = vmatmul.bf16.gmra.mxu0 %v403
      %v479 = vpop.f32.mrf.mxu0
      %v480 = vadd.f32 0.0, %v479
      %v481 = vpop.f32.mrf.mxu0
      %v482 = vadd.f32 0.0, %v481
      %483 = vmatmul.bf16.gmra.mxu0 %v406
      %v484 = vpop.f32.mrf.mxu0
      %v485 = vadd.f32 0.0, %v484
      %v486 = vpop.f32.mrf.mxu0
      %v487 = vadd.f32 0.0, %v486
      %488 = vmatmul.bf16.gmra.mxu0 %v409
      %v489 = vpop.f32.mrf.mxu0
      %v490 = vadd.f32 0.0, %v489
      %v491 = vpop.f32.mrf.mxu0
      %v492 = vadd.f32 0.0, %v491
      %493 = vmatmul.bf16.gmra.mxu0 %v412
      %v494 = vpop.f32.mrf.mxu0
      %v495 = vadd.f32 0.0, %v494
      %v496 = vpop.f32.mrf.mxu0
      %v497 = vadd.f32 0.0, %v496
      %498 = vmatmul.bf16.gmra.mxu0 %v415
      %v499 = vpop.f32.mrf.mxu0
      %v500 = vadd.f32 0.0, %v499
      %v501 = vpop.f32.mrf.mxu0
      %v502 = vadd.f32 0.0, %v501
      %503 = vmatmul.bf16.gmra.mxu0 %v418
      %v504 = vpop.f32.mrf.mxu0
      %v505 = vadd.f32 0.0, %v504
      %v506 = vpop.f32.mrf.mxu0
      %v507 = vadd.f32 0.0, %v506
      %508 = vdwg.mxu0
      %v511 = vunpack.c.l.b16 %v226
      %v512 = vunpack.c.l.b16 %v227
      %v513 = vpack.c.b16 %v512, %v511
      %v518 = vunpack.c.l.b16 %v270
      %v519 = vunpack.c.l.b16 %v271
      %v520 = vunpack.c.l.b16 %v272
      %v521 = vunpack.c.l.b16 %v273
      %v522 = vpack.c.b16 %v519, %v518
      %v523 = vpack.c.b16 %v521, %v520
      %v527 = vsel %vm371, %v513, 0
      %529 = vmatpush.bf16.msra.mxu0 0
      %530 = vmatpush.bf16.msra.mxu0 0
      %531 = vmatpush.bf16.msra.mxu0 0
      %532 = vmatpush.bf16.msra.mxu0 0
      %533 = vmatpush.bf16.msra.mxu0 0
      %534 = vmatpush.bf16.msra.mxu0 0
      %535 = vmatpush.bf16.msra.mxu0 %v523
      %536 = vmatpush.bf16.msra.mxu0 %v522
      %537 = vmatmul.bf16.gmra.mxu0 %v527
      %v538 = vpop.f32.mrf.mxu0
      %v539 = vadd.f32 %v430, %v538
      %v540 = vpop.f32.mrf.mxu0
      %v541 = vadd.f32 %v432, %v540
      %542 = vmatmul.bf16.gmra.mxu0 %v373
      %v543 = vpop.f32.mrf.mxu0
      %v544 = vadd.f32 %v435, %v543
      %v545 = vpop.f32.mrf.mxu0
      %v546 = vadd.f32 %v437, %v545
      %547 = vmatmul.bf16.gmra.mxu0 %v376
      %v548 = vpop.f32.mrf.mxu0
      %v549 = vadd.f32 %v440, %v548
      %v550 = vpop.f32.mrf.mxu0
      %v551 = vadd.f32 %v442, %v550
      %552 = vmatmul.bf16.gmra.mxu0 %v379
      %v553 = vpop.f32.mrf.mxu0
      %v554 = vadd.f32 %v445, %v553
      %v555 = vpop.f32.mrf.mxu0
      %v556 = vadd.f32 %v447, %v555
      %557 = vmatmul.bf16.gmra.mxu0 %v382
      %v558 = vpop.f32.mrf.mxu0
      %v559 = vadd.f32 %v450, %v558
      %v560 = vpop.f32.mrf.mxu0
      %v561 = vadd.f32 %v452, %v560
      %562 = vmatmul.bf16.gmra.mxu0 %v385
      %v563 = vpop.f32.mrf.mxu0
      %v564 = vadd.f32 %v455, %v563
      %v565 = vpop.f32.mrf.mxu0
      %v566 = vadd.f32 %v457, %v565
      %567 = vmatmul.bf16.gmra.mxu0 %v388
      %v568 = vpop.f32.mrf.mxu0
      %v569 = vadd.f32 %v460, %v568
      %v570 = vpop.f32.mrf.mxu0
      %v571 = vadd.f32 %v462, %v570
      %572 = vmatmul.bf16.gmra.mxu0 %v391
      %v573 = vpop.f32.mrf.mxu0
      %v574 = vadd.f32 %v465, %v573
      %v575 = vpop.f32.mrf.mxu0
      %v576 = vadd.f32 %v467, %v575
      %577 = vmatmul.bf16.gmra.mxu0 %v394
      %v578 = vpop.f32.mrf.mxu0
      %v579 = vadd.f32 %v470, %v578
      %v580 = vpop.f32.mrf.mxu0
      %v581 = vadd.f32 %v472, %v580
      %582 = vmatmul.bf16.gmra.mxu0 %v397
      %v583 = vpop.f32.mrf.mxu0
      %v584 = vadd.f32 %v475, %v583
      %v585 = vpop.f32.mrf.mxu0
      %v586 = vadd.f32 %v477, %v585
      %587 = vmatmul.bf16.gmra.mxu0 %v400
      %v588 = vpop.f32.mrf.mxu0
      %v589 = vadd.f32 %v480, %v588
      %v590 = vpop.f32.mrf.mxu0
      %v591 = vadd.f32 %v482, %v590
      %592 = vmatmul.bf16.gmra.mxu0 %v403
      %v593 = vpop.f32.mrf.mxu0
      %v594 = vadd.f32 %v485, %v593
      %v595 = vpop.f32.mrf.mxu0
      %v596 = vadd.f32 %v487, %v595
      %597 = vmatmul.bf16.gmra.mxu0 %v406
      %v598 = vpop.f32.mrf.mxu0
      %v599 = vadd.f32 %v490, %v598
      %v600 = vpop.f32.mrf.mxu0
      %v601 = vadd.f32 %v492, %v600
      %602 = vmatmul.bf16.gmra.mxu0 %v409
      %v603 = vpop.f32.mrf.mxu0
      %v604 = vadd.f32 %v495, %v603
      %v605 = vpop.f32.mrf.mxu0
      %v606 = vadd.f32 %v497, %v605
      %607 = vmatmul.bf16.gmra.mxu0 %v412
      %v608 = vpop.f32.mrf.mxu0
      %v609 = vadd.f32 %v500, %v608
      %v610 = vpop.f32.mrf.mxu0
      %v611 = vadd.f32 %v502, %v610
      %612 = vmatmul.bf16.gmra.mxu0 %v415
      %v613 = vpop.f32.mrf.mxu0
      %v614 = vadd.f32 %v505, %v613
      %v615 = vpop.f32.mrf.mxu0
      %v616 = vadd.f32 %v507, %v615
      %617 = vdwg.mxu0
      %s618 = scalar_lea.vmem %s1, 32
      %v619 = vld [vmem:[%s618] sm:$0xf]
      %v620 = vld [vmem:[%s618 + $0x4] sm:$0xf]
      %v621 = vld [vmem:[%s618 + $0x8] sm:$0xf]
      %v622 = vld [vmem:[%s618 + $0xc] sm:$0xf]
      %v625 = vunpack.c.l.b16 %v260
      %v626 = vunpack.c.l.b16 %v261
      %v627 = vpack.c.b16 %v626, %v625
      %v632 = vunpack.c.l.b16 %v619
      %v633 = vunpack.c.l.b16 %v620
      %v634 = vunpack.c.l.b16 %v621
      %v635 = vunpack.c.l.b16 %v622
      %v636 = vpack.c.b16 %v633, %v632
      %v637 = vpack.c.b16 %v635, %v634
      %v641 = vsel %vm371, %v627, 0
      %643 = vmatpush.bf16.msra.mxu0 0
      %644 = vmatpush.bf16.msra.mxu0 0
      %645 = vmatpush.bf16.msra.mxu0 0
      %646 = vmatpush.bf16.msra.mxu0 0
      %647 = vmatpush.bf16.msra.mxu0 0
      %648 = vmatpush.bf16.msra.mxu0 0
      %649 = vmatpush.bf16.msra.mxu0 %v637
      %650 = vmatpush.bf16.msra.mxu0 %v636
      %651 = vmatmul.bf16.gmra.mxu0 %v376
      %v652 = vpop.f32.mrf.mxu0
      %v653 = vadd.f32 0.0, %v652
      %v654 = vpop.f32.mrf.mxu0
      %v655 = vadd.f32 0.0, %v654
      %656 = vmatmul.bf16.gmra.mxu0 %v379
      %v657 = vpop.f32.mrf.mxu0
      %v658 = vadd.f32 0.0, %v657
      %v659 = vpop.f32.mrf.mxu0
      %v660 = vadd.f32 0.0, %v659
      %661 = vmatmul.bf16.gmra.mxu0 %v382
      %v662 = vpop.f32.mrf.mxu0
      %v663 = vadd.f32 0.0, %v662
      %v664 = vpop.f32.mrf.mxu0
      %v665 = vadd.f32 0.0, %v664
      %666 = vmatmul.bf16.gmra.mxu0 %v385
      %v667 = vpop.f32.mrf.mxu0
      %v668 = vadd.f32 0.0, %v667
      %v669 = vpop.f32.mrf.mxu0
      %v670 = vadd.f32 0.0, %v669
      %671 = vmatmul.bf16.gmra.mxu0 %v388
      %v672 = vpop.f32.mrf.mxu0
      %v673 = vadd.f32 0.0, %v672
      %v674 = vpop.f32.mrf.mxu0
      %v675 = vadd.f32 0.0, %v674
      %676 = vmatmul.bf16.gmra.mxu0 %v391
      %v677 = vpop.f32.mrf.mxu0
      %v678 = vadd.f32 0.0, %v677
      %v679 = vpop.f32.mrf.mxu0
      %v680 = vadd.f32 0.0, %v679
      %681 = vmatmul.bf16.gmra.mxu0 %v394
      %v682 = vpop.f32.mrf.mxu0
      %v683 = vadd.f32 0.0, %v682
      %v684 = vpop.f32.mrf.mxu0
      %v685 = vadd.f32 0.0, %v684
      %686 = vmatmul.bf16.gmra.mxu0 %v397
      %v687 = vpop.f32.mrf.mxu0
      %v688 = vadd.f32 0.0, %v687
      %v689 = vpop.f32.mrf.mxu0
      %v690 = vadd.f32 0.0, %v689
      %691 = vmatmul.bf16.gmra.mxu0 %v400
      %v692 = vpop.f32.mrf.mxu0
      %v693 = vadd.f32 0.0, %v692
      %v694 = vpop.f32.mrf.mxu0
      %v695 = vadd.f32 0.0, %v694
      %696 = vmatmul.bf16.gmra.mxu0 %v403
      %v697 = vpop.f32.mrf.mxu0
      %v698 = vadd.f32 0.0, %v697
      %v699 = vpop.f32.mrf.mxu0
      %v700 = vadd.f32 0.0, %v699
      %701 = vmatmul.bf16.gmra.mxu0 %v406
      %v702 = vpop.f32.mrf.mxu0
      %v703 = vadd.f32 0.0, %v702
      %v704 = vpop.f32.mrf.mxu0
      %v705 = vadd.f32 0.0, %v704
      %706 = vmatmul.bf16.gmra.mxu0 %v409
      %v707 = vpop.f32.mrf.mxu0
      %v708 = vadd.f32 0.0, %v707
      %v709 = vpop.f32.mrf.mxu0
      %v710 = vadd.f32 0.0, %v709
      %711 = vmatmul.bf16.gmra.mxu0 %v412
      %v712 = vpop.f32.mrf.mxu0
      %v713 = vadd.f32 0.0, %v712
      %v714 = vpop.f32.mrf.mxu0
      %v715 = vadd.f32 0.0, %v714
      %716 = vmatmul.bf16.gmra.mxu0 %v415
      %v717 = vpop.f32.mrf.mxu0
      %v718 = vadd.f32 0.0, %v717
      %v719 = vpop.f32.mrf.mxu0
      %v720 = vadd.f32 0.0, %v719
      %721 = vmatmul.bf16.gmra.mxu0 %v418
      %v722 = vpop.f32.mrf.mxu0
      %v723 = vadd.f32 0.0, %v722
      %v724 = vpop.f32.mrf.mxu0
      %v725 = vadd.f32 0.0, %v724
      %726 = vmatmul.bf16.gmra.mxu0 %v641
      %v727 = vpop.f32.mrf.mxu0
      %v728 = vadd.f32 0.0, %v727
      %v729 = vpop.f32.mrf.mxu0
      %v730 = vadd.f32 0.0, %v729
      %731 = vdwg.mxu0
      %v732 = vadd.f32 %v539, %v653
      %v733 = vadd.f32 %v541, %v655
      %v734 = vadd.f32 %v544, %v658
      %v735 = vadd.f32 %v546, %v660
      %v736 = vadd.f32 %v549, %v663
      %v737 = vadd.f32 %v551, %v665
      %v738 = vadd.f32 %v554, %v668
      %v739 = vadd.f32 %v556, %v670
      %v740 = vadd.f32 %v559, %v673
      %v741 = vadd.f32 %v561, %v675
      %v742 = vadd.f32 %v564, %v678
      %v743 = vadd.f32 %v566, %v680
      %v744 = vadd.f32 %v569, %v683
      %v745 = vadd.f32 %v571, %v685
      %v746 = vadd.f32 %v574, %v688
      %v747 = vadd.f32 %v576, %v690
      %v748 = vadd.f32 %v579, %v693
      %v749 = vadd.f32 %v581, %v695
      %v750 = vadd.f32 %v584, %v698
      %v751 = vadd.f32 %v586, %v700
      %v752 = vadd.f32 %v589, %v703
      %v753 = vadd.f32 %v591, %v705
      %v754 = vadd.f32 %v594, %v708
      %v755 = vadd.f32 %v596, %v710
      %v756 = vadd.f32 %v599, %v713
      %v757 = vadd.f32 %v601, %v715
      %v758 = vadd.f32 %v604, %v718
      %v759 = vadd.f32 %v606, %v720
      %v760 = vadd.f32 %v609, %v723
      %v761 = vadd.f32 %v611, %v725
      %v762 = vadd.f32 %v614, %v728
      %v763 = vadd.f32 %v616, %v730
      %s764 = scalar_lea.vmem %s1, 48
      %v765 = vld [vmem:[%s764] sm:$0xf]
      %v766 = vld [vmem:[%s764 + $0x4] sm:$0xf]
      %v767 = vld [vmem:[%s764 + $0x8] sm:$0xf]
      %v768 = vld [vmem:[%s764 + $0xc] sm:$0xf]
      %v771 = vunpack.c.l.b16 %v262
      %v772 = vunpack.c.l.b16 %v263
      %v773 = vpack.c.b16 %v772, %v771
      %v778 = vunpack.c.l.b16 %v765
      %v779 = vunpack.c.l.b16 %v766
      %v780 = vunpack.c.l.b16 %v767
      %v781 = vunpack.c.l.b16 %v768
      %v782 = vpack.c.b16 %v779, %v778
      %v783 = vpack.c.b16 %v781, %v780
      %v787 = vsel %vm371, %v773, 0
      %789 = vmatpush.bf16.msra.mxu0 0
      %790 = vmatpush.bf16.msra.mxu0 0
      %791 = vmatpush.bf16.msra.mxu0 0
      %792 = vmatpush.bf16.msra.mxu0 0
      %793 = vmatpush.bf16.msra.mxu0 0
      %794 = vmatpush.bf16.msra.mxu0 0
      %795 = vmatpush.bf16.msra.mxu0 %v783
      %796 = vmatpush.bf16.msra.mxu0 %v782
      %797 = vmatmul.bf16.gmra.mxu0 %v379
      %v798 = vpop.f32.mrf.mxu0
      %v799 = vadd.f32 0.0, %v798
      %v800 = vpop.f32.mrf.mxu0
      %v801 = vadd.f32 0.0, %v800
      %802 = vmatmul.bf16.gmra.mxu0 %v382
      %v803 = vpop.f32.mrf.mxu0
      %v804 = vadd.f32 0.0, %v803
      %v805 = vpop.f32.mrf.mxu0
      %v806 = vadd.f32 0.0, %v805
      %807 = vmatmul.bf16.gmra.mxu0 %v385
      %v808 = vpop.f32.mrf.mxu0
      %v809 = vadd.f32 0.0, %v808
      %v810 = vpop.f32.mrf.mxu0
      %v811 = vadd.f32 0.0, %v810
      %812 = vmatmul.bf16.gmra.mxu0 %v388
      %v813 = vpop.f32.mrf.mxu0
      %v814 = vadd.f32 0.0, %v813
      %v815 = vpop.f32.mrf.mxu0
      %v816 = vadd.f32 0.0, %v815
      %817 = vmatmul.bf16.gmra.mxu0 %v391
      %v818 = vpop.f32.mrf.mxu0
      %v819 = vadd.f32 0.0, %v818
      %v820 = vpop.f32.mrf.mxu0
      %v821 = vadd.f32 0.0, %v820
      %822 = vmatmul.bf16.gmra.mxu0 %v394
      %v823 = vpop.f32.mrf.mxu0
      %v824 = vadd.f32 0.0, %v823
      %v825 = vpop.f32.mrf.mxu0
      %v826 = vadd.f32 0.0, %v825
      %827 = vmatmul.bf16.gmra.mxu0 %v397
      %v828 = vpop.f32.mrf.mxu0
      %v829 = vadd.f32 0.0, %v828
      %v830 = vpop.f32.mrf.mxu0
      %v831 = vadd.f32 0.0, %v830
      %832 = vmatmul.bf16.gmra.mxu0 %v400
      %v833 = vpop.f32.mrf.mxu0
      %v834 = vadd.f32 0.0, %v833
      %v835 = vpop.f32.mrf.mxu0
      %v836 = vadd.f32 0.0, %v835
      %837 = vmatmul.bf16.gmra.mxu0 %v403
      %v838 = vpop.f32.mrf.mxu0
      %v839 = vadd.f32 0.0, %v838
      %v840 = vpop.f32.mrf.mxu0
      %v841 = vadd.f32 0.0, %v840
      %842 = vmatmul.bf16.gmra.mxu0 %v406
      %v843 = vpop.f32.mrf.mxu0
      %v844 = vadd.f32 0.0, %v843
      %v845 = vpop.f32.mrf.mxu0
      %v846 = vadd.f32 0.0, %v845
      %847 = vmatmul.bf16.gmra.mxu0 %v409
      %v848 = vpop.f32.mrf.mxu0
      %v849 = vadd.f32 0.0, %v848
      %v850 = vpop.f32.mrf.mxu0
      %v851 = vadd.f32 0.0, %v850
      %852 = vmatmul.bf16.gmra.mxu0 %v412
      %v853 = vpop.f32.mrf.mxu0
      %v854 = vadd.f32 0.0, %v853
      %v855 = vpop.f32.mrf.mxu0
      %v856 = vadd.f32 0.0, %v855
      %857 = vmatmul.bf16.gmra.mxu0 %v415
      %v858 = vpop.f32.mrf.mxu0
      %v859 = vadd.f32 0.0, %v858
      %v860 = vpop.f32.mrf.mxu0
      %v861 = vadd.f32 0.0, %v860
      %862 = vmatmul.bf16.gmra.mxu0 %v418
      %v863 = vpop.f32.mrf.mxu0
      %v864 = vadd.f32 0.0, %v863
      %v865 = vpop.f32.mrf.mxu0
      %v866 = vadd.f32 0.0, %v865
      %867 = vmatmul.bf16.gmra.mxu0 %v641
      %v868 = vpop.f32.mrf.mxu0
      %v869 = vadd.f32 0.0, %v868
      %v870 = vpop.f32.mrf.mxu0
      %v871 = vadd.f32 0.0, %v870
      %872 = vmatmul.bf16.gmra.mxu0 %v787
      %v873 = vpop.f32.mrf.mxu0
      %v874 = vadd.f32 0.0, %v873
      %v875 = vpop.f32.mrf.mxu0
      %v876 = vadd.f32 0.0, %v875
      %877 = vdwg.mxu0
      %v878 = vadd.f32 %v732, %v799
      %v879 = vadd.f32 %v733, %v801
      %v880 = vadd.f32 %v734, %v804
      %v881 = vadd.f32 %v735, %v806
      %v882 = vadd.f32 %v736, %v809
      %v883 = vadd.f32 %v737, %v811
      %v884 = vadd.f32 %v738, %v814
      %v885 = vadd.f32 %v739, %v816
      %v886 = vadd.f32 %v740, %v819
      %v887 = vadd.f32 %v741, %v821
      %v888 = vadd.f32 %v742, %v824
      %v889 = vadd.f32 %v743, %v826
      %v890 = vadd.f32 %v744, %v829
      %v891 = vadd.f32 %v745, %v831
      %v892 = vadd.f32 %v746, %v834
      %v893 = vadd.f32 %v747, %v836
      %v894 = vadd.f32 %v748, %v839
      %v895 = vadd.f32 %v749, %v841
      %v896 = vadd.f32 %v750, %v844
      %v897 = vadd.f32 %v751, %v846
      %v898 = vadd.f32 %v752, %v849
      %v899 = vadd.f32 %v753, %v851
      %v900 = vadd.f32 %v754, %v854
      %v901 = vadd.f32 %v755, %v856
      %v902 = vadd.f32 %v756, %v859
      %v903 = vadd.f32 %v757, %v861
      %v904 = vadd.f32 %v758, %v864
      %v905 = vadd.f32 %v759, %v866
      %v906 = vadd.f32 %v760, %v869
      %v907 = vadd.f32 %v761, %v871
      %v908 = vadd.f32 %v762, %v874
      %v909 = vadd.f32 %v763, %v876
      %s910 = scalar_lea.vmem %s1, 64
      %v911 = vld [vmem:[%s910] sm:$0xf]
      %v912 = vld [vmem:[%s910 + $0x4] sm:$0xf]
      %v913 = vld [vmem:[%s910 + $0x8] sm:$0xf]
      %v914 = vld [vmem:[%s910 + $0xc] sm:$0xf]
      %v917 = vunpack.c.l.b16 %v264
      %v918 = vunpack.c.l.b16 %v265
      %v919 = vpack.c.b16 %v918, %v917
      %v924 = vunpack.c.l.b16 %v911
      %v925 = vunpack.c.l.b16 %v912
      %v926 = vunpack.c.l.b16 %v913
      %v927 = vunpack.c.l.b16 %v914
      %v928 = vpack.c.b16 %v925, %v924
      %v929 = vpack.c.b16 %v927, %v926
      %v933 = vsel %vm371, %v919, 0
      %935 = vmatpush.bf16.msra.mxu0 0
      %936 = vmatpush.bf16.msra.mxu0 0
      %937 = vmatpush.bf16.msra.mxu0 0
      %938 = vmatpush.bf16.msra.mxu0 0
      %939 = vmatpush.bf16.msra.mxu0 0
      %940 = vmatpush.bf16.msra.mxu0 0
      %941 = vmatpush.bf16.msra.mxu0 %v929
      %942 = vmatpush.bf16.msra.mxu0 %v928
      %943 = vmatmul.bf16.gmra.mxu0 %v382
      %v944 = vpop.f32.mrf.mxu0
      %v945 = vadd.f32 0.0, %v944
      %v946 = vpop.f32.mrf.mxu0
      %v947 = vadd.f32 0.0, %v946
      %948 = vmatmul.bf16.gmra.mxu0 %v385
      %v949 = vpop.f32.mrf.mxu0
      %v950 = vadd.f32 0.0, %v949
      %v951 = vpop.f32.mrf.mxu0
      %v952 = vadd.f32 0.0, %v951
      %953 = vmatmul.bf16.gmra.mxu0 %v388
      %v954 = vpop.f32.mrf.mxu0
      %v955 = vadd.f32 0.0, %v954
      %v956 = vpop.f32.mrf.mxu0
      %v957 = vadd.f32 0.0, %v956
      %958 = vmatmul.bf16.gmra.mxu0 %v391
      %v959 = vpop.f32.mrf.mxu0
      %v960 = vadd.f32 0.0, %v959
      %v961 = vpop.f32.mrf.mxu0
      %v962 = vadd.f32 0.0, %v961
      %963 = vmatmul.bf16.gmra.mxu0 %v394
      %v964 = vpop.f32.mrf.mxu0
      %v965 = vadd.f32 0.0, %v964
      %v966 = vpop.f32.mrf.mxu0
      %v967 = vadd.f32 0.0, %v966
      %968 = vmatmul.bf16.gmra.mxu0 %v397
      %v969 = vpop.f32.mrf.mxu0
      %v970 = vadd.f32 0.0, %v969
      %v971 = vpop.f32.mrf.mxu0
      %v972 = vadd.f32 0.0, %v971
      %973 = vmatmul.bf16.gmra.mxu0 %v400
      %v974 = vpop.f32.mrf.mxu0
      %v975 = vadd.f32 0.0, %v974
      %v976 = vpop.f32.mrf.mxu0
      %v977 = vadd.f32 0.0, %v976
      %978 = vmatmul.bf16.gmra.mxu0 %v403
      %v979 = vpop.f32.mrf.mxu0
      %v980 = vadd.f32 0.0, %v979
      %v981 = vpop.f32.mrf.mxu0
      %v982 = vadd.f32 0.0, %v981
      %983 = vmatmul.bf16.gmra.mxu0 %v406
      %v984 = vpop.f32.mrf.mxu0
      %v985 = vadd.f32 0.0, %v984
      %v986 = vpop.f32.mrf.mxu0
      %v987 = vadd.f32 0.0, %v986
      %988 = vmatmul.bf16.gmra.mxu0 %v409
      %v989 = vpop.f32.mrf.mxu0
      %v990 = vadd.f32 0.0, %v989
      %v991 = vpop.f32.mrf.mxu0
      %v992 = vadd.f32 0.0, %v991
      %993 = vmatmul.bf16.gmra.mxu0 %v412
      %v994 = vpop.f32.mrf.mxu0
      %v995 = vadd.f32 0.0, %v994
      %v996 = vpop.f32.mrf.mxu0
      %v997 = vadd.f32 0.0, %v996
      %998 = vmatmul.bf16.gmra.mxu0 %v415
      %v999 = vpop.f32.mrf.mxu0
      %v1000 = vadd.f32 0.0, %v999
      %v1001 = vpop.f32.mrf.mxu0
      %v1002 = vadd.f32 0.0, %v1001
      %1003 = vmatmul.bf16.gmra.mxu0 %v418
      %v1004 = vpop.f32.mrf.mxu0
      %v1005 = vadd.f32 0.0, %v1004
      %v1006 = vpop.f32.mrf.mxu0
      %v1007 = vadd.f32 0.0, %v1006
      %1008 = vmatmul.bf16.gmra.mxu0 %v641
      %v1009 = vpop.f32.mrf.mxu0
      %v1010 = vadd.f32 0.0, %v1009
      %v1011 = vpop.f32.mrf.mxu0
      %v1012 = vadd.f32 0.0, %v1011
      %1013 = vmatmul.bf16.gmra.mxu0 %v787
      %v1014 = vpop.f32.mrf.mxu0
      %v1015 = vadd.f32 0.0, %v1014
      %v1016 = vpop.f32.mrf.mxu0
      %v1017 = vadd.f32 0.0, %v1016
      %1018 = vmatmul.bf16.gmra.mxu0 %v933
      %v1019 = vpop.f32.mrf.mxu0
      %v1020 = vadd.f32 0.0, %v1019
      %v1021 = vpop.f32.mrf.mxu0
      %v1022 = vadd.f32 0.0, %v1021
      %1023 = vdwg.mxu0
      %v1024 = vadd.f32 %v878, %v945
      %v1025 = vadd.f32 %v879, %v947
      %v1026 = vadd.f32 %v880, %v950
      %v1027 = vadd.f32 %v881, %v952
      %v1028 = vadd.f32 %v882, %v955
      %v1029 = vadd.f32 %v883, %v957
      %v1030 = vadd.f32 %v884, %v960
      %v1031 = vadd.f32 %v885, %v962
      %v1032 = vadd.f32 %v886, %v965
      %v1033 = vadd.f32 %v887, %v967
      %v1034 = vadd.f32 %v888, %v970
      %v1035 = vadd.f32 %v889, %v972
      %v1036 = vadd.f32 %v890, %v975
      %v1037 = vadd.f32 %v891, %v977
      %v1038 = vadd.f32 %v892, %v980
      %v1039 = vadd.f32 %v893, %v982
      %v1040 = vadd.f32 %v894, %v985
      %v1041 = vadd.f32 %v895, %v987
      %v1042 = vadd.f32 %v896, %v990
      %v1043 = vadd.f32 %v897, %v992
      %v1044 = vadd.f32 %v898, %v995
      %v1045 = vadd.f32 %v899, %v997
      %v1046 = vadd.f32 %v900, %v1000
      %v1047 = vadd.f32 %v901, %v1002
      %v1048 = vadd.f32 %v902, %v1005
      %v1049 = vadd.f32 %v903, %v1007
      %v1050 = vadd.f32 %v904, %v1010
      %v1051 = vadd.f32 %v905, %v1012
      %v1052 = vadd.f32 %v906, %v1015
      %v1053 = vadd.f32 %v907, %v1017
      %v1054 = vadd.f32 %v908, %v1020
      %v1055 = vadd.f32 %v909, %v1022
      %s1056 = scalar_lea.vmem %s1, 80
      %v1057 = vld [vmem:[%s1056] sm:$0xf]
      %v1058 = vld [vmem:[%s1056 + $0x4] sm:$0xf]
      %v1059 = vld [vmem:[%s1056 + $0x8] sm:$0xf]
      %v1060 = vld [vmem:[%s1056 + $0xc] sm:$0xf]
      %v1063 = vunpack.c.l.b16 %v266
      %v1064 = vunpack.c.l.b16 %v267
      %v1065 = vpack.c.b16 %v1064, %v1063
      %v1070 = vunpack.c.l.b16 %v1057
      %v1071 = vunpack.c.l.b16 %v1058
      %v1072 = vunpack.c.l.b16 %v1059
      %v1073 = vunpack.c.l.b16 %v1060
      %v1074 = vpack.c.b16 %v1071, %v1070
      %v1075 = vpack.c.b16 %v1073, %v1072
      %v1079 = vsel %vm371, %v1065, 0
      %1081 = vmatpush.bf16.msra.mxu0 0
      %1082 = vmatpush.bf16.msra.mxu0 0
      %1083 = vmatpush.bf16.msra.mxu0 0
      %1084 = vmatpush.bf16.msra.mxu0 0
      %1085 = vmatpush.bf16.msra.mxu0 0
      %1086 = vmatpush.bf16.msra.mxu0 0
      %1087 = vmatpush.bf16.msra.mxu0 %v1075
      %1088 = vmatpush.bf16.msra.mxu0 %v1074
      %1089 = vmatmul.bf16.gmra.mxu0 %v385
      %v1090 = vpop.f32.mrf.mxu0
      %v1091 = vadd.f32 0.0, %v1090
      %v1092 = vpop.f32.mrf.mxu0
      %v1093 = vadd.f32 0.0, %v1092
      %1094 = vmatmul.bf16.gmra.mxu0 %v388
      %v1095 = vpop.f32.mrf.mxu0
      %v1096 = vadd.f32 0.0, %v1095
      %v1097 = vpop.f32.mrf.mxu0
      %v1098 = vadd.f32 0.0, %v1097
      %1099 = vmatmul.bf16.gmra.mxu0 %v391
      %v1100 = vpop.f32.mrf.mxu0
      %v1101 = vadd.f32 0.0, %v1100
      %v1102 = vpop.f32.mrf.mxu0
      %v1103 = vadd.f32 0.0, %v1102
      %1104 = vmatmul.bf16.gmra.mxu0 %v394
      %v1105 = vpop.f32.mrf.mxu0
      %v1106 = vadd.f32 0.0, %v1105
      %v1107 = vpop.f32.mrf.mxu0
      %v1108 = vadd.f32 0.0, %v1107
      %1109 = vmatmul.bf16.gmra.mxu0 %v397
      %v1110 = vpop.f32.mrf.mxu0
      %v1111 = vadd.f32 0.0, %v1110
      %v1112 = vpop.f32.mrf.mxu0
      %v1113 = vadd.f32 0.0, %v1112
      %1114 = vmatmul.bf16.gmra.mxu0 %v400
      %v1115 = vpop.f32.mrf.mxu0
      %v1116 = vadd.f32 0.0, %v1115
      %v1117 = vpop.f32.mrf.mxu0
      %v1118 = vadd.f32 0.0, %v1117
      %1119 = vmatmul.bf16.gmra.mxu0 %v403
      %v1120 = vpop.f32.mrf.mxu0
      %v1121 = vadd.f32 0.0, %v1120
      %v1122 = vpop.f32.mrf.mxu0
      %v1123 = vadd.f32 0.0, %v1122
      %1124 = vmatmul.bf16.gmra.mxu0 %v406
      %v1125 = vpop.f32.mrf.mxu0
      %v1126 = vadd.f32 0.0, %v1125
      %v1127 = vpop.f32.mrf.mxu0
      %v1128 = vadd.f32 0.0, %v1127
      %1129 = vmatmul.bf16.gmra.mxu0 %v409
      %v1130 = vpop.f32.mrf.mxu0
      %v1131 = vadd.f32 0.0, %v1130
      %v1132 = vpop.f32.mrf.mxu0
      %v1133 = vadd.f32 0.0, %v1132
      %1134 = vmatmul.bf16.gmra.mxu0 %v412
      %v1135 = vpop.f32.mrf.mxu0
      %v1136 = vadd.f32 0.0, %v1135
      %v1137 = vpop.f32.mrf.mxu0
      %v1138 = vadd.f32 0.0, %v1137
      %1139 = vmatmul.bf16.gmra.mxu0 %v415
      %v1140 = vpop.f32.mrf.mxu0
      %v1141 = vadd.f32 0.0, %v1140
      %v1142 = vpop.f32.mrf.mxu0
      %v1143 = vadd.f32 0.0, %v1142
      %1144 = vmatmul.bf16.gmra.mxu0 %v418
      %v1145 = vpop.f32.mrf.mxu0
      %v1146 = vadd.f32 0.0, %v1145
      %v1147 = vpop.f32.mrf.mxu0
      %v1148 = vadd.f32 0.0, %v1147
      %1149 = vmatmul.bf16.gmra.mxu0 %v641
      %v1150 = vpop.f32.mrf.mxu0
      %v1151 = vadd.f32 0.0, %v1150
      %v1152 = vpop.f32.mrf.mxu0
      %v1153 = vadd.f32 0.0, %v1152
      %1154 = vmatmul.bf16.gmra.mxu0 %v787
      %v1155 = vpop.f32.mrf.mxu0
      %v1156 = vadd.f32 0.0, %v1155
      %v1157 = vpop.f32.mrf.mxu0
      %v1158 = vadd.f32 0.0, %v1157
      %1159 = vmatmul.bf16.gmra.mxu0 %v933
      %v1160 = vpop.f32.mrf.mxu0
      %v1161 = vadd.f32 0.0, %v1160
      %v1162 = vpop.f32.mrf.mxu0
      %v1163 = vadd.f32 0.0, %v1162
      %1164 = vmatmul.bf16.gmra.mxu0 %v1079
      %v1165 = vpop.f32.mrf.mxu0
      %v1166 = vadd.f32 0.0, %v1165
      %v1167 = vpop.f32.mrf.mxu0
      %v1168 = vadd.f32 0.0, %v1167
      %1169 = vdwg.mxu0
      %v1170 = vadd.f32 %v1024, %v1091
      %v1171 = vadd.f32 %v1025, %v1093
      %v1172 = vadd.f32 %v1026, %v1096
      %v1173 = vadd.f32 %v1027, %v1098
      %v1174 = vadd.f32 %v1028, %v1101
      %v1175 = vadd.f32 %v1029, %v1103
      %v1176 = vadd.f32 %v1030, %v1106
      %v1177 = vadd.f32 %v1031, %v1108
      %v1178 = vadd.f32 %v1032, %v1111
      %v1179 = vadd.f32 %v1033, %v1113
      %v1180 = vadd.f32 %v1034, %v1116
      %v1181 = vadd.f32 %v1035, %v1118
      %v1182 = vadd.f32 %v1036, %v1121
      %v1183 = vadd.f32 %v1037, %v1123
      %v1184 = vadd.f32 %v1038, %v1126
      %v1185 = vadd.f32 %v1039, %v1128
      %v1186 = vadd.f32 %v1040, %v1131
      %v1187 = vadd.f32 %v1041, %v1133
      %v1188 = vadd.f32 %v1042, %v1136
      %v1189 = vadd.f32 %v1043, %v1138
      %v1190 = vadd.f32 %v1044, %v1141
      %v1191 = vadd.f32 %v1045, %v1143
      %v1192 = vadd.f32 %v1046, %v1146
      %v1193 = vadd.f32 %v1047, %v1148
      %v1194 = vadd.f32 %v1048, %v1151
      %v1195 = vadd.f32 %v1049, %v1153
      %v1196 = vadd.f32 %v1050, %v1156
      %v1197 = vadd.f32 %v1051, %v1158
      %v1198 = vadd.f32 %v1052, %v1161
      %v1199 = vadd.f32 %v1053, %v1163
      %v1200 = vadd.f32 %v1054, %v1166
      %v1201 = vadd.f32 %v1055, %v1168
      %s1202 = scalar_lea.vmem %s1, 96
      %v1203 = vld [vmem:[%s1202] sm:$0xf]
      %v1204 = vld [vmem:[%s1202 + $0x4] sm:$0xf]
      %v1205 = vld [vmem:[%s1202 + $0x8] sm:$0xf]
      %v1206 = vld [vmem:[%s1202 + $0xc] sm:$0xf]
      %v1209 = vunpack.c.l.b16 %v268
      %v1210 = vunpack.c.l.b16 %v269
      %v1211 = vpack.c.b16 %v1210, %v1209
      %v1216 = vunpack.c.l.b16 %v1203
      %v1217 = vunpack.c.l.b16 %v1204
      %v1218 = vunpack.c.l.b16 %v1205
      %v1219 = vunpack.c.l.b16 %v1206
      %v1220 = vpack.c.b16 %v1217, %v1216
      %v1221 = vpack.c.b16 %v1219, %v1218
      %v1225 = vsel %vm371, %v1211, 0
      %1227 = vmatpush.bf16.msra.mxu0 0
      %1228 = vmatpush.bf16.msra.mxu0 0
      %1229 = vmatpush.bf16.msra.mxu0 0
      %1230 = vmatpush.bf16.msra.mxu0 0
      %1231 = vmatpush.bf16.msra.mxu0 0
      %1232 = vmatpush.bf16.msra.mxu0 0
      %1233 = vmatpush.bf16.msra.mxu0 %v1221
      %1234 = vmatpush.bf16.msra.mxu0 %v1220
      %1235 = vmatmul.bf16.gmra.mxu0 %v388
      %v1236 = vpop.f32.mrf.mxu0
      %v1237 = vadd.f32 0.0, %v1236
      %v1238 = vpop.f32.mrf.mxu0
      %v1239 = vadd.f32 0.0, %v1238
      %1240 = vmatmul.bf16.gmra.mxu0 %v391
      %v1241 = vpop.f32.mrf.mxu0
      %v1242 = vadd.f32 0.0, %v1241
      %v1243 = vpop.f32.mrf.mxu0
      %v1244 = vadd.f32 0.0, %v1243
      %1245 = vmatmul.bf16.gmra.mxu0 %v394
      %v1246 = vpop.f32.mrf.mxu0
      %v1247 = vadd.f32 0.0, %v1246
      %v1248 = vpop.f32.mrf.mxu0
      %v1249 = vadd.f32 0.0, %v1248
      %1250 = vmatmul.bf16.gmra.mxu0 %v397
      %v1251 = vpop.f32.mrf.mxu0
      %v1252 = vadd.f32 0.0, %v1251
      %v1253 = vpop.f32.mrf.mxu0
      %v1254 = vadd.f32 0.0, %v1253
      %1255 = vmatmul.bf16.gmra.mxu0 %v400
      %v1256 = vpop.f32.mrf.mxu0
      %v1257 = vadd.f32 0.0, %v1256
      %v1258 = vpop.f32.mrf.mxu0
      %v1259 = vadd.f32 0.0, %v1258
      %1260 = vmatmul.bf16.gmra.mxu0 %v403
      %v1261 = vpop.f32.mrf.mxu0
      %v1262 = vadd.f32 0.0, %v1261
      %v1263 = vpop.f32.mrf.mxu0
      %v1264 = vadd.f32 0.0, %v1263
      %1265 = vmatmul.bf16.gmra.mxu0 %v406
      %v1266 = vpop.f32.mrf.mxu0
      %v1267 = vadd.f32 0.0, %v1266
      %v1268 = vpop.f32.mrf.mxu0
      %v1269 = vadd.f32 0.0, %v1268
      %1270 = vmatmul.bf16.gmra.mxu0 %v409
      %v1271 = vpop.f32.mrf.mxu0
      %v1272 = vadd.f32 0.0, %v1271
      %v1273 = vpop.f32.mrf.mxu0
      %v1274 = vadd.f32 0.0, %v1273
      %1275 = vmatmul.bf16.gmra.mxu0 %v412
      %v1276 = vpop.f32.mrf.mxu0
      %v1277 = vadd.f32 0.0, %v1276
      %v1278 = vpop.f32.mrf.mxu0
      %v1279 = vadd.f32 0.0, %v1278
      %1280 = vmatmul.bf16.gmra.mxu0 %v415
      %v1281 = vpop.f32.mrf.mxu0
      %v1282 = vadd.f32 0.0, %v1281
      %v1283 = vpop.f32.mrf.mxu0
      %v1284 = vadd.f32 0.0, %v1283
      %1285 = vmatmul.bf16.gmra.mxu0 %v418
      %v1286 = vpop.f32.mrf.mxu0
      %v1287 = vadd.f32 0.0, %v1286
      %v1288 = vpop.f32.mrf.mxu0
      %v1289 = vadd.f32 0.0, %v1288
      %1290 = vmatmul.bf16.gmra.mxu0 %v641
      %v1291 = vpop.f32.mrf.mxu0
      %v1292 = vadd.f32 0.0, %v1291
      %v1293 = vpop.f32.mrf.mxu0
      %v1294 = vadd.f32 0.0, %v1293
      %1295 = vmatmul.bf16.gmra.mxu0 %v787
      %v1296 = vpop.f32.mrf.mxu0
      %v1297 = vadd.f32 0.0, %v1296
      %v1298 = vpop.f32.mrf.mxu0
      %v1299 = vadd.f32 0.0, %v1298
      %1300 = vmatmul.bf16.gmra.mxu0 %v933
      %v1301 = vpop.f32.mrf.mxu0
      %v1302 = vadd.f32 0.0, %v1301
      %v1303 = vpop.f32.mrf.mxu0
      %v1304 = vadd.f32 0.0, %v1303
      %1305 = vmatmul.bf16.gmra.mxu0 %v1079
      %v1306 = vpop.f32.mrf.mxu0
      %v1307 = vadd.f32 0.0, %v1306
      %v1308 = vpop.f32.mrf.mxu0
      %v1309 = vadd.f32 0.0, %v1308
      %1310 = vmatmul.bf16.gmra.mxu0 %v1225
      %v1311 = vpop.f32.mrf.mxu0
      %v1312 = vadd.f32 0.0, %v1311
      %v1313 = vpop.f32.mrf.mxu0
      %v1314 = vadd.f32 0.0, %v1313
      %1315 = vdwg.mxu0
      %v1316 = vadd.f32 %v1170, %v1237
      %v1317 = vadd.f32 %v1171, %v1239
      %v1318 = vadd.f32 %v1172, %v1242
      %v1319 = vadd.f32 %v1173, %v1244
      %v1320 = vadd.f32 %v1174, %v1247
      %v1321 = vadd.f32 %v1175, %v1249
      %v1322 = vadd.f32 %v1176, %v1252
      %v1323 = vadd.f32 %v1177, %v1254
      %v1324 = vadd.f32 %v1178, %v1257
      %v1325 = vadd.f32 %v1179, %v1259
      %v1326 = vadd.f32 %v1180, %v1262
      %v1327 = vadd.f32 %v1181, %v1264
      %v1328 = vadd.f32 %v1182, %v1267
      %v1329 = vadd.f32 %v1183, %v1269
      %v1330 = vadd.f32 %v1184, %v1272
      %v1331 = vadd.f32 %v1185, %v1274
      %v1332 = vadd.f32 %v1186, %v1277
      %v1333 = vadd.f32 %v1187, %v1279
      %v1334 = vadd.f32 %v1188, %v1282
      %v1335 = vadd.f32 %v1189, %v1284
      %v1336 = vadd.f32 %v1190, %v1287
      %v1337 = vadd.f32 %v1191, %v1289
      %v1338 = vadd.f32 %v1192, %v1292
      %v1339 = vadd.f32 %v1193, %v1294
      %v1340 = vadd.f32 %v1194, %v1297
      %v1341 = vadd.f32 %v1195, %v1299
      %v1342 = vadd.f32 %v1196, %v1302
      %v1343 = vadd.f32 %v1197, %v1304
      %v1344 = vadd.f32 %v1198, %v1307
      %v1345 = vadd.f32 %v1199, %v1309
      %v1346 = vadd.f32 %v1200, %v1312
      %v1347 = vadd.f32 %v1201, %v1314
      %v1348 = vld [vmem:[%s2] sm:$0x1]
      %v1350 = vperm.slane %v1348, 0
      %v1352 = vadd.f32 %v1316, %v1350
      %v1353 = vadd.f32 %v1317, %v1350
      %v1354 = vadd.f32 %v1318, %v1350
      %v1355 = vadd.f32 %v1319, %v1350
      %v1356 = vadd.f32 %v1320, %v1350
      %v1357 = vadd.f32 %v1321, %v1350
      %v1358 = vadd.f32 %v1322, %v1350
      %v1359 = vadd.f32 %v1323, %v1350
      %v1360 = vadd.f32 %v1324, %v1350
      %v1361 = vadd.f32 %v1325, %v1350
      %v1362 = vadd.f32 %v1326, %v1350
      %v1363 = vadd.f32 %v1327, %v1350
      %v1364 = vadd.f32 %v1328, %v1350
      %v1365 = vadd.f32 %v1329, %v1350
      %v1366 = vadd.f32 %v1330, %v1350
      %v1367 = vadd.f32 %v1331, %v1350
      %v1368 = vadd.f32 %v1332, %v1350
      %v1369 = vadd.f32 %v1333, %v1350
      %v1370 = vadd.f32 %v1334, %v1350
      %v1371 = vadd.f32 %v1335, %v1350
      %v1372 = vadd.f32 %v1336, %v1350
      %v1373 = vadd.f32 %v1337, %v1350
      %v1374 = vadd.f32 %v1338, %v1350
      %v1375 = vadd.f32 %v1339, %v1350
      %v1376 = vadd.f32 %v1340, %v1350
      %v1377 = vadd.f32 %v1341, %v1350
      %v1378 = vadd.f32 %v1342, %v1350
      %v1379 = vadd.f32 %v1343, %v1350
      %v1380 = vadd.f32 %v1344, %v1350
      %v1381 = vadd.f32 %v1345, %v1350
      %v1382 = vadd.f32 %v1346, %v1350
      %v1383 = vadd.f32 %v1347, %v1350
      %vm1384 = vcmask 130048
      %v1385 = vsel %vm1384, %v1352, 0.0
      %v1386 = vsel %vm1384, %v1353, 0.0
      %v1387 = vadd.f32 %v1385, %v1386
      %v1388 = vsel %vm1384, %v1354, 0.0
      %v1389 = vadd.f32 %v1387, %v1388
      %v1390 = vsel %vm1384, %v1355, 0.0
      %v1391 = vadd.f32 %v1389, %v1390
      %v1392 = vsel %vm1384, %v1356, 0.0
      %v1393 = vadd.f32 %v1391, %v1392
      %v1394 = vsel %vm1384, %v1357, 0.0
      %v1395 = vadd.f32 %v1393, %v1394
      %v1396 = vsel %vm1384, %v1358, 0.0
      %v1397 = vadd.f32 %v1395, %v1396
      %v1398 = vsel %vm1384, %v1359, 0.0
      %v1399 = vadd.f32 %v1397, %v1398
      %v1400 = vsel %vm1384, %v1360, 0.0
      %v1401 = vadd.f32 %v1399, %v1400
      %v1402 = vsel %vm1384, %v1361, 0.0
      %v1403 = vadd.f32 %v1401, %v1402
      %v1404 = vsel %vm1384, %v1362, 0.0
      %v1405 = vadd.f32 %v1403, %v1404
      %v1406 = vsel %vm1384, %v1363, 0.0
      %v1407 = vadd.f32 %v1405, %v1406
      %v1408 = vsel %vm1384, %v1364, 0.0
      %v1409 = vadd.f32 %v1407, %v1408
      %v1410 = vsel %vm1384, %v1365, 0.0
      %v1411 = vadd.f32 %v1409, %v1410
      %v1412 = vsel %vm1384, %v1366, 0.0
      %v1413 = vadd.f32 %v1411, %v1412
      %v1414 = vsel %vm1384, %v1367, 0.0
      %v1415 = vadd.f32 %v1413, %v1414
      %v1416 = vsel %vm1384, %v1368, 0.0
      %v1417 = vadd.f32 %v1415, %v1416
      %v1418 = vsel %vm1384, %v1369, 0.0
      %v1419 = vadd.f32 %v1417, %v1418
      %v1420 = vsel %vm1384, %v1370, 0.0
      %v1421 = vadd.f32 %v1419, %v1420
      %v1422 = vsel %vm1384, %v1371, 0.0
      %v1423 = vadd.f32 %v1421, %v1422
      %v1424 = vsel %vm1384, %v1372, 0.0
      %v1425 = vadd.f32 %v1423, %v1424
      %v1426 = vsel %vm1384, %v1373, 0.0
      %v1427 = vadd.f32 %v1425, %v1426
      %v1428 = vsel %vm1384, %v1374, 0.0
      %v1429 = vadd.f32 %v1427, %v1428
      %v1430 = vsel %vm1384, %v1375, 0.0
      %v1431 = vadd.f32 %v1429, %v1430
      %v1432 = vsel %vm1384, %v1376, 0.0
      %v1433 = vadd.f32 %v1431, %v1432
      %v1434 = vsel %vm1384, %v1377, 0.0
      %v1435 = vadd.f32 %v1433, %v1434
      %v1436 = vsel %vm1384, %v1378, 0.0
      %v1437 = vadd.f32 %v1435, %v1436
      %v1438 = vsel %vm1384, %v1379, 0.0
      %v1439 = vadd.f32 %v1437, %v1438
      %v1440 = vsel %vm1384, %v1380, 0.0
      %v1441 = vadd.f32 %v1439, %v1440
      %v1442 = vsel %vm1384, %v1381, 0.0
      %v1443 = vadd.f32 %v1441, %v1442
      %v1444 = vsel %vm1384, %v1382, 0.0
      %v1445 = vadd.f32 %v1443, %v1444
      %v1446 = vsel %vm1384, %v1383, 0.0
      %v1447 = vadd.f32 %v1445, %v1446
      %v1448 = vrot.slane %v1447, 4
      %v1449 = vadd.f32 %v1447, %v1448
      %v1450 = vrot.slane %v1449, 2
      %v1451 = vadd.f32 %v1449, %v1450
      %v1452 = vrot.slane %v1451, 1
      %v1453 = vadd.f32 %v1451, %v1452
      %v1454 = vrcp.pop 256.0
      %v1455 = vmul.f32 256.0, %v1454
      %v1456 = vsub.f32 1.0, %v1455
      %v1457 = vmul.f32 %v1454, %v1456
      %v1458 = vadd.f32 %v1454, %v1457
      %vm1459 = vweird.f32 %v1454
      %v1460 = vsel %vm1459, %v1454, %v1458
      %v1461 = vmul.f32 %v1453, %v1460
      %v1462 = vsub.f32 %v1352, %v1461
      %v1463 = vsub.f32 %v1353, %v1461
      %v1464 = vsub.f32 %v1354, %v1461
      %v1465 = vsub.f32 %v1355, %v1461
      %v1466 = vsub.f32 %v1356, %v1461
      %v1467 = vsub.f32 %v1357, %v1461
      %v1468 = vsub.f32 %v1358, %v1461
      %v1469 = vsub.f32 %v1359, %v1461
      %v1470 = vsub.f32 %v1360, %v1461
      %v1471 = vsub.f32 %v1361, %v1461
      %v1472 = vsub.f32 %v1362, %v1461
      %v1473 = vsub.f32 %v1363, %v1461
      %v1474 = vsub.f32 %v1364, %v1461
      %v1475 = vsub.f32 %v1365, %v1461
      %v1476 = vsub.f32 %v1366, %v1461
      %v1477 = vsub.f32 %v1367, %v1461
      %v1478 = vsub.f32 %v1368, %v1461
      %v1479 = vsub.f32 %v1369, %v1461
      %v1480 = vsub.f32 %v1370, %v1461
      %v1481 = vsub.f32 %v1371, %v1461
      %v1482 = vsub.f32 %v1372, %v1461
      %v1483 = vsub.f32 %v1373, %v1461
      %v1484 = vsub.f32 %v1374, %v1461
      %v1485 = vsub.f32 %v1375, %v1461
      %v1486 = vsub.f32 %v1376, %v1461
      %v1487 = vsub.f32 %v1377, %v1461
      %v1488 = vsub.f32 %v1378, %v1461
      %v1489 = vsub.f32 %v1379, %v1461
      %v1490 = vsub.f32 %v1380, %v1461
      %v1491 = vsub.f32 %v1381, %v1461
      %v1492 = vsub.f32 %v1382, %v1461
      %v1493 = vsub.f32 %v1383, %v1461
      %v1494 = vmul.f32 %v1462, %v1462
      %v1495 = vmul.f32 %v1463, %v1463
      %v1496 = vmul.f32 %v1464, %v1464
      %v1497 = vmul.f32 %v1465, %v1465
      %v1498 = vmul.f32 %v1466, %v1466
      %v1499 = vmul.f32 %v1467, %v1467
      %v1500 = vmul.f32 %v1468, %v1468
      %v1501 = vmul.f32 %v1469, %v1469
      %v1502 = vmul.f32 %v1470, %v1470
      %v1503 = vmul.f32 %v1471, %v1471
      %v1504 = vmul.f32 %v1472, %v1472
      %v1505 = vmul.f32 %v1473, %v1473
      %v1506 = vmul.f32 %v1474, %v1474
      %v1507 = vmul.f32 %v1475, %v1475
      %v1508 = vmul.f32 %v1476, %v1476
      %v1509 = vmul.f32 %v1477, %v1477
      %v1510 = vmul.f32 %v1478, %v1478
      %v1511 = vmul.f32 %v1479, %v1479
      %v1512 = vmul.f32 %v1480, %v1480
      %v1513 = vmul.f32 %v1481, %v1481
      %v1514 = vmul.f32 %v1482, %v1482
      %v1515 = vmul.f32 %v1483, %v1483
      %v1516 = vmul.f32 %v1484, %v1484
      %v1517 = vmul.f32 %v1485, %v1485
      %v1518 = vmul.f32 %v1486, %v1486
      %v1519 = vmul.f32 %v1487, %v1487
      %v1520 = vmul.f32 %v1488, %v1488
      %v1521 = vmul.f32 %v1489, %v1489
      %v1522 = vmul.f32 %v1490, %v1490
      %v1523 = vmul.f32 %v1491, %v1491
      %v1524 = vmul.f32 %v1492, %v1492
      %v1525 = vmul.f32 %v1493, %v1493
      %v1526 = vsel %vm1384, %v1494, 0.0
      %v1527 = vsel %vm1384, %v1495, 0.0
      %v1528 = vadd.f32 %v1526, %v1527
      %v1529 = vsel %vm1384, %v1496, 0.0
      %v1530 = vadd.f32 %v1528, %v1529
      %v1531 = vsel %vm1384, %v1497, 0.0
      %v1532 = vadd.f32 %v1530, %v1531
      %v1533 = vsel %vm1384, %v1498, 0.0
      %v1534 = vadd.f32 %v1532, %v1533
      %v1535 = vsel %vm1384, %v1499, 0.0
      %v1536 = vadd.f32 %v1534, %v1535
      %v1537 = vsel %vm1384, %v1500, 0.0
      %v1538 = vadd.f32 %v1536, %v1537
      %v1539 = vsel %vm1384, %v1501, 0.0
      %v1540 = vadd.f32 %v1538, %v1539
      %v1541 = vsel %vm1384, %v1502, 0.0
      %v1542 = vadd.f32 %v1540, %v1541
      %v1543 = vsel %vm1384, %v1503, 0.0
      %v1544 = vadd.f32 %v1542, %v1543
      %v1545 = vsel %vm1384, %v1504, 0.0
      %v1546 = vadd.f32 %v1544, %v1545
      %v1547 = vsel %vm1384, %v1505, 0.0
      %v1548 = vadd.f32 %v1546, %v1547
      %v1549 = vsel %vm1384, %v1506, 0.0
      %v1550 = vadd.f32 %v1548, %v1549
      %v1551 = vsel %vm1384, %v1507, 0.0
      %v1552 = vadd.f32 %v1550, %v1551
      %v1553 = vsel %vm1384, %v1508, 0.0
      %v1554 = vadd.f32 %v1552, %v1553
      %v1555 = vsel %vm1384, %v1509, 0.0
      %v1556 = vadd.f32 %v1554, %v1555
      %v1557 = vsel %vm1384, %v1510, 0.0
      %v1558 = vadd.f32 %v1556, %v1557
      %v1559 = vsel %vm1384, %v1511, 0.0
      %v1560 = vadd.f32 %v1558, %v1559
      %v1561 = vsel %vm1384, %v1512, 0.0
      %v1562 = vadd.f32 %v1560, %v1561
      %v1563 = vsel %vm1384, %v1513, 0.0
      %v1564 = vadd.f32 %v1562, %v1563
      %v1565 = vsel %vm1384, %v1514, 0.0
      %v1566 = vadd.f32 %v1564, %v1565
      %v1567 = vsel %vm1384, %v1515, 0.0
      %v1568 = vadd.f32 %v1566, %v1567
      %v1569 = vsel %vm1384, %v1516, 0.0
      %v1570 = vadd.f32 %v1568, %v1569
      %v1571 = vsel %vm1384, %v1517, 0.0
      %v1572 = vadd.f32 %v1570, %v1571
      %v1573 = vsel %vm1384, %v1518, 0.0
      %v1574 = vadd.f32 %v1572, %v1573
      %v1575 = vsel %vm1384, %v1519, 0.0
      %v1576 = vadd.f32 %v1574, %v1575
      %v1577 = vsel %vm1384, %v1520, 0.0
      %v1578 = vadd.f32 %v1576, %v1577
      %v1579 = vsel %vm1384, %v1521, 0.0
      %v1580 = vadd.f32 %v1578, %v1579
      %v1581 = vsel %vm1384, %v1522, 0.0
      %v1582 = vadd.f32 %v1580, %v1581
      %v1583 = vsel %vm1384, %v1523, 0.0
      %v1584 = vadd.f32 %v1582, %v1583
      %v1585 = vsel %vm1384, %v1524, 0.0
      %v1586 = vadd.f32 %v1584, %v1585
      %v1587 = vsel %vm1384, %v1525, 0.0
      %v1588 = vadd.f32 %v1586, %v1587
      %v1589 = vrot.slane %v1588, 4
      %v1590 = vadd.f32 %v1588, %v1589
      %v1591 = vrot.slane %v1590, 2
      %v1592 = vadd.f32 %v1590, %v1591
      %v1593 = vrot.slane %v1592, 1
      %v1594 = vadd.f32 %v1592, %v1593
      %v1595 = vmul.f32 %v1594, %v1460
      %v1596 = vadd.f32 %v1595, 1e-05
      %v1597 = vrsqrt.pop %v1596
      %v1598 = vmul.f32 %v1597, %v1596
      %v1599 = vmul.f32 %v1598, %v1597
      %v1600 = vmul.f32 0.5, %v1599
      %v1601 = vsub.f32 1.5, %v1600
      %v1602 = vmul.f32 %v1597, %v1601
      %vm1603 = vweird.f32 %v1596
      %vm1604 = vweird.f32 %v1597
      %vm1605 = vmor %vm1603, %vm1604
      %v1606 = vsel %vm1605, %v1597, %v1602
      %v1607 = vmul.f32 %v1462, %v1606
      %v1608 = vmul.f32 %v1463, %v1606
      %v1609 = vmul.f32 %v1464, %v1606
      %v1610 = vmul.f32 %v1465, %v1606
      %v1611 = vmul.f32 %v1466, %v1606
      %v1612 = vmul.f32 %v1467, %v1606
      %v1613 = vmul.f32 %v1468, %v1606
      %v1614 = vmul.f32 %v1469, %v1606
      %v1615 = vmul.f32 %v1470, %v1606
      %v1616 = vmul.f32 %v1471, %v1606
      %v1617 = vmul.f32 %v1472, %v1606
      %v1618 = vmul.f32 %v1473, %v1606
      %v1619 = vmul.f32 %v1474, %v1606
      %v1620 = vmul.f32 %v1475, %v1606
      %v1621 = vmul.f32 %v1476, %v1606
      %v1622 = vmul.f32 %v1477, %v1606
      %v1623 = vmul.f32 %v1478, %v1606
      %v1624 = vmul.f32 %v1479, %v1606
      %v1625 = vmul.f32 %v1480, %v1606
      %v1626 = vmul.f32 %v1481, %v1606
      %v1627 = vmul.f32 %v1482, %v1606
      %v1628 = vmul.f32 %v1483, %v1606
      %v1629 = vmul.f32 %v1484, %v1606
      %v1630 = vmul.f32 %v1485, %v1606
      %v1631 = vmul.f32 %v1486, %v1606
      %v1632 = vmul.f32 %v1487, %v1606
      %v1633 = vmul.f32 %v1488, %v1606
      %v1634 = vmul.f32 %v1489, %v1606
      %v1635 = vmul.f32 %v1490, %v1606
      %v1636 = vmul.f32 %v1491, %v1606
      %v1637 = vmul.f32 %v1492, %v1606
      %v1638 = vmul.f32 %v1493, %v1606
      %v1639 = vld [vmem:[%s3] sm:$0x1]
      %v1641 = vperm.slane %v1639, 0
      %v1643 = vmul.f32 %v1607, %v1641
      %v1644 = vmul.f32 %v1608, %v1641
      %v1645 = vmul.f32 %v1609, %v1641
      %v1646 = vmul.f32 %v1610, %v1641
      %v1647 = vmul.f32 %v1611, %v1641
      %v1648 = vmul.f32 %v1612, %v1641
      %v1649 = vmul.f32 %v1613, %v1641
      %v1650 = vmul.f32 %v1614, %v1641
      %v1651 = vmul.f32 %v1615, %v1641
      %v1652 = vmul.f32 %v1616, %v1641
      %v1653 = vmul.f32 %v1617, %v1641
      %v1654 = vmul.f32 %v1618, %v1641
      %v1655 = vmul.f32 %v1619, %v1641
      %v1656 = vmul.f32 %v1620, %v1641
      %v1657 = vmul.f32 %v1621, %v1641
      %v1658 = vmul.f32 %v1622, %v1641
      %v1659 = vmul.f32 %v1623, %v1641
      %v1660 = vmul.f32 %v1624, %v1641
      %v1661 = vmul.f32 %v1625, %v1641
      %v1662 = vmul.f32 %v1626, %v1641
      %v1663 = vmul.f32 %v1627, %v1641
      %v1664 = vmul.f32 %v1628, %v1641
      %v1665 = vmul.f32 %v1629, %v1641
      %v1666 = vmul.f32 %v1630, %v1641
      %v1667 = vmul.f32 %v1631, %v1641
      %v1668 = vmul.f32 %v1632, %v1641
      %v1669 = vmul.f32 %v1633, %v1641
      %v1670 = vmul.f32 %v1634, %v1641
      %v1671 = vmul.f32 %v1635, %v1641
      %v1672 = vmul.f32 %v1636, %v1641
      %v1673 = vmul.f32 %v1637, %v1641
      %v1674 = vmul.f32 %v1638, %v1641
      %v1675 = vld [vmem:[%s4] sm:$0x1]
      %v1677 = vperm.slane %v1675, 0
      %v1679 = vadd.f32 %v1643, %v1677
      %v1680 = vadd.f32 %v1644, %v1677
      %v1681 = vadd.f32 %v1645, %v1677
      %v1682 = vadd.f32 %v1646, %v1677
      %v1683 = vadd.f32 %v1647, %v1677
      %v1684 = vadd.f32 %v1648, %v1677
      %v1685 = vadd.f32 %v1649, %v1677
      %v1686 = vadd.f32 %v1650, %v1677
      %v1687 = vadd.f32 %v1651, %v1677
      %v1688 = vadd.f32 %v1652, %v1677
      %v1689 = vadd.f32 %v1653, %v1677
      %v1690 = vadd.f32 %v1654, %v1677
      %v1691 = vadd.f32 %v1655, %v1677
      %v1692 = vadd.f32 %v1656, %v1677
      %v1693 = vadd.f32 %v1657, %v1677
      %v1694 = vadd.f32 %v1658, %v1677
      %v1695 = vadd.f32 %v1659, %v1677
      %v1696 = vadd.f32 %v1660, %v1677
      %v1697 = vadd.f32 %v1661, %v1677
      %v1698 = vadd.f32 %v1662, %v1677
      %v1699 = vadd.f32 %v1663, %v1677
      %v1700 = vadd.f32 %v1664, %v1677
      %v1701 = vadd.f32 %v1665, %v1677
      %v1702 = vadd.f32 %v1666, %v1677
      %v1703 = vadd.f32 %v1667, %v1677
      %v1704 = vadd.f32 %v1668, %v1677
      %v1705 = vadd.f32 %v1669, %v1677
      %v1706 = vadd.f32 %v1670, %v1677
      %v1707 = vadd.f32 %v1671, %v1677
      %v1708 = vadd.f32 %v1672, %v1677
      %v1709 = vadd.f32 %v1673, %v1677
      %v1710 = vadd.f32 %v1674, %v1677
      %v1711 = vmax.f32 %v1679, 0.0
      %v1712 = vmax.f32 %v1680, 0.0
      %v1713 = vmax.f32 %v1681, 0.0
      %v1714 = vmax.f32 %v1682, 0.0
      %v1715 = vmax.f32 %v1683, 0.0
      %v1716 = vmax.f32 %v1684, 0.0
      %v1717 = vmax.f32 %v1685, 0.0
      %v1718 = vmax.f32 %v1686, 0.0
      %v1719 = vmax.f32 %v1687, 0.0
      %v1720 = vmax.f32 %v1688, 0.0
      %v1721 = vmax.f32 %v1689, 0.0
      %v1722 = vmax.f32 %v1690, 0.0
      %v1723 = vmax.f32 %v1691, 0.0
      %v1724 = vmax.f32 %v1692, 0.0
      %v1725 = vmax.f32 %v1693, 0.0
      %v1726 = vmax.f32 %v1694, 0.0
      %v1727 = vmax.f32 %v1695, 0.0
      %v1728 = vmax.f32 %v1696, 0.0
      %v1729 = vmax.f32 %v1697, 0.0
      %v1730 = vmax.f32 %v1698, 0.0
      %v1731 = vmax.f32 %v1699, 0.0
      %v1732 = vmax.f32 %v1700, 0.0
      %v1733 = vmax.f32 %v1701, 0.0
      %v1734 = vmax.f32 %v1702, 0.0
      %v1735 = vmax.f32 %v1703, 0.0
      %v1736 = vmax.f32 %v1704, 0.0
      %v1737 = vmax.f32 %v1705, 0.0
      %v1738 = vmax.f32 %v1706, 0.0
      %v1739 = vmax.f32 %v1707, 0.0
      %v1740 = vmax.f32 %v1708, 0.0
      %v1741 = vmax.f32 %v1709, 0.0
      %v1742 = vmax.f32 %v1710, 0.0
      %v1743 = vpack.c.bf16 %v1711, %v1711
      %v1744 = vpack.c.bf16 %v1712, %v1712
      %v1745 = vpack.c.bf16 %v1713, %v1713
      %v1746 = vpack.c.bf16 %v1714, %v1714
      %v1747 = vpack.c.bf16 %v1715, %v1715
      %v1748 = vpack.c.bf16 %v1716, %v1716
      %v1749 = vpack.c.bf16 %v1717, %v1717
      %v1750 = vpack.c.bf16 %v1718, %v1718
      %v1751 = vpack.c.bf16 %v1719, %v1719
      %v1752 = vpack.c.bf16 %v1720, %v1720
      %v1753 = vpack.c.bf16 %v1721, %v1721
      %v1754 = vpack.c.bf16 %v1722, %v1722
      %v1755 = vpack.c.bf16 %v1723, %v1723
      %v1756 = vpack.c.bf16 %v1724, %v1724
      %v1757 = vpack.c.bf16 %v1725, %v1725
      %v1758 = vpack.c.bf16 %v1726, %v1726
      %v1759 = vpack.c.bf16 %v1727, %v1727
      %v1760 = vpack.c.bf16 %v1728, %v1728
      %v1761 = vpack.c.bf16 %v1729, %v1729
      %v1762 = vpack.c.bf16 %v1730, %v1730
      %v1763 = vpack.c.bf16 %v1731, %v1731
      %v1764 = vpack.c.bf16 %v1732, %v1732
      %v1765 = vpack.c.bf16 %v1733, %v1733
      %v1766 = vpack.c.bf16 %v1734, %v1734
      %v1767 = vpack.c.bf16 %v1735, %v1735
      %v1768 = vpack.c.bf16 %v1736, %v1736
      %v1769 = vpack.c.bf16 %v1737, %v1737
      %v1770 = vpack.c.bf16 %v1738, %v1738
      %v1771 = vpack.c.bf16 %v1739, %v1739
      %v1772 = vpack.c.bf16 %v1740, %v1740
      %v1773 = vpack.c.bf16 %v1741, %v1741
      %v1774 = vpack.c.bf16 %v1742, %v1742
      %vm1775 = vcmask 125952
      %1776 = vst.msk [vmem:[%s224] sm:$0xf] %vm1775, %v1743
      %1777 = vst.msk [vmem:[%s224 + $0x4] sm:$0xf] %vm1775, %v1744
      %1778 = vst.msk [vmem:[%s224 + $0x8] sm:$0xf] %vm1775, %v1745
      %1779 = vst.msk [vmem:[%s224 + $0xc] sm:$0xf] %vm1775, %v1746
      %1780 = vst.msk [vmem:[%s224 + $0x10] sm:$0xf] %vm1775, %v1747
      %1781 = vst.msk [vmem:[%s224 + $0x14] sm:$0xf] %vm1775, %v1748
      %1782 = vst.msk [vmem:[%s224 + $0x18] sm:$0xf] %vm1775, %v1749
      %1783 = vst.msk [vmem:[%s224 + $0x1c] sm:$0xf] %vm1775, %v1750
      %1784 = vst.msk [vmem:[%s224 + $0x20] sm:$0xf] %vm1775, %v1751
      %1785 = vst.msk [vmem:[%s224 + $0x24] sm:$0xf] %vm1775, %v1752
      %1786 = vst.msk [vmem:[%s224 + $0x28] sm:$0xf] %vm1775, %v1753
      %1787 = vst.msk [vmem:[%s224 + $0x2c] sm:$0xf] %vm1775, %v1754
      %1788 = vst.msk [vmem:[%s224 + $0x30] sm:$0xf] %vm1775, %v1755
      %1789 = vst.msk [vmem:[%s224 + $0x34] sm:$0xf] %vm1775, %v1756
      %1790 = vst.msk [vmem:[%s224 + $0x38] sm:$0xf] %vm1775, %v1757
      %1791 = vst.msk [vmem:[%s224 + $0x3c] sm:$0xf] %vm1775, %v1758
      %1792 = vst.msk [vmem:[%s224 + $0x40] sm:$0xf] %vm1775, %v1759
      %1793 = vst.msk [vmem:[%s224 + $0x44] sm:$0xf] %vm1775, %v1760
      %1794 = vst.msk [vmem:[%s224 + $0x48] sm:$0xf] %vm1775, %v1761
      %1795 = vst.msk [vmem:[%s224 + $0x4c] sm:$0xf] %vm1775, %v1762
      %1796 = vst.msk [vmem:[%s224 + $0x50] sm:$0xf] %vm1775, %v1763
      %1797 = vst.msk [vmem:[%s224 + $0x54] sm:$0xf] %vm1775, %v1764
      %1798 = vst.msk [vmem:[%s224 + $0x58] sm:$0xf] %vm1775, %v1765
      %1799 = vst.msk [vmem:[%s224 + $0x5c] sm:$0xf] %vm1775, %v1766
      %1800 = vst.msk [vmem:[%s224 + $0x60] sm:$0xf] %vm1775, %v1767
      %1801 = vst.msk [vmem:[%s224 + $0x64] sm:$0xf] %vm1775, %v1768
      %1802 = vst.msk [vmem:[%s224 + $0x68] sm:$0xf] %vm1775, %v1769
      %1803 = vst.msk [vmem:[%s224 + $0x6c] sm:$0xf] %vm1775, %v1770
      %1804 = vst.msk [vmem:[%s224 + $0x70] sm:$0xf] %vm1775, %v1771
      %1805 = vst.msk [vmem:[%s224 + $0x74] sm:$0xf] %vm1775, %v1772
      %1806 = vst.msk [vmem:[%s224 + $0x78] sm:$0xf] %vm1775, %v1773
      %1807 = vst.msk [vmem:[%s224 + $0x7c] sm:$0xf] %vm1775, %v1774
      %p1808 = scmp.lt.s32.totalorder %s16, 1
      %s1809 = scalar_select %p1808, %s16, 1
      %s1810 = smul.addr %s1809, 32
      %s1811 = smul.addr %s1810, 4
      %s1812 = scalar_lea.vmem %s5, %s1811
      // Predicated region
      $region41: #{forward.46} parent=39 // pred_check
        %p1813 = pneg %p144
      $region42: #{forward.46} parent=39 // pred_check_branch
        %1815 = sbr.rel (%p1813) target = $region44
      $region43: #{forward.46} parent=39 // pred_region
        _
      $region44: #{forward.46} parent=39 // pred_fallthru
        _
    $region40: #{forward.46} parent=5 // pred_fallthru
      _
    %p1816 = scmp.le.s32.totalorder 2, %s11
    // Predicated region
    $region45: #{forward.46} parent=5 // pred_check
      %p1817 = pneg %p1816
    $region46: #{forward.46} parent=5 // pred_check_branch
      %1819 = sbr.rel (%p1817) target = $region48
    $region47: #{forward.46} parent=5 // pred_region
      %s1820 = ssub.s32 %s11, 2
      // Predicated region
      $region49: #{forward.46} parent=47 // pred_check
        %p1821 = pneg %p150
      $region50: #{forward.46} parent=47 // pred_check_branch
        %1823 = sbr.rel (%p1821) target = $region52
      $region51: #{forward.46} parent=47 // pred_region
        %p1824 = scmp.lt.s32.totalorder %s17, 1
        %s1825 = scalar_select %p1824, %s17, 1
        %s1826 = smul.addr %s1825, 32
        %s1827 = smul.addr %s1826, 4
        %s1828 = scalar_lea.vmem %s5, %s1827
      $region52: #{forward.46} parent=47 // pred_fallthru
        _
    $region48: #{forward.46} parent=5 // pred_fallthru
      _
  $region6: #{forward.46} parent=0 // loop_footer
    %s15 = sadd.s32 1, %s11
  $region7: #{forward.46} parent=0 // loop_footer_branch
    %10 = sbr.rel target = $region3
  $region8: #{forward.46} parent=0 // loop_exit
    _

// kernel: forward.47
$region0: #{forward.47}
  #allocation0 [shape = 'u32[]', space=smem, size = 0x4, offset = 0x4, fixed_abs, tag = 'smem constant byte address 0x4 - core index']
  #allocation1 [shape = 'u32[72,128]{1,0:T(1,128)}', space=vmem, size = 0x9000, scoped, tag = 'internal scratch']
  #allocation2 [shape = 'f32[128,128]{1,0:T(8,128)}', space=vmem, size = 0x10000, scoped, tag = 'scratch operand']
  %s0 = inlined_call_operand.vmem [shape: bf16[128,144], index: 0, kind: input, shape index: {}]
  %s1 = inlined_call_operand.vmem [shape: bf16[144,128], index: 1, kind: input, shape index: {}]
  %s2 = inlined_call_operand.vmem [shape: f32[1,128], index: 2, kind: input, shape index: {}]
  %s3 = inlined_call_operand.vmem [shape: bf16[128,128], index: 3, kind: output, shape index: {}]
  %s4 = sld [smem:[#allocation0]]
  $region30: #{forward.47} parent=0
    _
  %s6 = ssub.s32 1, %s4
  %s7 = scalar_select 0, %s6, %s4
  // Predicated region
  $region2: #{forward.47} parent=0 // pred_check
    _
  $region3: #{forward.47} parent=0 // pred_check_branch
    %9 = sbr.rel (0) target = $region5
  $region4: #{forward.47} parent=0 // pred_region
    _
  $region5: #{forward.47} parent=0 // pred_fallthru
    _
  // Predicated region
  $region6: #{forward.47} parent=0 // pred_check
    _
  $region7: #{forward.47} parent=0 // pred_check_branch
    %11 = sbr.rel (0) target = $region9
  $region8: #{forward.47} parent=0 // pred_region
    _
  $region9: #{forward.47} parent=0 // pred_fallthru
    _
  // Predicated region
  $region10: #{forward.47} parent=0 // pred_check
    _
  $region11: #{forward.47} parent=0 // pred_check_branch
    %13 = sbr.rel (0) target = $region13
  $region12: #{forward.47} parent=0 // pred_region
    _
  $region13: #{forward.47} parent=0 // pred_fallthru
    _
  %p15 = scmp.eq.s32.totalorder 0, 0
  // Predicated region
  $region14: #{forward.47} parent=0 // pred_check
    %p16 = pneg %p15
  $region15: #{forward.47} parent=0 // pred_check_branch
    %18 = sbr.rel (%p16) target = $region17
  $region16: #{forward.47} parent=0 // pred_region
    %19 = vst [vmem:[#allocation2] sm:$0xff] 0.0
    %20 = vst [vmem:[#allocation2 + $0x8] sm:$0xff] 0.0
    %21 = vst [vmem:[#allocation2 + $0x10] sm:$0xff] 0.0
    %22 = vst [vmem:[#allocation2 + $0x18] sm:$0xff] 0.0
    %23 = vst [vmem:[#allocation2 + $0x20] sm:$0xff] 0.0
    %24 = vst [vmem:[#allocation2 + $0x28] sm:$0xff] 0.0
    %25 = vst [vmem:[#allocation2 + $0x30] sm:$0xff] 0.0
    %26 = vst [vmem:[#allocation2 + $0x38] sm:$0xff] 0.0
    %27 = vst [vmem:[#allocation2 + $0x40] sm:$0xff] 0.0
    %28 = vst [vmem:[#allocation2 + $0x48] sm:$0xff] 0.0
    %29 = vst [vmem:[#allocation2 + $0x50] sm:$0xff] 0.0
    %30 = vst [vmem:[#allocation2 + $0x58] sm:$0xff] 0.0
    %31 = vst [vmem:[#allocation2 + $0x60] sm:$0xff] 0.0
    %32 = vst [vmem:[#allocation2 + $0x68] sm:$0xff] 0.0
    %33 = vst [vmem:[#allocation2 + $0x70] sm:$0xff] 0.0
    %34 = vst [vmem:[#allocation2 + $0x78] sm:$0xff] 0.0
  $region17: #{forward.47} parent=0 // pred_fallthru
    _
  %v35 = vld [vmem:[#allocation2] sm:$0xff]
  %v36 = vld [vmem:[#allocation2 + $0x8] sm:$0xff]
  %v37 = vld [vmem:[#allocation2 + $0x10] sm:$0xff]
  %v38 = vld [vmem:[#allocation2 + $0x18] sm:$0xff]
  %v39 = vld [vmem:[#allocation2 + $0x20] sm:$0xff]
  %v40 = vld [vmem:[#allocation2 + $0x28] sm:$0xff]
  %v41 = vld [vmem:[#allocation2 + $0x30] sm:$0xff]
  %v42 = vld [vmem:[#allocation2 + $0x38] sm:$0xff]
  %v43 = vld [vmem:[#allocation2 + $0x40] sm:$0xff]
  %v44 = vld [vmem:[#allocation2 + $0x48] sm:$0xff]
  %v45 = vld [vmem:[#allocation2 + $0x50] sm:$0xff]
  %v46 = vld [vmem:[#allocation2 + $0x58] sm:$0xff]
  %v47 = vld [vmem:[#allocation2 + $0x60] sm:$0xff]
  %v48 = vld [vmem:[#allocation2 + $0x68] sm:$0xff]
  %v49 = vld [vmem:[#allocation2 + $0x70] sm:$0xff]
  %v50 = vld [vmem:[#allocation2 + $0x78] sm:$0xff]
  %v51 = vld [vmem:[%s0] sm:$0xff]
  %v52 = vld [vmem:[%s0 + $0x8] sm:$0xff]
  %v53 = vld [vmem:[%s0 + $0x10] sm:$0xff]
  %v54 = vld [vmem:[%s0 + $0x18] sm:$0xff]
  %v55 = vld [vmem:[%s0 + $0x20] sm:$0xff]
  %v56 = vld [vmem:[%s0 + $0x28] sm:$0xff]
  %v57 = vld [vmem:[%s0 + $0x30] sm:$0xff]
  %v58 = vld [vmem:[%s0 + $0x38] sm:$0xff]
  %v59 = vld [vmem:[%s0 + $0x40] sm:$0xff]
  %v60 = vld [vmem:[%s0 + $0x48] sm:$0xff]
  %v61 = vld [vmem:[%s0 + $0x50] sm:$0xff]
  %v62 = vld [vmem:[%s0 + $0x58] sm:$0xff]
  %v63 = vld [vmem:[%s0 + $0x60] sm:$0xff]
  %v64 = vld [vmem:[%s0 + $0x68] sm:$0xff]
  %v65 = vld [vmem:[%s0 + $0x70] sm:$0xff]
  %v66 = vld [vmem:[%s0 + $0x78] sm:$0xff]
  %v67 = vld [vmem:[%s1] sm:$0xf]
  %v68 = vld [vmem:[%s1 + $0x4] sm:$0xf]
  %v69 = vld [vmem:[%s1 + $0x8] sm:$0xf]
  %v70 = vld [vmem:[%s1 + $0xc] sm:$0xf]
  %v71 = vld [vmem:[%s1 + $0x10] sm:$0xf]
  %v72 = vld [vmem:[%s1 + $0x14] sm:$0xf]
  %v73 = vld [vmem:[%s1 + $0x18] sm:$0xf]
  %v74 = vld [vmem:[%s1 + $0x1c] sm:$0xf]
  %v75 = vld [vmem:[%s1 + $0x20] sm:$0xf]
  %v76 = vld [vmem:[%s1 + $0x24] sm:$0xf]
  %v77 = vld [vmem:[%s1 + $0x28] sm:$0xf]
  %v78 = vld [vmem:[%s1 + $0x2c] sm:$0xf]
  %v79 = vld [vmem:[%s1 + $0x30] sm:$0xf]
  %v80 = vld [vmem:[%s1 + $0x34] sm:$0xf]
  %v81 = vld [vmem:[%s1 + $0x38] sm:$0xf]
  %v82 = vld [vmem:[%s1 + $0x3c] sm:$0xf]
  %v83 = vld [vmem:[%s1 + $0x40] sm:$0xf]
  %v84 = vld [vmem:[%s1 + $0x44] sm:$0xf]
  %v101 = vunpack.c.l.b16 %v51
  %v102 = vunpack.c.h.b16 %v51
  %v103 = vunpack.c.l.b16 %v52
  %v104 = vunpack.c.h.b16 %v52
  %v105 = vunpack.c.l.b16 %v53
  %v106 = vunpack.c.h.b16 %v53
  %v107 = vunpack.c.l.b16 %v54
  %v108 = vunpack.c.h.b16 %v54
  %v109 = vunpack.c.l.b16 %v55
  %v110 = vunpack.c.h.b16 %v55
  %v111 = vunpack.c.l.b16 %v56
  %v112 = vunpack.c.h.b16 %v56
  %v113 = vunpack.c.l.b16 %v57
  %v114 = vunpack.c.h.b16 %v57
  %v115 = vunpack.c.l.b16 %v58
  %v116 = vunpack.c.h.b16 %v58
  %v117 = vunpack.c.l.b16 %v59
  %v118 = vunpack.c.h.b16 %v59
  %v119 = vunpack.c.l.b16 %v60
  %v120 = vunpack.c.h.b16 %v60
  %v121 = vunpack.c.l.b16 %v61
  %v122 = vunpack.c.h.b16 %v61
  %v123 = vunpack.c.l.b16 %v62
  %v124 = vunpack.c.h.b16 %v62
  %v125 = vunpack.c.l.b16 %v63
  %v126 = vunpack.c.h.b16 %v63
  %v127 = vunpack.c.l.b16 %v64
  %v128 = vunpack.c.h.b16 %v64
  %v129 = vunpack.c.l.b16 %v65
  %v130 = vunpack.c.h.b16 %v65
  %v131 = vunpack.c.l.b16 %v66
  %v132 = vunpack.c.h.b16 %v66
  %v133 = vpack.c.b16 %v103, %v101
  %v134 = vpack.c.b16 %v104, %v102
  %v135 = vpack.c.b16 %v107, %v105
  %v136 = vpack.c.b16 %v108, %v106
  %v137 = vpack.c.b16 %v111, %v109
  %v138 = vpack.c.b16 %v112, %v110
  %v139 = vpack.c.b16 %v115, %v113
  %v140 = vpack.c.b16 %v116, %v114
  %v141 = vpack.c.b16 %v119, %v117
  %v142 = vpack.c.b16 %v120, %v118
  %v143 = vpack.c.b16 %v123, %v121
  %v144 = vpack.c.b16 %v124, %v122
  %v145 = vpack.c.b16 %v127, %v125
  %v146 = vpack.c.b16 %v128, %v126
  %v147 = vpack.c.b16 %v131, %v129
  %v148 = vpack.c.b16 %v132, %v130
  %v175 = vunpack.c.l.b16 %v67
  %v176 = vunpack.c.l.b16 %v68
  %v177 = vunpack.c.l.b16 %v69
  %v178 = vunpack.c.l.b16 %v70
  %v179 = vunpack.c.l.b16 %v71
  %v180 = vunpack.c.l.b16 %v72
  %v181 = vunpack.c.l.b16 %v73
  %v182 = vunpack.c.l.b16 %v74
  %v183 = vunpack.c.l.b16 %v75
  %v184 = vunpack.c.l.b16 %v76
  %v185 = vunpack.c.l.b16 %v77
  %v186 = vunpack.c.l.b16 %v78
  %v187 = vunpack.c.l.b16 %v79
  %v188 = vunpack.c.l.b16 %v80
  %v189 = vunpack.c.l.b16 %v81
  %v190 = vunpack.c.l.b16 %v82
  %v191 = vunpack.c.l.b16 %v83
  %v192 = vunpack.c.l.b16 %v84
  %v193 = vpack.c.b16 %v176, %v175
  %v194 = vpack.c.b16 %v178, %v177
  %v195 = vpack.c.b16 %v180, %v179
  %v196 = vpack.c.b16 %v182, %v181
  %v197 = vpack.c.b16 %v184, %v183
  %v198 = vpack.c.b16 %v186, %v185
  %v199 = vpack.c.b16 %v188, %v187
  %v200 = vpack.c.b16 %v190, %v189
  %v201 = vpack.c.b16 %v192, %v191
  %vm211 = vcmask 130048
  %v213 = vsel %vm211, %v134, 0
  %v216 = vsel %vm211, %v136, 0
  %v219 = vsel %vm211, %v138, 0
  %v222 = vsel %vm211, %v140, 0
  %v225 = vsel %vm211, %v142, 0
  %v228 = vsel %vm211, %v144, 0
  %v231 = vsel %vm211, %v146, 0
  %v234 = vsel %vm211, %v148, 0
  %236 = vmatpush.bf16.msra.mxu0 %v200
  %237 = vmatpush.bf16.msra.mxu0 %v199
  %238 = vmatpush.bf16.msra.mxu0 %v198
  %239 = vmatpush.bf16.msra.mxu0 %v197
  %240 = vmatpush.bf16.msra.mxu0 %v196
  %241 = vmatpush.bf16.msra.mxu0 %v195
  %242 = vmatpush.bf16.msra.mxu0 %v194
  %243 = vmatpush.bf16.msra.mxu0 %v193
  %244 = vmatmul.bf16.gmra.mxu0 %v133
  %v245 = vpop.f32.mrf.mxu0
  %v246 = vadd.f32 0.0, %v245
  %v247 = vpop.f32.mrf.mxu0
  %v248 = vadd.f32 0.0, %v247
  %249 = vmatmul.bf16.gmra.mxu0 %v135
  %v250 = vpop.f32.mrf.mxu0
  %v251 = vadd.f32 0.0, %v250
  %v252 = vpop.f32.mrf.mxu0
  %v253 = vadd.f32 0.0, %v252
  %254 = vmatmul.bf16.gmra.mxu0 %v137
  %v255 = vpop.f32.mrf.mxu0
  %v256 = vadd.f32 0.0, %v255
  %v257 = vpop.f32.mrf.mxu0
  %v258 = vadd.f32 0.0, %v257
  %259 = vmatmul.bf16.gmra.mxu0 %v139
  %v260 = vpop.f32.mrf.mxu0
  %v261 = vadd.f32 0.0, %v260
  %v262 = vpop.f32.mrf.mxu0
  %v263 = vadd.f32 0.0, %v262
  %264 = vmatmul.bf16.gmra.mxu0 %v141
  %v265 = vpop.f32.mrf.mxu0
  %v266 = vadd.f32 0.0, %v265
  %v267 = vpop.f32.mrf.mxu0
  %v268 = vadd.f32 0.0, %v267
  %269 = vmatmul.bf16.gmra.mxu0 %v143
  %v270 = vpop.f32.mrf.mxu0
  %v271 = vadd.f32 0.0, %v270
  %v272 = vpop.f32.mrf.mxu0
  %v273 = vadd.f32 0.0, %v272
  %274 = vmatmul.bf16.gmra.mxu0 %v145
  %v275 = vpop.f32.mrf.mxu0
  %v276 = vadd.f32 0.0, %v275
  %v277 = vpop.f32.mrf.mxu0
  %v278 = vadd.f32 0.0, %v277
  %279 = vmatmul.bf16.gmra.mxu0 %v147
  %v280 = vpop.f32.mrf.mxu0
  %v281 = vadd.f32 0.0, %v280
  %v282 = vpop.f32.mrf.mxu0
  %v283 = vadd.f32 0.0, %v282
  %284 = vdwg.mxu0
  %285 = vmatpush.bf16.msra.mxu0 0
  %286 = vmatpush.bf16.msra.mxu0 0
  %287 = vmatpush.bf16.msra.mxu0 0
  %288 = vmatpush.bf16.msra.mxu0 0
  %289 = vmatpush.bf16.msra.mxu0 0
  %290 = vmatpush.bf16.msra.mxu0 0
  %291 = vmatpush.bf16.msra.mxu0 0
  %292 = vmatpush.bf16.msra.mxu0 %v201
  %293 = vmatmul.bf16.gmra.mxu0 %v213
  %v294 = vpop.f32.mrf.mxu0
  %v295 = vadd.f32 %v246, %v294
  %v296 = vpop.f32.mrf.mxu0
  %v297 = vadd.f32 %v248, %v296
  %298 = vmatmul.bf16.gmra.mxu0 %v216
  %v299 = vpop.f32.mrf.mxu0
  %v300 = vadd.f32 %v251, %v299
  %v301 = vpop.f32.mrf.mxu0
  %v302 = vadd.f32 %v253, %v301
  %303 = vmatmul.bf16.gmra.mxu0 %v219
  %v304 = vpop.f32.mrf.mxu0
  %v305 = vadd.f32 %v256, %v304
  %v306 = vpop.f32.mrf.mxu0
  %v307 = vadd.f32 %v258, %v306
  %308 = vmatmul.bf16.gmra.mxu0 %v222
  %v309 = vpop.f32.mrf.mxu0
  %v310 = vadd.f32 %v261, %v309
  %v311 = vpop.f32.mrf.mxu0
  %v312 = vadd.f32 %v263, %v311
  %313 = vmatmul.bf16.gmra.mxu0 %v225
  %v314 = vpop.f32.mrf.mxu0
  %v315 = vadd.f32 %v266, %v314
  %v316 = vpop.f32.mrf.mxu0
  %v317 = vadd.f32 %v268, %v316
  %318 = vmatmul.bf16.gmra.mxu0 %v228
  %v319 = vpop.f32.mrf.mxu0
  %v320 = vadd.f32 %v271, %v319
  %v321 = vpop.f32.mrf.mxu0
  %v322 = vadd.f32 %v273, %v321
  %323 = vmatmul.bf16.gmra.mxu0 %v231
  %v324 = vpop.f32.mrf.mxu0
  %v325 = vadd.f32 %v276, %v324
  %v326 = vpop.f32.mrf.mxu0
  %v327 = vadd.f32 %v278, %v326
  %328 = vmatmul.bf16.gmra.mxu0 %v234
  %v329 = vpop.f32.mrf.mxu0
  %v330 = vadd.f32 %v281, %v329
  %v331 = vpop.f32.mrf.mxu0
  %v332 = vadd.f32 %v283, %v331
  %333 = vdwg.mxu0
  %v334 = vadd.f32 %v35, %v295
  %v335 = vadd.f32 %v36, %v297
  %v336 = vadd.f32 %v37, %v300
  %v337 = vadd.f32 %v38, %v302
  %v338 = vadd.f32 %v39, %v305
  %v339 = vadd.f32 %v40, %v307
  %v340 = vadd.f32 %v41, %v310
  %v341 = vadd.f32 %v42, %v312
  %v342 = vadd.f32 %v43, %v315
  %v343 = vadd.f32 %v44, %v317
  %v344 = vadd.f32 %v45, %v320
  %v345 = vadd.f32 %v46, %v322
  %v346 = vadd.f32 %v47, %v325
  %v347 = vadd.f32 %v48, %v327
  %v348 = vadd.f32 %v49, %v330
  %v349 = vadd.f32 %v50, %v332
  %350 = vst [vmem:[#allocation2] sm:$0xff] %v334
  %351 = vst [vmem:[#allocation2 + $0x8] sm:$0xff] %v335
  %352 = vst [vmem:[#allocation2 + $0x10] sm:$0xff] %v336
  %353 = vst [vmem:[#allocation2 + $0x18] sm:$0xff] %v337
  %354 = vst [vmem:[#allocation2 + $0x20] sm:$0xff] %v338
  %355 = vst [vmem:[#allocation2 + $0x28] sm:$0xff] %v339
  %356 = vst [vmem:[#allocation2 + $0x30] sm:$0xff] %v340
  %357 = vst [vmem:[#allocation2 + $0x38] sm:$0xff] %v341
  %358 = vst [vmem:[#allocation2 + $0x40] sm:$0xff] %v342
  %359 = vst [vmem:[#allocation2 + $0x48] sm:$0xff] %v343
  %360 = vst [vmem:[#allocation2 + $0x50] sm:$0xff] %v344
  %361 = vst [vmem:[#allocation2 + $0x58] sm:$0xff] %v345
  %362 = vst [vmem:[#allocation2 + $0x60] sm:$0xff] %v346
  %363 = vst [vmem:[#allocation2 + $0x68] sm:$0xff] %v347
  %364 = vst [vmem:[#allocation2 + $0x70] sm:$0xff] %v348
  %365 = vst [vmem:[#allocation2 + $0x78] sm:$0xff] %v349
  // Predicated region
  $region18: #{forward.47} parent=0 // pred_check
    %p366 = pneg %p15
  $region19: #{forward.47} parent=0 // pred_check_branch
    %368 = sbr.rel (%p366) target = $region21
  $region20: #{forward.47} parent=0 // pred_region
    %v369 = vld [vmem:[#allocation2] sm:$0xff]
    %v370 = vld [vmem:[#allocation2 + $0x8] sm:$0xff]
    %v371 = vld [vmem:[#allocation2 + $0x10] sm:$0xff]
    %v372 = vld [vmem:[#allocation2 + $0x18] sm:$0xff]
    %v373 = vld [vmem:[#allocation2 + $0x20] sm:$0xff]
    %v374 = vld [vmem:[#allocation2 + $0x28] sm:$0xff]
    %v375 = vld [vmem:[#allocation2 + $0x30] sm:$0xff]
    %v376 = vld [vmem:[#allocation2 + $0x38] sm:$0xff]
    %v377 = vld [vmem:[#allocation2 + $0x40] sm:$0xff]
    %v378 = vld [vmem:[#allocation2 + $0x48] sm:$0xff]
    %v379 = vld [vmem:[#allocation2 + $0x50] sm:$0xff]
    %v380 = vld [vmem:[#allocation2 + $0x58] sm:$0xff]
    %v381 = vld [vmem:[#allocation2 + $0x60] sm:$0xff]
    %v382 = vld [vmem:[#allocation2 + $0x68] sm:$0xff]
    %v383 = vld [vmem:[#allocation2 + $0x70] sm:$0xff]
    %v384 = vld [vmem:[#allocation2 + $0x78] sm:$0xff]
    %v385 = vld [vmem:[%s2] sm:$0x1]
    %v387 = vperm.slane %v385, 0
    %v389 = vadd.f32 %v369, %v387
    %v390 = vadd.f32 %v370, %v387
    %v391 = vadd.f32 %v371, %v387
    %v392 = vadd.f32 %v372, %v387
    %v393 = vadd.f32 %v373, %v387
    %v394 = vadd.f32 %v374, %v387
    %v395 = vadd.f32 %v375, %v387
    %v396 = vadd.f32 %v376, %v387
    %v397 = vadd.f32 %v377, %v387
    %v398 = vadd.f32 %v378, %v387
    %v399 = vadd.f32 %v379, %v387
    %v400 = vadd.f32 %v380, %v387
    %v401 = vadd.f32 %v381, %v387
    %v402 = vadd.f32 %v382, %v387
    %v403 = vadd.f32 %v383, %v387
    %v404 = vadd.f32 %v384, %v387
    %v405 = vpack.c.bf16 %v389, %v389
    %v406 = vpack.c.bf16 %v390, %v390
    %v407 = vpack.c.bf16 %v391, %v391
    %v408 = vpack.c.bf16 %v392, %v392
    %v409 = vpack.c.bf16 %v393, %v393
    %v410 = vpack.c.bf16 %v394, %v394
    %v411 = vpack.c.bf16 %v395, %v395
    %v412 = vpack.c.bf16 %v396, %v396
    %v413 = vpack.c.bf16 %v397, %v397
    %v414 = vpack.c.bf16 %v398, %v398
    %v415 = vpack.c.bf16 %v399, %v399
    %v416 = vpack.c.bf16 %v400, %v400
    %v417 = vpack.c.bf16 %v401, %v401
    %v418 = vpack.c.bf16 %v402, %v402
    %v419 = vpack.c.bf16 %v403, %v403
    %v420 = vpack.c.bf16 %v404, %v404
    %421 = vst [vmem:[%s3] sm:$0xf] %v405
    %422 = vst [vmem:[%s3 + $0x4] sm:$0xf] %v406
    %423 = vst [vmem:[%s3 + $0x8] sm:$0xf] %v407
    %424 = vst [vmem:[%s3 + $0xc] sm:$0xf] %v408
    %425 = vst [vmem:[%s3 + $0x10] sm:$0xf] %v409
    %426 = vst [vmem:[%s3 + $0x14] sm:$0xf] %v410
    %427 = vst [vmem:[%s3 + $0x18] sm:$0xf] %v411
    %428 = vst [vmem:[%s3 + $0x1c] sm:$0xf] %v412
    %429 = vst [vmem:[%s3 + $0x20] sm:$0xf] %v413
    %430 = vst [vmem:[%s3 + $0x24] sm:$0xf] %v414
    %431 = vst [vmem:[%s3 + $0x28] sm:$0xf] %v415
    %432 = vst [vmem:[%s3 + $0x2c] sm:$0xf] %v416
    %433 = vst [vmem:[%s3 + $0x30] sm:$0xf] %v417
    %434 = vst [vmem:[%s3 + $0x34] sm:$0xf] %v418
    %435 = vst [vmem:[%s3 + $0x38] sm:$0xf] %v419
    %436 = vst [vmem:[%s3 + $0x3c] sm:$0xf] %v420
  $region21: #{forward.47} parent=0 // pred_fallthru
    _
  // Predicated region
  $region22: #{forward.47} parent=0 // pred_check
    _
  $region23: #{forward.47} parent=0 // pred_check_branch
    %438 = sbr.rel (0) target = $region25
  $region24: #{forward.47} parent=0 // pred_region
    _
  $region25: #{forward.47} parent=0 // pred_fallthru
    _
  // Predicated region
  $region26: #{forward.47} parent=0 // pred_check
    _
  $region27: #{forward.47} parent=0 // pred_check_branch
    %440 = sbr.rel (0) target = $region29
  $region28: #{forward.47} parent=0 // pred_region
    _
  $region29: #{forward.47} parent=0 // pred_fallthru
    _

// kernel: forward.48
$region0: #{forward.48}
  #allocation0 [shape = 'u32[]', space=smem, size = 0x4, offset = 0x4, fixed_abs, tag = 'smem constant byte address 0x4 - core index']
  #allocation1 [shape = 'u32[72,128]{1,0:T(1,128)}', space=vmem, size = 0x9000, scoped, tag = 'internal scratch']
  %s0 = inlined_call_operand.vmem [shape: bf16[2,64,32], index: 0, kind: input, shape index: {}]
  %s1 = inlined_call_operand.vmem [shape: f32[1,32], index: 1, kind: input, shape index: {}]
  %s2 = inlined_call_operand.vmem [shape: f32[1,32], index: 2, kind: input, shape index: {}]
  %s3 = inlined_call_operand.vmem [shape: bf16[2,64,32], index: 3, kind: output, shape index: {}]
  %s4 = sld [smem:[#allocation0]]
  $region45: #{forward.48} parent=0
    _
  %s6 = ssub.s32 1, %s4
  %s7 = scalar_select 0, %s6, %s4
  loop: start=0, step=1, limit=4
  $region2: #{forward.48} parent=0 // loop_pre_header
    _
  $region3: #{forward.48} parent=0 // loop_header
    %s9 = sphi 0, %s13
    %p10 = scmp.ge.s32.totalorder %s9, 4
    %s19 = sphi 0, %s21
    %s22 = sphi 0, %s19
    %s23 = sphi 0, %s22
    %s39 = sphi 0, %s23
    %s43 = sphi 0, %s43
    %s45 = sphi 0, %s43
    %s46 = sphi 0, %s45
    %s60 = sphi 0, %s46
    %s64 = sphi 0, %s64
    %s66 = sphi 0, %s64
    %s67 = sphi 0, %s66
    %s81 = sphi 0, %s67
    %s87 = sphi 0, %s89
    %s90 = sphi 0, %s87
    %s91 = sphi 0, %s90
    %s107 = sphi 0, %s91
  $region4: #{forward.48} parent=0 // loop_header_branch
    %12 = sbr.rel (%p10) target = $region8
  $region5: #{forward.48} parent=0 // loop_body
    %s14 = ssub.s32 %s9, 1
    %s15 = ssub.s32 %s9, 2
    %s16 = sadd.s32 %s9, 1
    %s17 = ssub.s32 %s9, %s16
    %p18 = scmp.eq.s32.totalorder %s17, 0
    %s20 = sadd.s32 %s19, 1
    %s21 = scalar_select %p18, %s19, %s20
    %p24 = pneg %p18
    %p25 = scmp.eq.s32.totalorder %s9, 1
    %p26 = por %p24, %p25
    %p27 = scmp.ne.s32.totalorder %s19, %s22
    %p28 = scmp.eq.s32.totalorder %s9, 0
    %p29 = por %p27, %p28
    %p30 = scmp.ne.s32.totalorder %s19, %s22
    %p31 = scmp.eq.s32.totalorder %s14, 1
    %p32 = por %p30, %p31
    %p33 = scmp.ne.s32.totalorder %s22, %s23
    %p34 = scmp.eq.s32.totalorder %s14, 0
    %p35 = por %p33, %p34
    %p36 = scmp.ne.s32.totalorder %s22, %s23
    %p37 = scmp.eq.s32.totalorder %s15, 1
    %p38 = por %p36, %p37
    %p40 = scmp.ne.s32.totalorder %s23, %s39
    %p41 = scmp.eq.s32.totalorder %s15, 0
    %p42 = por %p40, %p41
    %s44 = sadd.s32 %s43, 1
    %p47 = scmp.eq.s32.totalorder %s9, 1
    %p48 = scmp.ne.s32.totalorder %s43, %s45
    %p49 = scmp.eq.s32.totalorder %s9, 0
    %p50 = por %p48, %p49
    %p51 = scmp.ne.s32.totalorder %s43, %s45
    %p52 = scmp.eq.s32.totalorder %s14, 1
    %p53 = por %p51, %p52
    %p54 = scmp.ne.s32.totalorder %s45, %s46
    %p55 = scmp.eq.s32.totalorder %s14, 0
    %p56 = por %p54, %p55
    %p57 = scmp.ne.s32.totalorder %s45, %s46
    %p58 = scmp.eq.s32.totalorder %s15, 1
    %p59 = por %p57, %p58
    %p61 = scmp.ne.s32.totalorder %s46, %s60
    %p62 = scmp.eq.s32.totalorder %s15, 0
    %p63 = por %p61, %p62
    %s65 = sadd.s32 %s64, 1
    %p68 = scmp.eq.s32.totalorder %s9, 1
    %p69 = scmp.ne.s32.totalorder %s64, %s66
    %p70 = scmp.eq.s32.totalorder %s9, 0
    %p71 = por %p69, %p70
    %p72 = scmp.ne.s32.totalorder %s64, %s66
    %p73 = scmp.eq.s32.totalorder %s14, 1
    %p74 = por %p72, %p73
    %p75 = scmp.ne.s32.totalorder %s66, %s67
    %p76 = scmp.eq.s32.totalorder %s14, 0
    %p77 = por %p75, %p76
    %p78 = scmp.ne.s32.totalorder %s66, %s67
    %p79 = scmp.eq.s32.totalorder %s15, 1
    %p80 = por %p78, %p79
    %p82 = scmp.ne.s32.totalorder %s67, %s81
    %p83 = scmp.eq.s32.totalorder %s15, 0
    %p84 = por %p82, %p83
    %s85 = ssub.s32 %s9, %s16
    %p86 = scmp.eq.s32.totalorder %s85, 0
    %s88 = sadd.s32 %s87, 1
    %s89 = scalar_select %p86, %s87, %s88
    %p92 = pneg %p86
    %p93 = scmp.eq.s32.totalorder %s9, 1
    %p94 = por %p92, %p93
    %p95 = scmp.ne.s32.totalorder %s87, %s90
    %p96 = scmp.eq.s32.totalorder %s9, 0
    %p97 = por %p95, %p96
    %p98 = scmp.ne.s32.totalorder %s87, %s90
    %p99 = scmp.eq.s32.totalorder %s14, 1
    %p100 = por %p98, %p99
    %p101 = scmp.ne.s32.totalorder %s90, %s91
    %p102 = scmp.eq.s32.totalorder %s14, 0
    %p103 = por %p101, %p102
    %p104 = scmp.ne.s32.totalorder %s90, %s91
    %p105 = scmp.eq.s32.totalorder %s15, 1
    %p106 = por %p104, %p105
    %p108 = scmp.ne.s32.totalorder %s91, %s107
    %p109 = scmp.eq.s32.totalorder %s15, 0
    %p110 = por %p108, %p109
    %p111 = scmp.le.s32.totalorder 1, %s9
    %p112 = scmp.lt.s32.totalorder %s9, 3
    %p113 = pnand %p111, %p112
    %p114 = pneg %p113
    // Predicated region
    $region9: #{forward.48} parent=5 // pred_check
      _
    $region10: #{forward.48} parent=5 // pred_check_branch
      %116 = sbr.rel (%p113) target = $region12
    $region11: #{forward.48} parent=5 // pred_region
      %s117 = ssub.s32 %s9, 1
      // Predicated region
      $region13: #{forward.48} parent=11 // pred_check
        %p118 = pneg %p56
      $region14: #{forward.48} parent=11 // pred_check_branch
        %120 = sbr.rel (%p118) target = $region16
      $region15: #{forward.48} parent=11 // pred_region
        _
      $region16: #{forward.48} parent=11 // pred_fallthru
        _
      // Predicated region
      $region17: #{forward.48} parent=11 // pred_check
        %p121 = pneg %p77
      $region18: #{forward.48} parent=11 // pred_check_branch
        %123 = sbr.rel (%p121) target = $region20
      $region19: #{forward.48} parent=11 // pred_region
        _
      $region20: #{forward.48} parent=11 // pred_fallthru
        _
    $region12: #{forward.48} parent=5 // pred_fallthru
      _
    %p124 = scmp.lt.s32.totalorder %s9, 2
    // Predicated region
    $region21: #{forward.48} parent=5 // pred_check
      %p125 = pneg %p124
    $region22: #{forward.48} parent=5 // pred_check_branch
      %127 = sbr.rel (%p125) target = $region24
    $region23: #{forward.48} parent=5 // pred_region
      // Predicated region
      $region25: #{forward.48} parent=23 // pred_check
        %p128 = pneg %p29
      $region26: #{forward.48} parent=23 // pred_check_branch
        %130 = sbr.rel (%p128) target = $region28
      $region27: #{forward.48} parent=23 // pred_region
        %p131 = scmp.lt.s32.totalorder %s9, 1
        %s132 = scalar_select %p131, %s9, 1
        %s133 = smul.addr %s132, 8
        %s134 = smul.addr %s133, 4
        %s135 = scalar_lea.vmem %s0, %s134
      $region28: #{forward.48} parent=23 // pred_fallthru
        _
    $region24: #{forward.48} parent=5 // pred_fallthru
      _
    %p136 = scmp.le.s32.totalorder 1, %s9
    %p137 = scmp.lt.s32.totalorder %s9, 3
    %p138 = pnand %p136, %p137
    %p139 = pneg %p138
    // Predicated region
    $region29: #{forward.48} parent=5 // pred_check
      _
    $region30: #{forward.48} parent=5 // pred_check_branch
      %141 = sbr.rel (%p138) target = $region32
    $region31: #{forward.48} parent=5 // pred_region
      %s142 = ssub.s32 %s9, 1
      %p143 = scmp.lt.s32.totalorder %s14, 1
      %s144 = scalar_select %p143, %s14, 1
      %s145 = smul.addr %s144, 8
      %s146 = smul.addr %s145, 4
      %s147 = scalar_lea.vmem %s0, %s146
      %p148 = pneg %p35
      %p149 = pneg %p32
      %p150 = pneg %p56
      %p151 = pneg %p53
      %p152 = pneg %p77
      %p153 = pneg %p74
      %p154 = pneg %p103
      %p155 = pneg %p100
      %p156 = scmp.lt.s32.totalorder %s14, 1
      %s157 = scalar_select %p156, %s14, 1
      %s158 = smul.addr %s157, 8
      %s159 = smul.addr %s158, 4
      %s160 = scalar_lea.vmem %s3, %s159
      %p161 = scmp.lt.s32.totalorder %s14, 1
      %s162 = scalar_select %p161, %s14, 1
      %s163 = smul.addr %s162, 8
      %s164 = smul.addr %s163, 4
      %s165 = scalar_lea.vmem %s0, %s164
      %p166 = scmp.lt.s32.totalorder %s14, 1
      %s167 = scalar_select %p166, %s14, 1
      %s168 = smul.addr %s167, 8
      %s169 = smul.addr %s168, 4
      %s170 = scalar_lea.vmem %s3, %s169
      %v171 = vld [vmem:[%s165] sm:$0xf]
      %v172 = vld [vmem:[%s165 + $0x4] sm:$0xf]
      %v173 = vld [vmem:[%s165 + $0x8] sm:$0xf]
      %v174 = vld [vmem:[%s165 + $0xc] sm:$0xf]
      %v175 = vld [vmem:[%s165 + $0x10] sm:$0xf]
      %v176 = vld [vmem:[%s165 + $0x14] sm:$0xf]
      %v177 = vld [vmem:[%s165 + $0x18] sm:$0xf]
      %v178 = vld [vmem:[%s165 + $0x1c] sm:$0xf]
      %v179 = vunpack.c.l.bf16 %v171
      %v180 = vunpack.c.l.bf16 %v172
      %v181 = vunpack.c.l.bf16 %v173
      %v182 = vunpack.c.l.bf16 %v174
      %v183 = vunpack.c.l.bf16 %v175
      %v184 = vunpack.c.l.bf16 %v176
      %v185 = vunpack.c.l.bf16 %v177
      %v186 = vunpack.c.l.bf16 %v178
      %vm187 = vcmask 261120
      %v188 = vsel %vm187, %v179, 0.0
      %v189 = vsel %vm187, %v180, 0.0
      %v190 = vadd.f32 %v188, %v189
      %v191 = vsel %vm187, %v181, 0.0
      %v192 = vadd.f32 %v190, %v191
      %v193 = vsel %vm187, %v182, 0.0
      %v194 = vadd.f32 %v192, %v193
      %v195 = vsel %vm187, %v183, 0.0
      %v196 = vadd.f32 %v194, %v195
      %v197 = vsel %vm187, %v184, 0.0
      %v198 = vadd.f32 %v196, %v197
      %v199 = vsel %vm187, %v185, 0.0
      %v200 = vadd.f32 %v198, %v199
      %v201 = vsel %vm187, %v186, 0.0
      %v202 = vadd.f32 %v200, %v201
      %v203 = vrot.slane %v202, 4
      %v204 = vadd.f32 %v202, %v203
      %v205 = vrot.slane %v204, 2
      %v206 = vadd.f32 %v204, %v205
      %v207 = vrot.slane %v206, 1
      %v208 = vadd.f32 %v206, %v207
      %v209 = vrcp.pop 64.0
      %v210 = vmul.f32 64.0, %v209
      %v211 = vsub.f32 1.0, %v210
      %v212 = vmul.f32 %v209, %v211
      %v213 = vadd.f32 %v209, %v212
      %vm214 = vweird.f32 %v209
      %v215 = vsel %vm214, %v209, %v213
      %v216 = vmul.f32 %v208, %v215
      %v217 = vsub.f32 %v179, %v216
      %v218 = vsub.f32 %v180, %v216
      %v219 = vsub.f32 %v181, %v216
      %v220 = vsub.f32 %v182, %v216
      %v221 = vsub.f32 %v183, %v216
      %v222 = vsub.f32 %v184, %v216
      %v223 = vsub.f32 %v185, %v216
      %v224 = vsub.f32 %v186, %v216
      %v225 = vmul.f32 %v217, %v217
      %v226 = vmul.f32 %v218, %v218
      %v227 = vmul.f32 %v219, %v219
      %v228 = vmul.f32 %v220, %v220
      %v229 = vmul.f32 %v221, %v221
      %v230 = vmul.f32 %v222, %v222
      %v231 = vmul.f32 %v223, %v223
      %v232 = vmul.f32 %v224, %v224
      %v233 = vsel %vm187, %v225, 0.0
      %v234 = vsel %vm187, %v226, 0.0
      %v235 = vadd.f32 %v233, %v234
      %v236 = vsel %vm187, %v227, 0.0
      %v237 = vadd.f32 %v235, %v236
      %v238 = vsel %vm187, %v228, 0.0
      %v239 = vadd.f32 %v237, %v238
      %v240 = vsel %vm187, %v229, 0.0
      %v241 = vadd.f32 %v239, %v240
      %v242 = vsel %vm187, %v230, 0.0
      %v243 = vadd.f32 %v241, %v242
      %v244 = vsel %vm187, %v231, 0.0
      %v245 = vadd.f32 %v243, %v244
      %v246 = vsel %vm187, %v232, 0.0
      %v247 = vadd.f32 %v245, %v246
      %v248 = vrot.slane %v247, 4
      %v249 = vadd.f32 %v247, %v248
      %v250 = vrot.slane %v249, 2
      %v251 = vadd.f32 %v249, %v250
      %v252 = vrot.slane %v251, 1
      %v253 = vadd.f32 %v251, %v252
      %v254 = vmul.f32 %v253, %v215
      %v255 = vadd.f32 %v254, 1e-05
      %v256 = vrsqrt.pop %v255
      %v257 = vmul.f32 %v256, %v255
      %v258 = vmul.f32 %v257, %v256
      %v259 = vmul.f32 0.5, %v258
      %v260 = vsub.f32 1.5, %v259
      %v261 = vmul.f32 %v256, %v260
      %vm262 = vweird.f32 %v255
      %vm263 = vweird.f32 %v256
      %vm264 = vmor %vm262, %vm263
      %v265 = vsel %vm264, %v256, %v261
      %v266 = vmul.f32 %v217, %v265
      %v267 = vmul.f32 %v218, %v265
      %v268 = vmul.f32 %v219, %v265
      %v269 = vmul.f32 %v220, %v265
      %v270 = vmul.f32 %v221, %v265
      %v271 = vmul.f32 %v222, %v265
      %v272 = vmul.f32 %v223, %v265
      %v273 = vmul.f32 %v224, %v265
      %v274 = vld [vmem:[%s1] sm:$0x1]
      %v276 = vperm.slane %v274, 0
      %v278 = vmul.f32 %v266, %v276
      %v279 = vmul.f32 %v267, %v276
      %v280 = vmul.f32 %v268, %v276
      %v281 = vmul.f32 %v269, %v276
      %v282 = vmul.f32 %v270, %v276
      %v283 = vmul.f32 %v271, %v276
      %v284 = vmul.f32 %v272, %v276
      %v285 = vmul.f32 %v273, %v276
      %v286 = vld [vmem:[%s2] sm:$0x1]
      %v288 = vperm.slane %v286, 0
      %v290 = vadd.f32 %v278, %v288
      %v291 = vadd.f32 %v279, %v288
      %v292 = vadd.f32 %v280, %v288
      %v293 = vadd.f32 %v281, %v288
      %v294 = vadd.f32 %v282, %v288
      %v295 = vadd.f32 %v283, %v288
      %v296 = vadd.f32 %v284, %v288
      %v297 = vadd.f32 %v285, %v288
      %v298 = vmax.f32 %v290, 0.0
      %v299 = vmax.f32 %v291, 0.0
      %v300 = vmax.f32 %v292, 0.0
      %v301 = vmax.f32 %v293, 0.0
      %v302 = vmax.f32 %v294, 0.0
      %v303 = vmax.f32 %v295, 0.0
      %v304 = vmax.f32 %v296, 0.0
      %v305 = vmax.f32 %v297, 0.0
      %v306 = vpack.c.bf16 %v298, %v298
      %v307 = vpack.c.bf16 %v299, %v299
      %v308 = vpack.c.bf16 %v300, %v300
      %v309 = vpack.c.bf16 %v301, %v301
      %v310 = vpack.c.bf16 %v302, %v302
      %v311 = vpack.c.bf16 %v303, %v303
      %v312 = vpack.c.bf16 %v304, %v304
      %v313 = vpack.c.bf16 %v305, %v305
      %vm314 = vcmask 257024
      %315 = vst.msk [vmem:[%s170] sm:$0xf] %vm314, %v306
      %316 = vst.msk [vmem:[%s170 + $0x4] sm:$0xf] %vm314, %v307
      %317 = vst.msk [vmem:[%s170 + $0x8] sm:$0xf] %vm314, %v308
      %318 = vst.msk [vmem:[%s170 + $0xc] sm:$0xf] %vm314, %v309
      %319 = vst.msk [vmem:[%s170 + $0x10] sm:$0xf] %vm314, %v310
      %320 = vst.msk [vmem:[%s170 + $0x14] sm:$0xf] %vm314, %v311
      %321 = vst.msk [vmem:[%s170 + $0x18] sm:$0xf] %vm314, %v312
      %322 = vst.msk [vmem:[%s170 + $0x1c] sm:$0xf] %vm314, %v313
      %p323 = scmp.lt.s32.totalorder %s14, 1
      %s324 = scalar_select %p323, %s14, 1
      %s325 = smul.addr %s324, 8
      %s326 = smul.addr %s325, 4
      %s327 = scalar_lea.vmem %s3, %s326
      // Predicated region
      $region33: #{forward.48} parent=31 // pred_check
        %p328 = pneg %p100
      $region34: #{forward.48} parent=31 // pred_check_branch
        %330 = sbr.rel (%p328) target = $region36
      $region35: #{forward.48} parent=31 // pred_region
        _
      $region36: #{forward.48} parent=31 // pred_fallthru
        _
    $region32: #{forward.48} parent=5 // pred_fallthru
      _
    %p331 = scmp.le.s32.totalorder 2, %s9
    // Predicated region
    $region37: #{forward.48} parent=5 // pred_check
      %p332 = pneg %p331
    $region38: #{forward.48} parent=5 // pred_check_branch
      %334 = sbr.rel (%p332) target = $region40
    $region39: #{forward.48} parent=5 // pred_region
      %s335 = ssub.s32 %s9, 2
      // Predicated region
      $region41: #{forward.48} parent=39 // pred_check
        %p336 = pneg %p106
      $region42: #{forward.48} parent=39 // pred_check_branch
        %338 = sbr.rel (%p336) target = $region44
      $region43: #{forward.48} parent=39 // pred_region
        %p339 = scmp.lt.s32.totalorder %s15, 1
        %s340 = scalar_select %p339, %s15, 1
        %s341 = smul.addr %s340, 8
        %s342 = smul.addr %s341, 4
        %s343 = scalar_lea.vmem %s3, %s342
      $region44: #{forward.48} parent=39 // pred_fallthru
        _
    $region40: #{forward.48} parent=5 // pred_fallthru
      _
  $region6: #{forward.48} parent=0 // loop_footer
    %s13 = sadd.s32 1, %s9
  $region7: #{forward.48} parent=0 // loop_footer_branch
    %8 = sbr.rel target = $region3
  $region8: #{forward.48} parent=0 // loop_exit
    _

// kernel: forward.50
$region0: #{forward.50}
  #allocation0 [shape = 'u32[]', space=smem, size = 0x4, offset = 0x4, fixed_abs, tag = 'smem constant byte address 0x4 - core index']
  #allocation1 [shape = 'u32[72,128]{1,0:T(1,128)}', space=vmem, size = 0x9000, scoped, tag = 'internal scratch']
  %s0 = inlined_call_operand.vmem [shape: bf16[2,16,128], index: 0, kind: input, shape index: {}]
  %s1 = inlined_call_operand.vmem [shape: f32[1,128], index: 1, kind: input, shape index: {}]
  %s2 = inlined_call_operand.vmem [shape: f32[1,128], index: 2, kind: input, shape index: {}]
  %s3 = inlined_call_operand.vmem [shape: bf16[2,16,128], index: 3, kind: output, shape index: {}]
  %s4 = sld [smem:[#allocation0]]
  $region45: #{forward.50} parent=0
    _
  %s6 = ssub.s32 1, %s4
  %s7 = scalar_select 0, %s6, %s4
  loop: start=0, step=1, limit=4
  $region2: #{forward.50} parent=0 // loop_pre_header
    _
  $region3: #{forward.50} parent=0 // loop_header
    %s9 = sphi 0, %s13
    %p10 = scmp.ge.s32.totalorder %s9, 4
    %s19 = sphi 0, %s21
    %s22 = sphi 0, %s19
    %s23 = sphi 0, %s22
    %s39 = sphi 0, %s23
    %s43 = sphi 0, %s43
    %s45 = sphi 0, %s43
    %s46 = sphi 0, %s45
    %s60 = sphi 0, %s46
    %s64 = sphi 0, %s64
    %s66 = sphi 0, %s64
    %s67 = sphi 0, %s66
    %s81 = sphi 0, %s67
    %s87 = sphi 0, %s89
    %s90 = sphi 0, %s87
    %s91 = sphi 0, %s90
    %s107 = sphi 0, %s91
  $region4: #{forward.50} parent=0 // loop_header_branch
    %12 = sbr.rel (%p10) target = $region8
  $region5: #{forward.50} parent=0 // loop_body
    %s14 = ssub.s32 %s9, 1
    %s15 = ssub.s32 %s9, 2
    %s16 = sadd.s32 %s9, 1
    %s17 = ssub.s32 %s9, %s16
    %p18 = scmp.eq.s32.totalorder %s17, 0
    %s20 = sadd.s32 %s19, 1
    %s21 = scalar_select %p18, %s19, %s20
    %p24 = pneg %p18
    %p25 = scmp.eq.s32.totalorder %s9, 1
    %p26 = por %p24, %p25
    %p27 = scmp.ne.s32.totalorder %s19, %s22
    %p28 = scmp.eq.s32.totalorder %s9, 0
    %p29 = por %p27, %p28
    %p30 = scmp.ne.s32.totalorder %s19, %s22
    %p31 = scmp.eq.s32.totalorder %s14, 1
    %p32 = por %p30, %p31
    %p33 = scmp.ne.s32.totalorder %s22, %s23
    %p34 = scmp.eq.s32.totalorder %s14, 0
    %p35 = por %p33, %p34
    %p36 = scmp.ne.s32.totalorder %s22, %s23
    %p37 = scmp.eq.s32.totalorder %s15, 1
    %p38 = por %p36, %p37
    %p40 = scmp.ne.s32.totalorder %s23, %s39
    %p41 = scmp.eq.s32.totalorder %s15, 0
    %p42 = por %p40, %p41
    %s44 = sadd.s32 %s43, 1
    %p47 = scmp.eq.s32.totalorder %s9, 1
    %p48 = scmp.ne.s32.totalorder %s43, %s45
    %p49 = scmp.eq.s32.totalorder %s9, 0
    %p50 = por %p48, %p49
    %p51 = scmp.ne.s32.totalorder %s43, %s45
    %p52 = scmp.eq.s32.totalorder %s14, 1
    %p53 = por %p51, %p52
    %p54 = scmp.ne.s32.totalorder %s45, %s46
    %p55 = scmp.eq.s32.totalorder %s14, 0
    %p56 = por %p54, %p55
    %p57 = scmp.ne.s32.totalorder %s45, %s46
    %p58 = scmp.eq.s32.totalorder %s15, 1
    %p59 = por %p57, %p58
    %p61 = scmp.ne.s32.totalorder %s46, %s60
    %p62 = scmp.eq.s32.totalorder %s15, 0
    %p63 = por %p61, %p62
    %s65 = sadd.s32 %s64, 1
    %p68 = scmp.eq.s32.totalorder %s9, 1
    %p69 = scmp.ne.s32.totalorder %s64, %s66
    %p70 = scmp.eq.s32.totalorder %s9, 0
    %p71 = por %p69, %p70
    %p72 = scmp.ne.s32.totalorder %s64, %s66
    %p73 = scmp.eq.s32.totalorder %s14, 1
    %p74 = por %p72, %p73
    %p75 = scmp.ne.s32.totalorder %s66, %s67
    %p76 = scmp.eq.s32.totalorder %s14, 0
    %p77 = por %p75, %p76
    %p78 = scmp.ne.s32.totalorder %s66, %s67
    %p79 = scmp.eq.s32.totalorder %s15, 1
    %p80 = por %p78, %p79
    %p82 = scmp.ne.s32.totalorder %s67, %s81
    %p83 = scmp.eq.s32.totalorder %s15, 0
    %p84 = por %p82, %p83
    %s85 = ssub.s32 %s9, %s16
    %p86 = scmp.eq.s32.totalorder %s85, 0
    %s88 = sadd.s32 %s87, 1
    %s89 = scalar_select %p86, %s87, %s88
    %p92 = pneg %p86
    %p93 = scmp.eq.s32.totalorder %s9, 1
    %p94 = por %p92, %p93
    %p95 = scmp.ne.s32.totalorder %s87, %s90
    %p96 = scmp.eq.s32.totalorder %s9, 0
    %p97 = por %p95, %p96
    %p98 = scmp.ne.s32.totalorder %s87, %s90
    %p99 = scmp.eq.s32.totalorder %s14, 1
    %p100 = por %p98, %p99
    %p101 = scmp.ne.s32.totalorder %s90, %s91
    %p102 = scmp.eq.s32.totalorder %s14, 0
    %p103 = por %p101, %p102
    %p104 = scmp.ne.s32.totalorder %s90, %s91
    %p105 = scmp.eq.s32.totalorder %s15, 1
    %p106 = por %p104, %p105
    %p108 = scmp.ne.s32.totalorder %s91, %s107
    %p109 = scmp.eq.s32.totalorder %s15, 0
    %p110 = por %p108, %p109
    %p111 = scmp.le.s32.totalorder 1, %s9
    %p112 = scmp.lt.s32.totalorder %s9, 3
    %p113 = pnand %p111, %p112
    %p114 = pneg %p113
    // Predicated region
    $region9: #{forward.50} parent=5 // pred_check
      _
    $region10: #{forward.50} parent=5 // pred_check_branch
      %116 = sbr.rel (%p113) target = $region12
    $region11: #{forward.50} parent=5 // pred_region
      %s117 = ssub.s32 %s9, 1
      // Predicated region
      $region13: #{forward.50} parent=11 // pred_check
        %p118 = pneg %p56
      $region14: #{forward.50} parent=11 // pred_check_branch
        %120 = sbr.rel (%p118) target = $region16
      $region15: #{forward.50} parent=11 // pred_region
        _
      $region16: #{forward.50} parent=11 // pred_fallthru
        _
      // Predicated region
      $region17: #{forward.50} parent=11 // pred_check
        %p121 = pneg %p77
      $region18: #{forward.50} parent=11 // pred_check_branch
        %123 = sbr.rel (%p121) target = $region20
      $region19: #{forward.50} parent=11 // pred_region
        _
      $region20: #{forward.50} parent=11 // pred_fallthru
        _
    $region12: #{forward.50} parent=5 // pred_fallthru
      _
    %p124 = scmp.lt.s32.totalorder %s9, 2
    // Predicated region
    $region21: #{forward.50} parent=5 // pred_check
      %p125 = pneg %p124
    $region22: #{forward.50} parent=5 // pred_check_branch
      %127 = sbr.rel (%p125) target = $region24
    $region23: #{forward.50} parent=5 // pred_region
      // Predicated region
      $region25: #{forward.50} parent=23 // pred_check
        %p128 = pneg %p29
      $region26: #{forward.50} parent=23 // pred_check_branch
        %130 = sbr.rel (%p128) target = $region28
      $region27: #{forward.50} parent=23 // pred_region
        %p131 = scmp.lt.s32.totalorder %s9, 1
        %s132 = scalar_select %p131, %s9, 1
        %s133 = smul.addr %s132, 2
        %s134 = smul.addr %s133, 4
        %s135 = scalar_lea.vmem %s0, %s134
      $region28: #{forward.50} parent=23 // pred_fallthru
        _
    $region24: #{forward.50} parent=5 // pred_fallthru
      _
    %p136 = scmp.le.s32.totalorder 1, %s9
    %p137 = scmp.lt.s32.totalorder %s9, 3
    %p138 = pnand %p136, %p137
    %p139 = pneg %p138
    // Predicated region
    $region29: #{forward.50} parent=5 // pred_check
      _
    $region30: #{forward.50} parent=5 // pred_check_branch
      %141 = sbr.rel (%p138) target = $region32
    $region31: #{forward.50} parent=5 // pred_region
      %s142 = ssub.s32 %s9, 1
      %p143 = scmp.lt.s32.totalorder %s14, 1
      %s144 = scalar_select %p143, %s14, 1
      %s145 = smul.addr %s144, 2
      %s146 = smul.addr %s145, 4
      %s147 = scalar_lea.vmem %s0, %s146
      %p148 = pneg %p35
      %p149 = pneg %p32
      %p150 = pneg %p56
      %p151 = pneg %p53
      %p152 = pneg %p77
      %p153 = pneg %p74
      %p154 = pneg %p103
      %p155 = pneg %p100
      %p156 = scmp.lt.s32.totalorder %s14, 1
      %s157 = scalar_select %p156, %s14, 1
      %s158 = smul.addr %s157, 2
      %s159 = smul.addr %s158, 4
      %s160 = scalar_lea.vmem %s3, %s159
      %p161 = scmp.lt.s32.totalorder %s14, 1
      %s162 = scalar_select %p161, %s14, 1
      %s163 = smul.addr %s162, 2
      %s164 = smul.addr %s163, 4
      %s165 = scalar_lea.vmem %s0, %s164
      %p166 = scmp.lt.s32.totalorder %s14, 1
      %s167 = scalar_select %p166, %s14, 1
      %s168 = smul.addr %s167, 2
      %s169 = smul.addr %s168, 4
      %s170 = scalar_lea.vmem %s3, %s169
      %v171 = vld [vmem:[%s165] sm:$0xf]
      %v172 = vld [vmem:[%s165 + $0x4] sm:$0xf]
      %v173 = vunpack.c.l.bf16 %v171
      %v174 = vunpack.c.l.bf16 %v172
      %v175 = vadd.f32 %v173, %v174
      %v176 = vrot.slane %v175, 4
      %v177 = vadd.f32 %v175, %v176
      %v178 = vrot.slane %v177, 2
      %v179 = vadd.f32 %v177, %v178
      %v180 = vrot.slane %v179, 1
      %v181 = vadd.f32 %v179, %v180
      %v182 = vrcp.pop 16.0
      %v183 = vmul.f32 16.0, %v182
      %v184 = vsub.f32 1.0, %v183
      %v185 = vmul.f32 %v182, %v184
      %v186 = vadd.f32 %v182, %v185
      %vm187 = vweird.f32 %v182
      %v188 = vsel %vm187, %v182, %v186
      %v189 = vmul.f32 %v181, %v188
      %v190 = vsub.f32 %v173, %v189
      %v191 = vsub.f32 %v174, %v189
      %v192 = vmul.f32 %v190, %v190
      %v193 = vmul.f32 %v191, %v191
      %v194 = vadd.f32 %v192, %v193
      %v195 = vrot.slane %v194, 4
      %v196 = vadd.f32 %v194, %v195
      %v197 = vrot.slane %v196, 2
      %v198 = vadd.f32 %v196, %v197
      %v199 = vrot.slane %v198, 1
      %v200 = vadd.f32 %v198, %v199
      %v201 = vmul.f32 %v200, %v188
      %v202 = vadd.f32 %v201, 1e-05
      %v203 = vrsqrt.pop %v202
      %v204 = vmul.f32 %v203, %v202
      %v205 = vmul.f32 %v204, %v203
      %v206 = vmul.f32 0.5, %v205
      %v207 = vsub.f32 1.5, %v206
      %v208 = vmul.f32 %v203, %v207
      %vm209 = vweird.f32 %v202
      %vm210 = vweird.f32 %v203
      %vm211 = vmor %vm209, %vm210
      %v212 = vsel %vm211, %v203, %v208
      %v213 = vmul.f32 %v190, %v212
      %v214 = vmul.f32 %v191, %v212
      %v215 = vld [vmem:[%s1] sm:$0x1]
      %v217 = vperm.slane %v215, 0
      %v219 = vmul.f32 %v213, %v217
      %v220 = vmul.f32 %v214, %v217
      %v221 = vld [vmem:[%s2] sm:$0x1]
      %v223 = vperm.slane %v221, 0
      %v225 = vadd.f32 %v219, %v223
      %v226 = vadd.f32 %v220, %v223
      %v227 = vmax.f32 %v225, 0.0
      %v228 = vmax.f32 %v226, 0.0
      %v229 = vpack.c.bf16 %v227, %v227
      %v230 = vpack.c.bf16 %v228, %v228
      %231 = vst [vmem:[%s170] sm:$0xf] %v229
      %232 = vst [vmem:[%s170 + $0x4] sm:$0xf] %v230
      %p233 = scmp.lt.s32.totalorder %s14, 1
      %s234 = scalar_select %p233, %s14, 1
      %s235 = smul.addr %s234, 2
      %s236 = smul.addr %s235, 4
      %s237 = scalar_lea.vmem %s3, %s236
      // Predicated region
      $region33: #{forward.50} parent=31 // pred_check
        %p238 = pneg %p100
      $region34: #{forward.50} parent=31 // pred_check_branch
        %240 = sbr.rel (%p238) target = $region36
      $region35: #{forward.50} parent=31 // pred_region
        _
      $region36: #{forward.50} parent=31 // pred_fallthru
        _
    $region32: #{forward.50} parent=5 // pred_fallthru
      _
    %p241 = scmp.le.s32.totalorder 2, %s9
    // Predicated region
    $region37: #{forward.50} parent=5 // pred_check
      %p242 = pneg %p241
    $region38: #{forward.50} parent=5 // pred_check_branch
      %244 = sbr.rel (%p242) target = $region40
    $region39: #{forward.50} parent=5 // pred_region
      %s245 = ssub.s32 %s9, 2
      // Predicated region
      $region41: #{forward.50} parent=39 // pred_check
        %p246 = pneg %p106
      $region42: #{forward.50} parent=39 // pred_check_branch
        %248 = sbr.rel (%p246) target = $region44
      $region43: #{forward.50} parent=39 // pred_region
        %p249 = scmp.lt.s32.totalorder %s15, 1
        %s250 = scalar_select %p249, %s15, 1
        %s251 = smul.addr %s250, 2
        %s252 = smul.addr %s251, 4
        %s253 = scalar_lea.vmem %s3, %s252
      $region44: #{forward.50} parent=39 // pred_fallthru
        _
    $region40: #{forward.50} parent=5 // pred_fallthru
      _
  $region6: #{forward.50} parent=0 // loop_footer
    %s13 = sadd.s32 1, %s9
  $region7: #{forward.50} parent=0 // loop_footer_branch
    %8 = sbr.rel target = $region3
  $region8: #{forward.50} parent=0 // loop_exit
    _

// kernel: forward.49
$region0: #{forward.49}
  #allocation0 [shape = 'u32[]', space=smem, size = 0x4, offset = 0x4, fixed_abs, tag = 'smem constant byte address 0x4 - core index']
  #allocation1 [shape = 'u32[72,128]{1,0:T(1,128)}', space=vmem, size = 0x9000, scoped, tag = 'internal scratch']
  #allocation2 [shape = 'f32[32,128]{1,0:T(8,128)}', space=vmem, size = 0x4000, scoped, tag = 'scratch operand']
  %s0 = inlined_call_operand.vmem [shape: bf16[32,288], index: 0, kind: input, shape index: {}]
  %s1 = inlined_call_operand.vmem [shape: bf16[288,128], index: 1, kind: input, shape index: {}]
  %s2 = inlined_call_operand.vmem [shape: f32[1,128], index: 2, kind: input, shape index: {}]
  %s3 = inlined_call_operand.vmem [shape: bf16[32,128], index: 3, kind: output, shape index: {}]
  %s4 = sld [smem:[#allocation0]]
  $region30: #{forward.49} parent=0
    _
  %s6 = ssub.s32 1, %s4
  %s7 = scalar_select 0, %s6, %s4
  // Predicated region
  $region2: #{forward.49} parent=0 // pred_check
    _
  $region3: #{forward.49} parent=0 // pred_check_branch
    %9 = sbr.rel (0) target = $region5
  $region4: #{forward.49} parent=0 // pred_region
    _
  $region5: #{forward.49} parent=0 // pred_fallthru
    _
  // Predicated region
  $region6: #{forward.49} parent=0 // pred_check
    _
  $region7: #{forward.49} parent=0 // pred_check_branch
    %11 = sbr.rel (0) target = $region9
  $region8: #{forward.49} parent=0 // pred_region
    _
  $region9: #{forward.49} parent=0 // pred_fallthru
    _
  // Predicated region
  $region10: #{forward.49} parent=0 // pred_check
    _
  $region11: #{forward.49} parent=0 // pred_check_branch
    %13 = sbr.rel (0) target = $region13
  $region12: #{forward.49} parent=0 // pred_region
    _
  $region13: #{forward.49} parent=0 // pred_fallthru
    _
  %p15 = scmp.eq.s32.totalorder 0, 0
  // Predicated region
  $region14: #{forward.49} parent=0 // pred_check
    %p16 = pneg %p15
  $region15: #{forward.49} parent=0 // pred_check_branch
    %18 = sbr.rel (%p16) target = $region17
  $region16: #{forward.49} parent=0 // pred_region
    %19 = vst [vmem:[#allocation2] sm:$0xff] 0.0
    %20 = vst [vmem:[#allocation2 + $0x8] sm:$0xff] 0.0
    %21 = vst [vmem:[#allocation2 + $0x10] sm:$0xff] 0.0
    %22 = vst [vmem:[#allocation2 + $0x18] sm:$0xff] 0.0
  $region17: #{forward.49} parent=0 // pred_fallthru
    _
  %v23 = vld [vmem:[#allocation2] sm:$0xff]
  %v24 = vld [vmem:[#allocation2 + $0x8] sm:$0xff]
  %v25 = vld [vmem:[#allocation2 + $0x10] sm:$0xff]
  %v26 = vld [vmem:[#allocation2 + $0x18] sm:$0xff]
  %v27 = vld [vmem:[%s0] sm:$0xff]
  %v28 = vld [vmem:[%s0 + $0x8] sm:$0xf]
  %v29 = vld [vmem:[%s0 + $0xc] sm:$0xff]
  %v30 = vld [vmem:[%s0 + $0x14] sm:$0xf]
  %v31 = vld [vmem:[%s0 + $0x18] sm:$0xff]
  %v32 = vld [vmem:[%s0 + $0x20] sm:$0xf]
  %v33 = vld [vmem:[%s0 + $0x24] sm:$0xff]
  %v34 = vld [vmem:[%s0 + $0x2c] sm:$0xf]
  %v35 = vld [vmem:[%s1] sm:$0xf]
  %v36 = vld [vmem:[%s1 + $0x4] sm:$0xf]
  %v37 = vld [vmem:[%s1 + $0x8] sm:$0xf]
  %v38 = vld [vmem:[%s1 + $0xc] sm:$0xf]
  %v39 = vld [vmem:[%s1 + $0x10] sm:$0xf]
  %v40 = vld [vmem:[%s1 + $0x14] sm:$0xf]
  %v41 = vld [vmem:[%s1 + $0x18] sm:$0xf]
  %v42 = vld [vmem:[%s1 + $0x1c] sm:$0xf]
  %v43 = vld [vmem:[%s1 + $0x20] sm:$0xf]
  %v44 = vld [vmem:[%s1 + $0x24] sm:$0xf]
  %v45 = vld [vmem:[%s1 + $0x28] sm:$0xf]
  %v46 = vld [vmem:[%s1 + $0x2c] sm:$0xf]
  %v47 = vld [vmem:[%s1 + $0x30] sm:$0xf]
  %v48 = vld [vmem:[%s1 + $0x34] sm:$0xf]
  %v49 = vld [vmem:[%s1 + $0x38] sm:$0xf]
  %v50 = vld [vmem:[%s1 + $0x3c] sm:$0xf]
  %v51 = vld [vmem:[%s1 + $0x40] sm:$0xf]
  %v52 = vld [vmem:[%s1 + $0x44] sm:$0xf]
  %v53 = vld [vmem:[%s1 + $0x48] sm:$0xf]
  %v54 = vld [vmem:[%s1 + $0x4c] sm:$0xf]
  %v55 = vld [vmem:[%s1 + $0x50] sm:$0xf]
  %v56 = vld [vmem:[%s1 + $0x54] sm:$0xf]
  %v57 = vld [vmem:[%s1 + $0x58] sm:$0xf]
  %v58 = vld [vmem:[%s1 + $0x5c] sm:$0xf]
  %v59 = vld [vmem:[%s1 + $0x60] sm:$0xf]
  %v60 = vld [vmem:[%s1 + $0x64] sm:$0xf]
  %v61 = vld [vmem:[%s1 + $0x68] sm:$0xf]
  %v62 = vld [vmem:[%s1 + $0x6c] sm:$0xf]
  %v63 = vld [vmem:[%s1 + $0x70] sm:$0xf]
  %v64 = vld [vmem:[%s1 + $0x74] sm:$0xf]
  %v65 = vld [vmem:[%s1 + $0x78] sm:$0xf]
  %v66 = vld [vmem:[%s1 + $0x7c] sm:$0xf]
  %v67 = vld [vmem:[%s1 + $0x80] sm:$0xf]
  %v68 = vld [vmem:[%s1 + $0x84] sm:$0xf]
  %v69 = vld [vmem:[%s1 + $0x88] sm:$0xf]
  %v70 = vld [vmem:[%s1 + $0x8c] sm:$0xf]
  %v79 = vunpack.c.l.b16 %v27
  %v80 = vunpack.c.h.b16 %v27
  %v81 = vunpack.c.l.b16 %v28
  %v82 = vunpack.c.l.b16 %v29
  %v83 = vunpack.c.h.b16 %v29
  %v84 = vunpack.c.l.b16 %v30
  %v85 = vunpack.c.l.b16 %v31
  %v86 = vunpack.c.h.b16 %v31
  %v87 = vunpack.c.l.b16 %v32
  %v88 = vunpack.c.l.b16 %v33
  %v89 = vunpack.c.h.b16 %v33
  %v90 = vunpack.c.l.b16 %v34
  %v91 = vpack.c.b16 %v82, %v79
  %v92 = vpack.c.b16 %v83, %v80
  %v93 = vpack.c.b16 %v84, %v81
  %v94 = vpack.c.b16 %v88, %v85
  %v95 = vpack.c.b16 %v89, %v86
  %v96 = vpack.c.b16 %v90, %v87
  %v137 = vunpack.c.l.b16 %v35
  %v138 = vunpack.c.l.b16 %v36
  %v139 = vunpack.c.l.b16 %v37
  %v140 = vunpack.c.l.b16 %v38
  %v141 = vunpack.c.l.b16 %v39
  %v142 = vunpack.c.l.b16 %v40
  %v143 = vunpack.c.l.b16 %v41
  %v144 = vunpack.c.l.b16 %v42
  %v145 = vunpack.c.l.b16 %v43
  %v146 = vunpack.c.l.b16 %v44
  %v147 = vunpack.c.l.b16 %v45
  %v148 = vunpack.c.l.b16 %v46
  %v149 = vunpack.c.l.b16 %v47
  %v150 = vunpack.c.l.b16 %v48
  %v151 = vunpack.c.l.b16 %v49
  %v152 = vunpack.c.l.b16 %v50
  %v153 = vunpack.c.l.b16 %v51
  %v154 = vunpack.c.l.b16 %v52
  %v155 = vunpack.c.l.b16 %v53
  %v156 = vunpack.c.l.b16 %v54
  %v157 = vunpack.c.l.b16 %v55
  %v158 = vunpack.c.l.b16 %v56
  %v159 = vunpack.c.l.b16 %v57
  %v160 = vunpack.c.l.b16 %v58
  %v161 = vunpack.c.l.b16 %v59
  %v162 = vunpack.c.l.b16 %v60
  %v163 = vunpack.c.l.b16 %v61
  %v164 = vunpack.c.l.b16 %v62
  %v165 = vunpack.c.l.b16 %v63
  %v166 = vunpack.c.l.b16 %v64
  %v167 = vunpack.c.l.b16 %v65
  %v168 = vunpack.c.l.b16 %v66
  %v169 = vunpack.c.l.b16 %v67
  %v170 = vunpack.c.l.b16 %v68
  %v171 = vunpack.c.l.b16 %v69
  %v172 = vunpack.c.l.b16 %v70
  %v173 = vpack.c.b16 %v138, %v137
  %v174 = vpack.c.b16 %v140, %v139
  %v175 = vpack.c.b16 %v142, %v141
  %v176 = vpack.c.b16 %v144, %v143
  %v177 = vpack.c.b16 %v146, %v145
  %v178 = vpack.c.b16 %v148, %v147
  %v179 = vpack.c.b16 %v150, %v149
  %v180 = vpack.c.b16 %v152, %v151
  %v181 = vpack.c.b16 %v154, %v153
  %v182 = vpack.c.b16 %v156, %v155
  %v183 = vpack.c.b16 %v158, %v157
  %v184 = vpack.c.b16 %v160, %v159
  %v185 = vpack.c.b16 %v162, %v161
  %v186 = vpack.c.b16 %v164, %v163
  %v187 = vpack.c.b16 %v166, %v165
  %v188 = vpack.c.b16 %v168, %v167
  %v189 = vpack.c.b16 %v170, %v169
  %v190 = vpack.c.b16 %v172, %v171
  %vm209 = vcmask 261120
  %v211 = vsel %vm209, %v93, 0
  %v214 = vsel %vm209, %v96, 0
  %216 = vmatpush.bf16.msra.mxu0 %v180
  %217 = vmatpush.bf16.msra.mxu0 %v179
  %218 = vmatpush.bf16.msra.mxu0 %v178
  %219 = vmatpush.bf16.msra.mxu0 %v177
  %220 = vmatpush.bf16.msra.mxu0 %v176
  %221 = vmatpush.bf16.msra.mxu0 %v175
  %222 = vmatpush.bf16.msra.mxu0 %v174
  %223 = vmatpush.bf16.msra.mxu0 %v173
  %224 = vmatmul.bf16.gmra.mxu0 %v91
  %v225 = vpop.f32.mrf.mxu0
  %v226 = vadd.f32 0.0, %v225
  %v227 = vpop.f32.mrf.mxu0
  %v228 = vadd.f32 0.0, %v227
  %229 = vmatmul.bf16.gmra.mxu0 %v94
  %v230 = vpop.f32.mrf.mxu0
  %v231 = vadd.f32 0.0, %v230
  %v232 = vpop.f32.mrf.mxu0
  %v233 = vadd.f32 0.0, %v232
  %234 = vdwg.mxu0
  %235 = vmatpush.bf16.msra.mxu0 %v188
  %236 = vmatpush.bf16.msra.mxu0 %v187
  %237 = vmatpush.bf16.msra.mxu0 %v186
  %238 = vmatpush.bf16.msra.mxu0 %v185
  %239 = vmatpush.bf16.msra.mxu0 %v184
  %240 = vmatpush.bf16.msra.mxu0 %v183
  %241 = vmatpush.bf16.msra.mxu0 %v182
  %242 = vmatpush.bf16.msra.mxu0 %v181
  %243 = vmatmul.bf16.gmra.mxu0 %v92
  %v244 = vpop.f32.mrf.mxu0
  %v245 = vadd.f32 %v226, %v244
  %v246 = vpop.f32.mrf.mxu0
  %v247 = vadd.f32 %v228, %v246
  %248 = vmatmul.bf16.gmra.mxu0 %v95
  %v249 = vpop.f32.mrf.mxu0
  %v250 = vadd.f32 %v231, %v249
  %v251 = vpop.f32.mrf.mxu0
  %v252 = vadd.f32 %v233, %v251
  %253 = vdwg.mxu0
  %254 = vmatpush.bf16.msra.mxu0 0
  %255 = vmatpush.bf16.msra.mxu0 0
  %256 = vmatpush.bf16.msra.mxu0 0
  %257 = vmatpush.bf16.msra.mxu0 0
  %258 = vmatpush.bf16.msra.mxu0 0
  %259 = vmatpush.bf16.msra.mxu0 0
  %260 = vmatpush.bf16.msra.mxu0 %v190
  %261 = vmatpush.bf16.msra.mxu0 %v189
  %262 = vmatmul.bf16.gmra.mxu0 %v211
  %v263 = vpop.f32.mrf.mxu0
  %v264 = vadd.f32 %v245, %v263
  %v265 = vpop.f32.mrf.mxu0
  %v266 = vadd.f32 %v247, %v265
  %267 = vmatmul.bf16.gmra.mxu0 %v214
  %v268 = vpop.f32.mrf.mxu0
  %v269 = vadd.f32 %v250, %v268
  %v270 = vpop.f32.mrf.mxu0
  %v271 = vadd.f32 %v252, %v270
  %272 = vdwg.mxu0
  %v273 = vadd.f32 %v23, %v264
  %v274 = vadd.f32 %v24, %v266
  %v275 = vadd.f32 %v25, %v269
  %v276 = vadd.f32 %v26, %v271
  %277 = vst [vmem:[#allocation2] sm:$0xff] %v273
  %278 = vst [vmem:[#allocation2 + $0x8] sm:$0xff] %v274
  %279 = vst [vmem:[#allocation2 + $0x10] sm:$0xff] %v275
  %280 = vst [vmem:[#allocation2 + $0x18] sm:$0xff] %v276
  // Predicated region
  $region18: #{forward.49} parent=0 // pred_check
    %p281 = pneg %p15
  $region19: #{forward.49} parent=0 // pred_check_branch
    %283 = sbr.rel (%p281) target = $region21
  $region20: #{forward.49} parent=0 // pred_region
    %v284 = vld [vmem:[#allocation2] sm:$0xff]
    %v285 = vld [vmem:[#allocation2 + $0x8] sm:$0xff]
    %v286 = vld [vmem:[#allocation2 + $0x10] sm:$0xff]
    %v287 = vld [vmem:[#allocation2 + $0x18] sm:$0xff]
    %v288 = vld [vmem:[%s2] sm:$0x1]
    %v290 = vperm.slane %v288, 0
    %v292 = vadd.f32 %v284, %v290
    %v293 = vadd.f32 %v285, %v290
    %v294 = vadd.f32 %v286, %v290
    %v295 = vadd.f32 %v287, %v290
    %v296 = vpack.c.bf16 %v292, %v292
    %v297 = vpack.c.bf16 %v293, %v293
    %v298 = vpack.c.bf16 %v294, %v294
    %v299 = vpack.c.bf16 %v295, %v295
    %300 = vst [vmem:[%s3] sm:$0xf] %v296
    %301 = vst [vmem:[%s3 + $0x4] sm:$0xf] %v297
    %302 = vst [vmem:[%s3 + $0x8] sm:$0xf] %v298
    %303 = vst [vmem:[%s3 + $0xc] sm:$0xf] %v299
  $region21: #{forward.49} parent=0 // pred_fallthru
    _
  // Predicated region
  $region22: #{forward.49} parent=0 // pred_check
    _
  $region23: #{forward.49} parent=0 // pred_check_branch
    %305 = sbr.rel (0) target = $region25
  $region24: #{forward.49} parent=0 // pred_region
    _
  $region25: #{forward.49} parent=0 // pred_fallthru
    _
  // Predicated region
  $region26: #{forward.49} parent=0 // pred_check
    _
  $region27: #{forward.49} parent=0 // pred_check_branch
    %307 = sbr.rel (0) target = $region29
  $region28: #{forward.49} parent=0 // pred_region
    _
  $region29: #{forward.49} parent=0 // pred_fallthru
    _

// kernel: forward.51
$region0: #{forward.51}
  #allocation0 [shape = 'u32[]', space=smem, size = 0x4, offset = 0x4, fixed_abs, tag = 'smem constant byte address 0x4 - core index']
  #allocation1 [shape = 'u32[72,128]{1,0:T(1,128)}', space=vmem, size = 0x9000, scoped, tag = 'internal scratch']
  %s0 = inlined_call_operand.vmem [shape: bf16[2,6,6,128], index: 0, kind: input, shape index: {}]
  %s1 = inlined_call_operand.vmem [shape: f32[3,3,128], index: 1, kind: input, shape index: {}]
  %s2 = inlined_call_operand.vmem [shape: f32[1,128], index: 2, kind: input, shape index: {}]
  %s3 = inlined_call_operand.vmem [shape: f32[1,128], index: 3, kind: input, shape index: {}]
  %s4 = inlined_call_operand.vmem [shape: f32[1,128], index: 4, kind: input, shape index: {}]
  %s5 = inlined_call_operand.vmem [shape: bf16[2,4,4,128], index: 5, kind: output, shape index: {}]
  %s6 = sld [smem:[#allocation0]]
  $region53: #{forward.51} parent=0
    _
  %s8 = ssub.s32 1, %s6
  %s9 = scalar_select 0, %s8, %s6
  loop: start=0, step=1, limit=4
  $region2: #{forward.51} parent=0 // loop_pre_header
    _
  $region3: #{forward.51} parent=0 // loop_header
    %s11 = sphi 0, %s15
    %p12 = scmp.ge.s32.totalorder %s11, 4
    %s21 = sphi 0, %s23
    %s24 = sphi 0, %s21
    %s25 = sphi 0, %s24
    %s41 = sphi 0, %s25
    %s45 = sphi 0, %s45
    %s47 = sphi 0, %s45
    %s48 = sphi 0, %s47
    %s62 = sphi 0, %s48
    %s66 = sphi 0, %s66
    %s68 = sphi 0, %s66
    %s69 = sphi 0, %s68
    %s83 = sphi 0, %s69
    %s87 = sphi 0, %s87
    %s89 = sphi 0, %s87
    %s90 = sphi 0, %s89
    %s104 = sphi 0, %s90
    %s108 = sphi 0, %s108
    %s110 = sphi 0, %s108
    %s111 = sphi 0, %s110
    %s125 = sphi 0, %s111
    %s131 = sphi 0, %s133
    %s134 = sphi 0, %s131
    %s135 = sphi 0, %s134
    %s151 = sphi 0, %s135
  $region4: #{forward.51} parent=0 // loop_header_branch
    %14 = sbr.rel (%p12) target = $region8
  $region5: #{forward.51} parent=0 // loop_body
    %s16 = ssub.s32 %s11, 1
    %s17 = ssub.s32 %s11, 2
    %s18 = sadd.s32 %s11, 1
    %s19 = ssub.s32 %s11, %s18
    %p20 = scmp.eq.s32.totalorder %s19, 0
    %s22 = sadd.s32 %s21, 1
    %s23 = scalar_select %p20, %s21, %s22
    %p26 = pneg %p20
    %p27 = scmp.eq.s32.totalorder %s11, 1
    %p28 = por %p26, %p27
    %p29 = scmp.ne.s32.totalorder %s21, %s24
    %p30 = scmp.eq.s32.totalorder %s11, 0
    %p31 = por %p29, %p30
    %p32 = scmp.ne.s32.totalorder %s21, %s24
    %p33 = scmp.eq.s32.totalorder %s16, 1
    %p34 = por %p32, %p33
    %p35 = scmp.ne.s32.totalorder %s24, %s25
    %p36 = scmp.eq.s32.totalorder %s16, 0
    %p37 = por %p35, %p36
    %p38 = scmp.ne.s32.totalorder %s24, %s25
    %p39 = scmp.eq.s32.totalorder %s17, 1
    %p40 = por %p38, %p39
    %p42 = scmp.ne.s32.totalorder %s25, %s41
    %p43 = scmp.eq.s32.totalorder %s17, 0
    %p44 = por %p42, %p43
    %s46 = sadd.s32 %s45, 1
    %p49 = scmp.eq.s32.totalorder %s11, 1
    %p50 = scmp.ne.s32.totalorder %s45, %s47
    %p51 = scmp.eq.s32.totalorder %s11, 0
    %p52 = por %p50, %p51
    %p53 = scmp.ne.s32.totalorder %s45, %s47
    %p54 = scmp.eq.s32.totalorder %s16, 1
    %p55 = por %p53, %p54
    %p56 = scmp.ne.s32.totalorder %s47, %s48
    %p57 = scmp.eq.s32.totalorder %s16, 0
    %p58 = por %p56, %p57
    %p59 = scmp.ne.s32.totalorder %s47, %s48
    %p60 = scmp.eq.s32.totalorder %s17, 1
    %p61 = por %p59, %p60
    %p63 = scmp.ne.s32.totalorder %s48, %s62
    %p64 = scmp.eq.s32.totalorder %s17, 0
    %p65 = por %p63, %p64
    %s67 = sadd.s32 %s66, 1
    %p70 = scmp.eq.s32.totalorder %s11, 1
    %p71 = scmp.ne.s32.totalorder %s66, %s68
    %p72 = scmp.eq.s32.totalorder %s11, 0
    %p73 = por %p71, %p72
    %p74 = scmp.ne.s32.totalorder %s66, %s68
    %p75 = scmp.eq.s32.totalorder %s16, 1
    %p76 = por %p74, %p75
    %p77 = scmp.ne.s32.totalorder %s68, %s69
    %p78 = scmp.eq.s32.totalorder %s16, 0
    %p79 = por %p77, %p78
    %p80 = scmp.ne.s32.totalorder %s68, %s69
    %p81 = scmp.eq.s32.totalorder %s17, 1
    %p82 = por %p80, %p81
    %p84 = scmp.ne.s32.totalorder %s69, %s83
    %p85 = scmp.eq.s32.totalorder %s17, 0
    %p86 = por %p84, %p85
    %s88 = sadd.s32 %s87, 1
    %p91 = scmp.eq.s32.totalorder %s11, 1
    %p92 = scmp.ne.s32.totalorder %s87, %s89
    %p93 = scmp.eq.s32.totalorder %s11, 0
    %p94 = por %p92, %p93
    %p95 = scmp.ne.s32.totalorder %s87, %s89
    %p96 = scmp.eq.s32.totalorder %s16, 1
    %p97 = por %p95, %p96
    %p98 = scmp.ne.s32.totalorder %s89, %s90
    %p99 = scmp.eq.s32.totalorder %s16, 0
    %p100 = por %p98, %p99
    %p101 = scmp.ne.s32.totalorder %s89, %s90
    %p102 = scmp.eq.s32.totalorder %s17, 1
    %p103 = por %p101, %p102
    %p105 = scmp.ne.s32.totalorder %s90, %s104
    %p106 = scmp.eq.s32.totalorder %s17, 0
    %p107 = por %p105, %p106
    %s109 = sadd.s32 %s108, 1
    %p112 = scmp.eq.s32.totalorder %s11, 1
    %p113 = scmp.ne.s32.totalorder %s108, %s110
    %p114 = scmp.eq.s32.totalorder %s11, 0
    %p115 = por %p113, %p114
    %p116 = scmp.ne.s32.totalorder %s108, %s110
    %p117 = scmp.eq.s32.totalorder %s16, 1
    %p118 = por %p116, %p117
    %p119 = scmp.ne.s32.totalorder %s110, %s111
    %p120 = scmp.eq.s32.totalorder %s16, 0
    %p121 = por %p119, %p120
    %p122 = scmp.ne.s32.totalorder %s110, %s111
    %p123 = scmp.eq.s32.totalorder %s17, 1
    %p124 = por %p122, %p123
    %p126 = scmp.ne.s32.totalorder %s111, %s125
    %p127 = scmp.eq.s32.totalorder %s17, 0
    %p128 = por %p126, %p127
    %s129 = ssub.s32 %s11, %s18
    %p130 = scmp.eq.s32.totalorder %s129, 0
    %s132 = sadd.s32 %s131, 1
    %s133 = scalar_select %p130, %s131, %s132
    %p136 = pneg %p130
    %p137 = scmp.eq.s32.totalorder %s11, 1
    %p138 = por %p136, %p137
    %p139 = scmp.ne.s32.totalorder %s131, %s134
    %p140 = scmp.eq.s32.totalorder %s11, 0
    %p141 = por %p139, %p140
    %p142 = scmp.ne.s32.totalorder %s131, %s134
    %p143 = scmp.eq.s32.totalorder %s16, 1
    %p144 = por %p142, %p143
    %p145 = scmp.ne.s32.totalorder %s134, %s135
    %p146 = scmp.eq.s32.totalorder %s16, 0
    %p147 = por %p145, %p146
    %p148 = scmp.ne.s32.totalorder %s134, %s135
    %p149 = scmp.eq.s32.totalorder %s17, 1
    %p150 = por %p148, %p149
    %p152 = scmp.ne.s32.totalorder %s135, %s151
    %p153 = scmp.eq.s32.totalorder %s17, 0
    %p154 = por %p152, %p153
    %p155 = scmp.le.s32.totalorder 1, %s11
    %p156 = scmp.lt.s32.totalorder %s11, 3
    %p157 = pnand %p155, %p156
    %p158 = pneg %p157
    // Predicated region
    $region9: #{forward.51} parent=5 // pred_check
      _
    $region10: #{forward.51} parent=5 // pred_check_branch
      %160 = sbr.rel (%p157) target = $region12
    $region11: #{forward.51} parent=5 // pred_region
      %s161 = ssub.s32 %s11, 1
      // Predicated region
      $region13: #{forward.51} parent=11 // pred_check
        %p162 = pneg %p58
      $region14: #{forward.51} parent=11 // pred_check_branch
        %164 = sbr.rel (%p162) target = $region16
      $region15: #{forward.51} parent=11 // pred_region
        _
      $region16: #{forward.51} parent=11 // pred_fallthru
        _
      // Predicated region
      $region17: #{forward.51} parent=11 // pred_check
        %p165 = pneg %p79
      $region18: #{forward.51} parent=11 // pred_check_branch
        %167 = sbr.rel (%p165) target = $region20
      $region19: #{forward.51} parent=11 // pred_region
        _
      $region20: #{forward.51} parent=11 // pred_fallthru
        _
      // Predicated region
      $region21: #{forward.51} parent=11 // pred_check
        %p168 = pneg %p100
      $region22: #{forward.51} parent=11 // pred_check_branch
        %170 = sbr.rel (%p168) target = $region24
      $region23: #{forward.51} parent=11 // pred_region
        _
      $region24: #{forward.51} parent=11 // pred_fallthru
        _
      // Predicated region
      $region25: #{forward.51} parent=11 // pred_check
        %p171 = pneg %p121
      $region26: #{forward.51} parent=11 // pred_check_branch
        %173 = sbr.rel (%p171) target = $region28
      $region27: #{forward.51} parent=11 // pred_region
        _
      $region28: #{forward.51} parent=11 // pred_fallthru
        _
    $region12: #{forward.51} parent=5 // pred_fallthru
      _
    %p174 = scmp.lt.s32.totalorder %s11, 2
    // Predicated region
    $region29: #{forward.51} parent=5 // pred_check
      %p175 = pneg %p174
    $region30: #{forward.51} parent=5 // pred_check_branch
      %177 = sbr.rel (%p175) target = $region32
    $region31: #{forward.51} parent=5 // pred_region
      // Predicated region
      $region33: #{forward.51} parent=31 // pred_check
        %p178 = pneg %p31
      $region34: #{forward.51} parent=31 // pred_check_branch
        %180 = sbr.rel (%p178) target = $region36
      $region35: #{forward.51} parent=31 // pred_region
        %p181 = scmp.lt.s32.totalorder %s11, 1
        %s182 = scalar_select %p181, %s11, 1
        %s183 = smul.addr %s182, 6
        %s184 = smul.addr %s183, 4
        %s185 = scalar_lea.vmem %s0, %s184
      $region36: #{forward.51} parent=31 // pred_fallthru
        _
    $region32: #{forward.51} parent=5 // pred_fallthru
      _
    %p186 = scmp.le.s32.totalorder 1, %s11
    %p187 = scmp.lt.s32.totalorder %s11, 3
    %p188 = pnand %p186, %p187
    %p189 = pneg %p188
    // Predicated region
    $region37: #{forward.51} parent=5 // pred_check
      _
    $region38: #{forward.51} parent=5 // pred_check_branch
      %191 = sbr.rel (%p188) target = $region40
    $region39: #{forward.51} parent=5 // pred_region
      %s192 = ssub.s32 %s11, 1
      %p193 = scmp.lt.s32.totalorder %s16, 1
      %s194 = scalar_select %p193, %s16, 1
      %s195 = smul.addr %s194, 6
      %s196 = smul.addr %s195, 4
      %s197 = scalar_lea.vmem %s0, %s196
      %p198 = pneg %p37
      %p199 = pneg %p34
      %p200 = pneg %p58
      %p201 = pneg %p55
      %p202 = pneg %p79
      %p203 = pneg %p76
      %p204 = pneg %p100
      %p205 = pneg %p97
      %p206 = pneg %p121
      %p207 = pneg %p118
      %p208 = pneg %p147
      %p209 = pneg %p144
      %p210 = scmp.lt.s32.totalorder %s16, 1
      %s211 = scalar_select %p210, %s16, 1
      %s212 = smul.addr %s211, 4
      %s213 = smul.addr %s212, 2
      %s214 = scalar_lea.vmem %s5, %s213
      %p215 = scmp.lt.s32.totalorder %s16, 1
      %s216 = scalar_select %p215, %s16, 1
      %s217 = smul.addr %s216, 6
      %s218 = smul.addr %s217, 4
      %s219 = scalar_lea.vmem %s0, %s218
      %p220 = scmp.lt.s32.totalorder %s16, 1
      %s221 = scalar_select %p220, %s16, 1
      %s222 = smul.addr %s221, 4
      %s223 = smul.addr %s222, 2
      %s224 = scalar_lea.vmem %s5, %s223
      %v225 = vld [vmem:[%s219] sm:$0x7]
      %v226 = vld [vmem:[%s219 + $0x4] sm:$0x7]
      %v227 = vld [vmem:[%s219 + $0x8] sm:$0x7]
      %v228 = vld [vmem:[%s219 + $0xc] sm:$0x7]
      %v229 = vld [vmem:[%s219 + $0x10] sm:$0x7]
      %v230 = vld [vmem:[%s219 + $0x14] sm:$0x7]
      %v231 = vunpack.c.l.bf16 %v225
      %v232 = vunpack.c.l.bf16 %v226
      %v233 = vunpack.c.l.bf16 %v227
      %v234 = vunpack.c.l.bf16 %v228
      %v235 = vunpack.c.l.bf16 %v229
      %v236 = vunpack.c.l.bf16 %v230
      %v237 = vld [vmem:[%s1] sm:$0x7]
      %v238 = vld [vmem:[%s1 + $0x4] sm:$0x7]
      %v239 = vld [vmem:[%s1 + $0x8] sm:$0x7]
      %v240 = vperm.slane %v237, 0
      %v241 = vmul.f32 %v231, %v240
      %v242 = vmul.f32 %v232, %v240
      %v243 = vmul.f32 %v233, %v240
      %v244 = vmul.f32 %v234, %v240
      %v245 = vadd.f32 %v241, 0.0
      %v246 = vadd.f32 %v242, 0.0
      %v247 = vadd.f32 %v243, 0.0
      %v248 = vadd.f32 %v244, 0.0
      %v249 = vperm.slane %v237, 1
      %v250 = vmul.f32 %v231, %v249
      %v251 = vmul.f32 %v232, %v249
      %v252 = vmul.f32 %v233, %v249
      %v253 = vmul.f32 %v234, %v249
      %v258 = vrot.slane %v250, 1
      %v259 = vrot.slane %v251, 1
      %v260 = vrot.slane %v252, 1
      %v261 = vrot.slane %v253, 1
      %v266 = vadd.f32 %v245, %v258
      %v267 = vadd.f32 %v246, %v259
      %v268 = vadd.f32 %v247, %v260
      %v269 = vadd.f32 %v248, %v261
      %v270 = vperm.slane %v237, 2
      %v271 = vmul.f32 %v231, %v270
      %v272 = vmul.f32 %v232, %v270
      %v273 = vmul.f32 %v233, %v270
      %v274 = vmul.f32 %v234, %v270
      %v279 = vrot.slane %v271, 2
      %v280 = vrot.slane %v272, 2
      %v281 = vrot.slane %v273, 2
      %v282 = vrot.slane %v274, 2
      %v287 = vadd.f32 %v266, %v279
      %v288 = vadd.f32 %v267, %v280
      %v289 = vadd.f32 %v268, %v281
      %v290 = vadd.f32 %v269, %v282
      %v291 = vperm.slane %v238, 0
      %v292 = vmul.f32 %v232, %v291
      %v293 = vmul.f32 %v233, %v291
      %v294 = vmul.f32 %v234, %v291
      %v295 = vmul.f32 %v235, %v291
      %v296 = vadd.f32 %v287, %v292
      %v297 = vadd.f32 %v288, %v293
      %v298 = vadd.f32 %v289, %v294
      %v299 = vadd.f32 %v290, %v295
      %v300 = vperm.slane %v238, 1
      %v301 = vmul.f32 %v232, %v300
      %v302 = vmul.f32 %v233, %v300
      %v303 = vmul.f32 %v234, %v300
      %v304 = vmul.f32 %v235, %v300
      %v309 = vrot.slane %v301, 1
      %v310 = vrot.slane %v302, 1
      %v311 = vrot.slane %v303, 1
      %v312 = vrot.slane %v304, 1
      %v317 = vadd.f32 %v296, %v309
      %v318 = vadd.f32 %v297, %v310
      %v319 = vadd.f32 %v298, %v311
      %v320 = vadd.f32 %v299, %v312
      %v321 = vperm.slane %v238, 2
      %v322 = vmul.f32 %v232, %v321
      %v323 = vmul.f32 %v233, %v321
      %v324 = vmul.f32 %v234, %v321
      %v325 = vmul.f32 %v235, %v321
      %v330 = vrot.slane %v322, 2
      %v331 = vrot.slane %v323, 2
      %v332 = vrot.slane %v324, 2
      %v333 = vrot.slane %v325, 2
      %v338 = vadd.f32 %v317, %v330
      %v339 = vadd.f32 %v318, %v331
      %v340 = vadd.f32 %v319, %v332
      %v341 = vadd.f32 %v320, %v333
      %v342 = vperm.slane %v239, 0
      %v343 = vmul.f32 %v233, %v342
      %v344 = vmul.f32 %v234, %v342
      %v345 = vmul.f32 %v235, %v342
      %v346 = vmul.f32 %v236, %v342
      %v347 = vadd.f32 %v338, %v343
      %v348 = vadd.f32 %v339, %v344
      %v349 = vadd.f32 %v340, %v345
      %v350 = vadd.f32 %v341, %v346
      %v351 = vperm.slane %v239, 1
      %v352 = vmul.f32 %v233, %v351
      %v353 = vmul.f32 %v234, %v351
      %v354 = vmul.f32 %v235, %v351
      %v355 = vmul.f32 %v236, %v351
      %v360 = vrot.slane %v352, 1
      %v361 = vrot.slane %v353, 1
      %v362 = vrot.slane %v354, 1
      %v363 = vrot.slane %v355, 1
      %v368 = vadd.f32 %v347, %v360
      %v369 = vadd.f32 %v348, %v361
      %v370 = vadd.f32 %v349, %v362
      %v371 = vadd.f32 %v350, %v363
      %v372 = vperm.slane %v239, 2
      %v373 = vmul.f32 %v233, %v372
      %v374 = vmul.f32 %v234, %v372
      %v375 = vmul.f32 %v235, %v372
      %v376 = vmul.f32 %v236, %v372
      %v381 = vrot.slane %v373, 2
      %v382 = vrot.slane %v374, 2
      %v383 = vrot.slane %v375, 2
      %v384 = vrot.slane %v376, 2
      %v389 = vadd.f32 %v368, %v381
      %v390 = vadd.f32 %v369, %v382
      %v391 = vadd.f32 %v370, %v383
      %v392 = vadd.f32 %v371, %v384
      %v393 = vld [vmem:[%s2] sm:$0x1]
      %v395 = vperm.slane %v393, 0
      %v397 = vadd.f32 %v389, %v395
      %v398 = vadd.f32 %v390, %v395
      %v399 = vadd.f32 %v391, %v395
      %v400 = vadd.f32 %v392, %v395
      %vm401 = vcmask 1043456
      %v402 = vsel %vm401, %v397, 0.0
      %v403 = vsel %vm401, %v398, 0.0
      %v404 = vadd.f32 %v402, %v403
      %v405 = vsel %vm401, %v399, 0.0
      %v406 = vadd.f32 %v404, %v405
      %v407 = vsel %vm401, %v400, 0.0
      %v408 = vadd.f32 %v406, %v407
      %v409 = vrcp.pop 4.0
      %v410 = vmul.f32 4.0, %v409
      %v411 = vsub.f32 1.0, %v410
      %v412 = vmul.f32 %v409, %v411
      %v413 = vadd.f32 %v409, %v412
      %vm414 = vweird.f32 %v409
      %v415 = vsel %vm414, %v409, %v413
      %v416 = vmul.f32 %v408, %v415
      %v417 = vsel %vm401, %v416, 0.0
      %v418 = vrot.slane %v417, 4
      %v419 = vadd.f32 %v417, %v418
      %v420 = vrot.slane %v419, 2
      %v421 = vadd.f32 %v419, %v420
      %v422 = vrot.slane %v421, 1
      %v423 = vadd.f32 %v421, %v422
      %v424 = vmul.f32 %v423, %v415
      %v425 = vsub.f32 %v397, %v424
      %v426 = vsub.f32 %v398, %v424
      %v427 = vsub.f32 %v399, %v424
      %v428 = vsub.f32 %v400, %v424
      %v429 = vmul.f32 %v425, %v425
      %v430 = vmul.f32 %v426, %v426
      %v431 = vmul.f32 %v427, %v427
      %v432 = vmul.f32 %v428, %v428
      %v433 = vsel %vm401, %v429, 0.0
      %v434 = vsel %vm401, %v430, 0.0
      %v435 = vadd.f32 %v433, %v434
      %v436 = vsel %vm401, %v431, 0.0
      %v437 = vadd.f32 %v435, %v436
      %v438 = vsel %vm401, %v432, 0.0
      %v439 = vadd.f32 %v437, %v438
      %v440 = vmul.f32 %v439, %v415
      %v441 = vsel %vm401, %v440, 0.0
      %v442 = vrot.slane %v441, 4
      %v443 = vadd.f32 %v441, %v442
      %v444 = vrot.slane %v443, 2
      %v445 = vadd.f32 %v443, %v444
      %v446 = vrot.slane %v445, 1
      %v447 = vadd.f32 %v445, %v446
      %v448 = vmul.f32 %v447, %v415
      %v449 = vadd.f32 %v448, 1e-05
      %v450 = vrsqrt.pop %v449
      %v451 = vmul.f32 %v450, %v449
      %v452 = vmul.f32 %v451, %v450
      %v453 = vmul.f32 0.5, %v452
      %v454 = vsub.f32 1.5, %v453
      %v455 = vmul.f32 %v450, %v454
      %vm456 = vweird.f32 %v449
      %vm457 = vweird.f32 %v450
      %vm458 = vmor %vm456, %vm457
      %v459 = vsel %vm458, %v450, %v455
      %v460 = vmul.f32 %v425, %v459
      %v461 = vmul.f32 %v426, %v459
      %v462 = vmul.f32 %v427, %v459
      %v463 = vmul.f32 %v428, %v459
      %v464 = vld [vmem:[%s3] sm:$0x1]
      %v466 = vperm.slane %v464, 0
      %v468 = vmul.f32 %v460, %v466
      %v469 = vmul.f32 %v461, %v466
      %v470 = vmul.f32 %v462, %v466
      %v471 = vmul.f32 %v463, %v466
      %v472 = vld [vmem:[%s4] sm:$0x1]
      %v474 = vperm.slane %v472, 0
      %v476 = vadd.f32 %v468, %v474
      %v477 = vadd.f32 %v469, %v474
      %v478 = vadd.f32 %v470, %v474
      %v479 = vadd.f32 %v471, %v474
      %v480 = vpack.c.bf16 %v476, %v476
      %v481 = vpack.c.bf16 %v477, %v477
      %v482 = vpack.c.bf16 %v478, %v478
      %v483 = vpack.c.bf16 %v479, %v479
      %484 = vst [vmem:[%s224] sm:$0x3] %v480
      %485 = vst [vmem:[%s224 + $0x2] sm:$0x3] %v481
      %486 = vst [vmem:[%s224 + $0x4] sm:$0x3] %v482
      %487 = vst [vmem:[%s224 + $0x6] sm:$0x3] %v483
      %p488 = scmp.lt.s32.totalorder %s16, 1
      %s489 = scalar_select %p488, %s16, 1
      %s490 = smul.addr %s489, 4
      %s491 = smul.addr %s490, 2
      %s492 = scalar_lea.vmem %s5, %s491
      // Predicated region
      $region41: #{forward.51} parent=39 // pred_check
        %p493 = pneg %p144
      $region42: #{forward.51} parent=39 // pred_check_branch
        %495 = sbr.rel (%p493) target = $region44
      $region43: #{forward.51} parent=39 // pred_region
        _
      $region44: #{forward.51} parent=39 // pred_fallthru
        _
    $region40: #{forward.51} parent=5 // pred_fallthru
      _
    %p496 = scmp.le.s32.totalorder 2, %s11
    // Predicated region
    $region45: #{forward.51} parent=5 // pred_check
      %p497 = pneg %p496
    $region46: #{forward.51} parent=5 // pred_check_branch
      %499 = sbr.rel (%p497) target = $region48
    $region47: #{forward.51} parent=5 // pred_region
      %s500 = ssub.s32 %s11, 2
      // Predicated region
      $region49: #{forward.51} parent=47 // pred_check
        %p501 = pneg %p150
      $region50: #{forward.51} parent=47 // pred_check_branch
        %503 = sbr.rel (%p501) target = $region52
      $region51: #{forward.51} parent=47 // pred_region
        %p504 = scmp.lt.s32.totalorder %s17, 1
        %s505 = scalar_select %p504, %s17, 1
        %s506 = smul.addr %s505, 4
        %s507 = smul.addr %s506, 2
        %s508 = scalar_lea.vmem %s5, %s507
      $region52: #{forward.51} parent=47 // pred_fallthru
        _
    $region48: #{forward.51} parent=5 // pred_fallthru
      _
  $region6: #{forward.51} parent=0 // loop_footer
    %s15 = sadd.s32 1, %s11
  $region7: #{forward.51} parent=0 // loop_footer_branch
    %10 = sbr.rel target = $region3
  $region8: #{forward.51} parent=0 // loop_exit
    _

// kernel: forward.52
$region0: #{forward.52}
  #allocation0 [shape = 'u32[]', space=smem, size = 0x4, offset = 0x4, fixed_abs, tag = 'smem constant byte address 0x4 - core index']
  #allocation1 [shape = 'u32[72,128]{1,0:T(1,128)}', space=vmem, size = 0x9000, scoped, tag = 'internal scratch']
  %s0 = inlined_call_operand.vmem [shape: bf16[2,16,128], index: 0, kind: input, shape index: {}]
  %s1 = inlined_call_operand.vmem [shape: bf16[128,64], index: 1, kind: input, shape index: {}]
  %s2 = inlined_call_operand.vmem [shape: f32[1,64], index: 2, kind: input, shape index: {}]
  %s3 = inlined_call_operand.vmem [shape: f32[1,64], index: 3, kind: input, shape index: {}]
  %s4 = inlined_call_operand.vmem [shape: f32[1,64], index: 4, kind: input, shape index: {}]
  %s5 = inlined_call_operand.vmem [shape: bf16[2,16,64], index: 5, kind: output, shape index: {}]
  %s6 = sld [smem:[#allocation0]]
  $region53: #{forward.52} parent=0
    _
  %s8 = ssub.s32 1, %s6
  %s9 = scalar_select 0, %s8, %s6
  loop: start=0, step=1, limit=4
  $region2: #{forward.52} parent=0 // loop_pre_header
    _
  $region3: #{forward.52} parent=0 // loop_header
    %s11 = sphi 0, %s15
    %p12 = scmp.ge.s32.totalorder %s11, 4
    %s21 = sphi 0, %s23
    %s24 = sphi 0, %s21
    %s25 = sphi 0, %s24
    %s41 = sphi 0, %s25
    %s45 = sphi 0, %s45
    %s47 = sphi 0, %s45
    %s48 = sphi 0, %s47
    %s62 = sphi 0, %s48
    %s66 = sphi 0, %s66
    %s68 = sphi 0, %s66
    %s69 = sphi 0, %s68
    %s83 = sphi 0, %s69
    %s87 = sphi 0, %s87
    %s89 = sphi 0, %s87
    %s90 = sphi 0, %s89
    %s104 = sphi 0, %s90
    %s108 = sphi 0, %s108
    %s110 = sphi 0, %s108
    %s111 = sphi 0, %s110
    %s125 = sphi 0, %s111
    %s131 = sphi 0, %s133
    %s134 = sphi 0, %s131
    %s135 = sphi 0, %s134
    %s151 = sphi 0, %s135
  $region4: #{forward.52} parent=0 // loop_header_branch
    %14 = sbr.rel (%p12) target = $region8
  $region5: #{forward.52} parent=0 // loop_body
    %s16 = ssub.s32 %s11, 1
    %s17 = ssub.s32 %s11, 2
    %s18 = sadd.s32 %s11, 1
    %s19 = ssub.s32 %s11, %s18
    %p20 = scmp.eq.s32.totalorder %s19, 0
    %s22 = sadd.s32 %s21, 1
    %s23 = scalar_select %p20, %s21, %s22
    %p26 = pneg %p20
    %p27 = scmp.eq.s32.totalorder %s11, 1
    %p28 = por %p26, %p27
    %p29 = scmp.ne.s32.totalorder %s21, %s24
    %p30 = scmp.eq.s32.totalorder %s11, 0
    %p31 = por %p29, %p30
    %p32 = scmp.ne.s32.totalorder %s21, %s24
    %p33 = scmp.eq.s32.totalorder %s16, 1
    %p34 = por %p32, %p33
    %p35 = scmp.ne.s32.totalorder %s24, %s25
    %p36 = scmp.eq.s32.totalorder %s16, 0
    %p37 = por %p35, %p36
    %p38 = scmp.ne.s32.totalorder %s24, %s25
    %p39 = scmp.eq.s32.totalorder %s17, 1
    %p40 = por %p38, %p39
    %p42 = scmp.ne.s32.totalorder %s25, %s41
    %p43 = scmp.eq.s32.totalorder %s17, 0
    %p44 = por %p42, %p43
    %s46 = sadd.s32 %s45, 1
    %p49 = scmp.eq.s32.totalorder %s11, 1
    %p50 = scmp.ne.s32.totalorder %s45, %s47
    %p51 = scmp.eq.s32.totalorder %s11, 0
    %p52 = por %p50, %p51
    %p53 = scmp.ne.s32.totalorder %s45, %s47
    %p54 = scmp.eq.s32.totalorder %s16, 1
    %p55 = por %p53, %p54
    %p56 = scmp.ne.s32.totalorder %s47, %s48
    %p57 = scmp.eq.s32.totalorder %s16, 0
    %p58 = por %p56, %p57
    %p59 = scmp.ne.s32.totalorder %s47, %s48
    %p60 = scmp.eq.s32.totalorder %s17, 1
    %p61 = por %p59, %p60
    %p63 = scmp.ne.s32.totalorder %s48, %s62
    %p64 = scmp.eq.s32.totalorder %s17, 0
    %p65 = por %p63, %p64
    %s67 = sadd.s32 %s66, 1
    %p70 = scmp.eq.s32.totalorder %s11, 1
    %p71 = scmp.ne.s32.totalorder %s66, %s68
    %p72 = scmp.eq.s32.totalorder %s11, 0
    %p73 = por %p71, %p72
    %p74 = scmp.ne.s32.totalorder %s66, %s68
    %p75 = scmp.eq.s32.totalorder %s16, 1
    %p76 = por %p74, %p75
    %p77 = scmp.ne.s32.totalorder %s68, %s69
    %p78 = scmp.eq.s32.totalorder %s16, 0
    %p79 = por %p77, %p78
    %p80 = scmp.ne.s32.totalorder %s68, %s69
    %p81 = scmp.eq.s32.totalorder %s17, 1
    %p82 = por %p80, %p81
    %p84 = scmp.ne.s32.totalorder %s69, %s83
    %p85 = scmp.eq.s32.totalorder %s17, 0
    %p86 = por %p84, %p85
    %s88 = sadd.s32 %s87, 1
    %p91 = scmp.eq.s32.totalorder %s11, 1
    %p92 = scmp.ne.s32.totalorder %s87, %s89
    %p93 = scmp.eq.s32.totalorder %s11, 0
    %p94 = por %p92, %p93
    %p95 = scmp.ne.s32.totalorder %s87, %s89
    %p96 = scmp.eq.s32.totalorder %s16, 1
    %p97 = por %p95, %p96
    %p98 = scmp.ne.s32.totalorder %s89, %s90
    %p99 = scmp.eq.s32.totalorder %s16, 0
    %p100 = por %p98, %p99
    %p101 = scmp.ne.s32.totalorder %s89, %s90
    %p102 = scmp.eq.s32.totalorder %s17, 1
    %p103 = por %p101, %p102
    %p105 = scmp.ne.s32.totalorder %s90, %s104
    %p106 = scmp.eq.s32.totalorder %s17, 0
    %p107 = por %p105, %p106
    %s109 = sadd.s32 %s108, 1
    %p112 = scmp.eq.s32.totalorder %s11, 1
    %p113 = scmp.ne.s32.totalorder %s108, %s110
    %p114 = scmp.eq.s32.totalorder %s11, 0
    %p115 = por %p113, %p114
    %p116 = scmp.ne.s32.totalorder %s108, %s110
    %p117 = scmp.eq.s32.totalorder %s16, 1
    %p118 = por %p116, %p117
    %p119 = scmp.ne.s32.totalorder %s110, %s111
    %p120 = scmp.eq.s32.totalorder %s16, 0
    %p121 = por %p119, %p120
    %p122 = scmp.ne.s32.totalorder %s110, %s111
    %p123 = scmp.eq.s32.totalorder %s17, 1
    %p124 = por %p122, %p123
    %p126 = scmp.ne.s32.totalorder %s111, %s125
    %p127 = scmp.eq.s32.totalorder %s17, 0
    %p128 = por %p126, %p127
    %s129 = ssub.s32 %s11, %s18
    %p130 = scmp.eq.s32.totalorder %s129, 0
    %s132 = sadd.s32 %s131, 1
    %s133 = scalar_select %p130, %s131, %s132
    %p136 = pneg %p130
    %p137 = scmp.eq.s32.totalorder %s11, 1
    %p138 = por %p136, %p137
    %p139 = scmp.ne.s32.totalorder %s131, %s134
    %p140 = scmp.eq.s32.totalorder %s11, 0
    %p141 = por %p139, %p140
    %p142 = scmp.ne.s32.totalorder %s131, %s134
    %p143 = scmp.eq.s32.totalorder %s16, 1
    %p144 = por %p142, %p143
    %p145 = scmp.ne.s32.totalorder %s134, %s135
    %p146 = scmp.eq.s32.totalorder %s16, 0
    %p147 = por %p145, %p146
    %p148 = scmp.ne.s32.totalorder %s134, %s135
    %p149 = scmp.eq.s32.totalorder %s17, 1
    %p150 = por %p148, %p149
    %p152 = scmp.ne.s32.totalorder %s135, %s151
    %p153 = scmp.eq.s32.totalorder %s17, 0
    %p154 = por %p152, %p153
    %p155 = scmp.le.s32.totalorder 1, %s11
    %p156 = scmp.lt.s32.totalorder %s11, 3
    %p157 = pnand %p155, %p156
    %p158 = pneg %p157
    // Predicated region
    $region9: #{forward.52} parent=5 // pred_check
      _
    $region10: #{forward.52} parent=5 // pred_check_branch
      %160 = sbr.rel (%p157) target = $region12
    $region11: #{forward.52} parent=5 // pred_region
      %s161 = ssub.s32 %s11, 1
      // Predicated region
      $region13: #{forward.52} parent=11 // pred_check
        %p162 = pneg %p58
      $region14: #{forward.52} parent=11 // pred_check_branch
        %164 = sbr.rel (%p162) target = $region16
      $region15: #{forward.52} parent=11 // pred_region
        _
      $region16: #{forward.52} parent=11 // pred_fallthru
        _
      // Predicated region
      $region17: #{forward.52} parent=11 // pred_check
        %p165 = pneg %p79
      $region18: #{forward.52} parent=11 // pred_check_branch
        %167 = sbr.rel (%p165) target = $region20
      $region19: #{forward.52} parent=11 // pred_region
        _
      $region20: #{forward.52} parent=11 // pred_fallthru
        _
      // Predicated region
      $region21: #{forward.52} parent=11 // pred_check
        %p168 = pneg %p100
      $region22: #{forward.52} parent=11 // pred_check_branch
        %170 = sbr.rel (%p168) target = $region24
      $region23: #{forward.52} parent=11 // pred_region
        _
      $region24: #{forward.52} parent=11 // pred_fallthru
        _
      // Predicated region
      $region25: #{forward.52} parent=11 // pred_check
        %p171 = pneg %p121
      $region26: #{forward.52} parent=11 // pred_check_branch
        %173 = sbr.rel (%p171) target = $region28
      $region27: #{forward.52} parent=11 // pred_region
        _
      $region28: #{forward.52} parent=11 // pred_fallthru
        _
    $region12: #{forward.52} parent=5 // pred_fallthru
      _
    %p174 = scmp.lt.s32.totalorder %s11, 2
    // Predicated region
    $region29: #{forward.52} parent=5 // pred_check
      %p175 = pneg %p174
    $region30: #{forward.52} parent=5 // pred_check_branch
      %177 = sbr.rel (%p175) target = $region32
    $region31: #{forward.52} parent=5 // pred_region
      // Predicated region
      $region33: #{forward.52} parent=31 // pred_check
        %p178 = pneg %p31
      $region34: #{forward.52} parent=31 // pred_check_branch
        %180 = sbr.rel (%p178) target = $region36
      $region35: #{forward.52} parent=31 // pred_region
        %p181 = scmp.lt.s32.totalorder %s11, 1
        %s182 = scalar_select %p181, %s11, 1
        %s183 = smul.addr %s182, 2
        %s184 = smul.addr %s183, 4
        %s185 = scalar_lea.vmem %s0, %s184
      $region36: #{forward.52} parent=31 // pred_fallthru
        _
    $region32: #{forward.52} parent=5 // pred_fallthru
      _
    %p186 = scmp.le.s32.totalorder 1, %s11
    %p187 = scmp.lt.s32.totalorder %s11, 3
    %p188 = pnand %p186, %p187
    %p189 = pneg %p188
    // Predicated region
    $region37: #{forward.52} parent=5 // pred_check
      _
    $region38: #{forward.52} parent=5 // pred_check_branch
      %191 = sbr.rel (%p188) target = $region40
    $region39: #{forward.52} parent=5 // pred_region
      %s192 = ssub.s32 %s11, 1
      %p193 = scmp.lt.s32.totalorder %s16, 1
      %s194 = scalar_select %p193, %s16, 1
      %s195 = smul.addr %s194, 2
      %s196 = smul.addr %s195, 4
      %s197 = scalar_lea.vmem %s0, %s196
      %p198 = pneg %p37
      %p199 = pneg %p34
      %p200 = pneg %p58
      %p201 = pneg %p55
      %p202 = pneg %p79
      %p203 = pneg %p76
      %p204 = pneg %p100
      %p205 = pneg %p97
      %p206 = pneg %p121
      %p207 = pneg %p118
      %p208 = pneg %p147
      %p209 = pneg %p144
      %p210 = scmp.lt.s32.totalorder %s16, 1
      %s211 = scalar_select %p210, %s16, 1
      %s212 = smul.addr %s211, 2
      %s213 = smul.addr %s212, 4
      %s214 = scalar_lea.vmem %s5, %s213
      %p215 = scmp.lt.s32.totalorder %s16, 1
      %s216 = scalar_select %p215, %s16, 1
      %s217 = smul.addr %s216, 2
      %s218 = smul.addr %s217, 4
      %s219 = scalar_lea.vmem %s0, %s218
      %p220 = scmp.lt.s32.totalorder %s16, 1
      %s221 = scalar_select %p220, %s16, 1
      %s222 = smul.addr %s221, 2
      %s223 = smul.addr %s222, 4
      %s224 = scalar_lea.vmem %s5, %s223
      %v225 = vld [vmem:[%s219] sm:$0xf]
      %v226 = vld [vmem:[%s219 + $0x4] sm:$0xf]
      %v227 = vld [vmem:[%s1] sm:$0xf]
      %v228 = vld [vmem:[%s1 + $0x4] sm:$0xf]
      %v229 = vld [vmem:[%s1 + $0x8] sm:$0xf]
      %v230 = vld [vmem:[%s1 + $0xc] sm:$0xf]
      %v231 = vld [vmem:[%s1 + $0x10] sm:$0xf]
      %v232 = vld [vmem:[%s1 + $0x14] sm:$0xf]
      %v233 = vld [vmem:[%s1 + $0x18] sm:$0xf]
      %v234 = vld [vmem:[%s1 + $0x1c] sm:$0xf]
      %v235 = vld [vmem:[%s1 + $0x20] sm:$0xf]
      %v236 = vld [vmem:[%s1 + $0x24] sm:$0xf]
      %v237 = vld [vmem:[%s1 + $0x28] sm:$0xf]
      %v238 = vld [vmem:[%s1 + $0x2c] sm:$0xf]
      %v239 = vld [vmem:[%s1 + $0x30] sm:$0xf]
      %v240 = vld [vmem:[%s1 + $0x34] sm:$0xf]
      %v241 = vld [vmem:[%s1 + $0x38] sm:$0xf]
      %v242 = vld [vmem:[%s1 + $0x3c] sm:$0xf]
      %v243 = vld [vmem:[%s2] sm:$0x1]
      %v245 = vperm.slane %v243, 0
      %v249 = vunpack.c.l.b16 %v225
      %v250 = vunpack.c.l.b16 %v226
      %v251 = vpack.c.b16 %v250, %v249
      %v269 = vunpack.c.l.b16 %v227
      %v270 = vunpack.c.l.b16 %v228
      %v271 = vunpack.c.l.b16 %v229
      %v272 = vunpack.c.l.b16 %v230
      %v273 = vunpack.c.l.b16 %v231
      %v274 = vunpack.c.l.b16 %v232
      %v275 = vunpack.c.l.b16 %v233
      %v276 = vunpack.c.l.b16 %v234
      %v277 = vunpack.c.l.b16 %v235
      %v278 = vunpack.c.l.b16 %v236
      %v279 = vunpack.c.l.b16 %v237
      %v280 = vunpack.c.l.b16 %v238
      %v281 = vunpack.c.l.b16 %v239
      %v282 = vunpack.c.l.b16 %v240
      %v283 = vunpack.c.l.b16 %v241
      %v284 = vunpack.c.l.b16 %v242
      %v285 = vpack.c.b16 %v270, %v269
      %v286 = vpack.c.b16 %v272, %v271
      %v287 = vpack.c.b16 %v274, %v273
      %v288 = vpack.c.b16 %v276, %v275
      %v289 = vpack.c.b16 %v278, %v277
      %v290 = vpack.c.b16 %v280, %v279
      %v291 = vpack.c.b16 %v282, %v281
      %v292 = vpack.c.b16 %v284, %v283
      %301 = vmatpush.bf16.msra.mxu0 %v292
      %302 = vmatpush.bf16.msra.mxu0 %v291
      %303 = vmatpush.bf16.msra.mxu0 %v290
      %304 = vmatpush.bf16.msra.mxu0 %v289
      %305 = vmatpush.bf16.msra.mxu0 %v288
      %306 = vmatpush.bf16.msra.mxu0 %v287
      %307 = vmatpush.bf16.msra.mxu0 %v286
      %308 = vmatpush.bf16.msra.mxu0 %v285
      %309 = vmatmul.bf16.gmra.mxu0 %v251
      %v310 = vpop.f32.mrf.mxu0
      %v311 = vadd.f32 %v245, %v310
      %v312 = vpop.f32.mrf.mxu0
      %v313 = vadd.f32 %v245, %v312
      %314 = vdwg.mxu0
      %vm315 = vcmask 523264
      %v316 = vsel %vm315, %v311, 0.0
      %v317 = vsel %vm315, %v313, 0.0
      %v318 = vadd.f32 %v316, %v317
      %v319 = vrot.slane %v318, 4
      %v320 = vadd.f32 %v318, %v319
      %v321 = vrot.slane %v320, 2
      %v322 = vadd.f32 %v320, %v321
      %v323 = vrot.slane %v322, 1
      %v324 = vadd.f32 %v322, %v323
      %v325 = vrcp.pop 16.0
      %v326 = vmul.f32 16.0, %v325
      %v327 = vsub.f32 1.0, %v326
      %v328 = vmul.f32 %v325, %v327
      %v329 = vadd.f32 %v325, %v328
      %vm330 = vweird.f32 %v325
      %v331 = vsel %vm330, %v325, %v329
      %v332 = vmul.f32 %v324, %v331
      %v333 = vsub.f32 %v311, %v332
      %v334 = vsub.f32 %v313, %v332
      %v335 = vmul.f32 %v333, %v333
      %v336 = vmul.f32 %v334, %v334
      %v337 = vsel %vm315, %v335, 0.0
      %v338 = vsel %vm315, %v336, 0.0
      %v339 = vadd.f32 %v337, %v338
      %v340 = vrot.slane %v339, 4
      %v341 = vadd.f32 %v339, %v340
      %v342 = vrot.slane %v341, 2
      %v343 = vadd.f32 %v341, %v342
      %v344 = vrot.slane %v343, 1
      %v345 = vadd.f32 %v343, %v344
      %v346 = vmul.f32 %v345, %v331
      %v347 = vadd.f32 %v346, 1e-05
      %v348 = vrsqrt.pop %v347
      %v349 = vmul.f32 %v348, %v347
      %v350 = vmul.f32 %v349, %v348
      %v351 = vmul.f32 0.5, %v350
      %v352 = vsub.f32 1.5, %v351
      %v353 = vmul.f32 %v348, %v352
      %vm354 = vweird.f32 %v347
      %vm355 = vweird.f32 %v348
      %vm356 = vmor %vm354, %vm355
      %v357 = vsel %vm356, %v348, %v353
      %v358 = vmul.f32 %v333, %v357
      %v359 = vmul.f32 %v334, %v357
      %v360 = vld [vmem:[%s3] sm:$0x1]
      %v362 = vperm.slane %v360, 0
      %v364 = vmul.f32 %v358, %v362
      %v365 = vmul.f32 %v359, %v362
      %v366 = vld [vmem:[%s4] sm:$0x1]
      %v368 = vperm.slane %v366, 0
      %v370 = vadd.f32 %v364, %v368
      %v371 = vadd.f32 %v365, %v368
      %v372 = vmax.f32 %v370, 0.0
      %v373 = vmax.f32 %v371, 0.0
      %v374 = vpack.c.bf16 %v372, %v372
      %v375 = vpack.c.bf16 %v373, %v373
      %vm376 = vcmask 519168
      %377 = vst.msk [vmem:[%s224] sm:$0xf] %vm376, %v374
      %378 = vst.msk [vmem:[%s224 + $0x4] sm:$0xf] %vm376, %v375
      %p379 = scmp.lt.s32.totalorder %s16, 1
      %s380 = scalar_select %p379, %s16, 1
      %s381 = smul.addr %s380, 2
      %s382 = smul.addr %s381, 4
      %s383 = scalar_lea.vmem %s5, %s382
      // Predicated region
      $region41: #{forward.52} parent=39 // pred_check
        %p384 = pneg %p144
      $region42: #{forward.52} parent=39 // pred_check_branch
        %386 = sbr.rel (%p384) target = $region44
      $region43: #{forward.52} parent=39 // pred_region
        _
      $region44: #{forward.52} parent=39 // pred_fallthru
        _
    $region40: #{forward.52} parent=5 // pred_fallthru
      _
    %p387 = scmp.le.s32.totalorder 2, %s11
    // Predicated region
    $region45: #{forward.52} parent=5 // pred_check
      %p388 = pneg %p387
    $region46: #{forward.52} parent=5 // pred_check_branch
      %390 = sbr.rel (%p388) target = $region48
    $region47: #{forward.52} parent=5 // pred_region
      %s391 = ssub.s32 %s11, 2
      // Predicated region
      $region49: #{forward.52} parent=47 // pred_check
        %p392 = pneg %p150
      $region50: #{forward.52} parent=47 // pred_check_branch
        %394 = sbr.rel (%p392) target = $region52
      $region51: #{forward.52} parent=47 // pred_region
        %p395 = scmp.lt.s32.totalorder %s17, 1
        %s396 = scalar_select %p395, %s17, 1
        %s397 = smul.addr %s396, 2
        %s398 = smul.addr %s397, 4
        %s399 = scalar_lea.vmem %s5, %s398
      $region52: #{forward.52} parent=47 // pred_fallthru
        _
    $region48: #{forward.52} parent=5 // pred_fallthru
      _
  $region6: #{forward.52} parent=0 // loop_footer
    %s15 = sadd.s32 1, %s11
  $region7: #{forward.52} parent=0 // loop_footer_branch
    %10 = sbr.rel target = $region3
  $region8: #{forward.52} parent=0 // loop_exit
    _

// kernel: forward.54
$region0: #{forward.54}
  #allocation0 [shape = 'u32[]', space=smem, size = 0x4, offset = 0x4, fixed_abs, tag = 'smem constant byte address 0x4 - core index']
  #allocation1 [shape = 'u32[72,128]{1,0:T(1,128)}', space=vmem, size = 0x9000, scoped, tag = 'internal scratch']
  %s0 = inlined_call_operand.vmem [shape: bf16[2,16,64], index: 0, kind: input, shape index: {}]
  %s1 = inlined_call_operand.vmem [shape: bf16[64,128], index: 1, kind: input, shape index: {}]
  %s2 = inlined_call_operand.vmem [shape: f32[1,128], index: 2, kind: input, shape index: {}]
  %s3 = inlined_call_operand.vmem [shape: f32[1,128], index: 3, kind: input, shape index: {}]
  %s4 = inlined_call_operand.vmem [shape: f32[1,128], index: 4, kind: input, shape index: {}]
  %s5 = inlined_call_operand.vmem [shape: bf16[2,16,128], index: 5, kind: input, shape index: {}]
  %s6 = inlined_call_operand.vmem [shape: bf16[2,16,128], index: 6, kind: output, shape index: {}]
  %s7 = sld [smem:[#allocation0]]
  $region57: #{forward.54} parent=0
    _
  %s9 = ssub.s32 1, %s7
  %s10 = scalar_select 0, %s9, %s7
  loop: start=0, step=1, limit=4
  $region2: #{forward.54} parent=0 // loop_pre_header
    _
  $region3: #{forward.54} parent=0 // loop_header
    %s12 = sphi 0, %s16
    %p13 = scmp.ge.s32.totalorder %s12, 4
    %s22 = sphi 0, %s24
    %s25 = sphi 0, %s22
    %s26 = sphi 0, %s25
    %s42 = sphi 0, %s26
    %s46 = sphi 0, %s46
    %s48 = sphi 0, %s46
    %s49 = sphi 0, %s48
    %s63 = sphi 0, %s49
    %s67 = sphi 0, %s67
    %s69 = sphi 0, %s67
    %s70 = sphi 0, %s69
    %s84 = sphi 0, %s70
    %s88 = sphi 0, %s88
    %s90 = sphi 0, %s88
    %s91 = sphi 0, %s90
    %s105 = sphi 0, %s91
    %s109 = sphi 0, %s109
    %s111 = sphi 0, %s109
    %s112 = sphi 0, %s111
    %s126 = sphi 0, %s112
    %s132 = sphi 0, %s134
    %s135 = sphi 0, %s132
    %s136 = sphi 0, %s135
    %s152 = sphi 0, %s136
    %s158 = sphi 0, %s160
    %s161 = sphi 0, %s158
    %s162 = sphi 0, %s161
    %s178 = sphi 0, %s162
  $region4: #{forward.54} parent=0 // loop_header_branch
    %15 = sbr.rel (%p13) target = $region8
  $region5: #{forward.54} parent=0 // loop_body
    %s17 = ssub.s32 %s12, 1
    %s18 = ssub.s32 %s12, 2
    %s19 = sadd.s32 %s12, 1
    %s20 = ssub.s32 %s12, %s19
    %p21 = scmp.eq.s32.totalorder %s20, 0
    %s23 = sadd.s32 %s22, 1
    %s24 = scalar_select %p21, %s22, %s23
    %p27 = pneg %p21
    %p28 = scmp.eq.s32.totalorder %s12, 1
    %p29 = por %p27, %p28
    %p30 = scmp.ne.s32.totalorder %s22, %s25
    %p31 = scmp.eq.s32.totalorder %s12, 0
    %p32 = por %p30, %p31
    %p33 = scmp.ne.s32.totalorder %s22, %s25
    %p34 = scmp.eq.s32.totalorder %s17, 1
    %p35 = por %p33, %p34
    %p36 = scmp.ne.s32.totalorder %s25, %s26
    %p37 = scmp.eq.s32.totalorder %s17, 0
    %p38 = por %p36, %p37
    %p39 = scmp.ne.s32.totalorder %s25, %s26
    %p40 = scmp.eq.s32.totalorder %s18, 1
    %p41 = por %p39, %p40
    %p43 = scmp.ne.s32.totalorder %s26, %s42
    %p44 = scmp.eq.s32.totalorder %s18, 0
    %p45 = por %p43, %p44
    %s47 = sadd.s32 %s46, 1
    %p50 = scmp.eq.s32.totalorder %s12, 1
    %p51 = scmp.ne.s32.totalorder %s46, %s48
    %p52 = scmp.eq.s32.totalorder %s12, 0
    %p53 = por %p51, %p52
    %p54 = scmp.ne.s32.totalorder %s46, %s48
    %p55 = scmp.eq.s32.totalorder %s17, 1
    %p56 = por %p54, %p55
    %p57 = scmp.ne.s32.totalorder %s48, %s49
    %p58 = scmp.eq.s32.totalorder %s17, 0
    %p59 = por %p57, %p58
    %p60 = scmp.ne.s32.totalorder %s48, %s49
    %p61 = scmp.eq.s32.totalorder %s18, 1
    %p62 = por %p60, %p61
    %p64 = scmp.ne.s32.totalorder %s49, %s63
    %p65 = scmp.eq.s32.totalorder %s18, 0
    %p66 = por %p64, %p65
    %s68 = sadd.s32 %s67, 1
    %p71 = scmp.eq.s32.totalorder %s12, 1
    %p72 = scmp.ne.s32.totalorder %s67, %s69
    %p73 = scmp.eq.s32.totalorder %s12, 0
    %p74 = por %p72, %p73
    %p75 = scmp.ne.s32.totalorder %s67, %s69
    %p76 = scmp.eq.s32.totalorder %s17, 1
    %p77 = por %p75, %p76
    %p78 = scmp.ne.s32.totalorder %s69, %s70
    %p79 = scmp.eq.s32.totalorder %s17, 0
    %p80 = por %p78, %p79
    %p81 = scmp.ne.s32.totalorder %s69, %s70
    %p82 = scmp.eq.s32.totalorder %s18, 1
    %p83 = por %p81, %p82
    %p85 = scmp.ne.s32.totalorder %s70, %s84
    %p86 = scmp.eq.s32.totalorder %s18, 0
    %p87 = por %p85, %p86
    %s89 = sadd.s32 %s88, 1
    %p92 = scmp.eq.s32.totalorder %s12, 1
    %p93 = scmp.ne.s32.totalorder %s88, %s90
    %p94 = scmp.eq.s32.totalorder %s12, 0
    %p95 = por %p93, %p94
    %p96 = scmp.ne.s32.totalorder %s88, %s90
    %p97 = scmp.eq.s32.totalorder %s17, 1
    %p98 = por %p96, %p97
    %p99 = scmp.ne.s32.totalorder %s90, %s91
    %p100 = scmp.eq.s32.totalorder %s17, 0
    %p101 = por %p99, %p100
    %p102 = scmp.ne.s32.totalorder %s90, %s91
    %p103 = scmp.eq.s32.totalorder %s18, 1
    %p104 = por %p102, %p103
    %p106 = scmp.ne.s32.totalorder %s91, %s105
    %p107 = scmp.eq.s32.totalorder %s18, 0
    %p108 = por %p106, %p107
    %s110 = sadd.s32 %s109, 1
    %p113 = scmp.eq.s32.totalorder %s12, 1
    %p114 = scmp.ne.s32.totalorder %s109, %s111
    %p115 = scmp.eq.s32.totalorder %s12, 0
    %p116 = por %p114, %p115
    %p117 = scmp.ne.s32.totalorder %s109, %s111
    %p118 = scmp.eq.s32.totalorder %s17, 1
    %p119 = por %p117, %p118
    %p120 = scmp.ne.s32.totalorder %s111, %s112
    %p121 = scmp.eq.s32.totalorder %s17, 0
    %p122 = por %p120, %p121
    %p123 = scmp.ne.s32.totalorder %s111, %s112
    %p124 = scmp.eq.s32.totalorder %s18, 1
    %p125 = por %p123, %p124
    %p127 = scmp.ne.s32.totalorder %s112, %s126
    %p128 = scmp.eq.s32.totalorder %s18, 0
    %p129 = por %p127, %p128
    %s130 = ssub.s32 %s12, %s19
    %p131 = scmp.eq.s32.totalorder %s130, 0
    %s133 = sadd.s32 %s132, 1
    %s134 = scalar_select %p131, %s132, %s133
    %p137 = pneg %p131
    %p138 = scmp.eq.s32.totalorder %s12, 1
    %p139 = por %p137, %p138
    %p140 = scmp.ne.s32.totalorder %s132, %s135
    %p141 = scmp.eq.s32.totalorder %s12, 0
    %p142 = por %p140, %p141
    %p143 = scmp.ne.s32.totalorder %s132, %s135
    %p144 = scmp.eq.s32.totalorder %s17, 1
    %p145 = por %p143, %p144
    %p146 = scmp.ne.s32.totalorder %s135, %s136
    %p147 = scmp.eq.s32.totalorder %s17, 0
    %p148 = por %p146, %p147
    %p149 = scmp.ne.s32.totalorder %s135, %s136
    %p150 = scmp.eq.s32.totalorder %s18, 1
    %p151 = por %p149, %p150
    %p153 = scmp.ne.s32.totalorder %s136, %s152
    %p154 = scmp.eq.s32.totalorder %s18, 0
    %p155 = por %p153, %p154
    %s156 = ssub.s32 %s12, %s19
    %p157 = scmp.eq.s32.totalorder %s156, 0
    %s159 = sadd.s32 %s158, 1
    %s160 = scalar_select %p157, %s158, %s159
    %p163 = pneg %p157
    %p164 = scmp.eq.s32.totalorder %s12, 1
    %p165 = por %p163, %p164
    %p166 = scmp.ne.s32.totalorder %s158, %s161
    %p167 = scmp.eq.s32.totalorder %s12, 0
    %p168 = por %p166, %p167
    %p169 = scmp.ne.s32.totalorder %s158, %s161
    %p170 = scmp.eq.s32.totalorder %s17, 1
    %p171 = por %p169, %p170
    %p172 = scmp.ne.s32.totalorder %s161, %s162
    %p173 = scmp.eq.s32.totalorder %s17, 0
    %p174 = por %p172, %p173
    %p175 = scmp.ne.s32.totalorder %s161, %s162
    %p176 = scmp.eq.s32.totalorder %s18, 1
    %p177 = por %p175, %p176
    %p179 = scmp.ne.s32.totalorder %s162, %s178
    %p180 = scmp.eq.s32.totalorder %s18, 0
    %p181 = por %p179, %p180
    %p182 = scmp.le.s32.totalorder 1, %s12
    %p183 = scmp.lt.s32.totalorder %s12, 3
    %p184 = pnand %p182, %p183
    %p185 = pneg %p184
    // Predicated region
    $region9: #{forward.54} parent=5 // pred_check
      _
    $region10: #{forward.54} parent=5 // pred_check_branch
      %187 = sbr.rel (%p184) target = $region12
    $region11: #{forward.54} parent=5 // pred_region
      %s188 = ssub.s32 %s12, 1
      // Predicated region
      $region13: #{forward.54} parent=11 // pred_check
        %p189 = pneg %p59
      $region14: #{forward.54} parent=11 // pred_check_branch
        %191 = sbr.rel (%p189) target = $region16
      $region15: #{forward.54} parent=11 // pred_region
        _
      $region16: #{forward.54} parent=11 // pred_fallthru
        _
      // Predicated region
      $region17: #{forward.54} parent=11 // pred_check
        %p192 = pneg %p80
      $region18: #{forward.54} parent=11 // pred_check_branch
        %194 = sbr.rel (%p192) target = $region20
      $region19: #{forward.54} parent=11 // pred_region
        _
      $region20: #{forward.54} parent=11 // pred_fallthru
        _
      // Predicated region
      $region21: #{forward.54} parent=11 // pred_check
        %p195 = pneg %p101
      $region22: #{forward.54} parent=11 // pred_check_branch
        %197 = sbr.rel (%p195) target = $region24
      $region23: #{forward.54} parent=11 // pred_region
        _
      $region24: #{forward.54} parent=11 // pred_fallthru
        _
      // Predicated region
      $region25: #{forward.54} parent=11 // pred_check
        %p198 = pneg %p122
      $region26: #{forward.54} parent=11 // pred_check_branch
        %200 = sbr.rel (%p198) target = $region28
      $region27: #{forward.54} parent=11 // pred_region
        _
      $region28: #{forward.54} parent=11 // pred_fallthru
        _
    $region12: #{forward.54} parent=5 // pred_fallthru
      _
    %p201 = scmp.lt.s32.totalorder %s12, 2
    // Predicated region
    $region29: #{forward.54} parent=5 // pred_check
      %p202 = pneg %p201
    $region30: #{forward.54} parent=5 // pred_check_branch
      %204 = sbr.rel (%p202) target = $region32
    $region31: #{forward.54} parent=5 // pred_region
      // Predicated region
      $region33: #{forward.54} parent=31 // pred_check
        %p205 = pneg %p32
      $region34: #{forward.54} parent=31 // pred_check_branch
        %207 = sbr.rel (%p205) target = $region36
      $region35: #{forward.54} parent=31 // pred_region
        %p208 = scmp.lt.s32.totalorder %s12, 1
        %s209 = scalar_select %p208, %s12, 1
        %s210 = smul.addr %s209, 2
        %s211 = smul.addr %s210, 4
        %s212 = scalar_lea.vmem %s0, %s211
      $region36: #{forward.54} parent=31 // pred_fallthru
        _
      // Predicated region
      $region37: #{forward.54} parent=31 // pred_check
        %p213 = pneg %p142
      $region38: #{forward.54} parent=31 // pred_check_branch
        %215 = sbr.rel (%p213) target = $region40
      $region39: #{forward.54} parent=31 // pred_region
        %p216 = scmp.lt.s32.totalorder %s12, 1
        %s217 = scalar_select %p216, %s12, 1
        %s218 = smul.addr %s217, 2
        %s219 = smul.addr %s218, 4
        %s220 = scalar_lea.vmem %s5, %s219
      $region40: #{forward.54} parent=31 // pred_fallthru
        _
    $region32: #{forward.54} parent=5 // pred_fallthru
      _
    %p221 = scmp.le.s32.totalorder 1, %s12
    %p222 = scmp.lt.s32.totalorder %s12, 3
    %p223 = pnand %p221, %p222
    %p224 = pneg %p223
    // Predicated region
    $region41: #{forward.54} parent=5 // pred_check
      _
    $region42: #{forward.54} parent=5 // pred_check_branch
      %226 = sbr.rel (%p223) target = $region44
    $region43: #{forward.54} parent=5 // pred_region
      %s227 = ssub.s32 %s12, 1
      %p228 = scmp.lt.s32.totalorder %s17, 1
      %s229 = scalar_select %p228, %s17, 1
      %s230 = smul.addr %s229, 2
      %s231 = smul.addr %s230, 4
      %s232 = scalar_lea.vmem %s0, %s231
      %p233 = pneg %p38
      %p234 = pneg %p35
      %p235 = pneg %p59
      %p236 = pneg %p56
      %p237 = pneg %p80
      %p238 = pneg %p77
      %p239 = pneg %p101
      %p240 = pneg %p98
      %p241 = pneg %p122
      %p242 = pneg %p119
      %p243 = scmp.lt.s32.totalorder %s17, 1
      %s244 = scalar_select %p243, %s17, 1
      %s245 = smul.addr %s244, 2
      %s246 = smul.addr %s245, 4
      %s247 = scalar_lea.vmem %s5, %s246
      %p248 = pneg %p148
      %p249 = pneg %p145
      %p250 = pneg %p174
      %p251 = pneg %p171
      %p252 = scmp.lt.s32.totalorder %s17, 1
      %s253 = scalar_select %p252, %s17, 1
      %s254 = smul.addr %s253, 2
      %s255 = smul.addr %s254, 4
      %s256 = scalar_lea.vmem %s6, %s255
      %p257 = scmp.lt.s32.totalorder %s17, 1
      %s258 = scalar_select %p257, %s17, 1
      %s259 = smul.addr %s258, 2
      %s260 = smul.addr %s259, 4
      %s261 = scalar_lea.vmem %s0, %s260
      %p262 = scmp.lt.s32.totalorder %s17, 1
      %s263 = scalar_select %p262, %s17, 1
      %s264 = smul.addr %s263, 2
      %s265 = smul.addr %s264, 4
      %s266 = scalar_lea.vmem %s5, %s265
      %p267 = scmp.lt.s32.totalorder %s17, 1
      %s268 = scalar_select %p267, %s17, 1
      %s269 = smul.addr %s268, 2
      %s270 = smul.addr %s269, 4
      %s271 = scalar_lea.vmem %s6, %s270
      %v273 = vld [vmem:[%s261] sm:$0xf]
      %v274 = vld [vmem:[%s261 + $0x4] sm:$0xf]
      %v275 = vld [vmem:[%s1] sm:$0xf]
      %v276 = vld [vmem:[%s1 + $0x4] sm:$0xf]
      %v277 = vld [vmem:[%s1 + $0x8] sm:$0xf]
      %v278 = vld [vmem:[%s1 + $0xc] sm:$0xf]
      %v279 = vld [vmem:[%s1 + $0x10] sm:$0xf]
      %v280 = vld [vmem:[%s1 + $0x14] sm:$0xf]
      %v281 = vld [vmem:[%s1 + $0x18] sm:$0xf]
      %v282 = vld [vmem:[%s1 + $0x1c] sm:$0xf]
      %v283 = vld [vmem:[%s2] sm:$0x1]
      %v285 = vperm.slane %v283, 0
      %v289 = vunpack.c.l.b16 %v273
      %v290 = vunpack.c.l.b16 %v274
      %v291 = vpack.c.b16 %v290, %v289
      %v300 = vunpack.c.l.b16 %v275
      %v301 = vunpack.c.l.b16 %v276
      %v302 = vunpack.c.l.b16 %v277
      %v303 = vunpack.c.l.b16 %v278
      %v304 = vunpack.c.l.b16 %v279
      %v305 = vunpack.c.l.b16 %v280
      %v306 = vunpack.c.l.b16 %v281
      %v307 = vunpack.c.l.b16 %v282
      %v308 = vpack.c.b16 %v301, %v300
      %v309 = vpack.c.b16 %v303, %v302
      %v310 = vpack.c.b16 %v305, %v304
      %v311 = vpack.c.b16 %v307, %v306
      %vm316 = vcmask 523264
      %v318 = vsel %vm316, %v291, 0
      %320 = vmatpush.bf16.msra.mxu0 0
      %321 = vmatpush.bf16.msra.mxu0 0
      %322 = vmatpush.bf16.msra.mxu0 0
      %323 = vmatpush.bf16.msra.mxu0 0
      %324 = vmatpush.bf16.msra.mxu0 %v311
      %325 = vmatpush.bf16.msra.mxu0 %v310
      %326 = vmatpush.bf16.msra.mxu0 %v309
      %327 = vmatpush.bf16.msra.mxu0 %v308
      %328 = vmatmul.bf16.gmra.mxu0 %v318
      %v329 = vpop.f32.mrf.mxu0
      %v330 = vadd.f32 %v285, %v329
      %v331 = vpop.f32.mrf.mxu0
      %v332 = vadd.f32 %v285, %v331
      %333 = vdwg.mxu0
      %v334 = vadd.f32 %v330, %v332
      %v335 = vrot.slane %v334, 4
      %v336 = vadd.f32 %v334, %v335
      %v337 = vrot.slane %v336, 2
      %v338 = vadd.f32 %v336, %v337
      %v339 = vrot.slane %v338, 1
      %v340 = vadd.f32 %v338, %v339
      %v341 = vrcp.pop 16.0
      %v342 = vmul.f32 16.0, %v341
      %v343 = vsub.f32 1.0, %v342
      %v344 = vmul.f32 %v341, %v343
      %v345 = vadd.f32 %v341, %v344
      %vm346 = vweird.f32 %v341
      %v347 = vsel %vm346, %v341, %v345
      %v348 = vmul.f32 %v340, %v347
      %v349 = vsub.f32 %v330, %v348
      %v350 = vsub.f32 %v332, %v348
      %v351 = vmul.f32 %v349, %v349
      %v352 = vmul.f32 %v350, %v350
      %v353 = vadd.f32 %v351, %v352
      %v354 = vrot.slane %v353, 4
      %v355 = vadd.f32 %v353, %v354
      %v356 = vrot.slane %v355, 2
      %v357 = vadd.f32 %v355, %v356
      %v358 = vrot.slane %v357, 1
      %v359 = vadd.f32 %v357, %v358
      %v360 = vmul.f32 %v359, %v347
      %v361 = vadd.f32 %v360, 1e-05
      %v362 = vrsqrt.pop %v361
      %v363 = vmul.f32 %v362, %v361
      %v364 = vmul.f32 %v363, %v362
      %v365 = vmul.f32 0.5, %v364
      %v366 = vsub.f32 1.5, %v365
      %v367 = vmul.f32 %v362, %v366
      %vm368 = vweird.f32 %v361
      %vm369 = vweird.f32 %v362
      %vm370 = vmor %vm368, %vm369
      %v371 = vsel %vm370, %v362, %v367
      %v372 = vmul.f32 %v349, %v371
      %v373 = vmul.f32 %v350, %v371
      %v374 = vld [vmem:[%s3] sm:$0x1]
      %v376 = vperm.slane %v374, 0
      %v378 = vmul.f32 %v372, %v376
      %v379 = vmul.f32 %v373, %v376
      %v380 = vld [vmem:[%s4] sm:$0x1]
      %v382 = vperm.slane %v380, 0
      %v384 = vadd.f32 %v378, %v382
      %v385 = vadd.f32 %v379, %v382
      %v386 = vld [vmem:[%s266] sm:$0xf]
      %v387 = vld [vmem:[%s266 + $0x4] sm:$0xf]
      %v388 = vunpack.c.l.bf16 %v386
      %v389 = vunpack.c.l.bf16 %v387
      %v390 = vadd.f32 %v384, %v388
      %v391 = vadd.f32 %v385, %v389
      %v392 = vpack.c.bf16 %v390, %v390
      %v393 = vpack.c.bf16 %v391, %v391
      %394 = vst [vmem:[%s271] sm:$0xf] %v392
      %395 = vst [vmem:[%s271 + $0x4] sm:$0xf] %v393
      %p396 = scmp.lt.s32.totalorder %s17, 1
      %s397 = scalar_select %p396, %s17, 1
      %s398 = smul.addr %s397, 2
      %s399 = smul.addr %s398, 4
      %s400 = scalar_lea.vmem %s6, %s399
      // Predicated region
      $region45: #{forward.54} parent=43 // pred_check
        %p401 = pneg %p171
      $region46: #{forward.54} parent=43 // pred_check_branch
        %403 = sbr.rel (%p401) target = $region48
      $region47: #{forward.54} parent=43 // pred_region
        _
      $region48: #{forward.54} parent=43 // pred_fallthru
        _
    $region44: #{forward.54} parent=5 // pred_fallthru
      _
    %p404 = scmp.le.s32.totalorder 2, %s12
    // Predicated region
    $region49: #{forward.54} parent=5 // pred_check
      %p405 = pneg %p404
    $region50: #{forward.54} parent=5 // pred_check_branch
      %407 = sbr.rel (%p405) target = $region52
    $region51: #{forward.54} parent=5 // pred_region
      %s408 = ssub.s32 %s12, 2
      // Predicated region
      $region53: #{forward.54} parent=51 // pred_check
        %p409 = pneg %p177
      $region54: #{forward.54} parent=51 // pred_check_branch
        %411 = sbr.rel (%p409) target = $region56
      $region55: #{forward.54} parent=51 // pred_region
        %p412 = scmp.lt.s32.totalorder %s18, 1
        %s413 = scalar_select %p412, %s18, 1
        %s414 = smul.addr %s413, 2
        %s415 = smul.addr %s414, 4
        %s416 = scalar_lea.vmem %s6, %s415
      $region56: #{forward.54} parent=51 // pred_fallthru
        _
    $region52: #{forward.54} parent=5 // pred_fallthru
      _
  $region6: #{forward.54} parent=0 // loop_footer
    %s16 = sadd.s32 1, %s12
  $region7: #{forward.54} parent=0 // loop_footer_branch
    %11 = sbr.rel target = $region3
  $region8: #{forward.54} parent=0 // loop_exit
    _

// kernel: forward.64
$region0: #{forward.64}
  #allocation0 [shape = 'u32[]', space=smem, size = 0x4, offset = 0x4, fixed_abs, tag = 'smem constant byte address 0x4 - core index']
  #allocation1 [shape = 'u32[72,128]{1,0:T(1,128)}', space=vmem, size = 0x9000, scoped, tag = 'internal scratch']
  %s0 = inlined_call_operand.vmem [shape: bf16[2,16,128], index: 0, kind: input, shape index: {}]
  %s1 = inlined_call_operand.vmem [shape: bf16[128,128], index: 1, kind: input, shape index: {}]
  %s2 = inlined_call_operand.vmem [shape: f32[1,128], index: 2, kind: input, shape index: {}]
  %s3 = inlined_call_operand.vmem [shape: f32[1,128], index: 3, kind: input, shape index: {}]
  %s4 = inlined_call_operand.vmem [shape: f32[1,128], index: 4, kind: input, shape index: {}]
  %s5 = inlined_call_operand.vmem [shape: bf16[2,16,128], index: 5, kind: output, shape index: {}]
  %s6 = sld [smem:[#allocation0]]
  $region53: #{forward.64} parent=0
    _
  %s8 = ssub.s32 1, %s6
  %s9 = scalar_select 0, %s8, %s6
  loop: start=0, step=1, limit=4
  $region2: #{forward.64} parent=0 // loop_pre_header
    _
  $region3: #{forward.64} parent=0 // loop_header
    %s11 = sphi 0, %s15
    %p12 = scmp.ge.s32.totalorder %s11, 4
    %s21 = sphi 0, %s23
    %s24 = sphi 0, %s21
    %s25 = sphi 0, %s24
    %s41 = sphi 0, %s25
    %s45 = sphi 0, %s45
    %s47 = sphi 0, %s45
    %s48 = sphi 0, %s47
    %s62 = sphi 0, %s48
    %s66 = sphi 0, %s66
    %s68 = sphi 0, %s66
    %s69 = sphi 0, %s68
    %s83 = sphi 0, %s69
    %s87 = sphi 0, %s87
    %s89 = sphi 0, %s87
    %s90 = sphi 0, %s89
    %s104 = sphi 0, %s90
    %s108 = sphi 0, %s108
    %s110 = sphi 0, %s108
    %s111 = sphi 0, %s110
    %s125 = sphi 0, %s111
    %s131 = sphi 0, %s133
    %s134 = sphi 0, %s131
    %s135 = sphi 0, %s134
    %s151 = sphi 0, %s135
  $region4: #{forward.64} parent=0 // loop_header_branch
    %14 = sbr.rel (%p12) target = $region8
  $region5: #{forward.64} parent=0 // loop_body
    %s16 = ssub.s32 %s11, 1
    %s17 = ssub.s32 %s11, 2
    %s18 = sadd.s32 %s11, 1
    %s19 = ssub.s32 %s11, %s18
    %p20 = scmp.eq.s32.totalorder %s19, 0
    %s22 = sadd.s32 %s21, 1
    %s23 = scalar_select %p20, %s21, %s22
    %p26 = pneg %p20
    %p27 = scmp.eq.s32.totalorder %s11, 1
    %p28 = por %p26, %p27
    %p29 = scmp.ne.s32.totalorder %s21, %s24
    %p30 = scmp.eq.s32.totalorder %s11, 0
    %p31 = por %p29, %p30
    %p32 = scmp.ne.s32.totalorder %s21, %s24
    %p33 = scmp.eq.s32.totalorder %s16, 1
    %p34 = por %p32, %p33
    %p35 = scmp.ne.s32.totalorder %s24, %s25
    %p36 = scmp.eq.s32.totalorder %s16, 0
    %p37 = por %p35, %p36
    %p38 = scmp.ne.s32.totalorder %s24, %s25
    %p39 = scmp.eq.s32.totalorder %s17, 1
    %p40 = por %p38, %p39
    %p42 = scmp.ne.s32.totalorder %s25, %s41
    %p43 = scmp.eq.s32.totalorder %s17, 0
    %p44 = por %p42, %p43
    %s46 = sadd.s32 %s45, 1
    %p49 = scmp.eq.s32.totalorder %s11, 1
    %p50 = scmp.ne.s32.totalorder %s45, %s47
    %p51 = scmp.eq.s32.totalorder %s11, 0
    %p52 = por %p50, %p51
    %p53 = scmp.ne.s32.totalorder %s45, %s47
    %p54 = scmp.eq.s32.totalorder %s16, 1
    %p55 = por %p53, %p54
    %p56 = scmp.ne.s32.totalorder %s47, %s48
    %p57 = scmp.eq.s32.totalorder %s16, 0
    %p58 = por %p56, %p57
    %p59 = scmp.ne.s32.totalorder %s47, %s48
    %p60 = scmp.eq.s32.totalorder %s17, 1
    %p61 = por %p59, %p60
    %p63 = scmp.ne.s32.totalorder %s48, %s62
    %p64 = scmp.eq.s32.totalorder %s17, 0
    %p65 = por %p63, %p64
    %s67 = sadd.s32 %s66, 1
    %p70 = scmp.eq.s32.totalorder %s11, 1
    %p71 = scmp.ne.s32.totalorder %s66, %s68
    %p72 = scmp.eq.s32.totalorder %s11, 0
    %p73 = por %p71, %p72
    %p74 = scmp.ne.s32.totalorder %s66, %s68
    %p75 = scmp.eq.s32.totalorder %s16, 1
    %p76 = por %p74, %p75
    %p77 = scmp.ne.s32.totalorder %s68, %s69
    %p78 = scmp.eq.s32.totalorder %s16, 0
    %p79 = por %p77, %p78
    %p80 = scmp.ne.s32.totalorder %s68, %s69
    %p81 = scmp.eq.s32.totalorder %s17, 1
    %p82 = por %p80, %p81
    %p84 = scmp.ne.s32.totalorder %s69, %s83
    %p85 = scmp.eq.s32.totalorder %s17, 0
    %p86 = por %p84, %p85
    %s88 = sadd.s32 %s87, 1
    %p91 = scmp.eq.s32.totalorder %s11, 1
    %p92 = scmp.ne.s32.totalorder %s87, %s89
    %p93 = scmp.eq.s32.totalorder %s11, 0
    %p94 = por %p92, %p93
    %p95 = scmp.ne.s32.totalorder %s87, %s89
    %p96 = scmp.eq.s32.totalorder %s16, 1
    %p97 = por %p95, %p96
    %p98 = scmp.ne.s32.totalorder %s89, %s90
    %p99 = scmp.eq.s32.totalorder %s16, 0
    %p100 = por %p98, %p99
    %p101 = scmp.ne.s32.totalorder %s89, %s90
    %p102 = scmp.eq.s32.totalorder %s17, 1
    %p103 = por %p101, %p102
    %p105 = scmp.ne.s32.totalorder %s90, %s104
    %p106 = scmp.eq.s32.totalorder %s17, 0
    %p107 = por %p105, %p106
    %s109 = sadd.s32 %s108, 1
    %p112 = scmp.eq.s32.totalorder %s11, 1
    %p113 = scmp.ne.s32.totalorder %s108, %s110
    %p114 = scmp.eq.s32.totalorder %s11, 0
    %p115 = por %p113, %p114
    %p116 = scmp.ne.s32.totalorder %s108, %s110
    %p117 = scmp.eq.s32.totalorder %s16, 1
    %p118 = por %p116, %p117
    %p119 = scmp.ne.s32.totalorder %s110, %s111
    %p120 = scmp.eq.s32.totalorder %s16, 0
    %p121 = por %p119, %p120
    %p122 = scmp.ne.s32.totalorder %s110, %s111
    %p123 = scmp.eq.s32.totalorder %s17, 1
    %p124 = por %p122, %p123
    %p126 = scmp.ne.s32.totalorder %s111, %s125
    %p127 = scmp.eq.s32.totalorder %s17, 0
    %p128 = por %p126, %p127
    %s129 = ssub.s32 %s11, %s18
    %p130 = scmp.eq.s32.totalorder %s129, 0
    %s132 = sadd.s32 %s131, 1
    %s133 = scalar_select %p130, %s131, %s132
    %p136 = pneg %p130
    %p137 = scmp.eq.s32.totalorder %s11, 1
    %p138 = por %p136, %p137
    %p139 = scmp.ne.s32.totalorder %s131, %s134
    %p140 = scmp.eq.s32.totalorder %s11, 0
    %p141 = por %p139, %p140
    %p142 = scmp.ne.s32.totalorder %s131, %s134
    %p143 = scmp.eq.s32.totalorder %s16, 1
    %p144 = por %p142, %p143
    %p145 = scmp.ne.s32.totalorder %s134, %s135
    %p146 = scmp.eq.s32.totalorder %s16, 0
    %p147 = por %p145, %p146
    %p148 = scmp.ne.s32.totalorder %s134, %s135
    %p149 = scmp.eq.s32.totalorder %s17, 1
    %p150 = por %p148, %p149
    %p152 = scmp.ne.s32.totalorder %s135, %s151
    %p153 = scmp.eq.s32.totalorder %s17, 0
    %p154 = por %p152, %p153
    %p155 = scmp.le.s32.totalorder 1, %s11
    %p156 = scmp.lt.s32.totalorder %s11, 3
    %p157 = pnand %p155, %p156
    %p158 = pneg %p157
    // Predicated region
    $region9: #{forward.64} parent=5 // pred_check
      _
    $region10: #{forward.64} parent=5 // pred_check_branch
      %160 = sbr.rel (%p157) target = $region12
    $region11: #{forward.64} parent=5 // pred_region
      %s161 = ssub.s32 %s11, 1
      // Predicated region
      $region13: #{forward.64} parent=11 // pred_check
        %p162 = pneg %p58
      $region14: #{forward.64} parent=11 // pred_check_branch
        %164 = sbr.rel (%p162) target = $region16
      $region15: #{forward.64} parent=11 // pred_region
        _
      $region16: #{forward.64} parent=11 // pred_fallthru
        _
      // Predicated region
      $region17: #{forward.64} parent=11 // pred_check
        %p165 = pneg %p79
      $region18: #{forward.64} parent=11 // pred_check_branch
        %167 = sbr.rel (%p165) target = $region20
      $region19: #{forward.64} parent=11 // pred_region
        _
      $region20: #{forward.64} parent=11 // pred_fallthru
        _
      // Predicated region
      $region21: #{forward.64} parent=11 // pred_check
        %p168 = pneg %p100
      $region22: #{forward.64} parent=11 // pred_check_branch
        %170 = sbr.rel (%p168) target = $region24
      $region23: #{forward.64} parent=11 // pred_region
        _
      $region24: #{forward.64} parent=11 // pred_fallthru
        _
      // Predicated region
      $region25: #{forward.64} parent=11 // pred_check
        %p171 = pneg %p121
      $region26: #{forward.64} parent=11 // pred_check_branch
        %173 = sbr.rel (%p171) target = $region28
      $region27: #{forward.64} parent=11 // pred_region
        _
      $region28: #{forward.64} parent=11 // pred_fallthru
        _
    $region12: #{forward.64} parent=5 // pred_fallthru
      _
    %p174 = scmp.lt.s32.totalorder %s11, 2
    // Predicated region
    $region29: #{forward.64} parent=5 // pred_check
      %p175 = pneg %p174
    $region30: #{forward.64} parent=5 // pred_check_branch
      %177 = sbr.rel (%p175) target = $region32
    $region31: #{forward.64} parent=5 // pred_region
      // Predicated region
      $region33: #{forward.64} parent=31 // pred_check
        %p178 = pneg %p31
      $region34: #{forward.64} parent=31 // pred_check_branch
        %180 = sbr.rel (%p178) target = $region36
      $region35: #{forward.64} parent=31 // pred_region
        %p181 = scmp.lt.s32.totalorder %s11, 1
        %s182 = scalar_select %p181, %s11, 1
        %s183 = smul.addr %s182, 2
        %s184 = smul.addr %s183, 4
        %s185 = scalar_lea.vmem %s0, %s184
      $region36: #{forward.64} parent=31 // pred_fallthru
        _
    $region32: #{forward.64} parent=5 // pred_fallthru
      _
    %p186 = scmp.le.s32.totalorder 1, %s11
    %p187 = scmp.lt.s32.totalorder %s11, 3
    %p188 = pnand %p186, %p187
    %p189 = pneg %p188
    // Predicated region
    $region37: #{forward.64} parent=5 // pred_check
      _
    $region38: #{forward.64} parent=5 // pred_check_branch
      %191 = sbr.rel (%p188) target = $region40
    $region39: #{forward.64} parent=5 // pred_region
      %s192 = ssub.s32 %s11, 1
      %p193 = scmp.lt.s32.totalorder %s16, 1
      %s194 = scalar_select %p193, %s16, 1
      %s195 = smul.addr %s194, 2
      %s196 = smul.addr %s195, 4
      %s197 = scalar_lea.vmem %s0, %s196
      %p198 = pneg %p37
      %p199 = pneg %p34
      %p200 = pneg %p58
      %p201 = pneg %p55
      %p202 = pneg %p79
      %p203 = pneg %p76
      %p204 = pneg %p100
      %p205 = pneg %p97
      %p206 = pneg %p121
      %p207 = pneg %p118
      %p208 = pneg %p147
      %p209 = pneg %p144
      %p210 = scmp.lt.s32.totalorder %s16, 1
      %s211 = scalar_select %p210, %s16, 1
      %s212 = smul.addr %s211, 2
      %s213 = smul.addr %s212, 4
      %s214 = scalar_lea.vmem %s5, %s213
      %p215 = scmp.lt.s32.totalorder %s16, 1
      %s216 = scalar_select %p215, %s16, 1
      %s217 = smul.addr %s216, 2
      %s218 = smul.addr %s217, 4
      %s219 = scalar_lea.vmem %s0, %s218
      %p220 = scmp.lt.s32.totalorder %s16, 1
      %s221 = scalar_select %p220, %s16, 1
      %s222 = smul.addr %s221, 2
      %s223 = smul.addr %s222, 4
      %s224 = scalar_lea.vmem %s5, %s223
      %v225 = vld [vmem:[%s219] sm:$0xf]
      %v226 = vld [vmem:[%s219 + $0x4] sm:$0xf]
      %v227 = vld [vmem:[%s1] sm:$0xf]
      %v228 = vld [vmem:[%s1 + $0x4] sm:$0xf]
      %v229 = vld [vmem:[%s1 + $0x8] sm:$0xf]
      %v230 = vld [vmem:[%s1 + $0xc] sm:$0xf]
      %v231 = vld [vmem:[%s1 + $0x10] sm:$0xf]
      %v232 = vld [vmem:[%s1 + $0x14] sm:$0xf]
      %v233 = vld [vmem:[%s1 + $0x18] sm:$0xf]
      %v234 = vld [vmem:[%s1 + $0x1c] sm:$0xf]
      %v235 = vld [vmem:[%s1 + $0x20] sm:$0xf]
      %v236 = vld [vmem:[%s1 + $0x24] sm:$0xf]
      %v237 = vld [vmem:[%s1 + $0x28] sm:$0xf]
      %v238 = vld [vmem:[%s1 + $0x2c] sm:$0xf]
      %v239 = vld [vmem:[%s1 + $0x30] sm:$0xf]
      %v240 = vld [vmem:[%s1 + $0x34] sm:$0xf]
      %v241 = vld [vmem:[%s1 + $0x38] sm:$0xf]
      %v242 = vld [vmem:[%s1 + $0x3c] sm:$0xf]
      %v243 = vld [vmem:[%s2] sm:$0x1]
      %v245 = vperm.slane %v243, 0
      %v249 = vunpack.c.l.b16 %v225
      %v250 = vunpack.c.l.b16 %v226
      %v251 = vpack.c.b16 %v250, %v249
      %v269 = vunpack.c.l.b16 %v227
      %v270 = vunpack.c.l.b16 %v228
      %v271 = vunpack.c.l.b16 %v229
      %v272 = vunpack.c.l.b16 %v230
      %v273 = vunpack.c.l.b16 %v231
      %v274 = vunpack.c.l.b16 %v232
      %v275 = vunpack.c.l.b16 %v233
      %v276 = vunpack.c.l.b16 %v234
      %v277 = vunpack.c.l.b16 %v235
      %v278 = vunpack.c.l.b16 %v236
      %v279 = vunpack.c.l.b16 %v237
      %v280 = vunpack.c.l.b16 %v238
      %v281 = vunpack.c.l.b16 %v239
      %v282 = vunpack.c.l.b16 %v240
      %v283 = vunpack.c.l.b16 %v241
      %v284 = vunpack.c.l.b16 %v242
      %v285 = vpack.c.b16 %v270, %v269
      %v286 = vpack.c.b16 %v272, %v271
      %v287 = vpack.c.b16 %v274, %v273
      %v288 = vpack.c.b16 %v276, %v275
      %v289 = vpack.c.b16 %v278, %v277
      %v290 = vpack.c.b16 %v280, %v279
      %v291 = vpack.c.b16 %v282, %v281
      %v292 = vpack.c.b16 %v284, %v283
      %301 = vmatpush.bf16.msra.mxu0 %v292
      %302 = vmatpush.bf16.msra.mxu0 %v291
      %303 = vmatpush.bf16.msra.mxu0 %v290
      %304 = vmatpush.bf16.msra.mxu0 %v289
      %305 = vmatpush.bf16.msra.mxu0 %v288
      %306 = vmatpush.bf16.msra.mxu0 %v287
      %307 = vmatpush.bf16.msra.mxu0 %v286
      %308 = vmatpush.bf16.msra.mxu0 %v285
      %309 = vmatmul.bf16.gmra.mxu0 %v251
      %v310 = vpop.f32.mrf.mxu0
      %v311 = vadd.f32 %v245, %v310
      %v312 = vpop.f32.mrf.mxu0
      %v313 = vadd.f32 %v245, %v312
      %314 = vdwg.mxu0
      %v315 = vadd.f32 %v311, %v313
      %v316 = vrot.slane %v315, 4
      %v317 = vadd.f32 %v315, %v316
      %v318 = vrot.slane %v317, 2
      %v319 = vadd.f32 %v317, %v318
      %v320 = vrot.slane %v319, 1
      %v321 = vadd.f32 %v319, %v320
      %v322 = vrcp.pop 16.0
      %v323 = vmul.f32 16.0, %v322
      %v324 = vsub.f32 1.0, %v323
      %v325 = vmul.f32 %v322, %v324
      %v326 = vadd.f32 %v322, %v325
      %vm327 = vweird.f32 %v322
      %v328 = vsel %vm327, %v322, %v326
      %v329 = vmul.f32 %v321, %v328
      %v330 = vsub.f32 %v311, %v329
      %v331 = vsub.f32 %v313, %v329
      %v332 = vmul.f32 %v330, %v330
      %v333 = vmul.f32 %v331, %v331
      %v334 = vadd.f32 %v332, %v333
      %v335 = vrot.slane %v334, 4
      %v336 = vadd.f32 %v334, %v335
      %v337 = vrot.slane %v336, 2
      %v338 = vadd.f32 %v336, %v337
      %v339 = vrot.slane %v338, 1
      %v340 = vadd.f32 %v338, %v339
      %v341 = vmul.f32 %v340, %v328
      %v342 = vadd.f32 %v341, 1e-05
      %v343 = vrsqrt.pop %v342
      %v344 = vmul.f32 %v343, %v342
      %v345 = vmul.f32 %v344, %v343
      %v346 = vmul.f32 0.5, %v345
      %v347 = vsub.f32 1.5, %v346
      %v348 = vmul.f32 %v343, %v347
      %vm349 = vweird.f32 %v342
      %vm350 = vweird.f32 %v343
      %vm351 = vmor %vm349, %vm350
      %v352 = vsel %vm351, %v343, %v348
      %v353 = vmul.f32 %v330, %v352
      %v354 = vmul.f32 %v331, %v352
      %v355 = vld [vmem:[%s3] sm:$0x1]
      %v357 = vperm.slane %v355, 0
      %v359 = vmul.f32 %v353, %v357
      %v360 = vmul.f32 %v354, %v357
      %v361 = vld [vmem:[%s4] sm:$0x1]
      %v363 = vperm.slane %v361, 0
      %v365 = vadd.f32 %v359, %v363
      %v366 = vadd.f32 %v360, %v363
      %v367 = vmax.f32 %v365, 0.0
      %v368 = vmax.f32 %v366, 0.0
      %v369 = vpack.c.bf16 %v367, %v367
      %v370 = vpack.c.bf16 %v368, %v368
      %371 = vst [vmem:[%s224] sm:$0xf] %v369
      %372 = vst [vmem:[%s224 + $0x4] sm:$0xf] %v370
      %p373 = scmp.lt.s32.totalorder %s16, 1
      %s374 = scalar_select %p373, %s16, 1
      %s375 = smul.addr %s374, 2
      %s376 = smul.addr %s375, 4
      %s377 = scalar_lea.vmem %s5, %s376
      // Predicated region
      $region41: #{forward.64} parent=39 // pred_check
        %p378 = pneg %p144
      $region42: #{forward.64} parent=39 // pred_check_branch
        %380 = sbr.rel (%p378) target = $region44
      $region43: #{forward.64} parent=39 // pred_region
        _
      $region44: #{forward.64} parent=39 // pred_fallthru
        _
    $region40: #{forward.64} parent=5 // pred_fallthru
      _
    %p381 = scmp.le.s32.totalorder 2, %s11
    // Predicated region
    $region45: #{forward.64} parent=5 // pred_check
      %p382 = pneg %p381
    $region46: #{forward.64} parent=5 // pred_check_branch
      %384 = sbr.rel (%p382) target = $region48
    $region47: #{forward.64} parent=5 // pred_region
      %s385 = ssub.s32 %s11, 2
      // Predicated region
      $region49: #{forward.64} parent=47 // pred_check
        %p386 = pneg %p150
      $region50: #{forward.64} parent=47 // pred_check_branch
        %388 = sbr.rel (%p386) target = $region52
      $region51: #{forward.64} parent=47 // pred_region
        %p389 = scmp.lt.s32.totalorder %s17, 1
        %s390 = scalar_select %p389, %s17, 1
        %s391 = smul.addr %s390, 2
        %s392 = smul.addr %s391, 4
        %s393 = scalar_lea.vmem %s5, %s392
      $region52: #{forward.64} parent=47 // pred_fallthru
        _
    $region48: #{forward.64} parent=5 // pred_fallthru
      _
  $region6: #{forward.64} parent=0 // loop_footer
    %s15 = sadd.s32 1, %s11
  $region7: #{forward.64} parent=0 // loop_footer_branch
    %10 = sbr.rel target = $region3
  $region8: #{forward.64} parent=0 // loop_exit
    _

// kernel: forward.66
$region0: #{forward.66}
  #allocation0 [shape = 'u32[]', space=smem, size = 0x4, offset = 0x4, fixed_abs, tag = 'smem constant byte address 0x4 - core index']
  #allocation1 [shape = 'u32[72,128]{1,0:T(1,128)}', space=vmem, size = 0x9000, scoped, tag = 'internal scratch']
  %s0 = inlined_call_operand.vmem [shape: bf16[2,16,128], index: 0, kind: input, shape index: {}]
  %s1 = inlined_call_operand.vmem [shape: bf16[128,128], index: 1, kind: input, shape index: {}]
  %s2 = inlined_call_operand.vmem [shape: f32[1,128], index: 2, kind: input, shape index: {}]
  %s3 = inlined_call_operand.vmem [shape: f32[1,128], index: 3, kind: input, shape index: {}]
  %s4 = inlined_call_operand.vmem [shape: f32[1,128], index: 4, kind: input, shape index: {}]
  %s5 = inlined_call_operand.vmem [shape: bf16[2,16,128], index: 5, kind: input, shape index: {}]
  %s6 = inlined_call_operand.vmem [shape: bf16[2,16,128], index: 6, kind: output, shape index: {}]
  %s7 = sld [smem:[#allocation0]]
  $region57: #{forward.66} parent=0
    _
  %s9 = ssub.s32 1, %s7
  %s10 = scalar_select 0, %s9, %s7
  loop: start=0, step=1, limit=4
  $region2: #{forward.66} parent=0 // loop_pre_header
    _
  $region3: #{forward.66} parent=0 // loop_header
    %s12 = sphi 0, %s16
    %p13 = scmp.ge.s32.totalorder %s12, 4
    %s22 = sphi 0, %s24
    %s25 = sphi 0, %s22
    %s26 = sphi 0, %s25
    %s42 = sphi 0, %s26
    %s46 = sphi 0, %s46
    %s48 = sphi 0, %s46
    %s49 = sphi 0, %s48
    %s63 = sphi 0, %s49
    %s67 = sphi 0, %s67
    %s69 = sphi 0, %s67
    %s70 = sphi 0, %s69
    %s84 = sphi 0, %s70
    %s88 = sphi 0, %s88
    %s90 = sphi 0, %s88
    %s91 = sphi 0, %s90
    %s105 = sphi 0, %s91
    %s109 = sphi 0, %s109
    %s111 = sphi 0, %s109
    %s112 = sphi 0, %s111
    %s126 = sphi 0, %s112
    %s132 = sphi 0, %s134
    %s135 = sphi 0, %s132
    %s136 = sphi 0, %s135
    %s152 = sphi 0, %s136
    %s158 = sphi 0, %s160
    %s161 = sphi 0, %s158
    %s162 = sphi 0, %s161
    %s178 = sphi 0, %s162
  $region4: #{forward.66} parent=0 // loop_header_branch
    %15 = sbr.rel (%p13) target = $region8
  $region5: #{forward.66} parent=0 // loop_body
    %s17 = ssub.s32 %s12, 1
    %s18 = ssub.s32 %s12, 2
    %s19 = sadd.s32 %s12, 1
    %s20 = ssub.s32 %s12, %s19
    %p21 = scmp.eq.s32.totalorder %s20, 0
    %s23 = sadd.s32 %s22, 1
    %s24 = scalar_select %p21, %s22, %s23
    %p27 = pneg %p21
    %p28 = scmp.eq.s32.totalorder %s12, 1
    %p29 = por %p27, %p28
    %p30 = scmp.ne.s32.totalorder %s22, %s25
    %p31 = scmp.eq.s32.totalorder %s12, 0
    %p32 = por %p30, %p31
    %p33 = scmp.ne.s32.totalorder %s22, %s25
    %p34 = scmp.eq.s32.totalorder %s17, 1
    %p35 = por %p33, %p34
    %p36 = scmp.ne.s32.totalorder %s25, %s26
    %p37 = scmp.eq.s32.totalorder %s17, 0
    %p38 = por %p36, %p37
    %p39 = scmp.ne.s32.totalorder %s25, %s26
    %p40 = scmp.eq.s32.totalorder %s18, 1
    %p41 = por %p39, %p40
    %p43 = scmp.ne.s32.totalorder %s26, %s42
    %p44 = scmp.eq.s32.totalorder %s18, 0
    %p45 = por %p43, %p44
    %s47 = sadd.s32 %s46, 1
    %p50 = scmp.eq.s32.totalorder %s12, 1
    %p51 = scmp.ne.s32.totalorder %s46, %s48
    %p52 = scmp.eq.s32.totalorder %s12, 0
    %p53 = por %p51, %p52
    %p54 = scmp.ne.s32.totalorder %s46, %s48
    %p55 = scmp.eq.s32.totalorder %s17, 1
    %p56 = por %p54, %p55
    %p57 = scmp.ne.s32.totalorder %s48, %s49
    %p58 = scmp.eq.s32.totalorder %s17, 0
    %p59 = por %p57, %p58
    %p60 = scmp.ne.s32.totalorder %s48, %s49
    %p61 = scmp.eq.s32.totalorder %s18, 1
    %p62 = por %p60, %p61
    %p64 = scmp.ne.s32.totalorder %s49, %s63
    %p65 = scmp.eq.s32.totalorder %s18, 0
    %p66 = por %p64, %p65
    %s68 = sadd.s32 %s67, 1
    %p71 = scmp.eq.s32.totalorder %s12, 1
    %p72 = scmp.ne.s32.totalorder %s67, %s69
    %p73 = scmp.eq.s32.totalorder %s12, 0
    %p74 = por %p72, %p73
    %p75 = scmp.ne.s32.totalorder %s67, %s69
    %p76 = scmp.eq.s32.totalorder %s17, 1
    %p77 = por %p75, %p76
    %p78 = scmp.ne.s32.totalorder %s69, %s70
    %p79 = scmp.eq.s32.totalorder %s17, 0
    %p80 = por %p78, %p79
    %p81 = scmp.ne.s32.totalorder %s69, %s70
    %p82 = scmp.eq.s32.totalorder %s18, 1
    %p83 = por %p81, %p82
    %p85 = scmp.ne.s32.totalorder %s70, %s84
    %p86 = scmp.eq.s32.totalorder %s18, 0
    %p87 = por %p85, %p86
    %s89 = sadd.s32 %s88, 1
    %p92 = scmp.eq.s32.totalorder %s12, 1
    %p93 = scmp.ne.s32.totalorder %s88, %s90
    %p94 = scmp.eq.s32.totalorder %s12, 0
    %p95 = por %p93, %p94
    %p96 = scmp.ne.s32.totalorder %s88, %s90
    %p97 = scmp.eq.s32.totalorder %s17, 1
    %p98 = por %p96, %p97
    %p99 = scmp.ne.s32.totalorder %s90, %s91
    %p100 = scmp.eq.s32.totalorder %s17, 0
    %p101 = por %p99, %p100
    %p102 = scmp.ne.s32.totalorder %s90, %s91
    %p103 = scmp.eq.s32.totalorder %s18, 1
    %p104 = por %p102, %p103
    %p106 = scmp.ne.s32.totalorder %s91, %s105
    %p107 = scmp.eq.s32.totalorder %s18, 0
    %p108 = por %p106, %p107
    %s110 = sadd.s32 %s109, 1
    %p113 = scmp.eq.s32.totalorder %s12, 1
    %p114 = scmp.ne.s32.totalorder %s109, %s111
    %p115 = scmp.eq.s32.totalorder %s12, 0
    %p116 = por %p114, %p115
    %p117 = scmp.ne.s32.totalorder %s109, %s111
    %p118 = scmp.eq.s32.totalorder %s17, 1
    %p119 = por %p117, %p118
    %p120 = scmp.ne.s32.totalorder %s111, %s112
    %p121 = scmp.eq.s32.totalorder %s17, 0
    %p122 = por %p120, %p121
    %p123 = scmp.ne.s32.totalorder %s111, %s112
    %p124 = scmp.eq.s32.totalorder %s18, 1
    %p125 = por %p123, %p124
    %p127 = scmp.ne.s32.totalorder %s112, %s126
    %p128 = scmp.eq.s32.totalorder %s18, 0
    %p129 = por %p127, %p128
    %s130 = ssub.s32 %s12, %s19
    %p131 = scmp.eq.s32.totalorder %s130, 0
    %s133 = sadd.s32 %s132, 1
    %s134 = scalar_select %p131, %s132, %s133
    %p137 = pneg %p131
    %p138 = scmp.eq.s32.totalorder %s12, 1
    %p139 = por %p137, %p138
    %p140 = scmp.ne.s32.totalorder %s132, %s135
    %p141 = scmp.eq.s32.totalorder %s12, 0
    %p142 = por %p140, %p141
    %p143 = scmp.ne.s32.totalorder %s132, %s135
    %p144 = scmp.eq.s32.totalorder %s17, 1
    %p145 = por %p143, %p144
    %p146 = scmp.ne.s32.totalorder %s135, %s136
    %p147 = scmp.eq.s32.totalorder %s17, 0
    %p148 = por %p146, %p147
    %p149 = scmp.ne.s32.totalorder %s135, %s136
    %p150 = scmp.eq.s32.totalorder %s18, 1
    %p151 = por %p149, %p150
    %p153 = scmp.ne.s32.totalorder %s136, %s152
    %p154 = scmp.eq.s32.totalorder %s18, 0
    %p155 = por %p153, %p154
    %s156 = ssub.s32 %s12, %s19
    %p157 = scmp.eq.s32.totalorder %s156, 0
    %s159 = sadd.s32 %s158, 1
    %s160 = scalar_select %p157, %s158, %s159
    %p163 = pneg %p157
    %p164 = scmp.eq.s32.totalorder %s12, 1
    %p165 = por %p163, %p164
    %p166 = scmp.ne.s32.totalorder %s158, %s161
    %p167 = scmp.eq.s32.totalorder %s12, 0
    %p168 = por %p166, %p167
    %p169 = scmp.ne.s32.totalorder %s158, %s161
    %p170 = scmp.eq.s32.totalorder %s17, 1
    %p171 = por %p169, %p170
    %p172 = scmp.ne.s32.totalorder %s161, %s162
    %p173 = scmp.eq.s32.totalorder %s17, 0
    %p174 = por %p172, %p173
    %p175 = scmp.ne.s32.totalorder %s161, %s162
    %p176 = scmp.eq.s32.totalorder %s18, 1
    %p177 = por %p175, %p176
    %p179 = scmp.ne.s32.totalorder %s162, %s178
    %p180 = scmp.eq.s32.totalorder %s18, 0
    %p181 = por %p179, %p180
    %p182 = scmp.le.s32.totalorder 1, %s12
    %p183 = scmp.lt.s32.totalorder %s12, 3
    %p184 = pnand %p182, %p183
    %p185 = pneg %p184
    // Predicated region
    $region9: #{forward.66} parent=5 // pred_check
      _
    $region10: #{forward.66} parent=5 // pred_check_branch
      %187 = sbr.rel (%p184) target = $region12
    $region11: #{forward.66} parent=5 // pred_region
      %s188 = ssub.s32 %s12, 1
      // Predicated region
      $region13: #{forward.66} parent=11 // pred_check
        %p189 = pneg %p59
      $region14: #{forward.66} parent=11 // pred_check_branch
        %191 = sbr.rel (%p189) target = $region16
      $region15: #{forward.66} parent=11 // pred_region
        _
      $region16: #{forward.66} parent=11 // pred_fallthru
        _
      // Predicated region
      $region17: #{forward.66} parent=11 // pred_check
        %p192 = pneg %p80
      $region18: #{forward.66} parent=11 // pred_check_branch
        %194 = sbr.rel (%p192) target = $region20
      $region19: #{forward.66} parent=11 // pred_region
        _
      $region20: #{forward.66} parent=11 // pred_fallthru
        _
      // Predicated region
      $region21: #{forward.66} parent=11 // pred_check
        %p195 = pneg %p101
      $region22: #{forward.66} parent=11 // pred_check_branch
        %197 = sbr.rel (%p195) target = $region24
      $region23: #{forward.66} parent=11 // pred_region
        _
      $region24: #{forward.66} parent=11 // pred_fallthru
        _
      // Predicated region
      $region25: #{forward.66} parent=11 // pred_check
        %p198 = pneg %p122
      $region26: #{forward.66} parent=11 // pred_check_branch
        %200 = sbr.rel (%p198) target = $region28
      $region27: #{forward.66} parent=11 // pred_region
        _
      $region28: #{forward.66} parent=11 // pred_fallthru
        _
    $region12: #{forward.66} parent=5 // pred_fallthru
      _
    %p201 = scmp.lt.s32.totalorder %s12, 2
    // Predicated region
    $region29: #{forward.66} parent=5 // pred_check
      %p202 = pneg %p201
    $region30: #{forward.66} parent=5 // pred_check_branch
      %204 = sbr.rel (%p202) target = $region32
    $region31: #{forward.66} parent=5 // pred_region
      // Predicated region
      $region33: #{forward.66} parent=31 // pred_check
        %p205 = pneg %p32
      $region34: #{forward.66} parent=31 // pred_check_branch
        %207 = sbr.rel (%p205) target = $region36
      $region35: #{forward.66} parent=31 // pred_region
        %p208 = scmp.lt.s32.totalorder %s12, 1
        %s209 = scalar_select %p208, %s12, 1
        %s210 = smul.addr %s209, 2
        %s211 = smul.addr %s210, 4
        %s212 = scalar_lea.vmem %s0, %s211
      $region36: #{forward.66} parent=31 // pred_fallthru
        _
      // Predicated region
      $region37: #{forward.66} parent=31 // pred_check
        %p213 = pneg %p142
      $region38: #{forward.66} parent=31 // pred_check_branch
        %215 = sbr.rel (%p213) target = $region40
      $region39: #{forward.66} parent=31 // pred_region
        %p216 = scmp.lt.s32.totalorder %s12, 1
        %s217 = scalar_select %p216, %s12, 1
        %s218 = smul.addr %s217, 2
        %s219 = smul.addr %s218, 4
        %s220 = scalar_lea.vmem %s5, %s219
      $region40: #{forward.66} parent=31 // pred_fallthru
        _
    $region32: #{forward.66} parent=5 // pred_fallthru
      _
    %p221 = scmp.le.s32.totalorder 1, %s12
    %p222 = scmp.lt.s32.totalorder %s12, 3
    %p223 = pnand %p221, %p222
    %p224 = pneg %p223
    // Predicated region
    $region41: #{forward.66} parent=5 // pred_check
      _
    $region42: #{forward.66} parent=5 // pred_check_branch
      %226 = sbr.rel (%p223) target = $region44
    $region43: #{forward.66} parent=5 // pred_region
      %s227 = ssub.s32 %s12, 1
      %p228 = scmp.lt.s32.totalorder %s17, 1
      %s229 = scalar_select %p228, %s17, 1
      %s230 = smul.addr %s229, 2
      %s231 = smul.addr %s230, 4
      %s232 = scalar_lea.vmem %s0, %s231
      %p233 = pneg %p38
      %p234 = pneg %p35
      %p235 = pneg %p59
      %p236 = pneg %p56
      %p237 = pneg %p80
      %p238 = pneg %p77
      %p239 = pneg %p101
      %p240 = pneg %p98
      %p241 = pneg %p122
      %p242 = pneg %p119
      %p243 = scmp.lt.s32.totalorder %s17, 1
      %s244 = scalar_select %p243, %s17, 1
      %s245 = smul.addr %s244, 2
      %s246 = smul.addr %s245, 4
      %s247 = scalar_lea.vmem %s5, %s246
      %p248 = pneg %p148
      %p249 = pneg %p145
      %p250 = pneg %p174
      %p251 = pneg %p171
      %p252 = scmp.lt.s32.totalorder %s17, 1
      %s253 = scalar_select %p252, %s17, 1
      %s254 = smul.addr %s253, 2
      %s255 = smul.addr %s254, 4
      %s256 = scalar_lea.vmem %s6, %s255
      %p257 = scmp.lt.s32.totalorder %s17, 1
      %s258 = scalar_select %p257, %s17, 1
      %s259 = smul.addr %s258, 2
      %s260 = smul.addr %s259, 4
      %s261 = scalar_lea.vmem %s0, %s260
      %p262 = scmp.lt.s32.totalorder %s17, 1
      %s263 = scalar_select %p262, %s17, 1
      %s264 = smul.addr %s263, 2
      %s265 = smul.addr %s264, 4
      %s266 = scalar_lea.vmem %s5, %s265
      %p267 = scmp.lt.s32.totalorder %s17, 1
      %s268 = scalar_select %p267, %s17, 1
      %s269 = smul.addr %s268, 2
      %s270 = smul.addr %s269, 4
      %s271 = scalar_lea.vmem %s6, %s270
      %v272 = vld [vmem:[%s261] sm:$0xf]
      %v273 = vld [vmem:[%s261 + $0x4] sm:$0xf]
      %v274 = vld [vmem:[%s1] sm:$0xf]
      %v275 = vld [vmem:[%s1 + $0x4] sm:$0xf]
      %v276 = vld [vmem:[%s1 + $0x8] sm:$0xf]
      %v277 = vld [vmem:[%s1 + $0xc] sm:$0xf]
      %v278 = vld [vmem:[%s1 + $0x10] sm:$0xf]
      %v279 = vld [vmem:[%s1 + $0x14] sm:$0xf]
      %v280 = vld [vmem:[%s1 + $0x18] sm:$0xf]
      %v281 = vld [vmem:[%s1 + $0x1c] sm:$0xf]
      %v282 = vld [vmem:[%s1 + $0x20] sm:$0xf]
      %v283 = vld [vmem:[%s1 + $0x24] sm:$0xf]
      %v284 = vld [vmem:[%s1 + $0x28] sm:$0xf]
      %v285 = vld [vmem:[%s1 + $0x2c] sm:$0xf]
      %v286 = vld [vmem:[%s1 + $0x30] sm:$0xf]
      %v287 = vld [vmem:[%s1 + $0x34] sm:$0xf]
      %v288 = vld [vmem:[%s1 + $0x38] sm:$0xf]
      %v289 = vld [vmem:[%s1 + $0x3c] sm:$0xf]
      %v290 = vld [vmem:[%s2] sm:$0x1]
      %v292 = vperm.slane %v290, 0
      %v296 = vunpack.c.l.b16 %v272
      %v297 = vunpack.c.l.b16 %v273
      %v298 = vpack.c.b16 %v297, %v296
      %v316 = vunpack.c.l.b16 %v274
      %v317 = vunpack.c.l.b16 %v275
      %v318 = vunpack.c.l.b16 %v276
      %v319 = vunpack.c.l.b16 %v277
      %v320 = vunpack.c.l.b16 %v278
      %v321 = vunpack.c.l.b16 %v279
      %v322 = vunpack.c.l.b16 %v280
      %v323 = vunpack.c.l.b16 %v281
      %v324 = vunpack.c.l.b16 %v282
      %v325 = vunpack.c.l.b16 %v283
      %v326 = vunpack.c.l.b16 %v284
      %v327 = vunpack.c.l.b16 %v285
      %v328 = vunpack.c.l.b16 %v286
      %v329 = vunpack.c.l.b16 %v287
      %v330 = vunpack.c.l.b16 %v288
      %v331 = vunpack.c.l.b16 %v289
      %v332 = vpack.c.b16 %v317, %v316
      %v333 = vpack.c.b16 %v319, %v318
      %v334 = vpack.c.b16 %v321, %v320
      %v335 = vpack.c.b16 %v323, %v322
      %v336 = vpack.c.b16 %v325, %v324
      %v337 = vpack.c.b16 %v327, %v326
      %v338 = vpack.c.b16 %v329, %v328
      %v339 = vpack.c.b16 %v331, %v330
      %348 = vmatpush.bf16.msra.mxu0 %v339
      %349 = vmatpush.bf16.msra.mxu0 %v338
      %350 = vmatpush.bf16.msra.mxu0 %v337
      %351 = vmatpush.bf16.msra.mxu0 %v336
      %352 = vmatpush.bf16.msra.mxu0 %v335
      %353 = vmatpush.bf16.msra.mxu0 %v334
      %354 = vmatpush.bf16.msra.mxu0 %v333
      %355 = vmatpush.bf16.msra.mxu0 %v332
      %356 = vmatmul.bf16.gmra.mxu0 %v298
      %v357 = vpop.f32.mrf.mxu0
      %v358 = vadd.f32 %v292, %v357
      %v359 = vpop.f32.mrf.mxu0
      %v360 = vadd.f32 %v292, %v359
      %361 = vdwg.mxu0
      %v362 = vadd.f32 %v358, %v360
      %v363 = vrot.slane %v362, 4
      %v364 = vadd.f32 %v362, %v363
      %v365 = vrot.slane %v364, 2
      %v366 = vadd.f32 %v364, %v365
      %v367 = vrot.slane %v366, 1
      %v368 = vadd.f32 %v366, %v367
      %v369 = vrcp.pop 16.0
      %v370 = vmul.f32 16.0, %v369
      %v371 = vsub.f32 1.0, %v370
      %v372 = vmul.f32 %v369, %v371
      %v373 = vadd.f32 %v369, %v372
      %vm374 = vweird.f32 %v369
      %v375 = vsel %vm374, %v369, %v373
      %v376 = vmul.f32 %v368, %v375
      %v377 = vsub.f32 %v358, %v376
      %v378 = vsub.f32 %v360, %v376
      %v379 = vmul.f32 %v377, %v377
      %v380 = vmul.f32 %v378, %v378
      %v381 = vadd.f32 %v379, %v380
      %v382 = vrot.slane %v381, 4
      %v383 = vadd.f32 %v381, %v382
      %v384 = vrot.slane %v383, 2
      %v385 = vadd.f32 %v383, %v384
      %v386 = vrot.slane %v385, 1
      %v387 = vadd.f32 %v385, %v386
      %v388 = vmul.f32 %v387, %v375
      %v389 = vadd.f32 %v388, 1e-05
      %v390 = vrsqrt.pop %v389
      %v391 = vmul.f32 %v390, %v389
      %v392 = vmul.f32 %v391, %v390
      %v393 = vmul.f32 0.5, %v392
      %v394 = vsub.f32 1.5, %v393
      %v395 = vmul.f32 %v390, %v394
      %vm396 = vweird.f32 %v389
      %vm397 = vweird.f32 %v390
      %vm398 = vmor %vm396, %vm397
      %v399 = vsel %vm398, %v390, %v395
      %v400 = vmul.f32 %v377, %v399
      %v401 = vmul.f32 %v378, %v399
      %v402 = vld [vmem:[%s3] sm:$0x1]
      %v404 = vperm.slane %v402, 0
      %v406 = vmul.f32 %v400, %v404
      %v407 = vmul.f32 %v401, %v404
      %v408 = vld [vmem:[%s4] sm:$0x1]
      %v410 = vperm.slane %v408, 0
      %v412 = vadd.f32 %v406, %v410
      %v413 = vadd.f32 %v407, %v410
      %v414 = vld [vmem:[%s266] sm:$0xf]
      %v415 = vld [vmem:[%s266 + $0x4] sm:$0xf]
      %v416 = vunpack.c.l.bf16 %v414
      %v417 = vunpack.c.l.bf16 %v415
      %v418 = vadd.f32 %v412, %v416
      %v419 = vadd.f32 %v413, %v417
      %v420 = vpack.c.bf16 %v418, %v418
      %v421 = vpack.c.bf16 %v419, %v419
      %422 = vst [vmem:[%s271] sm:$0xf] %v420
      %423 = vst [vmem:[%s271 + $0x4] sm:$0xf] %v421
      %p424 = scmp.lt.s32.totalorder %s17, 1
      %s425 = scalar_select %p424, %s17, 1
      %s426 = smul.addr %s425, 2
      %s427 = smul.addr %s426, 4
      %s428 = scalar_lea.vmem %s6, %s427
      // Predicated region
      $region45: #{forward.66} parent=43 // pred_check
        %p429 = pneg %p171
      $region46: #{forward.66} parent=43 // pred_check_branch
        %431 = sbr.rel (%p429) target = $region48
      $region47: #{forward.66} parent=43 // pred_region
        _
      $region48: #{forward.66} parent=43 // pred_fallthru
        _
    $region44: #{forward.66} parent=5 // pred_fallthru
      _
    %p432 = scmp.le.s32.totalorder 2, %s12
    // Predicated region
    $region49: #{forward.66} parent=5 // pred_check
      %p433 = pneg %p432
    $region50: #{forward.66} parent=5 // pred_check_branch
      %435 = sbr.rel (%p433) target = $region52
    $region51: #{forward.66} parent=5 // pred_region
      %s436 = ssub.s32 %s12, 2
      // Predicated region
      $region53: #{forward.66} parent=51 // pred_check
        %p437 = pneg %p177
      $region54: #{forward.66} parent=51 // pred_check_branch
        %439 = sbr.rel (%p437) target = $region56
      $region55: #{forward.66} parent=51 // pred_region
        %p440 = scmp.lt.s32.totalorder %s18, 1
        %s441 = scalar_select %p440, %s18, 1
        %s442 = smul.addr %s441, 2
        %s443 = smul.addr %s442, 4
        %s444 = scalar_lea.vmem %s6, %s443
      $region56: #{forward.66} parent=51 // pred_fallthru
        _
    $region52: #{forward.66} parent=5 // pred_fallthru
      _
  $region6: #{forward.66} parent=0 // loop_footer
    %s16 = sadd.s32 1, %s12
  $region7: #{forward.66} parent=0 // loop_footer_branch
    %11 = sbr.rel target = $region3
  $region8: #{forward.66} parent=0 // loop_exit
    _

// kernel: forward.53
$region0: #{forward.53}
  #allocation0 [shape = 'u32[]', space=smem, size = 0x4, offset = 0x4, fixed_abs, tag = 'smem constant byte address 0x4 - core index']
  #allocation1 [shape = 'u32[72,128]{1,0:T(1,128)}', space=vmem, size = 0x9000, scoped, tag = 'internal scratch']
  %s0 = inlined_call_operand.vmem [shape: bf16[2,6,6,64], index: 0, kind: input, shape index: {}]
  %s1 = inlined_call_operand.vmem [shape: f32[3,3,64], index: 1, kind: input, shape index: {}]
  %s2 = inlined_call_operand.vmem [shape: f32[1,64], index: 2, kind: input, shape index: {}]
  %s3 = inlined_call_operand.vmem [shape: f32[1,64], index: 3, kind: input, shape index: {}]
  %s4 = inlined_call_operand.vmem [shape: f32[1,64], index: 4, kind: input, shape index: {}]
  %s5 = inlined_call_operand.vmem [shape: bf16[2,4,4,64], index: 5, kind: output, shape index: {}]
  %s6 = sld [smem:[#allocation0]]
  $region53: #{forward.53} parent=0
    _
  %s8 = ssub.s32 1, %s6
  %s9 = scalar_select 0, %s8, %s6
  loop: start=0, step=1, limit=4
  $region2: #{forward.53} parent=0 // loop_pre_header
    _
  $region3: #{forward.53} parent=0 // loop_header
    %s11 = sphi 0, %s15
    %p12 = scmp.ge.s32.totalorder %s11, 4
    %s21 = sphi 0, %s23
    %s24 = sphi 0, %s21
    %s25 = sphi 0, %s24
    %s41 = sphi 0, %s25
    %s45 = sphi 0, %s45
    %s47 = sphi 0, %s45
    %s48 = sphi 0, %s47
    %s62 = sphi 0, %s48
    %s66 = sphi 0, %s66
    %s68 = sphi 0, %s66
    %s69 = sphi 0, %s68
    %s83 = sphi 0, %s69
    %s87 = sphi 0, %s87
    %s89 = sphi 0, %s87
    %s90 = sphi 0, %s89
    %s104 = sphi 0, %s90
    %s108 = sphi 0, %s108
    %s110 = sphi 0, %s108
    %s111 = sphi 0, %s110
    %s125 = sphi 0, %s111
    %s131 = sphi 0, %s133
    %s134 = sphi 0, %s131
    %s135 = sphi 0, %s134
    %s151 = sphi 0, %s135
  $region4: #{forward.53} parent=0 // loop_header_branch
    %14 = sbr.rel (%p12) target = $region8
  $region5: #{forward.53} parent=0 // loop_body
    %s16 = ssub.s32 %s11, 1
    %s17 = ssub.s32 %s11, 2
    %s18 = sadd.s32 %s11, 1
    %s19 = ssub.s32 %s11, %s18
    %p20 = scmp.eq.s32.totalorder %s19, 0
    %s22 = sadd.s32 %s21, 1
    %s23 = scalar_select %p20, %s21, %s22
    %p26 = pneg %p20
    %p27 = scmp.eq.s32.totalorder %s11, 1
    %p28 = por %p26, %p27
    %p29 = scmp.ne.s32.totalorder %s21, %s24
    %p30 = scmp.eq.s32.totalorder %s11, 0
    %p31 = por %p29, %p30
    %p32 = scmp.ne.s32.totalorder %s21, %s24
    %p33 = scmp.eq.s32.totalorder %s16, 1
    %p34 = por %p32, %p33
    %p35 = scmp.ne.s32.totalorder %s24, %s25
    %p36 = scmp.eq.s32.totalorder %s16, 0
    %p37 = por %p35, %p36
    %p38 = scmp.ne.s32.totalorder %s24, %s25
    %p39 = scmp.eq.s32.totalorder %s17, 1
    %p40 = por %p38, %p39
    %p42 = scmp.ne.s32.totalorder %s25, %s41
    %p43 = scmp.eq.s32.totalorder %s17, 0
    %p44 = por %p42, %p43
    %s46 = sadd.s32 %s45, 1
    %p49 = scmp.eq.s32.totalorder %s11, 1
    %p50 = scmp.ne.s32.totalorder %s45, %s47
    %p51 = scmp.eq.s32.totalorder %s11, 0
    %p52 = por %p50, %p51
    %p53 = scmp.ne.s32.totalorder %s45, %s47
    %p54 = scmp.eq.s32.totalorder %s16, 1
    %p55 = por %p53, %p54
    %p56 = scmp.ne.s32.totalorder %s47, %s48
    %p57 = scmp.eq.s32.totalorder %s16, 0
    %p58 = por %p56, %p57
    %p59 = scmp.ne.s32.totalorder %s47, %s48
    %p60 = scmp.eq.s32.totalorder %s17, 1
    %p61 = por %p59, %p60
    %p63 = scmp.ne.s32.totalorder %s48, %s62
    %p64 = scmp.eq.s32.totalorder %s17, 0
    %p65 = por %p63, %p64
    %s67 = sadd.s32 %s66, 1
    %p70 = scmp.eq.s32.totalorder %s11, 1
    %p71 = scmp.ne.s32.totalorder %s66, %s68
    %p72 = scmp.eq.s32.totalorder %s11, 0
    %p73 = por %p71, %p72
    %p74 = scmp.ne.s32.totalorder %s66, %s68
    %p75 = scmp.eq.s32.totalorder %s16, 1
    %p76 = por %p74, %p75
    %p77 = scmp.ne.s32.totalorder %s68, %s69
    %p78 = scmp.eq.s32.totalorder %s16, 0
    %p79 = por %p77, %p78
    %p80 = scmp.ne.s32.totalorder %s68, %s69
    %p81 = scmp.eq.s32.totalorder %s17, 1
    %p82 = por %p80, %p81
    %p84 = scmp.ne.s32.totalorder %s69, %s83
    %p85 = scmp.eq.s32.totalorder %s17, 0
    %p86 = por %p84, %p85
    %s88 = sadd.s32 %s87, 1
    %p91 = scmp.eq.s32.totalorder %s11, 1
    %p92 = scmp.ne.s32.totalorder %s87, %s89
    %p93 = scmp.eq.s32.totalorder %s11, 0
    %p94 = por %p92, %p93
    %p95 = scmp.ne.s32.totalorder %s87, %s89
    %p96 = scmp.eq.s32.totalorder %s16, 1
    %p97 = por %p95, %p96
    %p98 = scmp.ne.s32.totalorder %s89, %s90
    %p99 = scmp.eq.s32.totalorder %s16, 0
    %p100 = por %p98, %p99
    %p101 = scmp.ne.s32.totalorder %s89, %s90
    %p102 = scmp.eq.s32.totalorder %s17, 1
    %p103 = por %p101, %p102
    %p105 = scmp.ne.s32.totalorder %s90, %s104
    %p106 = scmp.eq.s32.totalorder %s17, 0
    %p107 = por %p105, %p106
    %s109 = sadd.s32 %s108, 1
    %p112 = scmp.eq.s32.totalorder %s11, 1
    %p113 = scmp.ne.s32.totalorder %s108, %s110
    %p114 = scmp.eq.s32.totalorder %s11, 0
    %p115 = por %p113, %p114
    %p116 = scmp.ne.s32.totalorder %s108, %s110
    %p117 = scmp.eq.s32.totalorder %s16, 1
    %p118 = por %p116, %p117
    %p119 = scmp.ne.s32.totalorder %s110, %s111
    %p120 = scmp.eq.s32.totalorder %s16, 0
    %p121 = por %p119, %p120
    %p122 = scmp.ne.s32.totalorder %s110, %s111
    %p123 = scmp.eq.s32.totalorder %s17, 1
    %p124 = por %p122, %p123
    %p126 = scmp.ne.s32.totalorder %s111, %s125
    %p127 = scmp.eq.s32.totalorder %s17, 0
    %p128 = por %p126, %p127
    %s129 = ssub.s32 %s11, %s18
    %p130 = scmp.eq.s32.totalorder %s129, 0
    %s132 = sadd.s32 %s131, 1
    %s133 = scalar_select %p130, %s131, %s132
    %p136 = pneg %p130
    %p137 = scmp.eq.s32.totalorder %s11, 1
    %p138 = por %p136, %p137
    %p139 = scmp.ne.s32.totalorder %s131, %s134
    %p140 = scmp.eq.s32.totalorder %s11, 0
    %p141 = por %p139, %p140
    %p142 = scmp.ne.s32.totalorder %s131, %s134
    %p143 = scmp.eq.s32.totalorder %s16, 1
    %p144 = por %p142, %p143
    %p145 = scmp.ne.s32.totalorder %s134, %s135
    %p146 = scmp.eq.s32.totalorder %s16, 0
    %p147 = por %p145, %p146
    %p148 = scmp.ne.s32.totalorder %s134, %s135
    %p149 = scmp.eq.s32.totalorder %s17, 1
    %p150 = por %p148, %p149
    %p152 = scmp.ne.s32.totalorder %s135, %s151
    %p153 = scmp.eq.s32.totalorder %s17, 0
    %p154 = por %p152, %p153
    %p155 = scmp.le.s32.totalorder 1, %s11
    %p156 = scmp.lt.s32.totalorder %s11, 3
    %p157 = pnand %p155, %p156
    %p158 = pneg %p157
    // Predicated region
    $region9: #{forward.53} parent=5 // pred_check
      _
    $region10: #{forward.53} parent=5 // pred_check_branch
      %160 = sbr.rel (%p157) target = $region12
    $region11: #{forward.53} parent=5 // pred_region
      %s161 = ssub.s32 %s11, 1
      // Predicated region
      $region13: #{forward.53} parent=11 // pred_check
        %p162 = pneg %p58
      $region14: #{forward.53} parent=11 // pred_check_branch
        %164 = sbr.rel (%p162) target = $region16
      $region15: #{forward.53} parent=11 // pred_region
        _
      $region16: #{forward.53} parent=11 // pred_fallthru
        _
      // Predicated region
      $region17: #{forward.53} parent=11 // pred_check
        %p165 = pneg %p79
      $region18: #{forward.53} parent=11 // pred_check_branch
        %167 = sbr.rel (%p165) target = $region20
      $region19: #{forward.53} parent=11 // pred_region
        _
      $region20: #{forward.53} parent=11 // pred_fallthru
        _
      // Predicated region
      $region21: #{forward.53} parent=11 // pred_check
        %p168 = pneg %p100
      $region22: #{forward.53} parent=11 // pred_check_branch
        %170 = sbr.rel (%p168) target = $region24
      $region23: #{forward.53} parent=11 // pred_region
        _
      $region24: #{forward.53} parent=11 // pred_fallthru
        _
      // Predicated region
      $region25: #{forward.53} parent=11 // pred_check
        %p171 = pneg %p121
      $region26: #{forward.53} parent=11 // pred_check_branch
        %173 = sbr.rel (%p171) target = $region28
      $region27: #{forward.53} parent=11 // pred_region
        _
      $region28: #{forward.53} parent=11 // pred_fallthru
        _
    $region12: #{forward.53} parent=5 // pred_fallthru
      _
    %p174 = scmp.lt.s32.totalorder %s11, 2
    // Predicated region
    $region29: #{forward.53} parent=5 // pred_check
      %p175 = pneg %p174
    $region30: #{forward.53} parent=5 // pred_check_branch
      %177 = sbr.rel (%p175) target = $region32
    $region31: #{forward.53} parent=5 // pred_region
      // Predicated region
      $region33: #{forward.53} parent=31 // pred_check
        %p178 = pneg %p31
      $region34: #{forward.53} parent=31 // pred_check_branch
        %180 = sbr.rel (%p178) target = $region36
      $region35: #{forward.53} parent=31 // pred_region
        %p181 = scmp.lt.s32.totalorder %s11, 1
        %s182 = scalar_select %p181, %s11, 1
        %s183 = smul.addr %s182, 6
        %s184 = smul.addr %s183, 4
        %s185 = scalar_lea.vmem %s0, %s184
      $region36: #{forward.53} parent=31 // pred_fallthru
        _
    $region32: #{forward.53} parent=5 // pred_fallthru
      _
    %p186 = scmp.le.s32.totalorder 1, %s11
    %p187 = scmp.lt.s32.totalorder %s11, 3
    %p188 = pnand %p186, %p187
    %p189 = pneg %p188
    // Predicated region
    $region37: #{forward.53} parent=5 // pred_check
      _
    $region38: #{forward.53} parent=5 // pred_check_branch
      %191 = sbr.rel (%p188) target = $region40
    $region39: #{forward.53} parent=5 // pred_region
      %s192 = ssub.s32 %s11, 1
      %p193 = scmp.lt.s32.totalorder %s16, 1
      %s194 = scalar_select %p193, %s16, 1
      %s195 = smul.addr %s194, 6
      %s196 = smul.addr %s195, 4
      %s197 = scalar_lea.vmem %s0, %s196
      %p198 = pneg %p37
      %p199 = pneg %p34
      %p200 = pneg %p58
      %p201 = pneg %p55
      %p202 = pneg %p79
      %p203 = pneg %p76
      %p204 = pneg %p100
      %p205 = pneg %p97
      %p206 = pneg %p121
      %p207 = pneg %p118
      %p208 = pneg %p147
      %p209 = pneg %p144
      %p210 = scmp.lt.s32.totalorder %s16, 1
      %s211 = scalar_select %p210, %s16, 1
      %s212 = smul.addr %s211, 4
      %s213 = smul.addr %s212, 2
      %s214 = scalar_lea.vmem %s5, %s213
      %p215 = scmp.lt.s32.totalorder %s16, 1
      %s216 = scalar_select %p215, %s16, 1
      %s217 = smul.addr %s216, 6
      %s218 = smul.addr %s217, 4
      %s219 = scalar_lea.vmem %s0, %s218
      %p220 = scmp.lt.s32.totalorder %s16, 1
      %s221 = scalar_select %p220, %s16, 1
      %s222 = smul.addr %s221, 4
      %s223 = smul.addr %s222, 2
      %s224 = scalar_lea.vmem %s5, %s223
      %v225 = vld [vmem:[%s219] sm:$0x7]
      %v226 = vld [vmem:[%s219 + $0x4] sm:$0x7]
      %v227 = vld [vmem:[%s219 + $0x8] sm:$0x7]
      %v228 = vld [vmem:[%s219 + $0xc] sm:$0x7]
      %v229 = vld [vmem:[%s219 + $0x10] sm:$0x7]
      %v230 = vld [vmem:[%s219 + $0x14] sm:$0x7]
      %v231 = vunpack.c.l.bf16 %v225
      %v232 = vunpack.c.l.bf16 %v226
      %v233 = vunpack.c.l.bf16 %v227
      %v234 = vunpack.c.l.bf16 %v228
      %v235 = vunpack.c.l.bf16 %v229
      %v236 = vunpack.c.l.bf16 %v230
      %v237 = vld [vmem:[%s1] sm:$0x7]
      %v238 = vld [vmem:[%s1 + $0x4] sm:$0x7]
      %v239 = vld [vmem:[%s1 + $0x8] sm:$0x7]
      %v240 = vperm.slane %v237, 0
      %v241 = vmul.f32 %v231, %v240
      %v242 = vmul.f32 %v232, %v240
      %v243 = vmul.f32 %v233, %v240
      %v244 = vmul.f32 %v234, %v240
      %v245 = vadd.f32 %v241, 0.0
      %v246 = vadd.f32 %v242, 0.0
      %v247 = vadd.f32 %v243, 0.0
      %v248 = vadd.f32 %v244, 0.0
      %v249 = vperm.slane %v237, 1
      %v250 = vmul.f32 %v231, %v249
      %v251 = vmul.f32 %v232, %v249
      %v252 = vmul.f32 %v233, %v249
      %v253 = vmul.f32 %v234, %v249
      %v258 = vrot.slane %v250, 1
      %v259 = vrot.slane %v251, 1
      %v260 = vrot.slane %v252, 1
      %v261 = vrot.slane %v253, 1
      %v266 = vadd.f32 %v245, %v258
      %v267 = vadd.f32 %v246, %v259
      %v268 = vadd.f32 %v247, %v260
      %v269 = vadd.f32 %v248, %v261
      %v270 = vperm.slane %v237, 2
      %v271 = vmul.f32 %v231, %v270
      %v272 = vmul.f32 %v232, %v270
      %v273 = vmul.f32 %v233, %v270
      %v274 = vmul.f32 %v234, %v270
      %v279 = vrot.slane %v271, 2
      %v280 = vrot.slane %v272, 2
      %v281 = vrot.slane %v273, 2
      %v282 = vrot.slane %v274, 2
      %v287 = vadd.f32 %v266, %v279
      %v288 = vadd.f32 %v267, %v280
      %v289 = vadd.f32 %v268, %v281
      %v290 = vadd.f32 %v269, %v282
      %v291 = vperm.slane %v238, 0
      %v292 = vmul.f32 %v232, %v291
      %v293 = vmul.f32 %v233, %v291
      %v294 = vmul.f32 %v234, %v291
      %v295 = vmul.f32 %v235, %v291
      %v296 = vadd.f32 %v287, %v292
      %v297 = vadd.f32 %v288, %v293
      %v298 = vadd.f32 %v289, %v294
      %v299 = vadd.f32 %v290, %v295
      %v300 = vperm.slane %v238, 1
      %v301 = vmul.f32 %v232, %v300
      %v302 = vmul.f32 %v233, %v300
      %v303 = vmul.f32 %v234, %v300
      %v304 = vmul.f32 %v235, %v300
      %v309 = vrot.slane %v301, 1
      %v310 = vrot.slane %v302, 1
      %v311 = vrot.slane %v303, 1
      %v312 = vrot.slane %v304, 1
      %v317 = vadd.f32 %v296, %v309
      %v318 = vadd.f32 %v297, %v310
      %v319 = vadd.f32 %v298, %v311
      %v320 = vadd.f32 %v299, %v312
      %v321 = vperm.slane %v238, 2
      %v322 = vmul.f32 %v232, %v321
      %v323 = vmul.f32 %v233, %v321
      %v324 = vmul.f32 %v234, %v321
      %v325 = vmul.f32 %v235, %v321
      %v330 = vrot.slane %v322, 2
      %v331 = vrot.slane %v323, 2
      %v332 = vrot.slane %v324, 2
      %v333 = vrot.slane %v325, 2
      %v338 = vadd.f32 %v317, %v330
      %v339 = vadd.f32 %v318, %v331
      %v340 = vadd.f32 %v319, %v332
      %v341 = vadd.f32 %v320, %v333
      %v342 = vperm.slane %v239, 0
      %v343 = vmul.f32 %v233, %v342
      %v344 = vmul.f32 %v234, %v342
      %v345 = vmul.f32 %v235, %v342
      %v346 = vmul.f32 %v236, %v342
      %v347 = vadd.f32 %v338, %v343
      %v348 = vadd.f32 %v339, %v344
      %v349 = vadd.f32 %v340, %v345
      %v350 = vadd.f32 %v341, %v346
      %v351 = vperm.slane %v239, 1
      %v352 = vmul.f32 %v233, %v351
      %v353 = vmul.f32 %v234, %v351
      %v354 = vmul.f32 %v235, %v351
      %v355 = vmul.f32 %v236, %v351
      %v360 = vrot.slane %v352, 1
      %v361 = vrot.slane %v353, 1
      %v362 = vrot.slane %v354, 1
      %v363 = vrot.slane %v355, 1
      %v368 = vadd.f32 %v347, %v360
      %v369 = vadd.f32 %v348, %v361
      %v370 = vadd.f32 %v349, %v362
      %v371 = vadd.f32 %v350, %v363
      %v372 = vperm.slane %v239, 2
      %v373 = vmul.f32 %v233, %v372
      %v374 = vmul.f32 %v234, %v372
      %v375 = vmul.f32 %v235, %v372
      %v376 = vmul.f32 %v236, %v372
      %v381 = vrot.slane %v373, 2
      %v382 = vrot.slane %v374, 2
      %v383 = vrot.slane %v375, 2
      %v384 = vrot.slane %v376, 2
      %v389 = vadd.f32 %v368, %v381
      %v390 = vadd.f32 %v369, %v382
      %v391 = vadd.f32 %v370, %v383
      %v392 = vadd.f32 %v371, %v384
      %v393 = vld [vmem:[%s2] sm:$0x1]
      %v395 = vperm.slane %v393, 0
      %v397 = vadd.f32 %v389, %v395
      %v398 = vadd.f32 %v390, %v395
      %v399 = vadd.f32 %v391, %v395
      %v400 = vadd.f32 %v392, %v395
      %vm401 = vcmask 519168
      %v402 = vsel %vm401, %v397, 0.0
      %v403 = vsel %vm401, %v398, 0.0
      %v404 = vadd.f32 %v402, %v403
      %v405 = vsel %vm401, %v399, 0.0
      %v406 = vadd.f32 %v404, %v405
      %v407 = vsel %vm401, %v400, 0.0
      %v408 = vadd.f32 %v406, %v407
      %v409 = vrcp.pop 4.0
      %v410 = vmul.f32 4.0, %v409
      %v411 = vsub.f32 1.0, %v410
      %v412 = vmul.f32 %v409, %v411
      %v413 = vadd.f32 %v409, %v412
      %vm414 = vweird.f32 %v409
      %v415 = vsel %vm414, %v409, %v413
      %v416 = vmul.f32 %v408, %v415
      %v417 = vsel %vm401, %v416, 0.0
      %v418 = vrot.slane %v417, 4
      %v419 = vadd.f32 %v417, %v418
      %v420 = vrot.slane %v419, 2
      %v421 = vadd.f32 %v419, %v420
      %v422 = vrot.slane %v421, 1
      %v423 = vadd.f32 %v421, %v422
      %v424 = vmul.f32 %v423, %v415
      %v425 = vsub.f32 %v397, %v424
      %v426 = vsub.f32 %v398, %v424
      %v427 = vsub.f32 %v399, %v424
      %v428 = vsub.f32 %v400, %v424
      %v429 = vmul.f32 %v425, %v425
      %v430 = vmul.f32 %v426, %v426
      %v431 = vmul.f32 %v427, %v427
      %v432 = vmul.f32 %v428, %v428
      %v433 = vsel %vm401, %v429, 0.0
      %v434 = vsel %vm401, %v430, 0.0
      %v435 = vadd.f32 %v433, %v434
      %v436 = vsel %vm401, %v431, 0.0
      %v437 = vadd.f32 %v435, %v436
      %v438 = vsel %vm401, %v432, 0.0
      %v439 = vadd.f32 %v437, %v438
      %v440 = vmul.f32 %v439, %v415
      %v441 = vsel %vm401, %v440, 0.0
      %v442 = vrot.slane %v441, 4
      %v443 = vadd.f32 %v441, %v442
      %v444 = vrot.slane %v443, 2
      %v445 = vadd.f32 %v443, %v444
      %v446 = vrot.slane %v445, 1
      %v447 = vadd.f32 %v445, %v446
      %v448 = vmul.f32 %v447, %v415
      %v449 = vadd.f32 %v448, 1e-05
      %v450 = vrsqrt.pop %v449
      %v451 = vmul.f32 %v450, %v449
      %v452 = vmul.f32 %v451, %v450
      %v453 = vmul.f32 0.5, %v452
      %v454 = vsub.f32 1.5, %v453
      %v455 = vmul.f32 %v450, %v454
      %vm456 = vweird.f32 %v449
      %vm457 = vweird.f32 %v450
      %vm458 = vmor %vm456, %vm457
      %v459 = vsel %vm458, %v450, %v455
      %v460 = vmul.f32 %v425, %v459
      %v461 = vmul.f32 %v426, %v459
      %v462 = vmul.f32 %v427, %v459
      %v463 = vmul.f32 %v428, %v459
      %v464 = vld [vmem:[%s3] sm:$0x1]
      %v466 = vperm.slane %v464, 0
      %v468 = vmul.f32 %v460, %v466
      %v469 = vmul.f32 %v461, %v466
      %v470 = vmul.f32 %v462, %v466
      %v471 = vmul.f32 %v463, %v466
      %v472 = vld [vmem:[%s4] sm:$0x1]
      %v474 = vperm.slane %v472, 0
      %v476 = vadd.f32 %v468, %v474
      %v477 = vadd.f32 %v469, %v474
      %v478 = vadd.f32 %v470, %v474
      %v479 = vadd.f32 %v471, %v474
      %v480 = vpack.c.bf16 %v476, %v476
      %v481 = vpack.c.bf16 %v477, %v477
      %v482 = vpack.c.bf16 %v478, %v478
      %v483 = vpack.c.bf16 %v479, %v479
      %vm484 = vcmask 517120
      %485 = vst.msk [vmem:[%s224] sm:$0x3] %vm484, %v480
      %486 = vst.msk [vmem:[%s224 + $0x2] sm:$0x3] %vm484, %v481
      %487 = vst.msk [vmem:[%s224 + $0x4] sm:$0x3] %vm484, %v482
      %488 = vst.msk [vmem:[%s224 + $0x6] sm:$0x3] %vm484, %v483
      %p489 = scmp.lt.s32.totalorder %s16, 1
      %s490 = scalar_select %p489, %s16, 1
      %s491 = smul.addr %s490, 4
      %s492 = smul.addr %s491, 2
      %s493 = scalar_lea.vmem %s5, %s492
      // Predicated region
      $region41: #{forward.53} parent=39 // pred_check
        %p494 = pneg %p144
      $region42: #{forward.53} parent=39 // pred_check_branch
        %496 = sbr.rel (%p494) target = $region44
      $region43: #{forward.53} parent=39 // pred_region
        _
      $region44: #{forward.53} parent=39 // pred_fallthru
        _
    $region40: #{forward.53} parent=5 // pred_fallthru
      _
    %p497 = scmp.le.s32.totalorder 2, %s11
    // Predicated region
    $region45: #{forward.53} parent=5 // pred_check
      %p498 = pneg %p497
    $region46: #{forward.53} parent=5 // pred_check_branch
      %500 = sbr.rel (%p498) target = $region48
    $region47: #{forward.53} parent=5 // pred_region
      %s501 = ssub.s32 %s11, 2
      // Predicated region
      $region49: #{forward.53} parent=47 // pred_check
        %p502 = pneg %p150
      $region50: #{forward.53} parent=47 // pred_check_branch
        %504 = sbr.rel (%p502) target = $region52
      $region51: #{forward.53} parent=47 // pred_region
        %p505 = scmp.lt.s32.totalorder %s17, 1
        %s506 = scalar_select %p505, %s17, 1
        %s507 = smul.addr %s506, 4
        %s508 = smul.addr %s507, 2
        %s509 = scalar_lea.vmem %s5, %s508
      $region52: #{forward.53} parent=47 // pred_fallthru
        _
    $region48: #{forward.53} parent=5 // pred_fallthru
      _
  $region6: #{forward.53} parent=0 // loop_footer
    %s15 = sadd.s32 1, %s11
  $region7: #{forward.53} parent=0 // loop_footer_branch
    %10 = sbr.rel target = $region3
  $region8: #{forward.53} parent=0 // loop_exit
    _

// kernel: tile.13
$region0: #{tile.13}
  #allocation0 [shape = 's32[1]{0}', space=sflag, size = 0x4, scoped, tag = 'scoped memory for tile.13']
  %s0 = inlined_call_operand.vmem [shape: f32[32], index: 0, kind: input, shape index: {}]
  %s1 = inlined_call_operand.vmem [shape: f32[4,32], index: 1, kind: output, shape index: {}]
  // Predicated region
  $region2: #{tile.13} parent=0 // pred_check
    _
  $region3: #{tile.13} parent=0 // pred_check_branch
    %3 = sbr.rel (0) target = $region5
  $region4: #{tile.13} parent=0 // pred_region
    _
  $region5: #{tile.13} parent=0 // pred_fallthru
    _
  %v4 = vld [vmem:[%s0] ss:$0 sm:$0xff]
  %5 = vst [vmem:[%s1] sm:$0xf] %v4

// kernel: tile.14
$region0: #{tile.14}
  %s0 = inlined_call_operand.vmem [shape: f32[4,32], index: 0, kind: input, shape index: {}]
  %s1 = inlined_call_operand.vmem [shape: f32[1,128], index: 1, kind: output, shape index: {}]
  $region1: #{tile.14} parent=0
    #allocation0 [shape = 'u8[4096]{0}', space=vmem, size = 0x1000, scoped, tag = 'scoped mem for output reshape']
    #allocation1 [shape = 'u8[4096]{0}', space=vmem, size = 0x1000, scoped, tag = 'scoped mem for input reshape']
    %s3 = ssub.s32 16, 1
    %v4 = vld [vmem:[%s0] sm:%s3]
    %5 = vst [vmem:[#allocation1] sm:%s3] %v4
    %v6 = vld [vmem:[#allocation1] sm:$0x1]
    %vm7 = vcmask 261120
    %8 = vst.msk [vmem:[#allocation0] sm:$0x1] %vm7, %v6
    %s9 = scalar_lea.vmem [#allocation1], 3
    %v10 = vld [vmem:[%s9] sm:$0x1]
    %11 = vrot.lane.b32.xlu0 %v10, 96
    %v12 = vpop.permute.xlu0 %11
    %vm13 = vcmask 1048320
    %14 = vst.msk [vmem:[#allocation0] sm:$0x1] %vm13, %v12
    %s15 = scalar_lea.vmem [#allocation1], 2
    %v16 = vld [vmem:[%s15] sm:$0x1]
    %17 = vrot.lane.b32.xlu0 %v16, 64
    %v18 = vpop.permute.xlu0 %17
    %vm19 = vcmask 785920
    %20 = vst.msk [vmem:[#allocation0] sm:$0x1] %vm19, %v18
    %s21 = scalar_lea.vmem [#allocation1], 1
    %v22 = vld [vmem:[%s21] sm:$0x1]
    %23 = vrot.lane.b32.xlu0 %v22, 32
    %v24 = vpop.permute.xlu0 %23
    %vm25 = vcmask 523520
    %26 = vst.msk [vmem:[#allocation0] sm:$0x1] %vm25, %v24
    %s28 = ssub.s32 2, 1
    %v29 = vld [vmem:[#allocation0] sm:%s28]
    %s31 = ssub.s32 2, 1
    %32 = vst [vmem:[%s1] sm:%s31] %v29

// kernel: tile.18
$region0: #{tile.18}
  #allocation0 [shape = 's32[1]{0}', space=sflag, size = 0x4, scoped, tag = 'scoped memory for tile.18']
  %s0 = inlined_call_operand.vmem [shape: f32[16], index: 0, kind: input, shape index: {}]
  %s1 = inlined_call_operand.vmem [shape: f32[4,16], index: 1, kind: output, shape index: {}]
  // Predicated region
  $region2: #{tile.18} parent=0 // pred_check
    _
  $region3: #{tile.18} parent=0 // pred_check_branch
    %3 = sbr.rel (0) target = $region5
  $region4: #{tile.18} parent=0 // pred_region
    _
  $region5: #{tile.18} parent=0 // pred_fallthru
    _
  %v4 = vld [vmem:[%s0] ss:$0 sm:$0xff]
  %5 = vst [vmem:[%s1] sm:$0xf] %v4

// kernel: tile.19
$region0: #{tile.19}
  %s0 = inlined_call_operand.vmem [shape: f32[4,16], index: 0, kind: input, shape index: {}]
  %s1 = inlined_call_operand.vmem [shape: f32[1,64], index: 1, kind: output, shape index: {}]
  $region1: #{tile.19} parent=0
    #allocation0 [shape = 'u8[4096]{0}', space=vmem, size = 0x1000, scoped, tag = 'scoped mem for output reshape']
    #allocation1 [shape = 'u8[4096]{0}', space=vmem, size = 0x1000, scoped, tag = 'scoped mem for input reshape']
    %s3 = ssub.s32 16, 1
    %v4 = vld [vmem:[%s0] sm:%s3]
    %5 = vst [vmem:[#allocation1] sm:%s3] %v4
    %v6 = vld [vmem:[#allocation1] sm:$0x1]
    %vm7 = vcmask 130048
    %8 = vst.msk [vmem:[#allocation0] sm:$0x1] %vm7, %v6
    %s9 = scalar_lea.vmem [#allocation1], 3
    %v10 = vld [vmem:[%s9] sm:$0x1]
    %11 = vrot.lane.b32.xlu0 %v10, 48
    %v12 = vpop.permute.xlu0 %11
    %vm13 = vcmask 523648
    %14 = vst.msk [vmem:[#allocation0] sm:$0x1] %vm13, %v12
    %s15 = scalar_lea.vmem [#allocation1], 2
    %v16 = vld [vmem:[%s15] sm:$0x1]
    %17 = vrot.lane.b32.xlu0 %v16, 32
    %v18 = vpop.permute.xlu0 %17
    %vm19 = vcmask 392448
    %20 = vst.msk [vmem:[#allocation0] sm:$0x1] %vm19, %v18
    %s21 = scalar_lea.vmem [#allocation1], 1
    %v22 = vld [vmem:[%s21] sm:$0x1]
    %23 = vrot.lane.b32.xlu0 %v22, 16
    %v24 = vpop.permute.xlu0 %23
    %vm25 = vcmask 261248
    %26 = vst.msk [vmem:[#allocation0] sm:$0x1] %vm25, %v24
    %s28 = ssub.s32 2, 1
    %v29 = vld [vmem:[#allocation0] sm:%s28]
    %s31 = ssub.s32 2, 1
    %32 = vst [vmem:[%s1] sm:%s31] %v29

// kernel: forward.87
$region0: #{forward.87}
  #allocation0 [shape = 'u32[]', space=smem, size = 0x4, offset = 0x4, fixed_abs, tag = 'smem constant byte address 0x4 - core index']
  #allocation1 [shape = 'u32[72,128]{1,0:T(1,128)}', space=vmem, size = 0x9000, scoped, tag = 'internal scratch']
  #allocation2 [shape = 'f32[32,128]{1,0:T(8,128)}', space=vmem, size = 0x4000, scoped, tag = 'scratch operand']
  %s0 = inlined_call_operand.vmem [shape: bf16[32,512], index: 0, kind: input, shape index: {}]
  %s1 = inlined_call_operand.vmem [shape: bf16[512,128], index: 1, kind: input, shape index: {}]
  %s2 = inlined_call_operand.vmem [shape: f32[1,128], index: 2, kind: input, shape index: {}]
  %s3 = inlined_call_operand.vmem [shape: bf16[32,128], index: 3, kind: output, shape index: {}]
  %s4 = sld [smem:[#allocation0]]
  $region30: #{forward.87} parent=0
    _
  %s6 = ssub.s32 1, %s4
  %s7 = scalar_select 0, %s6, %s4
  // Predicated region
  $region2: #{forward.87} parent=0 // pred_check
    _
  $region3: #{forward.87} parent=0 // pred_check_branch
    %9 = sbr.rel (0) target = $region5
  $region4: #{forward.87} parent=0 // pred_region
    _
  $region5: #{forward.87} parent=0 // pred_fallthru
    _
  // Predicated region
  $region6: #{forward.87} parent=0 // pred_check
    _
  $region7: #{forward.87} parent=0 // pred_check_branch
    %11 = sbr.rel (0) target = $region9
  $region8: #{forward.87} parent=0 // pred_region
    _
  $region9: #{forward.87} parent=0 // pred_fallthru
    _
  // Predicated region
  $region10: #{forward.87} parent=0 // pred_check
    _
  $region11: #{forward.87} parent=0 // pred_check_branch
    %13 = sbr.rel (0) target = $region13
  $region12: #{forward.87} parent=0 // pred_region
    _
  $region13: #{forward.87} parent=0 // pred_fallthru
    _
  %p14 = scmp.eq.s32.totalorder 0, 0
  // Predicated region
  $region14: #{forward.87} parent=0 // pred_check
    %p15 = pneg %p14
  $region15: #{forward.87} parent=0 // pred_check_branch
    %17 = sbr.rel (%p15) target = $region17
  $region16: #{forward.87} parent=0 // pred_region
    %18 = vst [vmem:[#allocation2] sm:$0xff] 0.0
    %19 = vst [vmem:[#allocation2 + $0x8] sm:$0xff] 0.0
    %20 = vst [vmem:[#allocation2 + $0x10] sm:$0xff] 0.0
    %21 = vst [vmem:[#allocation2 + $0x18] sm:$0xff] 0.0
  $region17: #{forward.87} parent=0 // pred_fallthru
    _
  %v22 = vld [vmem:[#allocation2] sm:$0xff]
  %v23 = vld [vmem:[#allocation2 + $0x8] sm:$0xff]
  %v24 = vld [vmem:[#allocation2 + $0x10] sm:$0xff]
  %v25 = vld [vmem:[#allocation2 + $0x18] sm:$0xff]
  %v26 = vld [vmem:[%s0] sm:$0xff]
  %v27 = vld [vmem:[%s0 + $0x8] sm:$0xff]
  %v28 = vld [vmem:[%s0 + $0x10] sm:$0xff]
  %v29 = vld [vmem:[%s0 + $0x18] sm:$0xff]
  %v30 = vld [vmem:[%s0 + $0x20] sm:$0xff]
  %v31 = vld [vmem:[%s0 + $0x28] sm:$0xff]
  %v32 = vld [vmem:[%s0 + $0x30] sm:$0xff]
  %v33 = vld [vmem:[%s0 + $0x38] sm:$0xff]
  %v34 = vld [vmem:[%s1] sm:$0xf]
  %v35 = vld [vmem:[%s1 + $0x4] sm:$0xf]
  %v36 = vld [vmem:[%s1 + $0x8] sm:$0xf]
  %v37 = vld [vmem:[%s1 + $0xc] sm:$0xf]
  %v38 = vld [vmem:[%s1 + $0x10] sm:$0xf]
  %v39 = vld [vmem:[%s1 + $0x14] sm:$0xf]
  %v40 = vld [vmem:[%s1 + $0x18] sm:$0xf]
  %v41 = vld [vmem:[%s1 + $0x1c] sm:$0xf]
  %v42 = vld [vmem:[%s1 + $0x20] sm:$0xf]
  %v43 = vld [vmem:[%s1 + $0x24] sm:$0xf]
  %v44 = vld [vmem:[%s1 + $0x28] sm:$0xf]
  %v45 = vld [vmem:[%s1 + $0x2c] sm:$0xf]
  %v46 = vld [vmem:[%s1 + $0x30] sm:$0xf]
  %v47 = vld [vmem:[%s1 + $0x34] sm:$0xf]
  %v48 = vld [vmem:[%s1 + $0x38] sm:$0xf]
  %v49 = vld [vmem:[%s1 + $0x3c] sm:$0xf]
  %v50 = vld [vmem:[%s1 + $0x40] sm:$0xf]
  %v51 = vld [vmem:[%s1 + $0x44] sm:$0xf]
  %v52 = vld [vmem:[%s1 + $0x48] sm:$0xf]
  %v53 = vld [vmem:[%s1 + $0x4c] sm:$0xf]
  %v54 = vld [vmem:[%s1 + $0x50] sm:$0xf]
  %v55 = vld [vmem:[%s1 + $0x54] sm:$0xf]
  %v56 = vld [vmem:[%s1 + $0x58] sm:$0xf]
  %v57 = vld [vmem:[%s1 + $0x5c] sm:$0xf]
  %v58 = vld [vmem:[%s1 + $0x60] sm:$0xf]
  %v59 = vld [vmem:[%s1 + $0x64] sm:$0xf]
  %v60 = vld [vmem:[%s1 + $0x68] sm:$0xf]
  %v61 = vld [vmem:[%s1 + $0x6c] sm:$0xf]
  %v62 = vld [vmem:[%s1 + $0x70] sm:$0xf]
  %v63 = vld [vmem:[%s1 + $0x74] sm:$0xf]
  %v64 = vld [vmem:[%s1 + $0x78] sm:$0xf]
  %v65 = vld [vmem:[%s1 + $0x7c] sm:$0xf]
  %v66 = vld [vmem:[%s1 + $0x80] sm:$0xf]
  %v67 = vld [vmem:[%s1 + $0x84] sm:$0xf]
  %v68 = vld [vmem:[%s1 + $0x88] sm:$0xf]
  %v69 = vld [vmem:[%s1 + $0x8c] sm:$0xf]
  %v70 = vld [vmem:[%s1 + $0x90] sm:$0xf]
  %v71 = vld [vmem:[%s1 + $0x94] sm:$0xf]
  %v72 = vld [vmem:[%s1 + $0x98] sm:$0xf]
  %v73 = vld [vmem:[%s1 + $0x9c] sm:$0xf]
  %v74 = vld [vmem:[%s1 + $0xa0] sm:$0xf]
  %v75 = vld [vmem:[%s1 + $0xa4] sm:$0xf]
  %v76 = vld [vmem:[%s1 + $0xa8] sm:$0xf]
  %v77 = vld [vmem:[%s1 + $0xac] sm:$0xf]
  %v78 = vld [vmem:[%s1 + $0xb0] sm:$0xf]
  %v79 = vld [vmem:[%s1 + $0xb4] sm:$0xf]
  %v80 = vld [vmem:[%s1 + $0xb8] sm:$0xf]
  %v81 = vld [vmem:[%s1 + $0xbc] sm:$0xf]
  %v82 = vld [vmem:[%s1 + $0xc0] sm:$0xf]
  %v83 = vld [vmem:[%s1 + $0xc4] sm:$0xf]
  %v84 = vld [vmem:[%s1 + $0xc8] sm:$0xf]
  %v85 = vld [vmem:[%s1 + $0xcc] sm:$0xf]
  %v86 = vld [vmem:[%s1 + $0xd0] sm:$0xf]
  %v87 = vld [vmem:[%s1 + $0xd4] sm:$0xf]
  %v88 = vld [vmem:[%s1 + $0xd8] sm:$0xf]
  %v89 = vld [vmem:[%s1 + $0xdc] sm:$0xf]
  %v90 = vld [vmem:[%s1 + $0xe0] sm:$0xf]
  %v91 = vld [vmem:[%s1 + $0xe4] sm:$0xf]
  %v92 = vld [vmem:[%s1 + $0xe8] sm:$0xf]
  %v93 = vld [vmem:[%s1 + $0xec] sm:$0xf]
  %v94 = vld [vmem:[%s1 + $0xf0] sm:$0xf]
  %v95 = vld [vmem:[%s1 + $0xf4] sm:$0xf]
  %v96 = vld [vmem:[%s1 + $0xf8] sm:$0xf]
  %v97 = vld [vmem:[%s1 + $0xfc] sm:$0xf]
  %v106 = vunpack.c.l.b16 %v26
  %v107 = vunpack.c.h.b16 %v26
  %v108 = vunpack.c.l.b16 %v27
  %v109 = vunpack.c.h.b16 %v27
  %v110 = vunpack.c.l.b16 %v28
  %v111 = vunpack.c.h.b16 %v28
  %v112 = vunpack.c.l.b16 %v29
  %v113 = vunpack.c.h.b16 %v29
  %v114 = vunpack.c.l.b16 %v30
  %v115 = vunpack.c.h.b16 %v30
  %v116 = vunpack.c.l.b16 %v31
  %v117 = vunpack.c.h.b16 %v31
  %v118 = vunpack.c.l.b16 %v32
  %v119 = vunpack.c.h.b16 %v32
  %v120 = vunpack.c.l.b16 %v33
  %v121 = vunpack.c.h.b16 %v33
  %v122 = vpack.c.b16 %v110, %v106
  %v123 = vpack.c.b16 %v111, %v107
  %v124 = vpack.c.b16 %v112, %v108
  %v125 = vpack.c.b16 %v113, %v109
  %v126 = vpack.c.b16 %v118, %v114
  %v127 = vpack.c.b16 %v119, %v115
  %v128 = vpack.c.b16 %v120, %v116
  %v129 = vpack.c.b16 %v121, %v117
  %v202 = vunpack.c.l.b16 %v34
  %v203 = vunpack.c.l.b16 %v35
  %v204 = vunpack.c.l.b16 %v36
  %v205 = vunpack.c.l.b16 %v37
  %v206 = vunpack.c.l.b16 %v38
  %v207 = vunpack.c.l.b16 %v39
  %v208 = vunpack.c.l.b16 %v40
  %v209 = vunpack.c.l.b16 %v41
  %v210 = vunpack.c.l.b16 %v42
  %v211 = vunpack.c.l.b16 %v43
  %v212 = vunpack.c.l.b16 %v44
  %v213 = vunpack.c.l.b16 %v45
  %v214 = vunpack.c.l.b16 %v46
  %v215 = vunpack.c.l.b16 %v47
  %v216 = vunpack.c.l.b16 %v48
  %v217 = vunpack.c.l.b16 %v49
  %v218 = vunpack.c.l.b16 %v50
  %v219 = vunpack.c.l.b16 %v51
  %v220 = vunpack.c.l.b16 %v52
  %v221 = vunpack.c.l.b16 %v53
  %v222 = vunpack.c.l.b16 %v54
  %v223 = vunpack.c.l.b16 %v55
  %v224 = vunpack.c.l.b16 %v56
  %v225 = vunpack.c.l.b16 %v57
  %v226 = vunpack.c.l.b16 %v58
  %v227 = vunpack.c.l.b16 %v59
  %v228 = vunpack.c.l.b16 %v60
  %v229 = vunpack.c.l.b16 %v61
  %v230 = vunpack.c.l.b16 %v62
  %v231 = vunpack.c.l.b16 %v63
  %v232 = vunpack.c.l.b16 %v64
  %v233 = vunpack.c.l.b16 %v65
  %v234 = vunpack.c.l.b16 %v66
  %v235 = vunpack.c.l.b16 %v67
  %v236 = vunpack.c.l.b16 %v68
  %v237 = vunpack.c.l.b16 %v69
  %v238 = vunpack.c.l.b16 %v70
  %v239 = vunpack.c.l.b16 %v71
  %v240 = vunpack.c.l.b16 %v72
  %v241 = vunpack.c.l.b16 %v73
  %v242 = vunpack.c.l.b16 %v74
  %v243 = vunpack.c.l.b16 %v75
  %v244 = vunpack.c.l.b16 %v76
  %v245 = vunpack.c.l.b16 %v77
  %v246 = vunpack.c.l.b16 %v78
  %v247 = vunpack.c.l.b16 %v79
  %v248 = vunpack.c.l.b16 %v80
  %v249 = vunpack.c.l.b16 %v81
  %v250 = vunpack.c.l.b16 %v82
  %v251 = vunpack.c.l.b16 %v83
  %v252 = vunpack.c.l.b16 %v84
  %v253 = vunpack.c.l.b16 %v85
  %v254 = vunpack.c.l.b16 %v86
  %v255 = vunpack.c.l.b16 %v87
  %v256 = vunpack.c.l.b16 %v88
  %v257 = vunpack.c.l.b16 %v89
  %v258 = vunpack.c.l.b16 %v90
  %v259 = vunpack.c.l.b16 %v91
  %v260 = vunpack.c.l.b16 %v92
  %v261 = vunpack.c.l.b16 %v93
  %v262 = vunpack.c.l.b16 %v94
  %v263 = vunpack.c.l.b16 %v95
  %v264 = vunpack.c.l.b16 %v96
  %v265 = vunpack.c.l.b16 %v97
  %v266 = vpack.c.b16 %v203, %v202
  %v267 = vpack.c.b16 %v205, %v204
  %v268 = vpack.c.b16 %v207, %v206
  %v269 = vpack.c.b16 %v209, %v208
  %v270 = vpack.c.b16 %v211, %v210
  %v271 = vpack.c.b16 %v213, %v212
  %v272 = vpack.c.b16 %v215, %v214
  %v273 = vpack.c.b16 %v217, %v216
  %v274 = vpack.c.b16 %v219, %v218
  %v275 = vpack.c.b16 %v221, %v220
  %v276 = vpack.c.b16 %v223, %v222
  %v277 = vpack.c.b16 %v225, %v224
  %v278 = vpack.c.b16 %v227, %v226
  %v279 = vpack.c.b16 %v229, %v228
  %v280 = vpack.c.b16 %v231, %v230
  %v281 = vpack.c.b16 %v233, %v232
  %v282 = vpack.c.b16 %v235, %v234
  %v283 = vpack.c.b16 %v237, %v236
  %v284 = vpack.c.b16 %v239, %v238
  %v285 = vpack.c.b16 %v241, %v240
  %v286 = vpack.c.b16 %v243, %v242
  %v287 = vpack.c.b16 %v245, %v244
  %v288 = vpack.c.b16 %v247, %v246
  %v289 = vpack.c.b16 %v249, %v248
  %v290 = vpack.c.b16 %v251, %v250
  %v291 = vpack.c.b16 %v253, %v252
  %v292 = vpack.c.b16 %v255, %v254
  %v293 = vpack.c.b16 %v257, %v256
  %v294 = vpack.c.b16 %v259, %v258
  %v295 = vpack.c.b16 %v261, %v260
  %v296 = vpack.c.b16 %v263, %v262
  %v297 = vpack.c.b16 %v265, %v264
  %330 = vmatpush.bf16.msra.mxu0 %v273
  %331 = vmatpush.bf16.msra.mxu0 %v272
  %332 = vmatpush.bf16.msra.mxu0 %v271
  %333 = vmatpush.bf16.msra.mxu0 %v270
  %334 = vmatpush.bf16.msra.mxu0 %v269
  %335 = vmatpush.bf16.msra.mxu0 %v268
  %336 = vmatpush.bf16.msra.mxu0 %v267
  %337 = vmatpush.bf16.msra.mxu0 %v266
  %338 = vmatmul.bf16.gmra.mxu0 %v122
  %v339 = vpop.f32.mrf.mxu0
  %v340 = vadd.f32 0.0, %v339
  %v341 = vpop.f32.mrf.mxu0
  %v342 = vadd.f32 0.0, %v341
  %343 = vmatmul.bf16.gmra.mxu0 %v126
  %v344 = vpop.f32.mrf.mxu0
  %v345 = vadd.f32 0.0, %v344
  %v346 = vpop.f32.mrf.mxu0
  %v347 = vadd.f32 0.0, %v346
  %348 = vdwg.mxu0
  %349 = vmatpush.bf16.msra.mxu0 %v281
  %350 = vmatpush.bf16.msra.mxu0 %v280
  %351 = vmatpush.bf16.msra.mxu0 %v279
  %352 = vmatpush.bf16.msra.mxu0 %v278
  %353 = vmatpush.bf16.msra.mxu0 %v277
  %354 = vmatpush.bf16.msra.mxu0 %v276
  %355 = vmatpush.bf16.msra.mxu0 %v275
  %356 = vmatpush.bf16.msra.mxu0 %v274
  %357 = vmatmul.bf16.gmra.mxu0 %v123
  %v358 = vpop.f32.mrf.mxu0
  %v359 = vadd.f32 %v340, %v358
  %v360 = vpop.f32.mrf.mxu0
  %v361 = vadd.f32 %v342, %v360
  %362 = vmatmul.bf16.gmra.mxu0 %v127
  %v363 = vpop.f32.mrf.mxu0
  %v364 = vadd.f32 %v345, %v363
  %v365 = vpop.f32.mrf.mxu0
  %v366 = vadd.f32 %v347, %v365
  %367 = vdwg.mxu0
  %368 = vmatpush.bf16.msra.mxu0 %v289
  %369 = vmatpush.bf16.msra.mxu0 %v288
  %370 = vmatpush.bf16.msra.mxu0 %v287
  %371 = vmatpush.bf16.msra.mxu0 %v286
  %372 = vmatpush.bf16.msra.mxu0 %v285
  %373 = vmatpush.bf16.msra.mxu0 %v284
  %374 = vmatpush.bf16.msra.mxu0 %v283
  %375 = vmatpush.bf16.msra.mxu0 %v282
  %376 = vmatmul.bf16.gmra.mxu0 %v124
  %v377 = vpop.f32.mrf.mxu0
  %v378 = vadd.f32 %v359, %v377
  %v379 = vpop.f32.mrf.mxu0
  %v380 = vadd.f32 %v361, %v379
  %381 = vmatmul.bf16.gmra.mxu0 %v128
  %v382 = vpop.f32.mrf.mxu0
  %v383 = vadd.f32 %v364, %v382
  %v384 = vpop.f32.mrf.mxu0
  %v385 = vadd.f32 %v366, %v384
  %386 = vdwg.mxu0
  %387 = vmatpush.bf16.msra.mxu0 %v297
  %388 = vmatpush.bf16.msra.mxu0 %v296
  %389 = vmatpush.bf16.msra.mxu0 %v295
  %390 = vmatpush.bf16.msra.mxu0 %v294
  %391 = vmatpush.bf16.msra.mxu0 %v293
  %392 = vmatpush.bf16.msra.mxu0 %v292
  %393 = vmatpush.bf16.msra.mxu0 %v291
  %394 = vmatpush.bf16.msra.mxu0 %v290
  %395 = vmatmul.bf16.gmra.mxu0 %v125
  %v396 = vpop.f32.mrf.mxu0
  %v397 = vadd.f32 %v378, %v396
  %v398 = vpop.f32.mrf.mxu0
  %v399 = vadd.f32 %v380, %v398
  %400 = vmatmul.bf16.gmra.mxu0 %v129
  %v401 = vpop.f32.mrf.mxu0
  %v402 = vadd.f32 %v383, %v401
  %v403 = vpop.f32.mrf.mxu0
  %v404 = vadd.f32 %v385, %v403
  %405 = vdwg.mxu0
  %v406 = vadd.f32 %v22, %v397
  %v407 = vadd.f32 %v23, %v399
  %v408 = vadd.f32 %v24, %v402
  %v409 = vadd.f32 %v25, %v404
  %410 = vst [vmem:[#allocation2] sm:$0xff] %v406
  %411 = vst [vmem:[#allocation2 + $0x8] sm:$0xff] %v407
  %412 = vst [vmem:[#allocation2 + $0x10] sm:$0xff] %v408
  %413 = vst [vmem:[#allocation2 + $0x18] sm:$0xff] %v409
  // Predicated region
  $region18: #{forward.87} parent=0 // pred_check
    %p414 = pneg %p14
  $region19: #{forward.87} parent=0 // pred_check_branch
    %416 = sbr.rel (%p414) target = $region21
  $region20: #{forward.87} parent=0 // pred_region
    %v417 = vld [vmem:[#allocation2] sm:$0xff]
    %v418 = vld [vmem:[#allocation2 + $0x8] sm:$0xff]
    %v419 = vld [vmem:[#allocation2 + $0x10] sm:$0xff]
    %v420 = vld [vmem:[#allocation2 + $0x18] sm:$0xff]
    %v421 = vld [vmem:[%s2] sm:$0x1]
    %v423 = vperm.slane %v421, 0
    %v425 = vadd.f32 %v417, %v423
    %v426 = vadd.f32 %v418, %v423
    %v427 = vadd.f32 %v419, %v423
    %v428 = vadd.f32 %v420, %v423
    %v429 = vpack.c.bf16 %v425, %v425
    %v430 = vpack.c.bf16 %v426, %v426
    %v431 = vpack.c.bf16 %v427, %v427
    %v432 = vpack.c.bf16 %v428, %v428
    %433 = vst [vmem:[%s3] sm:$0xf] %v429
    %434 = vst [vmem:[%s3 + $0x4] sm:$0xf] %v430
    %435 = vst [vmem:[%s3 + $0x8] sm:$0xf] %v431
    %436 = vst [vmem:[%s3 + $0xc] sm:$0xf] %v432
  $region21: #{forward.87} parent=0 // pred_fallthru
    _
  // Predicated region
  $region22: #{forward.87} parent=0 // pred_check
    _
  $region23: #{forward.87} parent=0 // pred_check_branch
    %438 = sbr.rel (0) target = $region25
  $region24: #{forward.87} parent=0 // pred_region
    _
  $region25: #{forward.87} parent=0 // pred_fallthru
    _
  // Predicated region
  $region26: #{forward.87} parent=0 // pred_check
    _
  $region27: #{forward.87} parent=0 // pred_check_branch
    %440 = sbr.rel (0) target = $region29
  $region28: #{forward.87} parent=0 // pred_region
    _
  $region29: #{forward.87} parent=0 // pred_fallthru
    _

// kernel: forward.89
$region0: #{forward.89}
  #allocation0 [shape = 'u32[]', space=smem, size = 0x4, offset = 0x4, fixed_abs, tag = 'smem constant byte address 0x4 - core index']
  #allocation1 [shape = 'u32[72,128]{1,0:T(1,128)}', space=vmem, size = 0x9000, scoped, tag = 'internal scratch']
  #allocation2 [shape = 'f32[128,128]{1,0:T(8,128)}', space=vmem, size = 0x10000, scoped, tag = 'scratch operand']
  %s0 = inlined_call_operand.vmem [shape: bf16[128,128], index: 0, kind: input, shape index: {}]
  %s1 = inlined_call_operand.vmem [shape: bf16[128,128], index: 1, kind: input, shape index: {}]
  %s2 = inlined_call_operand.vmem [shape: f32[1,128], index: 2, kind: input, shape index: {}]
  %s3 = inlined_call_operand.vmem [shape: bf16[128,128], index: 3, kind: output, shape index: {}]
  %s4 = sld [smem:[#allocation0]]
  $region30: #{forward.89} parent=0
    _
  %s6 = ssub.s32 1, %s4
  %s7 = scalar_select 0, %s6, %s4
  // Predicated region
  $region2: #{forward.89} parent=0 // pred_check
    _
  $region3: #{forward.89} parent=0 // pred_check_branch
    %9 = sbr.rel (0) target = $region5
  $region4: #{forward.89} parent=0 // pred_region
    _
  $region5: #{forward.89} parent=0 // pred_fallthru
    _
  // Predicated region
  $region6: #{forward.89} parent=0 // pred_check
    _
  $region7: #{forward.89} parent=0 // pred_check_branch
    %11 = sbr.rel (0) target = $region9
  $region8: #{forward.89} parent=0 // pred_region
    _
  $region9: #{forward.89} parent=0 // pred_fallthru
    _
  // Predicated region
  $region10: #{forward.89} parent=0 // pred_check
    _
  $region11: #{forward.89} parent=0 // pred_check_branch
    %13 = sbr.rel (0) target = $region13
  $region12: #{forward.89} parent=0 // pred_region
    _
  $region13: #{forward.89} parent=0 // pred_fallthru
    _
  %p14 = scmp.eq.s32.totalorder 0, 0
  // Predicated region
  $region14: #{forward.89} parent=0 // pred_check
    %p15 = pneg %p14
  $region15: #{forward.89} parent=0 // pred_check_branch
    %17 = sbr.rel (%p15) target = $region17
  $region16: #{forward.89} parent=0 // pred_region
    %18 = vst [vmem:[#allocation2] sm:$0xff] 0.0
    %19 = vst [vmem:[#allocation2 + $0x8] sm:$0xff] 0.0
    %20 = vst [vmem:[#allocation2 + $0x10] sm:$0xff] 0.0
    %21 = vst [vmem:[#allocation2 + $0x18] sm:$0xff] 0.0
    %22 = vst [vmem:[#allocation2 + $0x20] sm:$0xff] 0.0
    %23 = vst [vmem:[#allocation2 + $0x28] sm:$0xff] 0.0
    %24 = vst [vmem:[#allocation2 + $0x30] sm:$0xff] 0.0
    %25 = vst [vmem:[#allocation2 + $0x38] sm:$0xff] 0.0
    %26 = vst [vmem:[#allocation2 + $0x40] sm:$0xff] 0.0
    %27 = vst [vmem:[#allocation2 + $0x48] sm:$0xff] 0.0
    %28 = vst [vmem:[#allocation2 + $0x50] sm:$0xff] 0.0
    %29 = vst [vmem:[#allocation2 + $0x58] sm:$0xff] 0.0
    %30 = vst [vmem:[#allocation2 + $0x60] sm:$0xff] 0.0
    %31 = vst [vmem:[#allocation2 + $0x68] sm:$0xff] 0.0
    %32 = vst [vmem:[#allocation2 + $0x70] sm:$0xff] 0.0
    %33 = vst [vmem:[#allocation2 + $0x78] sm:$0xff] 0.0
  $region17: #{forward.89} parent=0 // pred_fallthru
    _
  %v34 = vld [vmem:[#allocation2] sm:$0xff]
  %v35 = vld [vmem:[#allocation2 + $0x8] sm:$0xff]
  %v36 = vld [vmem:[#allocation2 + $0x10] sm:$0xff]
  %v37 = vld [vmem:[#allocation2 + $0x18] sm:$0xff]
  %v38 = vld [vmem:[#allocation2 + $0x20] sm:$0xff]
  %v39 = vld [vmem:[#allocation2 + $0x28] sm:$0xff]
  %v40 = vld [vmem:[#allocation2 + $0x30] sm:$0xff]
  %v41 = vld [vmem:[#allocation2 + $0x38] sm:$0xff]
  %v42 = vld [vmem:[#allocation2 + $0x40] sm:$0xff]
  %v43 = vld [vmem:[#allocation2 + $0x48] sm:$0xff]
  %v44 = vld [vmem:[#allocation2 + $0x50] sm:$0xff]
  %v45 = vld [vmem:[#allocation2 + $0x58] sm:$0xff]
  %v46 = vld [vmem:[#allocation2 + $0x60] sm:$0xff]
  %v47 = vld [vmem:[#allocation2 + $0x68] sm:$0xff]
  %v48 = vld [vmem:[#allocation2 + $0x70] sm:$0xff]
  %v49 = vld [vmem:[#allocation2 + $0x78] sm:$0xff]
  %v50 = vld [vmem:[%s0] sm:$0xf]
  %v51 = vld [vmem:[%s0 + $0x4] sm:$0xf]
  %v52 = vld [vmem:[%s0 + $0x8] sm:$0xf]
  %v53 = vld [vmem:[%s0 + $0xc] sm:$0xf]
  %v54 = vld [vmem:[%s0 + $0x10] sm:$0xf]
  %v55 = vld [vmem:[%s0 + $0x14] sm:$0xf]
  %v56 = vld [vmem:[%s0 + $0x18] sm:$0xf]
  %v57 = vld [vmem:[%s0 + $0x1c] sm:$0xf]
  %v58 = vld [vmem:[%s0 + $0x20] sm:$0xf]
  %v59 = vld [vmem:[%s0 + $0x24] sm:$0xf]
  %v60 = vld [vmem:[%s0 + $0x28] sm:$0xf]
  %v61 = vld [vmem:[%s0 + $0x2c] sm:$0xf]
  %v62 = vld [vmem:[%s0 + $0x30] sm:$0xf]
  %v63 = vld [vmem:[%s0 + $0x34] sm:$0xf]
  %v64 = vld [vmem:[%s0 + $0x38] sm:$0xf]
  %v65 = vld [vmem:[%s0 + $0x3c] sm:$0xf]
  %v66 = vld [vmem:[%s1] sm:$0xf]
  %v67 = vld [vmem:[%s1 + $0x4] sm:$0xf]
  %v68 = vld [vmem:[%s1 + $0x8] sm:$0xf]
  %v69 = vld [vmem:[%s1 + $0xc] sm:$0xf]
  %v70 = vld [vmem:[%s1 + $0x10] sm:$0xf]
  %v71 = vld [vmem:[%s1 + $0x14] sm:$0xf]
  %v72 = vld [vmem:[%s1 + $0x18] sm:$0xf]
  %v73 = vld [vmem:[%s1 + $0x1c] sm:$0xf]
  %v74 = vld [vmem:[%s1 + $0x20] sm:$0xf]
  %v75 = vld [vmem:[%s1 + $0x24] sm:$0xf]
  %v76 = vld [vmem:[%s1 + $0x28] sm:$0xf]
  %v77 = vld [vmem:[%s1 + $0x2c] sm:$0xf]
  %v78 = vld [vmem:[%s1 + $0x30] sm:$0xf]
  %v79 = vld [vmem:[%s1 + $0x34] sm:$0xf]
  %v80 = vld [vmem:[%s1 + $0x38] sm:$0xf]
  %v81 = vld [vmem:[%s1 + $0x3c] sm:$0xf]
  %v98 = vunpack.c.l.b16 %v50
  %v99 = vunpack.c.l.b16 %v51
  %v100 = vunpack.c.l.b16 %v52
  %v101 = vunpack.c.l.b16 %v53
  %v102 = vunpack.c.l.b16 %v54
  %v103 = vunpack.c.l.b16 %v55
  %v104 = vunpack.c.l.b16 %v56
  %v105 = vunpack.c.l.b16 %v57
  %v106 = vunpack.c.l.b16 %v58
  %v107 = vunpack.c.l.b16 %v59
  %v108 = vunpack.c.l.b16 %v60
  %v109 = vunpack.c.l.b16 %v61
  %v110 = vunpack.c.l.b16 %v62
  %v111 = vunpack.c.l.b16 %v63
  %v112 = vunpack.c.l.b16 %v64
  %v113 = vunpack.c.l.b16 %v65
  %v114 = vpack.c.b16 %v99, %v98
  %v115 = vpack.c.b16 %v101, %v100
  %v116 = vpack.c.b16 %v103, %v102
  %v117 = vpack.c.b16 %v105, %v104
  %v118 = vpack.c.b16 %v107, %v106
  %v119 = vpack.c.b16 %v109, %v108
  %v120 = vpack.c.b16 %v111, %v110
  %v121 = vpack.c.b16 %v113, %v112
  %v146 = vunpack.c.l.b16 %v66
  %v147 = vunpack.c.l.b16 %v67
  %v148 = vunpack.c.l.b16 %v68
  %v149 = vunpack.c.l.b16 %v69
  %v150 = vunpack.c.l.b16 %v70
  %v151 = vunpack.c.l.b16 %v71
  %v152 = vunpack.c.l.b16 %v72
  %v153 = vunpack.c.l.b16 %v73
  %v154 = vunpack.c.l.b16 %v74
  %v155 = vunpack.c.l.b16 %v75
  %v156 = vunpack.c.l.b16 %v76
  %v157 = vunpack.c.l.b16 %v77
  %v158 = vunpack.c.l.b16 %v78
  %v159 = vunpack.c.l.b16 %v79
  %v160 = vunpack.c.l.b16 %v80
  %v161 = vunpack.c.l.b16 %v81
  %v162 = vpack.c.b16 %v147, %v146
  %v163 = vpack.c.b16 %v149, %v148
  %v164 = vpack.c.b16 %v151, %v150
  %v165 = vpack.c.b16 %v153, %v152
  %v166 = vpack.c.b16 %v155, %v154
  %v167 = vpack.c.b16 %v157, %v156
  %v168 = vpack.c.b16 %v159, %v158
  %v169 = vpack.c.b16 %v161, %v160
  %178 = vmatpush.bf16.msra.mxu0 %v169
  %179 = vmatpush.bf16.msra.mxu0 %v168
  %180 = vmatpush.bf16.msra.mxu0 %v167
  %181 = vmatpush.bf16.msra.mxu0 %v166
  %182 = vmatpush.bf16.msra.mxu0 %v165
  %183 = vmatpush.bf16.msra.mxu0 %v164
  %184 = vmatpush.bf16.msra.mxu0 %v163
  %185 = vmatpush.bf16.msra.mxu0 %v162
  %186 = vmatmul.bf16.gmra.mxu0 %v114
  %v187 = vpop.f32.mrf.mxu0
  %v188 = vadd.f32 0.0, %v187
  %v189 = vpop.f32.mrf.mxu0
  %v190 = vadd.f32 0.0, %v189
  %191 = vmatmul.bf16.gmra.mxu0 %v115
  %v192 = vpop.f32.mrf.mxu0
  %v193 = vadd.f32 0.0, %v192
  %v194 = vpop.f32.mrf.mxu0
  %v195 = vadd.f32 0.0, %v194
  %196 = vmatmul.bf16.gmra.mxu0 %v116
  %v197 = vpop.f32.mrf.mxu0
  %v198 = vadd.f32 0.0, %v197
  %v199 = vpop.f32.mrf.mxu0
  %v200 = vadd.f32 0.0, %v199
  %201 = vmatmul.bf16.gmra.mxu0 %v117
  %v202 = vpop.f32.mrf.mxu0
  %v203 = vadd.f32 0.0, %v202
  %v204 = vpop.f32.mrf.mxu0
  %v205 = vadd.f32 0.0, %v204
  %206 = vmatmul.bf16.gmra.mxu0 %v118
  %v207 = vpop.f32.mrf.mxu0
  %v208 = vadd.f32 0.0, %v207
  %v209 = vpop.f32.mrf.mxu0
  %v210 = vadd.f32 0.0, %v209
  %211 = vmatmul.bf16.gmra.mxu0 %v119
  %v212 = vpop.f32.mrf.mxu0
  %v213 = vadd.f32 0.0, %v212
  %v214 = vpop.f32.mrf.mxu0
  %v215 = vadd.f32 0.0, %v214
  %216 = vmatmul.bf16.gmra.mxu0 %v120
  %v217 = vpop.f32.mrf.mxu0
  %v218 = vadd.f32 0.0, %v217
  %v219 = vpop.f32.mrf.mxu0
  %v220 = vadd.f32 0.0, %v219
  %221 = vmatmul.bf16.gmra.mxu0 %v121
  %v222 = vpop.f32.mrf.mxu0
  %v223 = vadd.f32 0.0, %v222
  %v224 = vpop.f32.mrf.mxu0
  %v225 = vadd.f32 0.0, %v224
  %226 = vdwg.mxu0
  %v227 = vadd.f32 %v34, %v188
  %v228 = vadd.f32 %v35, %v190
  %v229 = vadd.f32 %v36, %v193
  %v230 = vadd.f32 %v37, %v195
  %v231 = vadd.f32 %v38, %v198
  %v232 = vadd.f32 %v39, %v200
  %v233 = vadd.f32 %v40, %v203
  %v234 = vadd.f32 %v41, %v205
  %v235 = vadd.f32 %v42, %v208
  %v236 = vadd.f32 %v43, %v210
  %v237 = vadd.f32 %v44, %v213
  %v238 = vadd.f32 %v45, %v215
  %v239 = vadd.f32 %v46, %v218
  %v240 = vadd.f32 %v47, %v220
  %v241 = vadd.f32 %v48, %v223
  %v242 = vadd.f32 %v49, %v225
  %243 = vst [vmem:[#allocation2] sm:$0xff] %v227
  %244 = vst [vmem:[#allocation2 + $0x8] sm:$0xff] %v228
  %245 = vst [vmem:[#allocation2 + $0x10] sm:$0xff] %v229
  %246 = vst [vmem:[#allocation2 + $0x18] sm:$0xff] %v230
  %247 = vst [vmem:[#allocation2 + $0x20] sm:$0xff] %v231
  %248 = vst [vmem:[#allocation2 + $0x28] sm:$0xff] %v232
  %249 = vst [vmem:[#allocation2 + $0x30] sm:$0xff] %v233
  %250 = vst [vmem:[#allocation2 + $0x38] sm:$0xff] %v234
  %251 = vst [vmem:[#allocation2 + $0x40] sm:$0xff] %v235
  %252 = vst [vmem:[#allocation2 + $0x48] sm:$0xff] %v236
  %253 = vst [vmem:[#allocation2 + $0x50] sm:$0xff] %v237
  %254 = vst [vmem:[#allocation2 + $0x58] sm:$0xff] %v238
  %255 = vst [vmem:[#allocation2 + $0x60] sm:$0xff] %v239
  %256 = vst [vmem:[#allocation2 + $0x68] sm:$0xff] %v240
  %257 = vst [vmem:[#allocation2 + $0x70] sm:$0xff] %v241
  %258 = vst [vmem:[#allocation2 + $0x78] sm:$0xff] %v242
  // Predicated region
  $region18: #{forward.89} parent=0 // pred_check
    %p259 = pneg %p14
  $region19: #{forward.89} parent=0 // pred_check_branch
    %261 = sbr.rel (%p259) target = $region21
  $region20: #{forward.89} parent=0 // pred_region
    %v262 = vld [vmem:[#allocation2] sm:$0xff]
    %v263 = vld [vmem:[#allocation2 + $0x8] sm:$0xff]
    %v264 = vld [vmem:[#allocation2 + $0x10] sm:$0xff]
    %v265 = vld [vmem:[#allocation2 + $0x18] sm:$0xff]
    %v266 = vld [vmem:[#allocation2 + $0x20] sm:$0xff]
    %v267 = vld [vmem:[#allocation2 + $0x28] sm:$0xff]
    %v268 = vld [vmem:[#allocation2 + $0x30] sm:$0xff]
    %v269 = vld [vmem:[#allocation2 + $0x38] sm:$0xff]
    %v270 = vld [vmem:[#allocation2 + $0x40] sm:$0xff]
    %v271 = vld [vmem:[#allocation2 + $0x48] sm:$0xff]
    %v272 = vld [vmem:[#allocation2 + $0x50] sm:$0xff]
    %v273 = vld [vmem:[#allocation2 + $0x58] sm:$0xff]
    %v274 = vld [vmem:[#allocation2 + $0x60] sm:$0xff]
    %v275 = vld [vmem:[#allocation2 + $0x68] sm:$0xff]
    %v276 = vld [vmem:[#allocation2 + $0x70] sm:$0xff]
    %v277 = vld [vmem:[#allocation2 + $0x78] sm:$0xff]
    %v278 = vld [vmem:[%s2] sm:$0x1]
    %v280 = vperm.slane %v278, 0
    %v282 = vadd.f32 %v262, %v280
    %v283 = vadd.f32 %v263, %v280
    %v284 = vadd.f32 %v264, %v280
    %v285 = vadd.f32 %v265, %v280
    %v286 = vadd.f32 %v266, %v280
    %v287 = vadd.f32 %v267, %v280
    %v288 = vadd.f32 %v268, %v280
    %v289 = vadd.f32 %v269, %v280
    %v290 = vadd.f32 %v270, %v280
    %v291 = vadd.f32 %v271, %v280
    %v292 = vadd.f32 %v272, %v280
    %v293 = vadd.f32 %v273, %v280
    %v294 = vadd.f32 %v274, %v280
    %v295 = vadd.f32 %v275, %v280
    %v296 = vadd.f32 %v276, %v280
    %v297 = vadd.f32 %v277, %v280
    %v298 = vpack.c.bf16 %v282, %v282
    %v299 = vpack.c.bf16 %v283, %v283
    %v300 = vpack.c.bf16 %v284, %v284
    %v301 = vpack.c.bf16 %v285, %v285
    %v302 = vpack.c.bf16 %v286, %v286
    %v303 = vpack.c.bf16 %v287, %v287
    %v304 = vpack.c.bf16 %v288, %v288
    %v305 = vpack.c.bf16 %v289, %v289
    %v306 = vpack.c.bf16 %v290, %v290
    %v307 = vpack.c.bf16 %v291, %v291
    %v308 = vpack.c.bf16 %v292, %v292
    %v309 = vpack.c.bf16 %v293, %v293
    %v310 = vpack.c.bf16 %v294, %v294
    %v311 = vpack.c.bf16 %v295, %v295
    %v312 = vpack.c.bf16 %v296, %v296
    %v313 = vpack.c.bf16 %v297, %v297
    %314 = vst [vmem:[%s3] sm:$0xf] %v298
    %315 = vst [vmem:[%s3 + $0x4] sm:$0xf] %v299
    %316 = vst [vmem:[%s3 + $0x8] sm:$0xf] %v300
    %317 = vst [vmem:[%s3 + $0xc] sm:$0xf] %v301
    %318 = vst [vmem:[%s3 + $0x10] sm:$0xf] %v302
    %319 = vst [vmem:[%s3 + $0x14] sm:$0xf] %v303
    %320 = vst [vmem:[%s3 + $0x18] sm:$0xf] %v304
    %321 = vst [vmem:[%s3 + $0x1c] sm:$0xf] %v305
    %322 = vst [vmem:[%s3 + $0x20] sm:$0xf] %v306
    %323 = vst [vmem:[%s3 + $0x24] sm:$0xf] %v307
    %324 = vst [vmem:[%s3 + $0x28] sm:$0xf] %v308
    %325 = vst [vmem:[%s3 + $0x2c] sm:$0xf] %v309
    %326 = vst [vmem:[%s3 + $0x30] sm:$0xf] %v310
    %327 = vst [vmem:[%s3 + $0x34] sm:$0xf] %v311
    %328 = vst [vmem:[%s3 + $0x38] sm:$0xf] %v312
    %329 = vst [vmem:[%s3 + $0x3c] sm:$0xf] %v313
  $region21: #{forward.89} parent=0 // pred_fallthru
    _
  // Predicated region
  $region22: #{forward.89} parent=0 // pred_check
    _
  $region23: #{forward.89} parent=0 // pred_check_branch
    %331 = sbr.rel (0) target = $region25
  $region24: #{forward.89} parent=0 // pred_region
    _
  $region25: #{forward.89} parent=0 // pred_fallthru
    _
  // Predicated region
  $region26: #{forward.89} parent=0 // pred_check
    _
  $region27: #{forward.89} parent=0 // pred_check_branch
    %333 = sbr.rel (0) target = $region29
  $region28: #{forward.89} parent=0 // pred_region
    _
  $region29: #{forward.89} parent=0 // pred_fallthru
    _

// kernel: forward.90
$region0: #{forward.90}
  #allocation0 [shape = 'u32[]', space=smem, size = 0x4, offset = 0x4, fixed_abs, tag = 'smem constant byte address 0x4 - core index']
  #allocation1 [shape = 'u32[72,128]{1,0:T(1,128)}', space=vmem, size = 0x9000, scoped, tag = 'internal scratch']
  %s0 = inlined_call_operand.vmem [shape: bf16[2,256,16], index: 0, kind: input, shape index: {}]
  %s1 = inlined_call_operand.vmem [shape: f32[1,16], index: 1, kind: input, shape index: {}]
  %s2 = inlined_call_operand.vmem [shape: f32[1,16], index: 2, kind: input, shape index: {}]
  %s3 = inlined_call_operand.vmem [shape: bf16[2,256,16], index: 3, kind: output, shape index: {}]
  %s4 = sld [smem:[#allocation0]]
  $region45: #{forward.90} parent=0
    _
  %s6 = ssub.s32 1, %s4
  %s7 = scalar_select 0, %s6, %s4
  loop: start=0, step=1, limit=4
  $region2: #{forward.90} parent=0 // loop_pre_header
    _
  $region3: #{forward.90} parent=0 // loop_header
    %s9 = sphi 0, %s13
    %p10 = scmp.ge.s32.totalorder %s9, 4
    %s19 = sphi 0, %s21
    %s22 = sphi 0, %s19
    %s23 = sphi 0, %s22
    %s39 = sphi 0, %s23
    %s43 = sphi 0, %s43
    %s45 = sphi 0, %s43
    %s46 = sphi 0, %s45
    %s60 = sphi 0, %s46
    %s64 = sphi 0, %s64
    %s66 = sphi 0, %s64
    %s67 = sphi 0, %s66
    %s81 = sphi 0, %s67
    %s87 = sphi 0, %s89
    %s90 = sphi 0, %s87
    %s91 = sphi 0, %s90
    %s107 = sphi 0, %s91
  $region4: #{forward.90} parent=0 // loop_header_branch
    %12 = sbr.rel (%p10) target = $region8
  $region5: #{forward.90} parent=0 // loop_body
    %s14 = ssub.s32 %s9, 1
    %s15 = ssub.s32 %s9, 2
    %s16 = sadd.s32 %s9, 1
    %s17 = ssub.s32 %s9, %s16
    %p18 = scmp.eq.s32.totalorder %s17, 0
    %s20 = sadd.s32 %s19, 1
    %s21 = scalar_select %p18, %s19, %s20
    %p24 = pneg %p18
    %p25 = scmp.eq.s32.totalorder %s9, 1
    %p26 = por %p24, %p25
    %p27 = scmp.ne.s32.totalorder %s19, %s22
    %p28 = scmp.eq.s32.totalorder %s9, 0
    %p29 = por %p27, %p28
    %p30 = scmp.ne.s32.totalorder %s19, %s22
    %p31 = scmp.eq.s32.totalorder %s14, 1
    %p32 = por %p30, %p31
    %p33 = scmp.ne.s32.totalorder %s22, %s23
    %p34 = scmp.eq.s32.totalorder %s14, 0
    %p35 = por %p33, %p34
    %p36 = scmp.ne.s32.totalorder %s22, %s23
    %p37 = scmp.eq.s32.totalorder %s15, 1
    %p38 = por %p36, %p37
    %p40 = scmp.ne.s32.totalorder %s23, %s39
    %p41 = scmp.eq.s32.totalorder %s15, 0
    %p42 = por %p40, %p41
    %s44 = sadd.s32 %s43, 1
    %p47 = scmp.eq.s32.totalorder %s9, 1
    %p48 = scmp.ne.s32.totalorder %s43, %s45
    %p49 = scmp.eq.s32.totalorder %s9, 0
    %p50 = por %p48, %p49
    %p51 = scmp.ne.s32.totalorder %s43, %s45
    %p52 = scmp.eq.s32.totalorder %s14, 1
    %p53 = por %p51, %p52
    %p54 = scmp.ne.s32.totalorder %s45, %s46
    %p55 = scmp.eq.s32.totalorder %s14, 0
    %p56 = por %p54, %p55
    %p57 = scmp.ne.s32.totalorder %s45, %s46
    %p58 = scmp.eq.s32.totalorder %s15, 1
    %p59 = por %p57, %p58
    %p61 = scmp.ne.s32.totalorder %s46, %s60
    %p62 = scmp.eq.s32.totalorder %s15, 0
    %p63 = por %p61, %p62
    %s65 = sadd.s32 %s64, 1
    %p68 = scmp.eq.s32.totalorder %s9, 1
    %p69 = scmp.ne.s32.totalorder %s64, %s66
    %p70 = scmp.eq.s32.totalorder %s9, 0
    %p71 = por %p69, %p70
    %p72 = scmp.ne.s32.totalorder %s64, %s66
    %p73 = scmp.eq.s32.totalorder %s14, 1
    %p74 = por %p72, %p73
    %p75 = scmp.ne.s32.totalorder %s66, %s67
    %p76 = scmp.eq.s32.totalorder %s14, 0
    %p77 = por %p75, %p76
    %p78 = scmp.ne.s32.totalorder %s66, %s67
    %p79 = scmp.eq.s32.totalorder %s15, 1
    %p80 = por %p78, %p79
    %p82 = scmp.ne.s32.totalorder %s67, %s81
    %p83 = scmp.eq.s32.totalorder %s15, 0
    %p84 = por %p82, %p83
    %s85 = ssub.s32 %s9, %s16
    %p86 = scmp.eq.s32.totalorder %s85, 0
    %s88 = sadd.s32 %s87, 1
    %s89 = scalar_select %p86, %s87, %s88
    %p92 = pneg %p86
    %p93 = scmp.eq.s32.totalorder %s9, 1
    %p94 = por %p92, %p93
    %p95 = scmp.ne.s32.totalorder %s87, %s90
    %p96 = scmp.eq.s32.totalorder %s9, 0
    %p97 = por %p95, %p96
    %p98 = scmp.ne.s32.totalorder %s87, %s90
    %p99 = scmp.eq.s32.totalorder %s14, 1
    %p100 = por %p98, %p99
    %p101 = scmp.ne.s32.totalorder %s90, %s91
    %p102 = scmp.eq.s32.totalorder %s14, 0
    %p103 = por %p101, %p102
    %p104 = scmp.ne.s32.totalorder %s90, %s91
    %p105 = scmp.eq.s32.totalorder %s15, 1
    %p106 = por %p104, %p105
    %p108 = scmp.ne.s32.totalorder %s91, %s107
    %p109 = scmp.eq.s32.totalorder %s15, 0
    %p110 = por %p108, %p109
    %p111 = scmp.le.s32.totalorder 1, %s9
    %p112 = scmp.lt.s32.totalorder %s9, 3
    %p113 = pnand %p111, %p112
    %p114 = pneg %p113
    // Predicated region
    $region9: #{forward.90} parent=5 // pred_check
      _
    $region10: #{forward.90} parent=5 // pred_check_branch
      %116 = sbr.rel (%p113) target = $region12
    $region11: #{forward.90} parent=5 // pred_region
      %s117 = ssub.s32 %s9, 1
      // Predicated region
      $region13: #{forward.90} parent=11 // pred_check
        %p118 = pneg %p56
      $region14: #{forward.90} parent=11 // pred_check_branch
        %120 = sbr.rel (%p118) target = $region16
      $region15: #{forward.90} parent=11 // pred_region
        _
      $region16: #{forward.90} parent=11 // pred_fallthru
        _
      // Predicated region
      $region17: #{forward.90} parent=11 // pred_check
        %p121 = pneg %p77
      $region18: #{forward.90} parent=11 // pred_check_branch
        %123 = sbr.rel (%p121) target = $region20
      $region19: #{forward.90} parent=11 // pred_region
        _
      $region20: #{forward.90} parent=11 // pred_fallthru
        _
    $region12: #{forward.90} parent=5 // pred_fallthru
      _
    %p124 = scmp.lt.s32.totalorder %s9, 2
    // Predicated region
    $region21: #{forward.90} parent=5 // pred_check
      %p125 = pneg %p124
    $region22: #{forward.90} parent=5 // pred_check_branch
      %127 = sbr.rel (%p125) target = $region24
    $region23: #{forward.90} parent=5 // pred_region
      // Predicated region
      $region25: #{forward.90} parent=23 // pred_check
        %p128 = pneg %p29
      $region26: #{forward.90} parent=23 // pred_check_branch
        %130 = sbr.rel (%p128) target = $region28
      $region27: #{forward.90} parent=23 // pred_region
        %p131 = scmp.lt.s32.totalorder %s9, 1
        %s132 = scalar_select %p131, %s9, 1
        %s133 = smul.addr %s132, 32
        %s134 = smul.addr %s133, 4
        %s135 = scalar_lea.vmem %s0, %s134
      $region28: #{forward.90} parent=23 // pred_fallthru
        _
    $region24: #{forward.90} parent=5 // pred_fallthru
      _
    %p136 = scmp.le.s32.totalorder 1, %s9
    %p137 = scmp.lt.s32.totalorder %s9, 3
    %p138 = pnand %p136, %p137
    %p139 = pneg %p138
    // Predicated region
    $region29: #{forward.90} parent=5 // pred_check
      _
    $region30: #{forward.90} parent=5 // pred_check_branch
      %141 = sbr.rel (%p138) target = $region32
    $region31: #{forward.90} parent=5 // pred_region
      %s142 = ssub.s32 %s9, 1
      %p143 = scmp.lt.s32.totalorder %s14, 1
      %s144 = scalar_select %p143, %s14, 1
      %s145 = smul.addr %s144, 32
      %s146 = smul.addr %s145, 4
      %s147 = scalar_lea.vmem %s0, %s146
      %p148 = pneg %p35
      %p149 = pneg %p32
      %p150 = pneg %p56
      %p151 = pneg %p53
      %p152 = pneg %p77
      %p153 = pneg %p74
      %p154 = pneg %p103
      %p155 = pneg %p100
      %p156 = scmp.lt.s32.totalorder %s14, 1
      %s157 = scalar_select %p156, %s14, 1
      %s158 = smul.addr %s157, 32
      %s159 = smul.addr %s158, 4
      %s160 = scalar_lea.vmem %s3, %s159
      %p161 = scmp.lt.s32.totalorder %s14, 1
      %s162 = scalar_select %p161, %s14, 1
      %s163 = smul.addr %s162, 32
      %s164 = smul.addr %s163, 4
      %s165 = scalar_lea.vmem %s0, %s164
      %p166 = scmp.lt.s32.totalorder %s14, 1
      %s167 = scalar_select %p166, %s14, 1
      %s168 = smul.addr %s167, 32
      %s169 = smul.addr %s168, 4
      %s170 = scalar_lea.vmem %s3, %s169
      %v171 = vld [vmem:[%s165] sm:$0xf]
      %v172 = vld [vmem:[%s165 + $0x4] sm:$0xf]
      %v173 = vld [vmem:[%s165 + $0x8] sm:$0xf]
      %v174 = vld [vmem:[%s165 + $0xc] sm:$0xf]
      %v175 = vld [vmem:[%s165 + $0x10] sm:$0xf]
      %v176 = vld [vmem:[%s165 + $0x14] sm:$0xf]
      %v177 = vld [vmem:[%s165 + $0x18] sm:$0xf]
      %v178 = vld [vmem:[%s165 + $0x1c] sm:$0xf]
      %v179 = vld [vmem:[%s165 + $0x20] sm:$0xf]
      %v180 = vld [vmem:[%s165 + $0x24] sm:$0xf]
      %v181 = vld [vmem:[%s165 + $0x28] sm:$0xf]
      %v182 = vld [vmem:[%s165 + $0x2c] sm:$0xf]
      %v183 = vld [vmem:[%s165 + $0x30] sm:$0xf]
      %v184 = vld [vmem:[%s165 + $0x34] sm:$0xf]
      %v185 = vld [vmem:[%s165 + $0x38] sm:$0xf]
      %v186 = vld [vmem:[%s165 + $0x3c] sm:$0xf]
      %v187 = vld [vmem:[%s165 + $0x40] sm:$0xf]
      %v188 = vld [vmem:[%s165 + $0x44] sm:$0xf]
      %v189 = vld [vmem:[%s165 + $0x48] sm:$0xf]
      %v190 = vld [vmem:[%s165 + $0x4c] sm:$0xf]
      %v191 = vld [vmem:[%s165 + $0x50] sm:$0xf]
      %v192 = vld [vmem:[%s165 + $0x54] sm:$0xf]
      %v193 = vld [vmem:[%s165 + $0x58] sm:$0xf]
      %v194 = vld [vmem:[%s165 + $0x5c] sm:$0xf]
      %v195 = vld [vmem:[%s165 + $0x60] sm:$0xf]
      %v196 = vld [vmem:[%s165 + $0x64] sm:$0xf]
      %v197 = vld [vmem:[%s165 + $0x68] sm:$0xf]
      %v198 = vld [vmem:[%s165 + $0x6c] sm:$0xf]
      %v199 = vld [vmem:[%s165 + $0x70] sm:$0xf]
      %v200 = vld [vmem:[%s165 + $0x74] sm:$0xf]
      %v201 = vld [vmem:[%s165 + $0x78] sm:$0xf]
      %v202 = vld [vmem:[%s165 + $0x7c] sm:$0xf]
      %v203 = vunpack.c.l.bf16 %v171
      %v204 = vunpack.c.l.bf16 %v172
      %v205 = vunpack.c.l.bf16 %v173
      %v206 = vunpack.c.l.bf16 %v174
      %v207 = vunpack.c.l.bf16 %v175
      %v208 = vunpack.c.l.bf16 %v176
      %v209 = vunpack.c.l.bf16 %v177
      %v210 = vunpack.c.l.bf16 %v178
      %v211 = vunpack.c.l.bf16 %v179
      %v212 = vunpack.c.l.bf16 %v180
      %v213 = vunpack.c.l.bf16 %v181
      %v214 = vunpack.c.l.bf16 %v182
      %v215 = vunpack.c.l.bf16 %v183
      %v216 = vunpack.c.l.bf16 %v184
      %v217 = vunpack.c.l.bf16 %v185
      %v218 = vunpack.c.l.bf16 %v186
      %v219 = vunpack.c.l.bf16 %v187
      %v220 = vunpack.c.l.bf16 %v188
      %v221 = vunpack.c.l.bf16 %v189
      %v222 = vunpack.c.l.bf16 %v190
      %v223 = vunpack.c.l.bf16 %v191
      %v224 = vunpack.c.l.bf16 %v192
      %v225 = vunpack.c.l.bf16 %v193
      %v226 = vunpack.c.l.bf16 %v194
      %v227 = vunpack.c.l.bf16 %v195
      %v228 = vunpack.c.l.bf16 %v196
      %v229 = vunpack.c.l.bf16 %v197
      %v230 = vunpack.c.l.bf16 %v198
      %v231 = vunpack.c.l.bf16 %v199
      %v232 = vunpack.c.l.bf16 %v200
      %v233 = vunpack.c.l.bf16 %v201
      %v234 = vunpack.c.l.bf16 %v202
      %vm235 = vcmask 130048
      %v236 = vsel %vm235, %v203, 0.0
      %v237 = vsel %vm235, %v204, 0.0
      %v238 = vadd.f32 %v236, %v237
      %v239 = vsel %vm235, %v205, 0.0
      %v240 = vadd.f32 %v238, %v239
      %v241 = vsel %vm235, %v206, 0.0
      %v242 = vadd.f32 %v240, %v241
      %v243 = vsel %vm235, %v207, 0.0
      %v244 = vadd.f32 %v242, %v243
      %v245 = vsel %vm235, %v208, 0.0
      %v246 = vadd.f32 %v244, %v245
      %v247 = vsel %vm235, %v209, 0.0
      %v248 = vadd.f32 %v246, %v247
      %v249 = vsel %vm235, %v210, 0.0
      %v250 = vadd.f32 %v248, %v249
      %v251 = vsel %vm235, %v211, 0.0
      %v252 = vadd.f32 %v250, %v251
      %v253 = vsel %vm235, %v212, 0.0
      %v254 = vadd.f32 %v252, %v253
      %v255 = vsel %vm235, %v213, 0.0
      %v256 = vadd.f32 %v254, %v255
      %v257 = vsel %vm235, %v214, 0.0
      %v258 = vadd.f32 %v256, %v257
      %v259 = vsel %vm235, %v215, 0.0
      %v260 = vadd.f32 %v258, %v259
      %v261 = vsel %vm235, %v216, 0.0
      %v262 = vadd.f32 %v260, %v261
      %v263 = vsel %vm235, %v217, 0.0
      %v264 = vadd.f32 %v262, %v263
      %v265 = vsel %vm235, %v218, 0.0
      %v266 = vadd.f32 %v264, %v265
      %v267 = vsel %vm235, %v219, 0.0
      %v268 = vadd.f32 %v266, %v267
      %v269 = vsel %vm235, %v220, 0.0
      %v270 = vadd.f32 %v268, %v269
      %v271 = vsel %vm235, %v221, 0.0
      %v272 = vadd.f32 %v270, %v271
      %v273 = vsel %vm235, %v222, 0.0
      %v274 = vadd.f32 %v272, %v273
      %v275 = vsel %vm235, %v223, 0.0
      %v276 = vadd.f32 %v274, %v275
      %v277 = vsel %vm235, %v224, 0.0
      %v278 = vadd.f32 %v276, %v277
      %v279 = vsel %vm235, %v225, 0.0
      %v280 = vadd.f32 %v278, %v279
      %v281 = vsel %vm235, %v226, 0.0
      %v282 = vadd.f32 %v280, %v281
      %v283 = vsel %vm235, %v227, 0.0
      %v284 = vadd.f32 %v282, %v283
      %v285 = vsel %vm235, %v228, 0.0
      %v286 = vadd.f32 %v284, %v285
      %v287 = vsel %vm235, %v229, 0.0
      %v288 = vadd.f32 %v286, %v287
      %v289 = vsel %vm235, %v230, 0.0
      %v290 = vadd.f32 %v288, %v289
      %v291 = vsel %vm235, %v231, 0.0
      %v292 = vadd.f32 %v290, %v291
      %v293 = vsel %vm235, %v232, 0.0
      %v294 = vadd.f32 %v292, %v293
      %v295 = vsel %vm235, %v233, 0.0
      %v296 = vadd.f32 %v294, %v295
      %v297 = vsel %vm235, %v234, 0.0
      %v298 = vadd.f32 %v296, %v297
      %v299 = vrot.slane %v298, 4
      %v300 = vadd.f32 %v298, %v299
      %v301 = vrot.slane %v300, 2
      %v302 = vadd.f32 %v300, %v301
      %v303 = vrot.slane %v302, 1
      %v304 = vadd.f32 %v302, %v303
      %v305 = vrcp.pop 256.0
      %v306 = vmul.f32 256.0, %v305
      %v307 = vsub.f32 1.0, %v306
      %v308 = vmul.f32 %v305, %v307
      %v309 = vadd.f32 %v305, %v308
      %vm310 = vweird.f32 %v305
      %v311 = vsel %vm310, %v305, %v309
      %v312 = vmul.f32 %v304, %v311
      %v313 = vsub.f32 %v203, %v312
      %v314 = vsub.f32 %v204, %v312
      %v315 = vsub.f32 %v205, %v312
      %v316 = vsub.f32 %v206, %v312
      %v317 = vsub.f32 %v207, %v312
      %v318 = vsub.f32 %v208, %v312
      %v319 = vsub.f32 %v209, %v312
      %v320 = vsub.f32 %v210, %v312
      %v321 = vsub.f32 %v211, %v312
      %v322 = vsub.f32 %v212, %v312
      %v323 = vsub.f32 %v213, %v312
      %v324 = vsub.f32 %v214, %v312
      %v325 = vsub.f32 %v215, %v312
      %v326 = vsub.f32 %v216, %v312
      %v327 = vsub.f32 %v217, %v312
      %v328 = vsub.f32 %v218, %v312
      %v329 = vsub.f32 %v219, %v312
      %v330 = vsub.f32 %v220, %v312
      %v331 = vsub.f32 %v221, %v312
      %v332 = vsub.f32 %v222, %v312
      %v333 = vsub.f32 %v223, %v312
      %v334 = vsub.f32 %v224, %v312
      %v335 = vsub.f32 %v225, %v312
      %v336 = vsub.f32 %v226, %v312
      %v337 = vsub.f32 %v227, %v312
      %v338 = vsub.f32 %v228, %v312
      %v339 = vsub.f32 %v229, %v312
      %v340 = vsub.f32 %v230, %v312
      %v341 = vsub.f32 %v231, %v312
      %v342 = vsub.f32 %v232, %v312
      %v343 = vsub.f32 %v233, %v312
      %v344 = vsub.f32 %v234, %v312
      %v345 = vmul.f32 %v313, %v313
      %v346 = vmul.f32 %v314, %v314
      %v347 = vmul.f32 %v315, %v315
      %v348 = vmul.f32 %v316, %v316
      %v349 = vmul.f32 %v317, %v317
      %v350 = vmul.f32 %v318, %v318
      %v351 = vmul.f32 %v319, %v319
      %v352 = vmul.f32 %v320, %v320
      %v353 = vmul.f32 %v321, %v321
      %v354 = vmul.f32 %v322, %v322
      %v355 = vmul.f32 %v323, %v323
      %v356 = vmul.f32 %v324, %v324
      %v357 = vmul.f32 %v325, %v325
      %v358 = vmul.f32 %v326, %v326
      %v359 = vmul.f32 %v327, %v327
      %v360 = vmul.f32 %v328, %v328
      %v361 = vmul.f32 %v329, %v329
      %v362 = vmul.f32 %v330, %v330
      %v363 = vmul.f32 %v331, %v331
      %v364 = vmul.f32 %v332, %v332
      %v365 = vmul.f32 %v333, %v333
      %v366 = vmul.f32 %v334, %v334
      %v367 = vmul.f32 %v335, %v335
      %v368 = vmul.f32 %v336, %v336
      %v369 = vmul.f32 %v337, %v337
      %v370 = vmul.f32 %v338, %v338
      %v371 = vmul.f32 %v339, %v339
      %v372 = vmul.f32 %v340, %v340
      %v373 = vmul.f32 %v341, %v341
      %v374 = vmul.f32 %v342, %v342
      %v375 = vmul.f32 %v343, %v343
      %v376 = vmul.f32 %v344, %v344
      %v377 = vsel %vm235, %v345, 0.0
      %v378 = vsel %vm235, %v346, 0.0
      %v379 = vadd.f32 %v377, %v378
      %v380 = vsel %vm235, %v347, 0.0
      %v381 = vadd.f32 %v379, %v380
      %v382 = vsel %vm235, %v348, 0.0
      %v383 = vadd.f32 %v381, %v382
      %v384 = vsel %vm235, %v349, 0.0
      %v385 = vadd.f32 %v383, %v384
      %v386 = vsel %vm235, %v350, 0.0
      %v387 = vadd.f32 %v385, %v386
      %v388 = vsel %vm235, %v351, 0.0
      %v389 = vadd.f32 %v387, %v388
      %v390 = vsel %vm235, %v352, 0.0
      %v391 = vadd.f32 %v389, %v390
      %v392 = vsel %vm235, %v353, 0.0
      %v393 = vadd.f32 %v391, %v392
      %v394 = vsel %vm235, %v354, 0.0
      %v395 = vadd.f32 %v393, %v394
      %v396 = vsel %vm235, %v355, 0.0
      %v397 = vadd.f32 %v395, %v396
      %v398 = vsel %vm235, %v356, 0.0
      %v399 = vadd.f32 %v397, %v398
      %v400 = vsel %vm235, %v357, 0.0
      %v401 = vadd.f32 %v399, %v400
      %v402 = vsel %vm235, %v358, 0.0
      %v403 = vadd.f32 %v401, %v402
      %v404 = vsel %vm235, %v359, 0.0
      %v405 = vadd.f32 %v403, %v404
      %v406 = vsel %vm235, %v360, 0.0
      %v407 = vadd.f32 %v405, %v406
      %v408 = vsel %vm235, %v361, 0.0
      %v409 = vadd.f32 %v407, %v408
      %v410 = vsel %vm235, %v362, 0.0
      %v411 = vadd.f32 %v409, %v410
      %v412 = vsel %vm235, %v363, 0.0
      %v413 = vadd.f32 %v411, %v412
      %v414 = vsel %vm235, %v364, 0.0
      %v415 = vadd.f32 %v413, %v414
      %v416 = vsel %vm235, %v365, 0.0
      %v417 = vadd.f32 %v415, %v416
      %v418 = vsel %vm235, %v366, 0.0
      %v419 = vadd.f32 %v417, %v418
      %v420 = vsel %vm235, %v367, 0.0
      %v421 = vadd.f32 %v419, %v420
      %v422 = vsel %vm235, %v368, 0.0
      %v423 = vadd.f32 %v421, %v422
      %v424 = vsel %vm235, %v369, 0.0
      %v425 = vadd.f32 %v423, %v424
      %v426 = vsel %vm235, %v370, 0.0
      %v427 = vadd.f32 %v425, %v426
      %v428 = vsel %vm235, %v371, 0.0
      %v429 = vadd.f32 %v427, %v428
      %v430 = vsel %vm235, %v372, 0.0
      %v431 = vadd.f32 %v429, %v430
      %v432 = vsel %vm235, %v373, 0.0
      %v433 = vadd.f32 %v431, %v432
      %v434 = vsel %vm235, %v374, 0.0
      %v435 = vadd.f32 %v433, %v434
      %v436 = vsel %vm235, %v375, 0.0
      %v437 = vadd.f32 %v435, %v436
      %v438 = vsel %vm235, %v376, 0.0
      %v439 = vadd.f32 %v437, %v438
      %v440 = vrot.slane %v439, 4
      %v441 = vadd.f32 %v439, %v440
      %v442 = vrot.slane %v441, 2
      %v443 = vadd.f32 %v441, %v442
      %v444 = vrot.slane %v443, 1
      %v445 = vadd.f32 %v443, %v444
      %v446 = vmul.f32 %v445, %v311
      %v447 = vadd.f32 %v446, 1e-05
      %v448 = vrsqrt.pop %v447
      %v449 = vmul.f32 %v448, %v447
      %v450 = vmul.f32 %v449, %v448
      %v451 = vmul.f32 0.5, %v450
      %v452 = vsub.f32 1.5, %v451
      %v453 = vmul.f32 %v448, %v452
      %vm454 = vweird.f32 %v447
      %vm455 = vweird.f32 %v448
      %vm456 = vmor %vm454, %vm455
      %v457 = vsel %vm456, %v448, %v453
      %v458 = vmul.f32 %v313, %v457
      %v459 = vmul.f32 %v314, %v457
      %v460 = vmul.f32 %v315, %v457
      %v461 = vmul.f32 %v316, %v457
      %v462 = vmul.f32 %v317, %v457
      %v463 = vmul.f32 %v318, %v457
      %v464 = vmul.f32 %v319, %v457
      %v465 = vmul.f32 %v320, %v457
      %v466 = vmul.f32 %v321, %v457
      %v467 = vmul.f32 %v322, %v457
      %v468 = vmul.f32 %v323, %v457
      %v469 = vmul.f32 %v324, %v457
      %v470 = vmul.f32 %v325, %v457
      %v471 = vmul.f32 %v326, %v457
      %v472 = vmul.f32 %v327, %v457
      %v473 = vmul.f32 %v328, %v457
      %v474 = vmul.f32 %v329, %v457
      %v475 = vmul.f32 %v330, %v457
      %v476 = vmul.f32 %v331, %v457
      %v477 = vmul.f32 %v332, %v457
      %v478 = vmul.f32 %v333, %v457
      %v479 = vmul.f32 %v334, %v457
      %v480 = vmul.f32 %v335, %v457
      %v481 = vmul.f32 %v336, %v457
      %v482 = vmul.f32 %v337, %v457
      %v483 = vmul.f32 %v338, %v457
      %v484 = vmul.f32 %v339, %v457
      %v485 = vmul.f32 %v340, %v457
      %v486 = vmul.f32 %v341, %v457
      %v487 = vmul.f32 %v342, %v457
      %v488 = vmul.f32 %v343, %v457
      %v489 = vmul.f32 %v344, %v457
      %v490 = vld [vmem:[%s1] sm:$0x1]
      %v492 = vperm.slane %v490, 0
      %v494 = vmul.f32 %v458, %v492
      %v495 = vmul.f32 %v459, %v492
      %v496 = vmul.f32 %v460, %v492
      %v497 = vmul.f32 %v461, %v492
      %v498 = vmul.f32 %v462, %v492
      %v499 = vmul.f32 %v463, %v492
      %v500 = vmul.f32 %v464, %v492
      %v501 = vmul.f32 %v465, %v492
      %v502 = vmul.f32 %v466, %v492
      %v503 = vmul.f32 %v467, %v492
      %v504 = vmul.f32 %v468, %v492
      %v505 = vmul.f32 %v469, %v492
      %v506 = vmul.f32 %v470, %v492
      %v507 = vmul.f32 %v471, %v492
      %v508 = vmul.f32 %v472, %v492
      %v509 = vmul.f32 %v473, %v492
      %v510 = vmul.f32 %v474, %v492
      %v511 = vmul.f32 %v475, %v492
      %v512 = vmul.f32 %v476, %v492
      %v513 = vmul.f32 %v477, %v492
      %v514 = vmul.f32 %v478, %v492
      %v515 = vmul.f32 %v479, %v492
      %v516 = vmul.f32 %v480, %v492
      %v517 = vmul.f32 %v481, %v492
      %v518 = vmul.f32 %v482, %v492
      %v519 = vmul.f32 %v483, %v492
      %v520 = vmul.f32 %v484, %v492
      %v521 = vmul.f32 %v485, %v492
      %v522 = vmul.f32 %v486, %v492
      %v523 = vmul.f32 %v487, %v492
      %v524 = vmul.f32 %v488, %v492
      %v525 = vmul.f32 %v489, %v492
      %v526 = vld [vmem:[%s2] sm:$0x1]
      %v528 = vperm.slane %v526, 0
      %v530 = vadd.f32 %v494, %v528
      %v531 = vadd.f32 %v495, %v528
      %v532 = vadd.f32 %v496, %v528
      %v533 = vadd.f32 %v497, %v528
      %v534 = vadd.f32 %v498, %v528
      %v535 = vadd.f32 %v499, %v528
      %v536 = vadd.f32 %v500, %v528
      %v537 = vadd.f32 %v501, %v528
      %v538 = vadd.f32 %v502, %v528
      %v539 = vadd.f32 %v503, %v528
      %v540 = vadd.f32 %v504, %v528
      %v541 = vadd.f32 %v505, %v528
      %v542 = vadd.f32 %v506, %v528
      %v543 = vadd.f32 %v507, %v528
      %v544 = vadd.f32 %v508, %v528
      %v545 = vadd.f32 %v509, %v528
      %v546 = vadd.f32 %v510, %v528
      %v547 = vadd.f32 %v511, %v528
      %v548 = vadd.f32 %v512, %v528
      %v549 = vadd.f32 %v513, %v528
      %v550 = vadd.f32 %v514, %v528
      %v551 = vadd.f32 %v515, %v528
      %v552 = vadd.f32 %v516, %v528
      %v553 = vadd.f32 %v517, %v528
      %v554 = vadd.f32 %v518, %v528
      %v555 = vadd.f32 %v519, %v528
      %v556 = vadd.f32 %v520, %v528
      %v557 = vadd.f32 %v521, %v528
      %v558 = vadd.f32 %v522, %v528
      %v559 = vadd.f32 %v523, %v528
      %v560 = vadd.f32 %v524, %v528
      %v561 = vadd.f32 %v525, %v528
      %v562 = vmax.f32 %v530, 0.0
      %v563 = vmax.f32 %v531, 0.0
      %v564 = vmax.f32 %v532, 0.0
      %v565 = vmax.f32 %v533, 0.0
      %v566 = vmax.f32 %v534, 0.0
      %v567 = vmax.f32 %v535, 0.0
      %v568 = vmax.f32 %v536, 0.0
      %v569 = vmax.f32 %v537, 0.0
      %v570 = vmax.f32 %v538, 0.0
      %v571 = vmax.f32 %v539, 0.0
      %v572 = vmax.f32 %v540, 0.0
      %v573 = vmax.f32 %v541, 0.0
      %v574 = vmax.f32 %v542, 0.0
      %v575 = vmax.f32 %v543, 0.0
      %v576 = vmax.f32 %v544, 0.0
      %v577 = vmax.f32 %v545, 0.0
      %v578 = vmax.f32 %v546, 0.0
      %v579 = vmax.f32 %v547, 0.0
      %v580 = vmax.f32 %v548, 0.0
      %v581 = vmax.f32 %v549, 0.0
      %v582 = vmax.f32 %v550, 0.0
      %v583 = vmax.f32 %v551, 0.0
      %v584 = vmax.f32 %v552, 0.0
      %v585 = vmax.f32 %v553, 0.0
      %v586 = vmax.f32 %v554, 0.0
      %v587 = vmax.f32 %v555, 0.0
      %v588 = vmax.f32 %v556, 0.0
      %v589 = vmax.f32 %v557, 0.0
      %v590 = vmax.f32 %v558, 0.0
      %v591 = vmax.f32 %v559, 0.0
      %v592 = vmax.f32 %v560, 0.0
      %v593 = vmax.f32 %v561, 0.0
      %v594 = vpack.c.bf16 %v562, %v562
      %v595 = vpack.c.bf16 %v563, %v563
      %v596 = vpack.c.bf16 %v564, %v564
      %v597 = vpack.c.bf16 %v565, %v565
      %v598 = vpack.c.bf16 %v566, %v566
      %v599 = vpack.c.bf16 %v567, %v567
      %v600 = vpack.c.bf16 %v568, %v568
      %v601 = vpack.c.bf16 %v569, %v569
      %v602 = vpack.c.bf16 %v570, %v570
      %v603 = vpack.c.bf16 %v571, %v571
      %v604 = vpack.c.bf16 %v572, %v572
      %v605 = vpack.c.bf16 %v573, %v573
      %v606 = vpack.c.bf16 %v574, %v574
      %v607 = vpack.c.bf16 %v575, %v575
      %v608 = vpack.c.bf16 %v576, %v576
      %v609 = vpack.c.bf16 %v577, %v577
      %v610 = vpack.c.bf16 %v578, %v578
      %v611 = vpack.c.bf16 %v579, %v579
      %v612 = vpack.c.bf16 %v580, %v580
      %v613 = vpack.c.bf16 %v581, %v581
      %v614 = vpack.c.bf16 %v582, %v582
      %v615 = vpack.c.bf16 %v583, %v583
      %v616 = vpack.c.bf16 %v584, %v584
      %v617 = vpack.c.bf16 %v585, %v585
      %v618 = vpack.c.bf16 %v586, %v586
      %v619 = vpack.c.bf16 %v587, %v587
      %v620 = vpack.c.bf16 %v588, %v588
      %v621 = vpack.c.bf16 %v589, %v589
      %v622 = vpack.c.bf16 %v590, %v590
      %v623 = vpack.c.bf16 %v591, %v591
      %v624 = vpack.c.bf16 %v592, %v592
      %v625 = vpack.c.bf16 %v593, %v593
      %vm626 = vcmask 125952
      %627 = vst.msk [vmem:[%s170] sm:$0xf] %vm626, %v594
      %628 = vst.msk [vmem:[%s170 + $0x4] sm:$0xf] %vm626, %v595
      %629 = vst.msk [vmem:[%s170 + $0x8] sm:$0xf] %vm626, %v596
      %630 = vst.msk [vmem:[%s170 + $0xc] sm:$0xf] %vm626, %v597
      %631 = vst.msk [vmem:[%s170 + $0x10] sm:$0xf] %vm626, %v598
      %632 = vst.msk [vmem:[%s170 + $0x14] sm:$0xf] %vm626, %v599
      %633 = vst.msk [vmem:[%s170 + $0x18] sm:$0xf] %vm626, %v600
      %634 = vst.msk [vmem:[%s170 + $0x1c] sm:$0xf] %vm626, %v601
      %635 = vst.msk [vmem:[%s170 + $0x20] sm:$0xf] %vm626, %v602
      %636 = vst.msk [vmem:[%s170 + $0x24] sm:$0xf] %vm626, %v603
      %637 = vst.msk [vmem:[%s170 + $0x28] sm:$0xf] %vm626, %v604
      %638 = vst.msk [vmem:[%s170 + $0x2c] sm:$0xf] %vm626, %v605
      %639 = vst.msk [vmem:[%s170 + $0x30] sm:$0xf] %vm626, %v606
      %640 = vst.msk [vmem:[%s170 + $0x34] sm:$0xf] %vm626, %v607
      %641 = vst.msk [vmem:[%s170 + $0x38] sm:$0xf] %vm626, %v608
      %642 = vst.msk [vmem:[%s170 + $0x3c] sm:$0xf] %vm626, %v609
      %643 = vst.msk [vmem:[%s170 + $0x40] sm:$0xf] %vm626, %v610
      %644 = vst.msk [vmem:[%s170 + $0x44] sm:$0xf] %vm626, %v611
      %645 = vst.msk [vmem:[%s170 + $0x48] sm:$0xf] %vm626, %v612
      %646 = vst.msk [vmem:[%s170 + $0x4c] sm:$0xf] %vm626, %v613
      %647 = vst.msk [vmem:[%s170 + $0x50] sm:$0xf] %vm626, %v614
      %648 = vst.msk [vmem:[%s170 + $0x54] sm:$0xf] %vm626, %v615
      %649 = vst.msk [vmem:[%s170 + $0x58] sm:$0xf] %vm626, %v616
      %650 = vst.msk [vmem:[%s170 + $0x5c] sm:$0xf] %vm626, %v617
      %651 = vst.msk [vmem:[%s170 + $0x60] sm:$0xf] %vm626, %v618
      %652 = vst.msk [vmem:[%s170 + $0x64] sm:$0xf] %vm626, %v619
      %653 = vst.msk [vmem:[%s170 + $0x68] sm:$0xf] %vm626, %v620
      %654 = vst.msk [vmem:[%s170 + $0x6c] sm:$0xf] %vm626, %v621
      %655 = vst.msk [vmem:[%s170 + $0x70] sm:$0xf] %vm626, %v622
      %656 = vst.msk [vmem:[%s170 + $0x74] sm:$0xf] %vm626, %v623
      %657 = vst.msk [vmem:[%s170 + $0x78] sm:$0xf] %vm626, %v624
      %658 = vst.msk [vmem:[%s170 + $0x7c] sm:$0xf] %vm626, %v625
      %p659 = scmp.lt.s32.totalorder %s14, 1
      %s660 = scalar_select %p659, %s14, 1
      %s661 = smul.addr %s660, 32
      %s662 = smul.addr %s661, 4
      %s663 = scalar_lea.vmem %s3, %s662
      // Predicated region
      $region33: #{forward.90} parent=31 // pred_check
        %p664 = pneg %p100
      $region34: #{forward.90} parent=31 // pred_check_branch
        %666 = sbr.rel (%p664) target = $region36
      $region35: #{forward.90} parent=31 // pred_region
        _
      $region36: #{forward.90} parent=31 // pred_fallthru
        _
    $region32: #{forward.90} parent=5 // pred_fallthru
      _
    %p667 = scmp.le.s32.totalorder 2, %s9
    // Predicated region
    $region37: #{forward.90} parent=5 // pred_check
      %p668 = pneg %p667
    $region38: #{forward.90} parent=5 // pred_check_branch
      %670 = sbr.rel (%p668) target = $region40
    $region39: #{forward.90} parent=5 // pred_region
      %s671 = ssub.s32 %s9, 2
      // Predicated region
      $region41: #{forward.90} parent=39 // pred_check
        %p672 = pneg %p106
      $region42: #{forward.90} parent=39 // pred_check_branch
        %674 = sbr.rel (%p672) target = $region44
      $region43: #{forward.90} parent=39 // pred_region
        %p675 = scmp.lt.s32.totalorder %s15, 1
        %s676 = scalar_select %p675, %s15, 1
        %s677 = smul.addr %s676, 32
        %s678 = smul.addr %s677, 4
        %s679 = scalar_lea.vmem %s3, %s678
      $region44: #{forward.90} parent=39 // pred_fallthru
        _
    $region40: #{forward.90} parent=5 // pred_fallthru
      _
  $region6: #{forward.90} parent=0 // loop_footer
    %s13 = sadd.s32 1, %s9
  $region7: #{forward.90} parent=0 // loop_footer_branch
    %8 = sbr.rel target = $region3
  $region8: #{forward.90} parent=0 // loop_exit
    _

// kernel: forward.91
$region0: #{forward.91}
  #allocation0 [shape = 'u32[]', space=smem, size = 0x4, offset = 0x4, fixed_abs, tag = 'smem constant byte address 0x4 - core index']
  #allocation1 [shape = 'u32[72,128]{1,0:T(1,128)}', space=vmem, size = 0x9000, scoped, tag = 'internal scratch']
  %s0 = inlined_call_operand.vmem [shape: bf16[2,352,112], index: 0, kind: input, shape index: {}]
  %s1 = inlined_call_operand.vmem [shape: bf16[7,112,3], index: 1, kind: input, shape index: {}]
  %s2 = inlined_call_operand.vmem [shape: f32[1,3], index: 2, kind: input, shape index: {}]
  %s3 = inlined_call_operand.vmem [shape: f32[2,256,3], index: 3, kind: output, shape index: {}]
  %s4 = sld [smem:[#allocation0]]
  $region45: #{forward.91} parent=0
    _
  %s6 = ssub.s32 1, %s4
  %s7 = scalar_select 0, %s6, %s4
  loop: start=0, step=1, limit=4
  $region2: #{forward.91} parent=0 // loop_pre_header
    _
  $region3: #{forward.91} parent=0 // loop_header
    %s9 = sphi 0, %s13
    %p10 = scmp.ge.s32.totalorder %s9, 4
    %s19 = sphi 0, %s21
    %s22 = sphi 0, %s19
    %s23 = sphi 0, %s22
    %s39 = sphi 0, %s23
    %s43 = sphi 0, %s43
    %s45 = sphi 0, %s43
    %s46 = sphi 0, %s45
    %s60 = sphi 0, %s46
    %s64 = sphi 0, %s64
    %s66 = sphi 0, %s64
    %s67 = sphi 0, %s66
    %s81 = sphi 0, %s67
    %s87 = sphi 0, %s89
    %s90 = sphi 0, %s87
    %s91 = sphi 0, %s90
    %s107 = sphi 0, %s91
  $region4: #{forward.91} parent=0 // loop_header_branch
    %12 = sbr.rel (%p10) target = $region8
  $region5: #{forward.91} parent=0 // loop_body
    %s14 = ssub.s32 %s9, 1
    %s15 = ssub.s32 %s9, 2
    %s16 = sadd.s32 %s9, 1
    %s17 = ssub.s32 %s9, %s16
    %p18 = scmp.eq.s32.totalorder %s17, 0
    %s20 = sadd.s32 %s19, 1
    %s21 = scalar_select %p18, %s19, %s20
    %p24 = pneg %p18
    %p25 = scmp.eq.s32.totalorder %s9, 1
    %p26 = por %p24, %p25
    %p27 = scmp.ne.s32.totalorder %s19, %s22
    %p28 = scmp.eq.s32.totalorder %s9, 0
    %p29 = por %p27, %p28
    %p30 = scmp.ne.s32.totalorder %s19, %s22
    %p31 = scmp.eq.s32.totalorder %s14, 1
    %p32 = por %p30, %p31
    %p33 = scmp.ne.s32.totalorder %s22, %s23
    %p34 = scmp.eq.s32.totalorder %s14, 0
    %p35 = por %p33, %p34
    %p36 = scmp.ne.s32.totalorder %s22, %s23
    %p37 = scmp.eq.s32.totalorder %s15, 1
    %p38 = por %p36, %p37
    %p40 = scmp.ne.s32.totalorder %s23, %s39
    %p41 = scmp.eq.s32.totalorder %s15, 0
    %p42 = por %p40, %p41
    %s44 = sadd.s32 %s43, 1
    %p47 = scmp.eq.s32.totalorder %s9, 1
    %p48 = scmp.ne.s32.totalorder %s43, %s45
    %p49 = scmp.eq.s32.totalorder %s9, 0
    %p50 = por %p48, %p49
    %p51 = scmp.ne.s32.totalorder %s43, %s45
    %p52 = scmp.eq.s32.totalorder %s14, 1
    %p53 = por %p51, %p52
    %p54 = scmp.ne.s32.totalorder %s45, %s46
    %p55 = scmp.eq.s32.totalorder %s14, 0
    %p56 = por %p54, %p55
    %p57 = scmp.ne.s32.totalorder %s45, %s46
    %p58 = scmp.eq.s32.totalorder %s15, 1
    %p59 = por %p57, %p58
    %p61 = scmp.ne.s32.totalorder %s46, %s60
    %p62 = scmp.eq.s32.totalorder %s15, 0
    %p63 = por %p61, %p62
    %s65 = sadd.s32 %s64, 1
    %p68 = scmp.eq.s32.totalorder %s9, 1
    %p69 = scmp.ne.s32.totalorder %s64, %s66
    %p70 = scmp.eq.s32.totalorder %s9, 0
    %p71 = por %p69, %p70
    %p72 = scmp.ne.s32.totalorder %s64, %s66
    %p73 = scmp.eq.s32.totalorder %s14, 1
    %p74 = por %p72, %p73
    %p75 = scmp.ne.s32.totalorder %s66, %s67
    %p76 = scmp.eq.s32.totalorder %s14, 0
    %p77 = por %p75, %p76
    %p78 = scmp.ne.s32.totalorder %s66, %s67
    %p79 = scmp.eq.s32.totalorder %s15, 1
    %p80 = por %p78, %p79
    %p82 = scmp.ne.s32.totalorder %s67, %s81
    %p83 = scmp.eq.s32.totalorder %s15, 0
    %p84 = por %p82, %p83
    %s85 = ssub.s32 %s9, %s16
    %p86 = scmp.eq.s32.totalorder %s85, 0
    %s88 = sadd.s32 %s87, 1
    %s89 = scalar_select %p86, %s87, %s88
    %p92 = pneg %p86
    %p93 = scmp.eq.s32.totalorder %s9, 1
    %p94 = por %p92, %p93
    %p95 = scmp.ne.s32.totalorder %s87, %s90
    %p96 = scmp.eq.s32.totalorder %s9, 0
    %p97 = por %p95, %p96
    %p98 = scmp.ne.s32.totalorder %s87, %s90
    %p99 = scmp.eq.s32.totalorder %s14, 1
    %p100 = por %p98, %p99
    %p101 = scmp.ne.s32.totalorder %s90, %s91
    %p102 = scmp.eq.s32.totalorder %s14, 0
    %p103 = por %p101, %p102
    %p104 = scmp.ne.s32.totalorder %s90, %s91
    %p105 = scmp.eq.s32.totalorder %s15, 1
    %p106 = por %p104, %p105
    %p108 = scmp.ne.s32.totalorder %s91, %s107
    %p109 = scmp.eq.s32.totalorder %s15, 0
    %p110 = por %p108, %p109
    %p111 = scmp.le.s32.totalorder 1, %s9
    %p112 = scmp.lt.s32.totalorder %s9, 3
    %p113 = pnand %p111, %p112
    %p114 = pneg %p113
    // Predicated region
    $region9: #{forward.91} parent=5 // pred_check
      _
    $region10: #{forward.91} parent=5 // pred_check_branch
      %116 = sbr.rel (%p113) target = $region12
    $region11: #{forward.91} parent=5 // pred_region
      %s117 = ssub.s32 %s9, 1
      // Predicated region
      $region13: #{forward.91} parent=11 // pred_check
        %p118 = pneg %p56
      $region14: #{forward.91} parent=11 // pred_check_branch
        %120 = sbr.rel (%p118) target = $region16
      $region15: #{forward.91} parent=11 // pred_region
        _
      $region16: #{forward.91} parent=11 // pred_fallthru
        _
      // Predicated region
      $region17: #{forward.91} parent=11 // pred_check
        %p121 = pneg %p77
      $region18: #{forward.91} parent=11 // pred_check_branch
        %123 = sbr.rel (%p121) target = $region20
      $region19: #{forward.91} parent=11 // pred_region
        _
      $region20: #{forward.91} parent=11 // pred_fallthru
        _
    $region12: #{forward.91} parent=5 // pred_fallthru
      _
    %p124 = scmp.lt.s32.totalorder %s9, 2
    // Predicated region
    $region21: #{forward.91} parent=5 // pred_check
      %p125 = pneg %p124
    $region22: #{forward.91} parent=5 // pred_check_branch
      %127 = sbr.rel (%p125) target = $region24
    $region23: #{forward.91} parent=5 // pred_region
      // Predicated region
      $region25: #{forward.91} parent=23 // pred_check
        %p128 = pneg %p29
      $region26: #{forward.91} parent=23 // pred_check_branch
        %130 = sbr.rel (%p128) target = $region28
      $region27: #{forward.91} parent=23 // pred_region
        %p131 = scmp.lt.s32.totalorder %s9, 1
        %s132 = scalar_select %p131, %s9, 1
        %s133 = smul.addr %s132, 44
        %s134 = smul.addr %s133, 4
        %s135 = scalar_lea.vmem %s0, %s134
      $region28: #{forward.91} parent=23 // pred_fallthru
        _
    $region24: #{forward.91} parent=5 // pred_fallthru
      _
    %p136 = scmp.le.s32.totalorder 1, %s9
    %p137 = scmp.lt.s32.totalorder %s9, 3
    %p138 = pnand %p136, %p137
    %p139 = pneg %p138
    // Predicated region
    $region29: #{forward.91} parent=5 // pred_check
      _
    $region30: #{forward.91} parent=5 // pred_check_branch
      %141 = sbr.rel (%p138) target = $region32
    $region31: #{forward.91} parent=5 // pred_region
      %s142 = ssub.s32 %s9, 1
      %p143 = scmp.lt.s32.totalorder %s14, 1
      %s144 = scalar_select %p143, %s14, 1
      %s145 = smul.addr %s144, 44
      %s146 = smul.addr %s145, 4
      %s147 = scalar_lea.vmem %s0, %s146
      %p148 = pneg %p35
      %p149 = pneg %p32
      %p150 = pneg %p56
      %p151 = pneg %p53
      %p152 = pneg %p77
      %p153 = pneg %p74
      %p154 = pneg %p103
      %p155 = pneg %p100
      %p156 = scmp.lt.s32.totalorder %s14, 1
      %s157 = scalar_select %p156, %s14, 1
      %s158 = smul.addr %s157, 32
      %s159 = smul.addr %s158, 8
      %s160 = scalar_lea.vmem %s3, %s159
      %p161 = scmp.lt.s32.totalorder %s14, 1
      %s162 = scalar_select %p161, %s14, 1
      %s163 = smul.addr %s162, 44
      %s164 = smul.addr %s163, 4
      %s165 = scalar_lea.vmem %s0, %s164
      %p166 = scmp.lt.s32.totalorder %s14, 1
      %s167 = scalar_select %p166, %s14, 1
      %s168 = smul.addr %s167, 32
      %s169 = smul.addr %s168, 8
      %s170 = scalar_lea.vmem %s3, %s169
      %v172 = vld [vmem:[%s165] sm:$0xf]
      %v173 = vld [vmem:[%s165 + $0x4] sm:$0xf]
      %v174 = vld [vmem:[%s165 + $0x8] sm:$0xf]
      %v175 = vld [vmem:[%s165 + $0xc] sm:$0xf]
      %v176 = vld [vmem:[%s165 + $0x10] sm:$0xf]
      %v177 = vld [vmem:[%s165 + $0x14] sm:$0xf]
      %v178 = vld [vmem:[%s165 + $0x18] sm:$0xf]
      %v179 = vld [vmem:[%s165 + $0x1c] sm:$0xf]
      %v180 = vld [vmem:[%s165 + $0x20] sm:$0xf]
      %v181 = vld [vmem:[%s165 + $0x24] sm:$0xf]
      %v182 = vld [vmem:[%s165 + $0x28] sm:$0xf]
      %v183 = vld [vmem:[%s165 + $0x2c] sm:$0xf]
      %v184 = vld [vmem:[%s165 + $0x30] sm:$0xf]
      %v185 = vld [vmem:[%s165 + $0x34] sm:$0xf]
      %v186 = vld [vmem:[%s165 + $0x38] sm:$0xf]
      %v187 = vld [vmem:[%s165 + $0x3c] sm:$0xf]
      %v188 = vld [vmem:[%s165 + $0x40] sm:$0xf]
      %v189 = vld [vmem:[%s165 + $0x44] sm:$0xf]
      %v190 = vld [vmem:[%s165 + $0x48] sm:$0xf]
      %v191 = vld [vmem:[%s165 + $0x4c] sm:$0xf]
      %v192 = vld [vmem:[%s165 + $0x50] sm:$0xf]
      %v193 = vld [vmem:[%s165 + $0x54] sm:$0xf]
      %v194 = vld [vmem:[%s165 + $0x58] sm:$0xf]
      %v195 = vld [vmem:[%s165 + $0x5c] sm:$0xf]
      %v196 = vld [vmem:[%s165 + $0x60] sm:$0xf]
      %v197 = vld [vmem:[%s165 + $0x64] sm:$0xf]
      %v198 = vld [vmem:[%s165 + $0x68] sm:$0xf]
      %v199 = vld [vmem:[%s165 + $0x6c] sm:$0xf]
      %v200 = vld [vmem:[%s165 + $0x70] sm:$0xf]
      %v201 = vld [vmem:[%s165 + $0x74] sm:$0xf]
      %v202 = vld [vmem:[%s165 + $0x78] sm:$0xf]
      %v203 = vld [vmem:[%s165 + $0x7c] sm:$0xf]
      %v204 = vld [vmem:[%s165 + $0x80] sm:$0xf]
      %v205 = vld [vmem:[%s165 + $0x84] sm:$0xf]
      %v206 = vld [vmem:[%s165 + $0x88] sm:$0xf]
      %v207 = vld [vmem:[%s165 + $0x8c] sm:$0xf]
      %v208 = vld [vmem:[%s165 + $0x90] sm:$0xf]
      %v209 = vld [vmem:[%s165 + $0x94] sm:$0xf]
      %v210 = vld [vmem:[%s165 + $0x98] sm:$0xf]
      %v211 = vld [vmem:[%s165 + $0x9c] sm:$0xf]
      %v212 = vld [vmem:[%s165 + $0xa0] sm:$0xf]
      %v213 = vld [vmem:[%s165 + $0xa4] sm:$0xf]
      %v214 = vld [vmem:[%s165 + $0xa8] sm:$0xf]
      %v215 = vld [vmem:[%s165 + $0xac] sm:$0xf]
      %v216 = vld [vmem:[%s1] sm:$0xf]
      %v217 = vld [vmem:[%s1 + $0x4] sm:$0xf]
      %v218 = vld [vmem:[%s1 + $0x8] sm:$0xf]
      %v219 = vld [vmem:[%s1 + $0xc] sm:$0xf]
      %v220 = vld [vmem:[%s1 + $0x10] sm:$0xf]
      %v221 = vld [vmem:[%s1 + $0x14] sm:$0xf]
      %v222 = vld [vmem:[%s1 + $0x18] sm:$0xf]
      %v223 = vld [vmem:[%s1 + $0x1c] sm:$0xf]
      %v224 = vld [vmem:[%s1 + $0x20] sm:$0xf]
      %v225 = vld [vmem:[%s1 + $0x24] sm:$0xf]
      %v226 = vld [vmem:[%s1 + $0x28] sm:$0xf]
      %v227 = vld [vmem:[%s1 + $0x2c] sm:$0xf]
      %v228 = vld [vmem:[%s1 + $0x30] sm:$0xf]
      %v229 = vld [vmem:[%s1 + $0x34] sm:$0xf]
      %s230 = scalar_lea.vmem %s1, 56
      %v231 = vld [vmem:[%s230] sm:$0xf]
      %v232 = vld [vmem:[%s230 + $0x4] sm:$0xf]
      %v233 = vld [vmem:[%s230 + $0x8] sm:$0xf]
      %v234 = vld [vmem:[%s230 + $0xc] sm:$0xf]
      %v235 = vld [vmem:[%s230 + $0x10] sm:$0xf]
      %v236 = vld [vmem:[%s230 + $0x14] sm:$0xf]
      %v237 = vld [vmem:[%s230 + $0x18] sm:$0xf]
      %v238 = vld [vmem:[%s230 + $0x1c] sm:$0xf]
      %v239 = vld [vmem:[%s230 + $0x20] sm:$0xf]
      %v240 = vld [vmem:[%s230 + $0x24] sm:$0xf]
      %v241 = vld [vmem:[%s230 + $0x28] sm:$0xf]
      %v242 = vld [vmem:[%s230 + $0x2c] sm:$0xf]
      %v243 = vld [vmem:[%s230 + $0x30] sm:$0xf]
      %v244 = vld [vmem:[%s230 + $0x34] sm:$0xf]
      %v277 = vunpack.c.l.b16 %v174
      %v278 = vunpack.c.l.b16 %v175
      %v279 = vunpack.c.l.b16 %v176
      %v280 = vunpack.c.l.b16 %v177
      %v281 = vunpack.c.l.b16 %v178
      %v282 = vunpack.c.l.b16 %v179
      %v283 = vunpack.c.l.b16 %v180
      %v284 = vunpack.c.l.b16 %v181
      %v285 = vunpack.c.l.b16 %v182
      %v286 = vunpack.c.l.b16 %v183
      %v287 = vunpack.c.l.b16 %v184
      %v288 = vunpack.c.l.b16 %v185
      %v289 = vunpack.c.l.b16 %v186
      %v290 = vunpack.c.l.b16 %v187
      %v291 = vunpack.c.l.b16 %v188
      %v292 = vunpack.c.l.b16 %v189
      %v293 = vunpack.c.l.b16 %v190
      %v294 = vunpack.c.l.b16 %v191
      %v295 = vunpack.c.l.b16 %v192
      %v296 = vunpack.c.l.b16 %v193
      %v297 = vunpack.c.l.b16 %v194
      %v298 = vunpack.c.l.b16 %v195
      %v299 = vunpack.c.l.b16 %v196
      %v300 = vunpack.c.l.b16 %v197
      %v301 = vunpack.c.l.b16 %v198
      %v302 = vunpack.c.l.b16 %v199
      %v303 = vunpack.c.l.b16 %v200
      %v304 = vunpack.c.l.b16 %v201
      %v305 = vunpack.c.l.b16 %v202
      %v306 = vunpack.c.l.b16 %v203
      %v307 = vunpack.c.l.b16 %v204
      %v308 = vunpack.c.l.b16 %v205
      %v309 = vpack.c.b16 %v278, %v277
      %v310 = vpack.c.b16 %v280, %v279
      %v311 = vpack.c.b16 %v282, %v281
      %v312 = vpack.c.b16 %v284, %v283
      %v313 = vpack.c.b16 %v286, %v285
      %v314 = vpack.c.b16 %v288, %v287
      %v315 = vpack.c.b16 %v290, %v289
      %v316 = vpack.c.b16 %v292, %v291
      %v317 = vpack.c.b16 %v294, %v293
      %v318 = vpack.c.b16 %v296, %v295
      %v319 = vpack.c.b16 %v298, %v297
      %v320 = vpack.c.b16 %v300, %v299
      %v321 = vpack.c.b16 %v302, %v301
      %v322 = vpack.c.b16 %v304, %v303
      %v323 = vpack.c.b16 %v306, %v305
      %v324 = vpack.c.b16 %v308, %v307
      %v339 = vunpack.c.l.b16 %v231
      %v340 = vunpack.c.l.b16 %v232
      %v341 = vunpack.c.l.b16 %v233
      %v342 = vunpack.c.l.b16 %v234
      %v343 = vunpack.c.l.b16 %v235
      %v344 = vunpack.c.l.b16 %v236
      %v345 = vunpack.c.l.b16 %v237
      %v346 = vunpack.c.l.b16 %v238
      %v347 = vunpack.c.l.b16 %v239
      %v348 = vunpack.c.l.b16 %v240
      %v349 = vunpack.c.l.b16 %v241
      %v350 = vunpack.c.l.b16 %v242
      %v351 = vunpack.c.l.b16 %v243
      %v352 = vunpack.c.l.b16 %v244
      %v353 = vpack.c.b16 %v340, %v339
      %v354 = vpack.c.b16 %v342, %v341
      %v355 = vpack.c.b16 %v344, %v343
      %v356 = vpack.c.b16 %v346, %v345
      %v357 = vpack.c.b16 %v348, %v347
      %v358 = vpack.c.b16 %v350, %v349
      %v359 = vpack.c.b16 %v352, %v351
      %vm367 = vcmask 916480
      %v369 = vsel %vm367, %v309, 0
      %v372 = vsel %vm367, %v310, 0
      %v375 = vsel %vm367, %v311, 0
      %v378 = vsel %vm367, %v312, 0
      %v381 = vsel %vm367, %v313, 0
      %v384 = vsel %vm367, %v314, 0
      %v387 = vsel %vm367, %v315, 0
      %v390 = vsel %vm367, %v316, 0
      %v393 = vsel %vm367, %v317, 0
      %v396 = vsel %vm367, %v318, 0
      %v399 = vsel %vm367, %v319, 0
      %v402 = vsel %vm367, %v320, 0
      %v405 = vsel %vm367, %v321, 0
      %v408 = vsel %vm367, %v322, 0
      %v411 = vsel %vm367, %v323, 0
      %v414 = vsel %vm367, %v324, 0
      %416 = vmatpush.bf16.msra.mxu0 0
      %417 = vmatpush.bf16.msra.mxu0 %v359
      %418 = vmatpush.bf16.msra.mxu0 %v358
      %419 = vmatpush.bf16.msra.mxu0 %v357
      %420 = vmatpush.bf16.msra.mxu0 %v356
      %421 = vmatpush.bf16.msra.mxu0 %v355
      %422 = vmatpush.bf16.msra.mxu0 %v354
      %423 = vmatpush.bf16.msra.mxu0 %v353
      %424 = vmatmul.bf16.gmra.mxu0 %v369
      %v425 = vpop.f32.mrf.mxu0
      %v426 = vadd.f32 0.0, %v425
      %v427 = vpop.f32.mrf.mxu0
      %v428 = vadd.f32 0.0, %v427
      %429 = vmatmul.bf16.gmra.mxu0 %v372
      %v430 = vpop.f32.mrf.mxu0
      %v431 = vadd.f32 0.0, %v430
      %v432 = vpop.f32.mrf.mxu0
      %v433 = vadd.f32 0.0, %v432
      %434 = vmatmul.bf16.gmra.mxu0 %v375
      %v435 = vpop.f32.mrf.mxu0
      %v436 = vadd.f32 0.0, %v435
      %v437 = vpop.f32.mrf.mxu0
      %v438 = vadd.f32 0.0, %v437
      %439 = vmatmul.bf16.gmra.mxu0 %v378
      %v440 = vpop.f32.mrf.mxu0
      %v441 = vadd.f32 0.0, %v440
      %v442 = vpop.f32.mrf.mxu0
      %v443 = vadd.f32 0.0, %v442
      %444 = vmatmul.bf16.gmra.mxu0 %v381
      %v445 = vpop.f32.mrf.mxu0
      %v446 = vadd.f32 0.0, %v445
      %v447 = vpop.f32.mrf.mxu0
      %v448 = vadd.f32 0.0, %v447
      %449 = vmatmul.bf16.gmra.mxu0 %v384
      %v450 = vpop.f32.mrf.mxu0
      %v451 = vadd.f32 0.0, %v450
      %v452 = vpop.f32.mrf.mxu0
      %v453 = vadd.f32 0.0, %v452
      %454 = vmatmul.bf16.gmra.mxu0 %v387
      %v455 = vpop.f32.mrf.mxu0
      %v456 = vadd.f32 0.0, %v455
      %v457 = vpop.f32.mrf.mxu0
      %v458 = vadd.f32 0.0, %v457
      %459 = vmatmul.bf16.gmra.mxu0 %v390
      %v460 = vpop.f32.mrf.mxu0
      %v461 = vadd.f32 0.0, %v460
      %v462 = vpop.f32.mrf.mxu0
      %v463 = vadd.f32 0.0, %v462
      %464 = vmatmul.bf16.gmra.mxu0 %v393
      %v465 = vpop.f32.mrf.mxu0
      %v466 = vadd.f32 0.0, %v465
      %v467 = vpop.f32.mrf.mxu0
      %v468 = vadd.f32 0.0, %v467
      %469 = vmatmul.bf16.gmra.mxu0 %v396
      %v470 = vpop.f32.mrf.mxu0
      %v471 = vadd.f32 0.0, %v470
      %v472 = vpop.f32.mrf.mxu0
      %v473 = vadd.f32 0.0, %v472
      %474 = vmatmul.bf16.gmra.mxu0 %v399
      %v475 = vpop.f32.mrf.mxu0
      %v476 = vadd.f32 0.0, %v475
      %v477 = vpop.f32.mrf.mxu0
      %v478 = vadd.f32 0.0, %v477
      %479 = vmatmul.bf16.gmra.mxu0 %v402
      %v480 = vpop.f32.mrf.mxu0
      %v481 = vadd.f32 0.0, %v480
      %v482 = vpop.f32.mrf.mxu0
      %v483 = vadd.f32 0.0, %v482
      %484 = vmatmul.bf16.gmra.mxu0 %v405
      %v485 = vpop.f32.mrf.mxu0
      %v486 = vadd.f32 0.0, %v485
      %v487 = vpop.f32.mrf.mxu0
      %v488 = vadd.f32 0.0, %v487
      %489 = vmatmul.bf16.gmra.mxu0 %v408
      %v490 = vpop.f32.mrf.mxu0
      %v491 = vadd.f32 0.0, %v490
      %v492 = vpop.f32.mrf.mxu0
      %v493 = vadd.f32 0.0, %v492
      %494 = vmatmul.bf16.gmra.mxu0 %v411
      %v495 = vpop.f32.mrf.mxu0
      %v496 = vadd.f32 0.0, %v495
      %v497 = vpop.f32.mrf.mxu0
      %v498 = vadd.f32 0.0, %v497
      %499 = vmatmul.bf16.gmra.mxu0 %v414
      %v500 = vpop.f32.mrf.mxu0
      %v501 = vadd.f32 0.0, %v500
      %v502 = vpop.f32.mrf.mxu0
      %v503 = vadd.f32 0.0, %v502
      %504 = vdwg.mxu0
      %v507 = vunpack.c.l.b16 %v172
      %v508 = vunpack.c.l.b16 %v173
      %v509 = vpack.c.b16 %v508, %v507
      %v524 = vunpack.c.l.b16 %v216
      %v525 = vunpack.c.l.b16 %v217
      %v526 = vunpack.c.l.b16 %v218
      %v527 = vunpack.c.l.b16 %v219
      %v528 = vunpack.c.l.b16 %v220
      %v529 = vunpack.c.l.b16 %v221
      %v530 = vunpack.c.l.b16 %v222
      %v531 = vunpack.c.l.b16 %v223
      %v532 = vunpack.c.l.b16 %v224
      %v533 = vunpack.c.l.b16 %v225
      %v534 = vunpack.c.l.b16 %v226
      %v535 = vunpack.c.l.b16 %v227
      %v536 = vunpack.c.l.b16 %v228
      %v537 = vunpack.c.l.b16 %v229
      %v538 = vpack.c.b16 %v525, %v524
      %v539 = vpack.c.b16 %v527, %v526
      %v540 = vpack.c.b16 %v529, %v528
      %v541 = vpack.c.b16 %v531, %v530
      %v542 = vpack.c.b16 %v533, %v532
      %v543 = vpack.c.b16 %v535, %v534
      %v544 = vpack.c.b16 %v537, %v536
      %v553 = vsel %vm367, %v509, 0
      %555 = vmatpush.bf16.msra.mxu0 0
      %556 = vmatpush.bf16.msra.mxu0 %v544
      %557 = vmatpush.bf16.msra.mxu0 %v543
      %558 = vmatpush.bf16.msra.mxu0 %v542
      %559 = vmatpush.bf16.msra.mxu0 %v541
      %560 = vmatpush.bf16.msra.mxu0 %v540
      %561 = vmatpush.bf16.msra.mxu0 %v539
      %562 = vmatpush.bf16.msra.mxu0 %v538
      %563 = vmatmul.bf16.gmra.mxu0 %v553
      %v564 = vpop.f32.mrf.mxu0
      %v565 = vadd.f32 %v426, %v564
      %v566 = vpop.f32.mrf.mxu0
      %v567 = vadd.f32 %v428, %v566
      %568 = vmatmul.bf16.gmra.mxu0 %v369
      %v569 = vpop.f32.mrf.mxu0
      %v570 = vadd.f32 %v431, %v569
      %v571 = vpop.f32.mrf.mxu0
      %v572 = vadd.f32 %v433, %v571
      %573 = vmatmul.bf16.gmra.mxu0 %v372
      %v574 = vpop.f32.mrf.mxu0
      %v575 = vadd.f32 %v436, %v574
      %v576 = vpop.f32.mrf.mxu0
      %v577 = vadd.f32 %v438, %v576
      %578 = vmatmul.bf16.gmra.mxu0 %v375
      %v579 = vpop.f32.mrf.mxu0
      %v580 = vadd.f32 %v441, %v579
      %v581 = vpop.f32.mrf.mxu0
      %v582 = vadd.f32 %v443, %v581
      %583 = vmatmul.bf16.gmra.mxu0 %v378
      %v584 = vpop.f32.mrf.mxu0
      %v585 = vadd.f32 %v446, %v584
      %v586 = vpop.f32.mrf.mxu0
      %v587 = vadd.f32 %v448, %v586
      %588 = vmatmul.bf16.gmra.mxu0 %v381
      %v589 = vpop.f32.mrf.mxu0
      %v590 = vadd.f32 %v451, %v589
      %v591 = vpop.f32.mrf.mxu0
      %v592 = vadd.f32 %v453, %v591
      %593 = vmatmul.bf16.gmra.mxu0 %v384
      %v594 = vpop.f32.mrf.mxu0
      %v595 = vadd.f32 %v456, %v594
      %v596 = vpop.f32.mrf.mxu0
      %v597 = vadd.f32 %v458, %v596
      %598 = vmatmul.bf16.gmra.mxu0 %v387
      %v599 = vpop.f32.mrf.mxu0
      %v600 = vadd.f32 %v461, %v599
      %v601 = vpop.f32.mrf.mxu0
      %v602 = vadd.f32 %v463, %v601
      %603 = vmatmul.bf16.gmra.mxu0 %v390
      %v604 = vpop.f32.mrf.mxu0
      %v605 = vadd.f32 %v466, %v604
      %v606 = vpop.f32.mrf.mxu0
      %v607 = vadd.f32 %v468, %v606
      %608 = vmatmul.bf16.gmra.mxu0 %v393
      %v609 = vpop.f32.mrf.mxu0
      %v610 = vadd.f32 %v471, %v609
      %v611 = vpop.f32.mrf.mxu0
      %v612 = vadd.f32 %v473, %v611
      %613 = vmatmul.bf16.gmra.mxu0 %v396
      %v614 = vpop.f32.mrf.mxu0
      %v615 = vadd.f32 %v476, %v614
      %v616 = vpop.f32.mrf.mxu0
      %v617 = vadd.f32 %v478, %v616
      %618 = vmatmul.bf16.gmra.mxu0 %v399
      %v619 = vpop.f32.mrf.mxu0
      %v620 = vadd.f32 %v481, %v619
      %v621 = vpop.f32.mrf.mxu0
      %v622 = vadd.f32 %v483, %v621
      %623 = vmatmul.bf16.gmra.mxu0 %v402
      %v624 = vpop.f32.mrf.mxu0
      %v625 = vadd.f32 %v486, %v624
      %v626 = vpop.f32.mrf.mxu0
      %v627 = vadd.f32 %v488, %v626
      %628 = vmatmul.bf16.gmra.mxu0 %v405
      %v629 = vpop.f32.mrf.mxu0
      %v630 = vadd.f32 %v491, %v629
      %v631 = vpop.f32.mrf.mxu0
      %v632 = vadd.f32 %v493, %v631
      %633 = vmatmul.bf16.gmra.mxu0 %v408
      %v634 = vpop.f32.mrf.mxu0
      %v635 = vadd.f32 %v496, %v634
      %v636 = vpop.f32.mrf.mxu0
      %v637 = vadd.f32 %v498, %v636
      %638 = vmatmul.bf16.gmra.mxu0 %v411
      %v639 = vpop.f32.mrf.mxu0
      %v640 = vadd.f32 %v501, %v639
      %v641 = vpop.f32.mrf.mxu0
      %v642 = vadd.f32 %v503, %v641
      %643 = vdwg.mxu0
      %s644 = scalar_lea.vmem %s1, 112
      %v645 = vld [vmem:[%s644] sm:$0xf]
      %v646 = vld [vmem:[%s644 + $0x4] sm:$0xf]
      %v647 = vld [vmem:[%s644 + $0x8] sm:$0xf]
      %v648 = vld [vmem:[%s644 + $0xc] sm:$0xf]
      %v649 = vld [vmem:[%s644 + $0x10] sm:$0xf]
      %v650 = vld [vmem:[%s644 + $0x14] sm:$0xf]
      %v651 = vld [vmem:[%s644 + $0x18] sm:$0xf]
      %v652 = vld [vmem:[%s644 + $0x1c] sm:$0xf]
      %v653 = vld [vmem:[%s644 + $0x20] sm:$0xf]
      %v654 = vld [vmem:[%s644 + $0x24] sm:$0xf]
      %v655 = vld [vmem:[%s644 + $0x28] sm:$0xf]
      %v656 = vld [vmem:[%s644 + $0x2c] sm:$0xf]
      %v657 = vld [vmem:[%s644 + $0x30] sm:$0xf]
      %v658 = vld [vmem:[%s644 + $0x34] sm:$0xf]
      %v661 = vunpack.c.l.b16 %v206
      %v662 = vunpack.c.l.b16 %v207
      %v663 = vpack.c.b16 %v662, %v661
      %v678 = vunpack.c.l.b16 %v645
      %v679 = vunpack.c.l.b16 %v646
      %v680 = vunpack.c.l.b16 %v647
      %v681 = vunpack.c.l.b16 %v648
      %v682 = vunpack.c.l.b16 %v649
      %v683 = vunpack.c.l.b16 %v650
      %v684 = vunpack.c.l.b16 %v651
      %v685 = vunpack.c.l.b16 %v652
      %v686 = vunpack.c.l.b16 %v653
      %v687 = vunpack.c.l.b16 %v654
      %v688 = vunpack.c.l.b16 %v655
      %v689 = vunpack.c.l.b16 %v656
      %v690 = vunpack.c.l.b16 %v657
      %v691 = vunpack.c.l.b16 %v658
      %v692 = vpack.c.b16 %v679, %v678
      %v693 = vpack.c.b16 %v681, %v680
      %v694 = vpack.c.b16 %v683, %v682
      %v695 = vpack.c.b16 %v685, %v684
      %v696 = vpack.c.b16 %v687, %v686
      %v697 = vpack.c.b16 %v689, %v688
      %v698 = vpack.c.b16 %v691, %v690
      %v707 = vsel %vm367, %v663, 0
      %709 = vmatpush.bf16.msra.mxu0 0
      %710 = vmatpush.bf16.msra.mxu0 %v698
      %711 = vmatpush.bf16.msra.mxu0 %v697
      %712 = vmatpush.bf16.msra.mxu0 %v696
      %713 = vmatpush.bf16.msra.mxu0 %v695
      %714 = vmatpush.bf16.msra.mxu0 %v694
      %715 = vmatpush.bf16.msra.mxu0 %v693
      %716 = vmatpush.bf16.msra.mxu0 %v692
      %717 = vmatmul.bf16.gmra.mxu0 %v372
      %v718 = vpop.f32.mrf.mxu0
      %v719 = vadd.f32 0.0, %v718
      %v720 = vpop.f32.mrf.mxu0
      %v721 = vadd.f32 0.0, %v720
      %722 = vmatmul.bf16.gmra.mxu0 %v375
      %v723 = vpop.f32.mrf.mxu0
      %v724 = vadd.f32 0.0, %v723
      %v725 = vpop.f32.mrf.mxu0
      %v726 = vadd.f32 0.0, %v725
      %727 = vmatmul.bf16.gmra.mxu0 %v378
      %v728 = vpop.f32.mrf.mxu0
      %v729 = vadd.f32 0.0, %v728
      %v730 = vpop.f32.mrf.mxu0
      %v731 = vadd.f32 0.0, %v730
      %732 = vmatmul.bf16.gmra.mxu0 %v381
      %v733 = vpop.f32.mrf.mxu0
      %v734 = vadd.f32 0.0, %v733
      %v735 = vpop.f32.mrf.mxu0
      %v736 = vadd.f32 0.0, %v735
      %737 = vmatmul.bf16.gmra.mxu0 %v384
      %v738 = vpop.f32.mrf.mxu0
      %v739 = vadd.f32 0.0, %v738
      %v740 = vpop.f32.mrf.mxu0
      %v741 = vadd.f32 0.0, %v740
      %742 = vmatmul.bf16.gmra.mxu0 %v387
      %v743 = vpop.f32.mrf.mxu0
      %v744 = vadd.f32 0.0, %v743
      %v745 = vpop.f32.mrf.mxu0
      %v746 = vadd.f32 0.0, %v745
      %747 = vmatmul.bf16.gmra.mxu0 %v390
      %v748 = vpop.f32.mrf.mxu0
      %v749 = vadd.f32 0.0, %v748
      %v750 = vpop.f32.mrf.mxu0
      %v751 = vadd.f32 0.0, %v750
      %752 = vmatmul.bf16.gmra.mxu0 %v393
      %v753 = vpop.f32.mrf.mxu0
      %v754 = vadd.f32 0.0, %v753
      %v755 = vpop.f32.mrf.mxu0
      %v756 = vadd.f32 0.0, %v755
      %757 = vmatmul.bf16.gmra.mxu0 %v396
      %v758 = vpop.f32.mrf.mxu0
      %v759 = vadd.f32 0.0, %v758
      %v760 = vpop.f32.mrf.mxu0
      %v761 = vadd.f32 0.0, %v760
      %762 = vmatmul.bf16.gmra.mxu0 %v399
      %v763 = vpop.f32.mrf.mxu0
      %v764 = vadd.f32 0.0, %v763
      %v765 = vpop.f32.mrf.mxu0
      %v766 = vadd.f32 0.0, %v765
      %767 = vmatmul.bf16.gmra.mxu0 %v402
      %v768 = vpop.f32.mrf.mxu0
      %v769 = vadd.f32 0.0, %v768
      %v770 = vpop.f32.mrf.mxu0
      %v771 = vadd.f32 0.0, %v770
      %772 = vmatmul.bf16.gmra.mxu0 %v405
      %v773 = vpop.f32.mrf.mxu0
      %v774 = vadd.f32 0.0, %v773
      %v775 = vpop.f32.mrf.mxu0
      %v776 = vadd.f32 0.0, %v775
      %777 = vmatmul.bf16.gmra.mxu0 %v408
      %v778 = vpop.f32.mrf.mxu0
      %v779 = vadd.f32 0.0, %v778
      %v780 = vpop.f32.mrf.mxu0
      %v781 = vadd.f32 0.0, %v780
      %782 = vmatmul.bf16.gmra.mxu0 %v411
      %v783 = vpop.f32.mrf.mxu0
      %v784 = vadd.f32 0.0, %v783
      %v785 = vpop.f32.mrf.mxu0
      %v786 = vadd.f32 0.0, %v785
      %787 = vmatmul.bf16.gmra.mxu0 %v414
      %v788 = vpop.f32.mrf.mxu0
      %v789 = vadd.f32 0.0, %v788
      %v790 = vpop.f32.mrf.mxu0
      %v791 = vadd.f32 0.0, %v790
      %792 = vmatmul.bf16.gmra.mxu0 %v707
      %v793 = vpop.f32.mrf.mxu0
      %v794 = vadd.f32 0.0, %v793
      %v795 = vpop.f32.mrf.mxu0
      %v796 = vadd.f32 0.0, %v795
      %797 = vdwg.mxu0
      %v798 = vadd.f32 %v565, %v719
      %v799 = vadd.f32 %v567, %v721
      %v800 = vadd.f32 %v570, %v724
      %v801 = vadd.f32 %v572, %v726
      %v802 = vadd.f32 %v575, %v729
      %v803 = vadd.f32 %v577, %v731
      %v804 = vadd.f32 %v580, %v734
      %v805 = vadd.f32 %v582, %v736
      %v806 = vadd.f32 %v585, %v739
      %v807 = vadd.f32 %v587, %v741
      %v808 = vadd.f32 %v590, %v744
      %v809 = vadd.f32 %v592, %v746
      %v810 = vadd.f32 %v595, %v749
      %v811 = vadd.f32 %v597, %v751
      %v812 = vadd.f32 %v600, %v754
      %v813 = vadd.f32 %v602, %v756
      %v814 = vadd.f32 %v605, %v759
      %v815 = vadd.f32 %v607, %v761
      %v816 = vadd.f32 %v610, %v764
      %v817 = vadd.f32 %v612, %v766
      %v818 = vadd.f32 %v615, %v769
      %v819 = vadd.f32 %v617, %v771
      %v820 = vadd.f32 %v620, %v774
      %v821 = vadd.f32 %v622, %v776
      %v822 = vadd.f32 %v625, %v779
      %v823 = vadd.f32 %v627, %v781
      %v824 = vadd.f32 %v630, %v784
      %v825 = vadd.f32 %v632, %v786
      %v826 = vadd.f32 %v635, %v789
      %v827 = vadd.f32 %v637, %v791
      %v828 = vadd.f32 %v640, %v794
      %v829 = vadd.f32 %v642, %v796
      %s830 = scalar_lea.vmem %s1, 168
      %v831 = vld [vmem:[%s830] sm:$0xf]
      %v832 = vld [vmem:[%s830 + $0x4] sm:$0xf]
      %v833 = vld [vmem:[%s830 + $0x8] sm:$0xf]
      %v834 = vld [vmem:[%s830 + $0xc] sm:$0xf]
      %v835 = vld [vmem:[%s830 + $0x10] sm:$0xf]
      %v836 = vld [vmem:[%s830 + $0x14] sm:$0xf]
      %v837 = vld [vmem:[%s830 + $0x18] sm:$0xf]
      %v838 = vld [vmem:[%s830 + $0x1c] sm:$0xf]
      %v839 = vld [vmem:[%s830 + $0x20] sm:$0xf]
      %v840 = vld [vmem:[%s830 + $0x24] sm:$0xf]
      %v841 = vld [vmem:[%s830 + $0x28] sm:$0xf]
      %v842 = vld [vmem:[%s830 + $0x2c] sm:$0xf]
      %v843 = vld [vmem:[%s830 + $0x30] sm:$0xf]
      %v844 = vld [vmem:[%s830 + $0x34] sm:$0xf]
      %v847 = vunpack.c.l.b16 %v208
      %v848 = vunpack.c.l.b16 %v209
      %v849 = vpack.c.b16 %v848, %v847
      %v864 = vunpack.c.l.b16 %v831
      %v865 = vunpack.c.l.b16 %v832
      %v866 = vunpack.c.l.b16 %v833
      %v867 = vunpack.c.l.b16 %v834
      %v868 = vunpack.c.l.b16 %v835
      %v869 = vunpack.c.l.b16 %v836
      %v870 = vunpack.c.l.b16 %v837
      %v871 = vunpack.c.l.b16 %v838
      %v872 = vunpack.c.l.b16 %v839
      %v873 = vunpack.c.l.b16 %v840
      %v874 = vunpack.c.l.b16 %v841
      %v875 = vunpack.c.l.b16 %v842
      %v876 = vunpack.c.l.b16 %v843
      %v877 = vunpack.c.l.b16 %v844
      %v878 = vpack.c.b16 %v865, %v864
      %v879 = vpack.c.b16 %v867, %v866
      %v880 = vpack.c.b16 %v869, %v868
      %v881 = vpack.c.b16 %v871, %v870
      %v882 = vpack.c.b16 %v873, %v872
      %v883 = vpack.c.b16 %v875, %v874
      %v884 = vpack.c.b16 %v877, %v876
      %v893 = vsel %vm367, %v849, 0
      %895 = vmatpush.bf16.msra.mxu0 0
      %896 = vmatpush.bf16.msra.mxu0 %v884
      %897 = vmatpush.bf16.msra.mxu0 %v883
      %898 = vmatpush.bf16.msra.mxu0 %v882
      %899 = vmatpush.bf16.msra.mxu0 %v881
      %900 = vmatpush.bf16.msra.mxu0 %v880
      %901 = vmatpush.bf16.msra.mxu0 %v879
      %902 = vmatpush.bf16.msra.mxu0 %v878
      %903 = vmatmul.bf16.gmra.mxu0 %v375
      %v904 = vpop.f32.mrf.mxu0
      %v905 = vadd.f32 0.0, %v904
      %v906 = vpop.f32.mrf.mxu0
      %v907 = vadd.f32 0.0, %v906
      %908 = vmatmul.bf16.gmra.mxu0 %v378
      %v909 = vpop.f32.mrf.mxu0
      %v910 = vadd.f32 0.0, %v909
      %v911 = vpop.f32.mrf.mxu0
      %v912 = vadd.f32 0.0, %v911
      %913 = vmatmul.bf16.gmra.mxu0 %v381
      %v914 = vpop.f32.mrf.mxu0
      %v915 = vadd.f32 0.0, %v914
      %v916 = vpop.f32.mrf.mxu0
      %v917 = vadd.f32 0.0, %v916
      %918 = vmatmul.bf16.gmra.mxu0 %v384
      %v919 = vpop.f32.mrf.mxu0
      %v920 = vadd.f32 0.0, %v919
      %v921 = vpop.f32.mrf.mxu0
      %v922 = vadd.f32 0.0, %v921
      %923 = vmatmul.bf16.gmra.mxu0 %v387
      %v924 = vpop.f32.mrf.mxu0
      %v925 = vadd.f32 0.0, %v924
      %v926 = vpop.f32.mrf.mxu0
      %v927 = vadd.f32 0.0, %v926
      %928 = vmatmul.bf16.gmra.mxu0 %v390
      %v929 = vpop.f32.mrf.mxu0
      %v930 = vadd.f32 0.0, %v929
      %v931 = vpop.f32.mrf.mxu0
      %v932 = vadd.f32 0.0, %v931
      %933 = vmatmul.bf16.gmra.mxu0 %v393
      %v934 = vpop.f32.mrf.mxu0
      %v935 = vadd.f32 0.0, %v934
      %v936 = vpop.f32.mrf.mxu0
      %v937 = vadd.f32 0.0, %v936
      %938 = vmatmul.bf16.gmra.mxu0 %v396
      %v939 = vpop.f32.mrf.mxu0
      %v940 = vadd.f32 0.0, %v939
      %v941 = vpop.f32.mrf.mxu0
      %v942 = vadd.f32 0.0, %v941
      %943 = vmatmul.bf16.gmra.mxu0 %v399
      %v944 = vpop.f32.mrf.mxu0
      %v945 = vadd.f32 0.0, %v944
      %v946 = vpop.f32.mrf.mxu0
      %v947 = vadd.f32 0.0, %v946
      %948 = vmatmul.bf16.gmra.mxu0 %v402
      %v949 = vpop.f32.mrf.mxu0
      %v950 = vadd.f32 0.0, %v949
      %v951 = vpop.f32.mrf.mxu0
      %v952 = vadd.f32 0.0, %v951
      %953 = vmatmul.bf16.gmra.mxu0 %v405
      %v954 = vpop.f32.mrf.mxu0
      %v955 = vadd.f32 0.0, %v954
      %v956 = vpop.f32.mrf.mxu0
      %v957 = vadd.f32 0.0, %v956
      %958 = vmatmul.bf16.gmra.mxu0 %v408
      %v959 = vpop.f32.mrf.mxu0
      %v960 = vadd.f32 0.0, %v959
      %v961 = vpop.f32.mrf.mxu0
      %v962 = vadd.f32 0.0, %v961
      %963 = vmatmul.bf16.gmra.mxu0 %v411
      %v964 = vpop.f32.mrf.mxu0
      %v965 = vadd.f32 0.0, %v964
      %v966 = vpop.f32.mrf.mxu0
      %v967 = vadd.f32 0.0, %v966
      %968 = vmatmul.bf16.gmra.mxu0 %v414
      %v969 = vpop.f32.mrf.mxu0
      %v970 = vadd.f32 0.0, %v969
      %v971 = vpop.f32.mrf.mxu0
      %v972 = vadd.f32 0.0, %v971
      %973 = vmatmul.bf16.gmra.mxu0 %v707
      %v974 = vpop.f32.mrf.mxu0
      %v975 = vadd.f32 0.0, %v974
      %v976 = vpop.f32.mrf.mxu0
      %v977 = vadd.f32 0.0, %v976
      %978 = vmatmul.bf16.gmra.mxu0 %v893
      %v979 = vpop.f32.mrf.mxu0
      %v980 = vadd.f32 0.0, %v979
      %v981 = vpop.f32.mrf.mxu0
      %v982 = vadd.f32 0.0, %v981
      %983 = vdwg.mxu0
      %v984 = vadd.f32 %v798, %v905
      %v985 = vadd.f32 %v799, %v907
      %v986 = vadd.f32 %v800, %v910
      %v987 = vadd.f32 %v801, %v912
      %v988 = vadd.f32 %v802, %v915
      %v989 = vadd.f32 %v803, %v917
      %v990 = vadd.f32 %v804, %v920
      %v991 = vadd.f32 %v805, %v922
      %v992 = vadd.f32 %v806, %v925
      %v993 = vadd.f32 %v807, %v927
      %v994 = vadd.f32 %v808, %v930
      %v995 = vadd.f32 %v809, %v932
      %v996 = vadd.f32 %v810, %v935
      %v997 = vadd.f32 %v811, %v937
      %v998 = vadd.f32 %v812, %v940
      %v999 = vadd.f32 %v813, %v942
      %v1000 = vadd.f32 %v814, %v945
      %v1001 = vadd.f32 %v815, %v947
      %v1002 = vadd.f32 %v816, %v950
      %v1003 = vadd.f32 %v817, %v952
      %v1004 = vadd.f32 %v818, %v955
      %v1005 = vadd.f32 %v819, %v957
      %v1006 = vadd.f32 %v820, %v960
      %v1007 = vadd.f32 %v821, %v962
      %v1008 = vadd.f32 %v822, %v965
      %v1009 = vadd.f32 %v823, %v967
      %v1010 = vadd.f32 %v824, %v970
      %v1011 = vadd.f32 %v825, %v972
      %v1012 = vadd.f32 %v826, %v975
      %v1013 = vadd.f32 %v827, %v977
      %v1014 = vadd.f32 %v828, %v980
      %v1015 = vadd.f32 %v829, %v982
      %s1016 = scalar_lea.vmem %s1, 224
      %v1017 = vld [vmem:[%s1016] sm:$0xf]
      %v1018 = vld [vmem:[%s1016 + $0x4] sm:$0xf]
      %v1019 = vld [vmem:[%s1016 + $0x8] sm:$0xf]
      %v1020 = vld [vmem:[%s1016 + $0xc] sm:$0xf]
      %v1021 = vld [vmem:[%s1016 + $0x10] sm:$0xf]
      %v1022 = vld [vmem:[%s1016 + $0x14] sm:$0xf]
      %v1023 = vld [vmem:[%s1016 + $0x18] sm:$0xf]
      %v1024 = vld [vmem:[%s1016 + $0x1c] sm:$0xf]
      %v1025 = vld [vmem:[%s1016 + $0x20] sm:$0xf]
      %v1026 = vld [vmem:[%s1016 + $0x24] sm:$0xf]
      %v1027 = vld [vmem:[%s1016 + $0x28] sm:$0xf]
      %v1028 = vld [vmem:[%s1016 + $0x2c] sm:$0xf]
      %v1029 = vld [vmem:[%s1016 + $0x30] sm:$0xf]
      %v1030 = vld [vmem:[%s1016 + $0x34] sm:$0xf]
      %v1033 = vunpack.c.l.b16 %v210
      %v1034 = vunpack.c.l.b16 %v211
      %v1035 = vpack.c.b16 %v1034, %v1033
      %v1050 = vunpack.c.l.b16 %v1017
      %v1051 = vunpack.c.l.b16 %v1018
      %v1052 = vunpack.c.l.b16 %v1019
      %v1053 = vunpack.c.l.b16 %v1020
      %v1054 = vunpack.c.l.b16 %v1021
      %v1055 = vunpack.c.l.b16 %v1022
      %v1056 = vunpack.c.l.b16 %v1023
      %v1057 = vunpack.c.l.b16 %v1024
      %v1058 = vunpack.c.l.b16 %v1025
      %v1059 = vunpack.c.l.b16 %v1026
      %v1060 = vunpack.c.l.b16 %v1027
      %v1061 = vunpack.c.l.b16 %v1028
      %v1062 = vunpack.c.l.b16 %v1029
      %v1063 = vunpack.c.l.b16 %v1030
      %v1064 = vpack.c.b16 %v1051, %v1050
      %v1065 = vpack.c.b16 %v1053, %v1052
      %v1066 = vpack.c.b16 %v1055, %v1054
      %v1067 = vpack.c.b16 %v1057, %v1056
      %v1068 = vpack.c.b16 %v1059, %v1058
      %v1069 = vpack.c.b16 %v1061, %v1060
      %v1070 = vpack.c.b16 %v1063, %v1062
      %v1079 = vsel %vm367, %v1035, 0
      %1081 = vmatpush.bf16.msra.mxu0 0
      %1082 = vmatpush.bf16.msra.mxu0 %v1070
      %1083 = vmatpush.bf16.msra.mxu0 %v1069
      %1084 = vmatpush.bf16.msra.mxu0 %v1068
      %1085 = vmatpush.bf16.msra.mxu0 %v1067
      %1086 = vmatpush.bf16.msra.mxu0 %v1066
      %1087 = vmatpush.bf16.msra.mxu0 %v1065
      %1088 = vmatpush.bf16.msra.mxu0 %v1064
      %1089 = vmatmul.bf16.gmra.mxu0 %v378
      %v1090 = vpop.f32.mrf.mxu0
      %v1091 = vadd.f32 0.0, %v1090
      %v1092 = vpop.f32.mrf.mxu0
      %v1093 = vadd.f32 0.0, %v1092
      %1094 = vmatmul.bf16.gmra.mxu0 %v381
      %v1095 = vpop.f32.mrf.mxu0
      %v1096 = vadd.f32 0.0, %v1095
      %v1097 = vpop.f32.mrf.mxu0
      %v1098 = vadd.f32 0.0, %v1097
      %1099 = vmatmul.bf16.gmra.mxu0 %v384
      %v1100 = vpop.f32.mrf.mxu0
      %v1101 = vadd.f32 0.0, %v1100
      %v1102 = vpop.f32.mrf.mxu0
      %v1103 = vadd.f32 0.0, %v1102
      %1104 = vmatmul.bf16.gmra.mxu0 %v387
      %v1105 = vpop.f32.mrf.mxu0
      %v1106 = vadd.f32 0.0, %v1105
      %v1107 = vpop.f32.mrf.mxu0
      %v1108 = vadd.f32 0.0, %v1107
      %1109 = vmatmul.bf16.gmra.mxu0 %v390
      %v1110 = vpop.f32.mrf.mxu0
      %v1111 = vadd.f32 0.0, %v1110
      %v1112 = vpop.f32.mrf.mxu0
      %v1113 = vadd.f32 0.0, %v1112
      %1114 = vmatmul.bf16.gmra.mxu0 %v393
      %v1115 = vpop.f32.mrf.mxu0
      %v1116 = vadd.f32 0.0, %v1115
      %v1117 = vpop.f32.mrf.mxu0
      %v1118 = vadd.f32 0.0, %v1117
      %1119 = vmatmul.bf16.gmra.mxu0 %v396
      %v1120 = vpop.f32.mrf.mxu0
      %v1121 = vadd.f32 0.0, %v1120
      %v1122 = vpop.f32.mrf.mxu0
      %v1123 = vadd.f32 0.0, %v1122
      %1124 = vmatmul.bf16.gmra.mxu0 %v399
      %v1125 = vpop.f32.mrf.mxu0
      %v1126 = vadd.f32 0.0, %v1125
      %v1127 = vpop.f32.mrf.mxu0
      %v1128 = vadd.f32 0.0, %v1127
      %1129 = vmatmul.bf16.gmra.mxu0 %v402
      %v1130 = vpop.f32.mrf.mxu0
      %v1131 = vadd.f32 0.0, %v1130
      %v1132 = vpop.f32.mrf.mxu0
      %v1133 = vadd.f32 0.0, %v1132
      %1134 = vmatmul.bf16.gmra.mxu0 %v405
      %v1135 = vpop.f32.mrf.mxu0
      %v1136 = vadd.f32 0.0, %v1135
      %v1137 = vpop.f32.mrf.mxu0
      %v1138 = vadd.f32 0.0, %v1137
      %1139 = vmatmul.bf16.gmra.mxu0 %v408
      %v1140 = vpop.f32.mrf.mxu0
      %v1141 = vadd.f32 0.0, %v1140
      %v1142 = vpop.f32.mrf.mxu0
      %v1143 = vadd.f32 0.0, %v1142
      %1144 = vmatmul.bf16.gmra.mxu0 %v411
      %v1145 = vpop.f32.mrf.mxu0
      %v1146 = vadd.f32 0.0, %v1145
      %v1147 = vpop.f32.mrf.mxu0
      %v1148 = vadd.f32 0.0, %v1147
      %1149 = vmatmul.bf16.gmra.mxu0 %v414
      %v1150 = vpop.f32.mrf.mxu0
      %v1151 = vadd.f32 0.0, %v1150
      %v1152 = vpop.f32.mrf.mxu0
      %v1153 = vadd.f32 0.0, %v1152
      %1154 = vmatmul.bf16.gmra.mxu0 %v707
      %v1155 = vpop.f32.mrf.mxu0
      %v1156 = vadd.f32 0.0, %v1155
      %v1157 = vpop.f32.mrf.mxu0
      %v1158 = vadd.f32 0.0, %v1157
      %1159 = vmatmul.bf16.gmra.mxu0 %v893
      %v1160 = vpop.f32.mrf.mxu0
      %v1161 = vadd.f32 0.0, %v1160
      %v1162 = vpop.f32.mrf.mxu0
      %v1163 = vadd.f32 0.0, %v1162
      %1164 = vmatmul.bf16.gmra.mxu0 %v1079
      %v1165 = vpop.f32.mrf.mxu0
      %v1166 = vadd.f32 0.0, %v1165
      %v1167 = vpop.f32.mrf.mxu0
      %v1168 = vadd.f32 0.0, %v1167
      %1169 = vdwg.mxu0
      %v1170 = vadd.f32 %v984, %v1091
      %v1171 = vadd.f32 %v985, %v1093
      %v1172 = vadd.f32 %v986, %v1096
      %v1173 = vadd.f32 %v987, %v1098
      %v1174 = vadd.f32 %v988, %v1101
      %v1175 = vadd.f32 %v989, %v1103
      %v1176 = vadd.f32 %v990, %v1106
      %v1177 = vadd.f32 %v991, %v1108
      %v1178 = vadd.f32 %v992, %v1111
      %v1179 = vadd.f32 %v993, %v1113
      %v1180 = vadd.f32 %v994, %v1116
      %v1181 = vadd.f32 %v995, %v1118
      %v1182 = vadd.f32 %v996, %v1121
      %v1183 = vadd.f32 %v997, %v1123
      %v1184 = vadd.f32 %v998, %v1126
      %v1185 = vadd.f32 %v999, %v1128
      %v1186 = vadd.f32 %v1000, %v1131
      %v1187 = vadd.f32 %v1001, %v1133
      %v1188 = vadd.f32 %v1002, %v1136
      %v1189 = vadd.f32 %v1003, %v1138
      %v1190 = vadd.f32 %v1004, %v1141
      %v1191 = vadd.f32 %v1005, %v1143
      %v1192 = vadd.f32 %v1006, %v1146
      %v1193 = vadd.f32 %v1007, %v1148
      %v1194 = vadd.f32 %v1008, %v1151
      %v1195 = vadd.f32 %v1009, %v1153
      %v1196 = vadd.f32 %v1010, %v1156
      %v1197 = vadd.f32 %v1011, %v1158
      %v1198 = vadd.f32 %v1012, %v1161
      %v1199 = vadd.f32 %v1013, %v1163
      %v1200 = vadd.f32 %v1014, %v1166
      %v1201 = vadd.f32 %v1015, %v1168
      %s1202 = scalar_lea.vmem %s1, 280
      %v1203 = vld [vmem:[%s1202] sm:$0xf]
      %v1204 = vld [vmem:[%s1202 + $0x4] sm:$0xf]
      %v1205 = vld [vmem:[%s1202 + $0x8] sm:$0xf]
      %v1206 = vld [vmem:[%s1202 + $0xc] sm:$0xf]
      %v1207 = vld [vmem:[%s1202 + $0x10] sm:$0xf]
      %v1208 = vld [vmem:[%s1202 + $0x14] sm:$0xf]
      %v1209 = vld [vmem:[%s1202 + $0x18] sm:$0xf]
      %v1210 = vld [vmem:[%s1202 + $0x1c] sm:$0xf]
      %v1211 = vld [vmem:[%s1202 + $0x20] sm:$0xf]
      %v1212 = vld [vmem:[%s1202 + $0x24] sm:$0xf]
      %v1213 = vld [vmem:[%s1202 + $0x28] sm:$0xf]
      %v1214 = vld [vmem:[%s1202 + $0x2c] sm:$0xf]
      %v1215 = vld [vmem:[%s1202 + $0x30] sm:$0xf]
      %v1216 = vld [vmem:[%s1202 + $0x34] sm:$0xf]
      %v1219 = vunpack.c.l.b16 %v212
      %v1220 = vunpack.c.l.b16 %v213
      %v1221 = vpack.c.b16 %v1220, %v1219
      %v1236 = vunpack.c.l.b16 %v1203
      %v1237 = vunpack.c.l.b16 %v1204
      %v1238 = vunpack.c.l.b16 %v1205
      %v1239 = vunpack.c.l.b16 %v1206
      %v1240 = vunpack.c.l.b16 %v1207
      %v1241 = vunpack.c.l.b16 %v1208
      %v1242 = vunpack.c.l.b16 %v1209
      %v1243 = vunpack.c.l.b16 %v1210
      %v1244 = vunpack.c.l.b16 %v1211
      %v1245 = vunpack.c.l.b16 %v1212
      %v1246 = vunpack.c.l.b16 %v1213
      %v1247 = vunpack.c.l.b16 %v1214
      %v1248 = vunpack.c.l.b16 %v1215
      %v1249 = vunpack.c.l.b16 %v1216
      %v1250 = vpack.c.b16 %v1237, %v1236
      %v1251 = vpack.c.b16 %v1239, %v1238
      %v1252 = vpack.c.b16 %v1241, %v1240
      %v1253 = vpack.c.b16 %v1243, %v1242
      %v1254 = vpack.c.b16 %v1245, %v1244
      %v1255 = vpack.c.b16 %v1247, %v1246
      %v1256 = vpack.c.b16 %v1249, %v1248
      %v1265 = vsel %vm367, %v1221, 0
      %1267 = vmatpush.bf16.msra.mxu0 0
      %1268 = vmatpush.bf16.msra.mxu0 %v1256
      %1269 = vmatpush.bf16.msra.mxu0 %v1255
      %1270 = vmatpush.bf16.msra.mxu0 %v1254
      %1271 = vmatpush.bf16.msra.mxu0 %v1253
      %1272 = vmatpush.bf16.msra.mxu0 %v1252
      %1273 = vmatpush.bf16.msra.mxu0 %v1251
      %1274 = vmatpush.bf16.msra.mxu0 %v1250
      %1275 = vmatmul.bf16.gmra.mxu0 %v381
      %v1276 = vpop.f32.mrf.mxu0
      %v1277 = vadd.f32 0.0, %v1276
      %v1278 = vpop.f32.mrf.mxu0
      %v1279 = vadd.f32 0.0, %v1278
      %1280 = vmatmul.bf16.gmra.mxu0 %v384
      %v1281 = vpop.f32.mrf.mxu0
      %v1282 = vadd.f32 0.0, %v1281
      %v1283 = vpop.f32.mrf.mxu0
      %v1284 = vadd.f32 0.0, %v1283
      %1285 = vmatmul.bf16.gmra.mxu0 %v387
      %v1286 = vpop.f32.mrf.mxu0
      %v1287 = vadd.f32 0.0, %v1286
      %v1288 = vpop.f32.mrf.mxu0
      %v1289 = vadd.f32 0.0, %v1288
      %1290 = vmatmul.bf16.gmra.mxu0 %v390
      %v1291 = vpop.f32.mrf.mxu0
      %v1292 = vadd.f32 0.0, %v1291
      %v1293 = vpop.f32.mrf.mxu0
      %v1294 = vadd.f32 0.0, %v1293
      %1295 = vmatmul.bf16.gmra.mxu0 %v393
      %v1296 = vpop.f32.mrf.mxu0
      %v1297 = vadd.f32 0.0, %v1296
      %v1298 = vpop.f32.mrf.mxu0
      %v1299 = vadd.f32 0.0, %v1298
      %1300 = vmatmul.bf16.gmra.mxu0 %v396
      %v1301 = vpop.f32.mrf.mxu0
      %v1302 = vadd.f32 0.0, %v1301
      %v1303 = vpop.f32.mrf.mxu0
      %v1304 = vadd.f32 0.0, %v1303
      %1305 = vmatmul.bf16.gmra.mxu0 %v399
      %v1306 = vpop.f32.mrf.mxu0
      %v1307 = vadd.f32 0.0, %v1306
      %v1308 = vpop.f32.mrf.mxu0
      %v1309 = vadd.f32 0.0, %v1308
      %1310 = vmatmul.bf16.gmra.mxu0 %v402
      %v1311 = vpop.f32.mrf.mxu0
      %v1312 = vadd.f32 0.0, %v1311
      %v1313 = vpop.f32.mrf.mxu0
      %v1314 = vadd.f32 0.0, %v1313
      %1315 = vmatmul.bf16.gmra.mxu0 %v405
      %v1316 = vpop.f32.mrf.mxu0
      %v1317 = vadd.f32 0.0, %v1316
      %v1318 = vpop.f32.mrf.mxu0
      %v1319 = vadd.f32 0.0, %v1318
      %1320 = vmatmul.bf16.gmra.mxu0 %v408
      %v1321 = vpop.f32.mrf.mxu0
      %v1322 = vadd.f32 0.0, %v1321
      %v1323 = vpop.f32.mrf.mxu0
      %v1324 = vadd.f32 0.0, %v1323
      %1325 = vmatmul.bf16.gmra.mxu0 %v411
      %v1326 = vpop.f32.mrf.mxu0
      %v1327 = vadd.f32 0.0, %v1326
      %v1328 = vpop.f32.mrf.mxu0
      %v1329 = vadd.f32 0.0, %v1328
      %1330 = vmatmul.bf16.gmra.mxu0 %v414
      %v1331 = vpop.f32.mrf.mxu0
      %v1332 = vadd.f32 0.0, %v1331
      %v1333 = vpop.f32.mrf.mxu0
      %v1334 = vadd.f32 0.0, %v1333
      %1335 = vmatmul.bf16.gmra.mxu0 %v707
      %v1336 = vpop.f32.mrf.mxu0
      %v1337 = vadd.f32 0.0, %v1336
      %v1338 = vpop.f32.mrf.mxu0
      %v1339 = vadd.f32 0.0, %v1338
      %1340 = vmatmul.bf16.gmra.mxu0 %v893
      %v1341 = vpop.f32.mrf.mxu0
      %v1342 = vadd.f32 0.0, %v1341
      %v1343 = vpop.f32.mrf.mxu0
      %v1344 = vadd.f32 0.0, %v1343
      %1345 = vmatmul.bf16.gmra.mxu0 %v1079
      %v1346 = vpop.f32.mrf.mxu0
      %v1347 = vadd.f32 0.0, %v1346
      %v1348 = vpop.f32.mrf.mxu0
      %v1349 = vadd.f32 0.0, %v1348
      %1350 = vmatmul.bf16.gmra.mxu0 %v1265
      %v1351 = vpop.f32.mrf.mxu0
      %v1352 = vadd.f32 0.0, %v1351
      %v1353 = vpop.f32.mrf.mxu0
      %v1354 = vadd.f32 0.0, %v1353
      %1355 = vdwg.mxu0
      %v1356 = vadd.f32 %v1170, %v1277
      %v1357 = vadd.f32 %v1171, %v1279
      %v1358 = vadd.f32 %v1172, %v1282
      %v1359 = vadd.f32 %v1173, %v1284
      %v1360 = vadd.f32 %v1174, %v1287
      %v1361 = vadd.f32 %v1175, %v1289
      %v1362 = vadd.f32 %v1176, %v1292
      %v1363 = vadd.f32 %v1177, %v1294
      %v1364 = vadd.f32 %v1178, %v1297
      %v1365 = vadd.f32 %v1179, %v1299
      %v1366 = vadd.f32 %v1180, %v1302
      %v1367 = vadd.f32 %v1181, %v1304
      %v1368 = vadd.f32 %v1182, %v1307
      %v1369 = vadd.f32 %v1183, %v1309
      %v1370 = vadd.f32 %v1184, %v1312
      %v1371 = vadd.f32 %v1185, %v1314
      %v1372 = vadd.f32 %v1186, %v1317
      %v1373 = vadd.f32 %v1187, %v1319
      %v1374 = vadd.f32 %v1188, %v1322
      %v1375 = vadd.f32 %v1189, %v1324
      %v1376 = vadd.f32 %v1190, %v1327
      %v1377 = vadd.f32 %v1191, %v1329
      %v1378 = vadd.f32 %v1192, %v1332
      %v1379 = vadd.f32 %v1193, %v1334
      %v1380 = vadd.f32 %v1194, %v1337
      %v1381 = vadd.f32 %v1195, %v1339
      %v1382 = vadd.f32 %v1196, %v1342
      %v1383 = vadd.f32 %v1197, %v1344
      %v1384 = vadd.f32 %v1198, %v1347
      %v1385 = vadd.f32 %v1199, %v1349
      %v1386 = vadd.f32 %v1200, %v1352
      %v1387 = vadd.f32 %v1201, %v1354
      %s1388 = scalar_lea.vmem %s1, 336
      %v1389 = vld [vmem:[%s1388] sm:$0xf]
      %v1390 = vld [vmem:[%s1388 + $0x4] sm:$0xf]
      %v1391 = vld [vmem:[%s1388 + $0x8] sm:$0xf]
      %v1392 = vld [vmem:[%s1388 + $0xc] sm:$0xf]
      %v1393 = vld [vmem:[%s1388 + $0x10] sm:$0xf]
      %v1394 = vld [vmem:[%s1388 + $0x14] sm:$0xf]
      %v1395 = vld [vmem:[%s1388 + $0x18] sm:$0xf]
      %v1396 = vld [vmem:[%s1388 + $0x1c] sm:$0xf]
      %v1397 = vld [vmem:[%s1388 + $0x20] sm:$0xf]
      %v1398 = vld [vmem:[%s1388 + $0x24] sm:$0xf]
      %v1399 = vld [vmem:[%s1388 + $0x28] sm:$0xf]
      %v1400 = vld [vmem:[%s1388 + $0x2c] sm:$0xf]
      %v1401 = vld [vmem:[%s1388 + $0x30] sm:$0xf]
      %v1402 = vld [vmem:[%s1388 + $0x34] sm:$0xf]
      %v1405 = vunpack.c.l.b16 %v214
      %v1406 = vunpack.c.l.b16 %v215
      %v1407 = vpack.c.b16 %v1406, %v1405
      %v1422 = vunpack.c.l.b16 %v1389
      %v1423 = vunpack.c.l.b16 %v1390
      %v1424 = vunpack.c.l.b16 %v1391
      %v1425 = vunpack.c.l.b16 %v1392
      %v1426 = vunpack.c.l.b16 %v1393
      %v1427 = vunpack.c.l.b16 %v1394
      %v1428 = vunpack.c.l.b16 %v1395
      %v1429 = vunpack.c.l.b16 %v1396
      %v1430 = vunpack.c.l.b16 %v1397
      %v1431 = vunpack.c.l.b16 %v1398
      %v1432 = vunpack.c.l.b16 %v1399
      %v1433 = vunpack.c.l.b16 %v1400
      %v1434 = vunpack.c.l.b16 %v1401
      %v1435 = vunpack.c.l.b16 %v1402
      %v1436 = vpack.c.b16 %v1423, %v1422
      %v1437 = vpack.c.b16 %v1425, %v1424
      %v1438 = vpack.c.b16 %v1427, %v1426
      %v1439 = vpack.c.b16 %v1429, %v1428
      %v1440 = vpack.c.b16 %v1431, %v1430
      %v1441 = vpack.c.b16 %v1433, %v1432
      %v1442 = vpack.c.b16 %v1435, %v1434
      %v1451 = vsel %vm367, %v1407, 0
      %1453 = vmatpush.bf16.msra.mxu0 0
      %1454 = vmatpush.bf16.msra.mxu0 %v1442
      %1455 = vmatpush.bf16.msra.mxu0 %v1441
      %1456 = vmatpush.bf16.msra.mxu0 %v1440
      %1457 = vmatpush.bf16.msra.mxu0 %v1439
      %1458 = vmatpush.bf16.msra.mxu0 %v1438
      %1459 = vmatpush.bf16.msra.mxu0 %v1437
      %1460 = vmatpush.bf16.msra.mxu0 %v1436
      %1461 = vmatmul.bf16.gmra.mxu0 %v384
      %v1462 = vpop.f32.mrf.mxu0
      %v1463 = vadd.f32 0.0, %v1462
      %v1464 = vpop.f32.mrf.mxu0
      %v1465 = vadd.f32 0.0, %v1464
      %1466 = vmatmul.bf16.gmra.mxu0 %v387
      %v1467 = vpop.f32.mrf.mxu0
      %v1468 = vadd.f32 0.0, %v1467
      %v1469 = vpop.f32.mrf.mxu0
      %v1470 = vadd.f32 0.0, %v1469
      %1471 = vmatmul.bf16.gmra.mxu0 %v390
      %v1472 = vpop.f32.mrf.mxu0
      %v1473 = vadd.f32 0.0, %v1472
      %v1474 = vpop.f32.mrf.mxu0
      %v1475 = vadd.f32 0.0, %v1474
      %1476 = vmatmul.bf16.gmra.mxu0 %v393
      %v1477 = vpop.f32.mrf.mxu0
      %v1478 = vadd.f32 0.0, %v1477
      %v1479 = vpop.f32.mrf.mxu0
      %v1480 = vadd.f32 0.0, %v1479
      %1481 = vmatmul.bf16.gmra.mxu0 %v396
      %v1482 = vpop.f32.mrf.mxu0
      %v1483 = vadd.f32 0.0, %v1482
      %v1484 = vpop.f32.mrf.mxu0
      %v1485 = vadd.f32 0.0, %v1484
      %1486 = vmatmul.bf16.gmra.mxu0 %v399
      %v1487 = vpop.f32.mrf.mxu0
      %v1488 = vadd.f32 0.0, %v1487
      %v1489 = vpop.f32.mrf.mxu0
      %v1490 = vadd.f32 0.0, %v1489
      %1491 = vmatmul.bf16.gmra.mxu0 %v402
      %v1492 = vpop.f32.mrf.mxu0
      %v1493 = vadd.f32 0.0, %v1492
      %v1494 = vpop.f32.mrf.mxu0
      %v1495 = vadd.f32 0.0, %v1494
      %1496 = vmatmul.bf16.gmra.mxu0 %v405
      %v1497 = vpop.f32.mrf.mxu0
      %v1498 = vadd.f32 0.0, %v1497
      %v1499 = vpop.f32.mrf.mxu0
      %v1500 = vadd.f32 0.0, %v1499
      %1501 = vmatmul.bf16.gmra.mxu0 %v408
      %v1502 = vpop.f32.mrf.mxu0
      %v1503 = vadd.f32 0.0, %v1502
      %v1504 = vpop.f32.mrf.mxu0
      %v1505 = vadd.f32 0.0, %v1504
      %1506 = vmatmul.bf16.gmra.mxu0 %v411
      %v1507 = vpop.f32.mrf.mxu0
      %v1508 = vadd.f32 0.0, %v1507
      %v1509 = vpop.f32.mrf.mxu0
      %v1510 = vadd.f32 0.0, %v1509
      %1511 = vmatmul.bf16.gmra.mxu0 %v414
      %v1512 = vpop.f32.mrf.mxu0
      %v1513 = vadd.f32 0.0, %v1512
      %v1514 = vpop.f32.mrf.mxu0
      %v1515 = vadd.f32 0.0, %v1514
      %1516 = vmatmul.bf16.gmra.mxu0 %v707
      %v1517 = vpop.f32.mrf.mxu0
      %v1518 = vadd.f32 0.0, %v1517
      %v1519 = vpop.f32.mrf.mxu0
      %v1520 = vadd.f32 0.0, %v1519
      %1521 = vmatmul.bf16.gmra.mxu0 %v893
      %v1522 = vpop.f32.mrf.mxu0
      %v1523 = vadd.f32 0.0, %v1522
      %v1524 = vpop.f32.mrf.mxu0
      %v1525 = vadd.f32 0.0, %v1524
      %1526 = vmatmul.bf16.gmra.mxu0 %v1079
      %v1527 = vpop.f32.mrf.mxu0
      %v1528 = vadd.f32 0.0, %v1527
      %v1529 = vpop.f32.mrf.mxu0
      %v1530 = vadd.f32 0.0, %v1529
      %1531 = vmatmul.bf16.gmra.mxu0 %v1265
      %v1532 = vpop.f32.mrf.mxu0
      %v1533 = vadd.f32 0.0, %v1532
      %v1534 = vpop.f32.mrf.mxu0
      %v1535 = vadd.f32 0.0, %v1534
      %1536 = vmatmul.bf16.gmra.mxu0 %v1451
      %v1537 = vpop.f32.mrf.mxu0
      %v1538 = vadd.f32 0.0, %v1537
      %v1539 = vpop.f32.mrf.mxu0
      %v1540 = vadd.f32 0.0, %v1539
      %1541 = vdwg.mxu0
      %v1542 = vadd.f32 %v1356, %v1463
      %v1543 = vadd.f32 %v1357, %v1465
      %v1544 = vadd.f32 %v1358, %v1468
      %v1545 = vadd.f32 %v1359, %v1470
      %v1546 = vadd.f32 %v1360, %v1473
      %v1547 = vadd.f32 %v1361, %v1475
      %v1548 = vadd.f32 %v1362, %v1478
      %v1549 = vadd.f32 %v1363, %v1480
      %v1550 = vadd.f32 %v1364, %v1483
      %v1551 = vadd.f32 %v1365, %v1485
      %v1552 = vadd.f32 %v1366, %v1488
      %v1553 = vadd.f32 %v1367, %v1490
      %v1554 = vadd.f32 %v1368, %v1493
      %v1555 = vadd.f32 %v1369, %v1495
      %v1556 = vadd.f32 %v1370, %v1498
      %v1557 = vadd.f32 %v1371, %v1500
      %v1558 = vadd.f32 %v1372, %v1503
      %v1559 = vadd.f32 %v1373, %v1505
      %v1560 = vadd.f32 %v1374, %v1508
      %v1561 = vadd.f32 %v1375, %v1510
      %v1562 = vadd.f32 %v1376, %v1513
      %v1563 = vadd.f32 %v1377, %v1515
      %v1564 = vadd.f32 %v1378, %v1518
      %v1565 = vadd.f32 %v1379, %v1520
      %v1566 = vadd.f32 %v1380, %v1523
      %v1567 = vadd.f32 %v1381, %v1525
      %v1568 = vadd.f32 %v1382, %v1528
      %v1569 = vadd.f32 %v1383, %v1530
      %v1570 = vadd.f32 %v1384, %v1533
      %v1571 = vadd.f32 %v1385, %v1535
      %v1572 = vadd.f32 %v1386, %v1538
      %v1573 = vadd.f32 %v1387, %v1540
      %v1574 = vld [vmem:[%s2] sm:$0x1]
      %v1576 = vperm.slane %v1574, 0
      %v1578 = vadd.f32 %v1542, %v1576
      %v1579 = vadd.f32 %v1543, %v1576
      %v1580 = vadd.f32 %v1544, %v1576
      %v1581 = vadd.f32 %v1545, %v1576
      %v1582 = vadd.f32 %v1546, %v1576
      %v1583 = vadd.f32 %v1547, %v1576
      %v1584 = vadd.f32 %v1548, %v1576
      %v1585 = vadd.f32 %v1549, %v1576
      %v1586 = vadd.f32 %v1550, %v1576
      %v1587 = vadd.f32 %v1551, %v1576
      %v1588 = vadd.f32 %v1552, %v1576
      %v1589 = vadd.f32 %v1553, %v1576
      %v1590 = vadd.f32 %v1554, %v1576
      %v1591 = vadd.f32 %v1555, %v1576
      %v1592 = vadd.f32 %v1556, %v1576
      %v1593 = vadd.f32 %v1557, %v1576
      %v1594 = vadd.f32 %v1558, %v1576
      %v1595 = vadd.f32 %v1559, %v1576
      %v1596 = vadd.f32 %v1560, %v1576
      %v1597 = vadd.f32 %v1561, %v1576
      %v1598 = vadd.f32 %v1562, %v1576
      %v1599 = vadd.f32 %v1563, %v1576
      %v1600 = vadd.f32 %v1564, %v1576
      %v1601 = vadd.f32 %v1565, %v1576
      %v1602 = vadd.f32 %v1566, %v1576
      %v1603 = vadd.f32 %v1567, %v1576
      %v1604 = vadd.f32 %v1568, %v1576
      %v1605 = vadd.f32 %v1569, %v1576
      %v1606 = vadd.f32 %v1570, %v1576
      %v1607 = vadd.f32 %v1571, %v1576
      %v1608 = vadd.f32 %v1572, %v1576
      %v1609 = vadd.f32 %v1573, %v1576
      %v1610 = vtanh.pop %v1578
      %v1611 = vtanh.pop %v1579
      %v1612 = vtanh.pop %v1580
      %v1613 = vtanh.pop %v1581
      %v1614 = vtanh.pop %v1582
      %v1615 = vtanh.pop %v1583
      %v1616 = vtanh.pop %v1584
      %v1617 = vtanh.pop %v1585
      %v1618 = vtanh.pop %v1586
      %v1619 = vtanh.pop %v1587
      %v1620 = vtanh.pop %v1588
      %v1621 = vtanh.pop %v1589
      %v1622 = vtanh.pop %v1590
      %v1623 = vtanh.pop %v1591
      %v1624 = vtanh.pop %v1592
      %v1625 = vtanh.pop %v1593
      %v1626 = vtanh.pop %v1594
      %v1627 = vtanh.pop %v1595
      %v1628 = vtanh.pop %v1596
      %v1629 = vtanh.pop %v1597
      %v1630 = vtanh.pop %v1598
      %v1631 = vtanh.pop %v1599
      %v1632 = vtanh.pop %v1600
      %v1633 = vtanh.pop %v1601
      %v1634 = vtanh.pop %v1602
      %v1635 = vtanh.pop %v1603
      %v1636 = vtanh.pop %v1604
      %v1637 = vtanh.pop %v1605
      %v1638 = vtanh.pop %v1606
      %v1639 = vtanh.pop %v1607
      %v1640 = vtanh.pop %v1608
      %v1641 = vtanh.pop %v1609
      %vm1642 = vcmask 23552
      %1643 = vst.msk [vmem:[%s170] sm:$0xff] %vm1642, %v1610
      %1644 = vst.msk [vmem:[%s170 + $0x8] sm:$0xff] %vm1642, %v1611
      %1645 = vst.msk [vmem:[%s170 + $0x10] sm:$0xff] %vm1642, %v1612
      %1646 = vst.msk [vmem:[%s170 + $0x18] sm:$0xff] %vm1642, %v1613
      %1647 = vst.msk [vmem:[%s170 + $0x20] sm:$0xff] %vm1642, %v1614
      %1648 = vst.msk [vmem:[%s170 + $0x28] sm:$0xff] %vm1642, %v1615
      %1649 = vst.msk [vmem:[%s170 + $0x30] sm:$0xff] %vm1642, %v1616
      %1650 = vst.msk [vmem:[%s170 + $0x38] sm:$0xff] %vm1642, %v1617
      %1651 = vst.msk [vmem:[%s170 + $0x40] sm:$0xff] %vm1642, %v1618
      %1652 = vst.msk [vmem:[%s170 + $0x48] sm:$0xff] %vm1642, %v1619
      %1653 = vst.msk [vmem:[%s170 + $0x50] sm:$0xff] %vm1642, %v1620
      %1654 = vst.msk [vmem:[%s170 + $0x58] sm:$0xff] %vm1642, %v1621
      %1655 = vst.msk [vmem:[%s170 + $0x60] sm:$0xff] %vm1642, %v1622
      %1656 = vst.msk [vmem:[%s170 + $0x68] sm:$0xff] %vm1642, %v1623
      %1657 = vst.msk [vmem:[%s170 + $0x70] sm:$0xff] %vm1642, %v1624
      %1658 = vst.msk [vmem:[%s170 + $0x78] sm:$0xff] %vm1642, %v1625
      %1659 = vst.msk [vmem:[%s170 + $0x80] sm:$0xff] %vm1642, %v1626
      %1660 = vst.msk [vmem:[%s170 + $0x88] sm:$0xff] %vm1642, %v1627
      %1661 = vst.msk [vmem:[%s170 + $0x90] sm:$0xff] %vm1642, %v1628
      %1662 = vst.msk [vmem:[%s170 + $0x98] sm:$0xff] %vm1642, %v1629
      %1663 = vst.msk [vmem:[%s170 + $0xa0] sm:$0xff] %vm1642, %v1630
      %1664 = vst.msk [vmem:[%s170 + $0xa8] sm:$0xff] %vm1642, %v1631
      %1665 = vst.msk [vmem:[%s170 + $0xb0] sm:$0xff] %vm1642, %v1632
      %1666 = vst.msk [vmem:[%s170 + $0xb8] sm:$0xff] %vm1642, %v1633
      %1667 = vst.msk [vmem:[%s170 + $0xc0] sm:$0xff] %vm1642, %v1634
      %1668 = vst.msk [vmem:[%s170 + $0xc8] sm:$0xff] %vm1642, %v1635
      %1669 = vst.msk [vmem:[%s170 + $0xd0] sm:$0xff] %vm1642, %v1636
      %1670 = vst.msk [vmem:[%s170 + $0xd8] sm:$0xff] %vm1642, %v1637
      %1671 = vst.msk [vmem:[%s170 + $0xe0] sm:$0xff] %vm1642, %v1638
      %1672 = vst.msk [vmem:[%s170 + $0xe8] sm:$0xff] %vm1642, %v1639
      %1673 = vst.msk [vmem:[%s170 + $0xf0] sm:$0xff] %vm1642, %v1640
      %1674 = vst.msk [vmem:[%s170 + $0xf8] sm:$0xff] %vm1642, %v1641
      %p1675 = scmp.lt.s32.totalorder %s14, 1
      %s1676 = scalar_select %p1675, %s14, 1
      %s1677 = smul.addr %s1676, 32
      %s1678 = smul.addr %s1677, 8
      %s1679 = scalar_lea.vmem %s3, %s1678
      // Predicated region
      $region33: #{forward.91} parent=31 // pred_check
        %p1680 = pneg %p100
      $region34: #{forward.91} parent=31 // pred_check_branch
        %1682 = sbr.rel (%p1680) target = $region36
      $region35: #{forward.91} parent=31 // pred_region
        _
      $region36: #{forward.91} parent=31 // pred_fallthru
        _
    $region32: #{forward.91} parent=5 // pred_fallthru
      _
    %p1683 = scmp.le.s32.totalorder 2, %s9
    // Predicated region
    $region37: #{forward.91} parent=5 // pred_check
      %p1684 = pneg %p1683
    $region38: #{forward.91} parent=5 // pred_check_branch
      %1686 = sbr.rel (%p1684) target = $region40
    $region39: #{forward.91} parent=5 // pred_region
      %s1687 = ssub.s32 %s9, 2
      // Predicated region
      $region41: #{forward.91} parent=39 // pred_check
        %p1688 = pneg %p106
      $region42: #{forward.91} parent=39 // pred_check_branch
        %1690 = sbr.rel (%p1688) target = $region44
      $region43: #{forward.91} parent=39 // pred_region
        %p1691 = scmp.lt.s32.totalorder %s15, 1
        %s1692 = scalar_select %p1691, %s15, 1
        %s1693 = smul.addr %s1692, 32
        %s1694 = smul.addr %s1693, 8
        %s1695 = scalar_lea.vmem %s3, %s1694
      $region44: #{forward.91} parent=39 // pred_fallthru
        _
    $region40: #{forward.91} parent=5 // pred_fallthru
      _
  $region6: #{forward.91} parent=0 // loop_footer
    %s13 = sadd.s32 1, %s9
  $region7: #{forward.91} parent=0 // loop_footer_branch
    %8 = sbr.rel target = $region3
  $region8: #{forward.91} parent=0 // loop_exit
    _

</llo_original>
